<compile_context>
chip_gen: v7x
topology: tpu7x:2x2x1
jax: 0.10.0
libtpu: 0.0.40
codegen_flags: <defaults>
</compile_context>

<pallas_src>
import functools

import jax
import jax.numpy as jnp
from jax import lax
from jax.experimental import pallas as pl
from jax.experimental.pallas import tpu as pltpu

LANE = 128      # lane tile (last dim)
SUBLANE = 8     # sublane tile (second-to-last dim)

# Kernel gate layout [i, f, o, g], built from PyTorch's [i, f, g, o].
GATE_PERM = (0, 1, 3, 2)


def _round_up(x, m):
    return ((x + m - 1) // m) * m


# ---------------------------------------------------------------------------
# Fused kernel: 3 LSTM layers + linear head, time loop inside the body.
# One grid step == one batch tile of BT rows through the whole network.
# ---------------------------------------------------------------------------
def _fused_lstm_kernel(*refs, num_layers, seq_len, bt, hp, unroll):
    """refs layout:
         [x2d, (w_ih, w_hh, b) * num_layers, reg_w, reg_b,   # inputs
          out,                                               # output
          gx_slab, h_slab]                                   # VMEM scratch
       Shapes (padded, per batch tile):
         x2d (S*BT, In) f32; w_ih (In or HP, 4*HP) bf16; w_hh (HP, 4*HP) bf16
         b (1, 4*HP) f32; reg_w (HP, OP) bf16; reg_b (1, OP) f32
         out (S*BT, OP) f32; gx_slab (S*BT, 4*HP) f32; h_slab (S*BT, HP) f32
    """
    x_ref = refs[0]
    layer_refs = [(refs[1 + 3 * l], refs[2 + 3 * l], refs[3 + 3 * l])
                  for l in range(num_layers)]
    w_reg_ref = refs[1 + 3 * num_layers]
    b_reg_ref = refs[2 + 3 * num_layers]
    out_ref = refs[3 + 3 * num_layers]
    gx_ref = refs[4 + 3 * num_layers]
    h_ref = refs[5 + 3 * num_layers]

    for li, (w_ih_ref, w_hh_ref, b_ref) in enumerate(layer_refs):
        # ---- hoisted input projection + bias, all timesteps at once --------
        layer_in = (x_ref[...] if li == 0 else h_ref[...]).astype(jnp.bfloat16)
        gx_ref[...] = (
            jnp.dot(layer_in, w_ih_ref[...], preferred_element_type=jnp.float32)
            + b_ref[...]
        )

        # ---- serial recurrence: only h @ W_hh on the critical path ---------
        def step(t, carry):
            h_prev, c_prev = carry                     # f32 (bt, hp)
            row = pl.multiple_of(t * bt, bt)           # sublane-tile aligned
            gates = gx_ref[pl.ds(row, bt), :] + jnp.dot(
                h_prev.astype(jnp.bfloat16), w_hh_ref[...],
                preferred_element_type=jnp.float32)
            # Gate layout [i, f, o, g]: one contiguous sigmoid, one tanh.
            sig = jax.nn.sigmoid(gates[:, 0:3 * hp])
            i_g = sig[:, 0 * hp:1 * hp]
            f_g = sig[:, 1 * hp:2 * hp]
            o_g = sig[:, 2 * hp:3 * hp]
            g_g = jnp.tanh(gates[:, 3 * hp:4 * hp])
            c_new = f_g * c_prev + i_g * g_g           # f32 elementwise
            h_new = o_g * jnp.tanh(c_new)
            h_ref[pl.ds(row, bt), :] = h_new           # lane-dense VMEM store
            return h_new, c_new

        init = (jnp.zeros((bt, hp), jnp.float32),
                jnp.zeros((bt, hp), jnp.float32))
        lax.fori_loop(0, seq_len, step, init, unroll=unroll)

    # ---- fused linear head: one matmul, single lane-dense HBM writeback ----
    out_ref[...] = (
        jnp.dot(h_ref[...].astype(jnp.bfloat16), w_reg_ref[...],
                preferred_element_type=jnp.float32)
        + b_reg_ref[...]
    )


# ---------------------------------------------------------------------------
# Parameter packing into the padded, lane-aligned kernel layout
# ---------------------------------------------------------------------------
def pack_params(params):
    """Pad transposed PyTorch-layout params: each gate gets HP=round_up(H,128)
    lanes (gate order permuted to [i,f,o,g]); weights cast to bf16 for the MXU,
    biases kept f32.  Unused lanes/rows are zero so padded state stays exactly
    zero through the recurrence."""
    H = params["lstm"][0]["w_hh"].shape[0]
    HP = _round_up(H, LANE)

    def pad_gates(w, rows):
        out = jnp.zeros((rows, 4 * HP), jnp.float32)
        r = w.shape[0]
        for dst, src in enumerate(GATE_PERM):
            out = out.at[:r, dst * HP:dst * HP + H].set(
                w[:, src * H:(src + 1) * H])
        return out

    packed = {"lstm": []}
    for li, layer in enumerate(params["lstm"]):
        in_rows = layer["w_ih"].shape[0] if li == 0 else HP
        packed["lstm"].append({
            "w_ih": pad_gates(layer["w_ih"], in_rows).astype(jnp.bfloat16),
            "w_hh": pad_gates(layer["w_hh"], HP).astype(jnp.bfloat16),
            "b": pad_gates(layer["b"], 1),                       # f32
        })
    O = params["reg_w"].shape[1]
    packed["reg_w"] = (jnp.zeros((HP, O), jnp.float32)
                       .at[:H, :].set(params["reg_w"]).astype(jnp.bfloat16))
    packed["reg_b"] = params["reg_b"]                            # (1, O) f32
    return packed


# ---------------------------------------------------------------------------
# Forward
# ---------------------------------------------------------------------------
@jax.jit
def lstm_reg_forward(x, packed):
    """x: (S, B, input_size) float32 -> (S, B, output_size)."""
    S, B, In = x.shape
    BP = _round_up(B, SUBLANE)
    HP = packed["lstm"][0]["w_hh"].shape[0]
    O = packed["reg_w"].shape[1]
    OP = _round_up(O, LANE)
    num_layers = len(packed["lstm"])

    # Batch tiling: 2 "parallel" tiles when padded batch allows (v7x dual-TC).
    n_bt = 2 if (BP >= 2 * SUBLANE and BP % (2 * SUBLANE) == 0) else 1
    BT = BP // n_bt

    # Pad batch to a sublane multiple; rearrange to batch-tile-major rows
    # (row index within a tile = t*BT + b).
    xp = jnp.zeros((S, BP, In), jnp.float32).at[:, :B, :].set(x)
    x2d = xp.reshape(S, n_bt, BT, In).transpose(1, 0, 2, 3).reshape(
        n_bt * S * BT, In)

    # Lane-dense head: pad output columns to a full 128-lane tile.
    reg_w_p = jnp.zeros((HP, OP), jnp.bfloat16).at[:, :O].set(packed["reg_w"])
    reg_b_p = jnp.zeros((1, OP), jnp.float32).at[:, :O].set(packed["reg_b"])

    weight_arrays = []
    for layer in packed["lstm"]:
        weight_arrays += [layer["w_ih"], layer["w_hh"], layer["b"]]
    weight_arrays += [reg_w_p, reg_b_p]
    inputs = [x2d] + weight_arrays

    kernel = functools.partial(
        _fused_lstm_kernel,
        num_layers=num_layers, seq_len=S, bt=BT, hp=HP, unroll=min(S, 8))

    in_specs = [pl.BlockSpec((S * BT, In), lambda i: (i, 0))]
    # Weights: constant block index across the grid -> stay resident in VMEM.
    in_specs += [pl.BlockSpec(a.shape, lambda i: (0, 0)) for a in weight_arrays]

    y2d = pl.pallas_call(
        kernel,
        out_shape=jax.ShapeDtypeStruct((n_bt * S * BT, OP), jnp.float32),
        grid_spec=pltpu.PrefetchScalarGridSpec(
            num_scalar_prefetch=0,
            grid=(n_bt,),                      # batch tiles (parallel)
            in_specs=in_specs,
            out_specs=pl.BlockSpec((S * BT, OP), lambda i: (i, 0)),
            scratch_shapes=[
                pltpu.VMEM((S * BT, 4 * HP), jnp.float32),   # hoisted gates_x
                pltpu.VMEM((S * BT, HP), jnp.float32),       # layer h sequence
            ],
        ),
        compiler_params=pltpu.CompilerParams(
            dimension_semantics=("parallel",),
        ),
    )(*inputs)

    y = y2d.reshape(n_bt, S, BT, OP).transpose(1, 0, 2, 3).reshape(S, BP, OP)
    return y[:, :B, :O]


# ---------------------------------------------------------------------------
# Init (mirrors PyTorch uniform(-1/sqrt(H), 1/sqrt(H)); weights transposed)
# ---------------------------------------------------------------------------
def init_params(key, input_size, hidden_size, output_size=1, num_layers=3):
    params = {"lstm": []}
    k = 1.0 / jnp.sqrt(jnp.float32(hidden_size))
    in_sz = input_size
    for _ in range(num_layers):
        key, k1, k2, k3, k4 = jax.random.split(key, 5)
        w_ih = jax.random.uniform(k1, (in_sz, 4 * hidden_size), jnp.float32, -k, k)
        w_hh = jax.random.uniform(k2, (hidden_size, 4 * hidden_size), jnp.float32, -k, k)
        b_ih = jax.random.uniform(k3, (1, 4 * hidden_size), jnp.float32, -k, k)
        b_hh = jax.random.uniform(k4, (1, 4 * hidden_size), jnp.float32, -k, k)
        params["lstm"].append({"w_ih": w_ih, "w_hh": w_hh, "b": b_ih + b_hh})
        in_sz = hidden_size
    key, k5, k6 = jax.random.split(key, 3)
    params["reg_w"] = jax.random.uniform(k5, (hidden_size, output_size), jnp.float32, -k, k)
    params["reg_b"] = jax.random.uniform(k6, (1, output_size), jnp.float32, -k, k)
    return params


# ---------------------------------------------------------------------------
# Pure-JAX references (correctness checks only).
# matmul_dtype=bf16 mirrors the kernel's mixed-precision numerics exactly.
# ---------------------------------------------------------------------------
def _reference_forward(x, params, matmul_dtype=jnp.float32):
    def mm(a, b):
        return jnp.dot(a.astype(matmul_dtype), b.astype(matmul_dtype),
                       preferred_element_type=jnp.float32)

    h = x
    for layer in params["lstm"]:
        S, B, _ = h.shape
        H = layer["w_hh"].shape[0]

        def step(carry, x_t, layer=layer, H=H):
            h_prev, c_prev = carry
            gates = mm(x_t, layer["w_ih"]) + mm(h_prev, layer["w_hh"]) + layer["b"]
            i = jax.nn.sigmoid(gates[:, 0 * H:1 * H])
            f = jax.nn.sigmoid(gates[:, 1 * H:2 * H])
            g = jnp.tanh(gates[:, 2 * H:3 * H])
            o = jax.nn.sigmoid(gates[:, 3 * H:4 * H])
            c = f * c_prev + i * g
            hh = o * jnp.tanh(c)
            return (hh, c), hh

        init = (jnp.zeros((B, H), jnp.float32), jnp.zeros((B, H), jnp.float32))
        _, h = jax.lax.scan(step, init, h)
    S, B, H = h.shape
    y = mm(h.reshape(S * B, H), params["reg_w"]) + params["reg_b"]
    return y.reshape(S, B, -1)


if __name__ == "__main__":
    SEQ, BATCH = 8, 2
    INPUT_SIZE, HIDDEN_SIZE, OUTPUT_SIZE, NUM_LAYERS = 4, 32, 1, 3

    key = jax.random.PRNGKey(0)
    key, xk = jax.random.split(key)
    x = jax.random.normal(xk, (SEQ, BATCH, INPUT_SIZE), jnp.float32)
    params = init_params(key, INPUT_SIZE, HIDDEN_SIZE, OUTPUT_SIZE, NUM_LAYERS)
    packed = pack_params(params)

    out = lstm_reg_forward(x, packed)
    out = jax.block_until_ready(out)
    assert out.shape == (SEQ, BATCH, OUTPUT_SIZE), out.shape

    # Tight check vs. a reference with matching bf16-matmul / f32-accumulate
    # numerics; loose check vs. the full-f32 reference.
    ref_bf16 = _reference_forward(x, params, matmul_dtype=jnp.bfloat16)
    ref_f32 = _reference_forward(x, params, matmul_dtype=jnp.float32)
    err_bf16 = float(jnp.max(jnp.abs(out - ref_bf16)))
    err_f32 = float(jnp.max(jnp.abs(out - ref_f32)))
    assert jnp.allclose(out, ref_bf16, atol=1e-2, rtol=1e-2), (
        f"mismatch vs bf16-matched ref: {err_bf16}")
    assert jnp.allclose(out, ref_f32, atol=5e-2, rtol=5e-2), (
        f"mismatch vs f32 ref: {err_f32}")

    print("KERNEL_OK")
</pallas_src>

<mosaic_0001>
module attributes {stable_mosaic.version = 11 : i64} {
  func.func @_fused_lstm_kernel(%arg0: i32, %arg1: memref<64x4xf32, #tpu.memory_space<vmem>>, %arg2: memref<4x512xbf16, #tpu.memory_space<vmem>>, %arg3: memref<128x512xbf16, #tpu.memory_space<vmem>>, %arg4: memref<1x512xf32, #tpu.memory_space<vmem>>, %arg5: memref<128x512xbf16, #tpu.memory_space<vmem>>, %arg6: memref<128x512xbf16, #tpu.memory_space<vmem>>, %arg7: memref<1x512xf32, #tpu.memory_space<vmem>>, %arg8: memref<128x512xbf16, #tpu.memory_space<vmem>>, %arg9: memref<128x512xbf16, #tpu.memory_space<vmem>>, %arg10: memref<1x512xf32, #tpu.memory_space<vmem>>, %arg11: memref<128x128xbf16, #tpu.memory_space<vmem>>, %arg12: memref<1x128xf32, #tpu.memory_space<vmem>>, %arg13: memref<64x128xf32, #tpu.memory_space<vmem>>, %arg14: memref<64x512xf32, #tpu.memory_space<vmem>>, %arg15: memref<64x128xf32, #tpu.memory_space<vmem>>) attributes {dimension_semantics = [#tpu.dimension_semantics<parallel>], iteration_bounds = array<i64: 1>, scalar_prefetch = 0 : i64, scratch_operands = 2 : i64, tpu.core_type = #tpu.core_type<tc>, window_params = [{transform_indices = @transform_0, window_bounds = array<i64: 64, 4>}, {pipeline_mode = #tpu.pipeline_mode<synchronous>, transform_indices = @transform_1, window_bounds = array<i64: 4, 512>}, {pipeline_mode = #tpu.pipeline_mode<synchronous>, transform_indices = @transform_2, window_bounds = array<i64: 128, 512>}, {pipeline_mode = #tpu.pipeline_mode<synchronous>, transform_indices = @transform_3, window_bounds = array<i64: 1, 512>}, {pipeline_mode = #tpu.pipeline_mode<synchronous>, transform_indices = @transform_4, window_bounds = array<i64: 128, 512>}, {pipeline_mode = #tpu.pipeline_mode<synchronous>, transform_indices = @transform_5, window_bounds = array<i64: 128, 512>}, {pipeline_mode = #tpu.pipeline_mode<synchronous>, transform_indices = @transform_6, window_bounds = array<i64: 1, 512>}, {pipeline_mode = #tpu.pipeline_mode<synchronous>, transform_indices = @transform_7, window_bounds = array<i64: 128, 512>}, {pipeline_mode = #tpu.pipeline_mode<synchronous>, transform_indices = @transform_8, window_bounds = array<i64: 128, 512>}, {pipeline_mode = #tpu.pipeline_mode<synchronous>, transform_indices = @transform_9, window_bounds = array<i64: 1, 512>}, {pipeline_mode = #tpu.pipeline_mode<synchronous>, transform_indices = @transform_10, window_bounds = array<i64: 128, 128>}, {pipeline_mode = #tpu.pipeline_mode<synchronous>, transform_indices = @transform_11, window_bounds = array<i64: 1, 128>}, {transform_indices = @transform_12, window_bounds = array<i64: 64, 128>}]} {
    %c0 = arith.constant 0 : index
    %c0_0 = arith.constant 0 : index
    %0 = vector.load %arg1[%c0, %c0_0] : memref<64x4xf32, #tpu.memory_space<vmem>>, vector<64x4xf32>
    %1 = arith.truncf %0 : vector<64x4xf32> to vector<64x4xbf16>
    %c0_1 = arith.constant 0 : index
    %c0_2 = arith.constant 0 : index
    %2 = vector.load %arg2[%c0_1, %c0_2] : memref<4x512xbf16, #tpu.memory_space<vmem>>, vector<4x512xbf16>
    %cst = arith.constant dense<0.000000e+00> : vector<64x512xf32>
    %3 = tpu.matmul %1, %2, %cst {dimension_numbers = #tpu.dot_dimension_numbers<[1], [0], [0], [1], [0, 0, 1, 1], [], []>} : vector<64x4xbf16>, vector<4x512xbf16>, vector<64x512xf32> -> vector<64x512xf32>
    %c0_3 = arith.constant 0 : index
    %c0_4 = arith.constant 0 : index
    %4 = vector.load %arg4[%c0_3, %c0_4] : memref<1x512xf32, #tpu.memory_space<vmem>>, vector<1x512xf32>
    %5 = vector.broadcast %4 : vector<1x512xf32> to vector<64x512xf32>
    %6 = arith.addf %3, %5 : vector<64x512xf32>
    %c0_5 = arith.constant 0 : index
    %c0_6 = arith.constant 0 : index
    %7 = vector.load %arg14[%c0_5, %c0_6] : memref<64x512xf32, #tpu.memory_space<vmem>>, vector<64x512xf32>
    tpu.vector_store %arg14[%c0_5, %c0_6], %6 {strides = array<i32>} : memref<64x512xf32, #tpu.memory_space<vmem>>, vector<64x512xf32>,
    %cst_7 = arith.constant 0.000000e+00 : f32
    %8 = vector.broadcast %cst_7 : f32 to vector<8x128xf32>
    %cst_8 = arith.constant 0.000000e+00 : f32
    %9 = vector.broadcast %cst_8 : f32 to vector<8x128xf32>
    %c0_i32 = arith.constant 0 : i32
    %c8_i32 = arith.constant 8 : i32
    %10 = arith.muli %c0_i32, %c8_i32 : i32
    %11 = tpu.assume_multiple %10, 8 : i32
    %12 = arith.index_cast %11 : i32 to index
    %c0_9 = arith.constant 0 : index
    %13 = vector.load %arg14[%12, %c0_9] : memref<64x512xf32, #tpu.memory_space<vmem>>, vector<8x512xf32>
    %14 = arith.truncf %8 : vector<8x128xf32> to vector<8x128xbf16>
    %c0_10 = arith.constant 0 : index
    %c0_11 = arith.constant 0 : index
    %15 = vector.load %arg3[%c0_10, %c0_11] : memref<128x512xbf16, #tpu.memory_space<vmem>>, vector<128x512xbf16>
    %cst_12 = arith.constant dense<0.000000e+00> : vector<8x512xf32>
    %16 = tpu.matmul %14, %15, %cst_12 {dimension_numbers = #tpu.dot_dimension_numbers<[1], [0], [0], [1], [0, 0, 1, 1], [], []>} : vector<8x128xbf16>, vector<128x512xbf16>, vector<8x512xf32> -> vector<8x512xf32>
    %17 = arith.addf %13, %16 : vector<8x512xf32>
    %18 = vector.extract_strided_slice %17 {offsets = [0, 0], sizes = [8, 384], strides = [1, 1]} : vector<8x512xf32> to vector<8x384xf32>
    %19 = arith.negf %18 : vector<8x384xf32>
    %20 = math.exp %19 : vector<8x384xf32>
    %cst_13 = arith.constant 1.000000e+00 : f32
    %21 = vector.broadcast %cst_13 : f32 to vector<8x384xf32>
    %22 = arith.addf %21, %20 : vector<8x384xf32>
    %23 = arith.divf %21, %22 : vector<8x384xf32>
    %24 = vector.extract_strided_slice %23 {offsets = [0, 0], sizes = [8, 128], strides = [1, 1]} : vector<8x384xf32> to vector<8x128xf32>
    %25 = vector.extract_strided_slice %23 {offsets = [0, 128], sizes = [8, 128], strides = [1, 1]} : vector<8x384xf32> to vector<8x128xf32>
    %26 = vector.extract_strided_slice %23 {offsets = [0, 256], sizes = [8, 128], strides = [1, 1]} : vector<8x384xf32> to vector<8x128xf32>
    %27 = vector.extract_strided_slice %17 {offsets = [0, 384], sizes = [8, 128], strides = [1, 1]} : vector<8x512xf32> to vector<8x128xf32>
    %28 = math.tanh %27 : vector<8x128xf32>
    %29 = arith.mulf %25, %9 : vector<8x128xf32>
    %30 = arith.mulf %24, %28 : vector<8x128xf32>
    %31 = arith.addf %29, %30 : vector<8x128xf32>
    %32 = math.tanh %31 : vector<8x128xf32>
    %33 = arith.mulf %26, %32 : vector<8x128xf32>
    %34 = arith.index_cast %11 : i32 to index
    %c0_14 = arith.constant 0 : index
    %35 = vector.load %arg15[%34, %c0_14] : memref<64x128xf32, #tpu.memory_space<vmem>>, vector<8x128xf32>
    tpu.vector_store %arg15[%34, %c0_14], %33 {strides = array<i32>} : memref<64x128xf32, #tpu.memory_space<vmem>>, vector<8x128xf32>,
    %c1_i32 = arith.constant 1 : i32
    %c8_i32_15 = arith.constant 8 : i32
    %36 = arith.muli %c1_i32, %c8_i32_15 : i32
    %37 = tpu.assume_multiple %36, 8 : i32
    %38 = arith.index_cast %37 : i32 to index
    %c0_16 = arith.constant 0 : index
    %39 = vector.load %arg14[%38, %c0_16] : memref<64x512xf32, #tpu.memory_space<vmem>>, vector<8x512xf32>
    %40 = arith.truncf %33 : vector<8x128xf32> to vector<8x128xbf16>
    %c0_17 = arith.constant 0 : index
    %c0_18 = arith.constant 0 : index
    %41 = vector.load %arg3[%c0_17, %c0_18] : memref<128x512xbf16, #tpu.memory_space<vmem>>, vector<128x512xbf16>
    %cst_19 = arith.constant dense<0.000000e+00> : vector<8x512xf32>
    %42 = tpu.matmul %40, %41, %cst_19 {dimension_numbers = #tpu.dot_dimension_numbers<[1], [0], [0], [1], [0, 0, 1, 1], [], []>} : vector<8x128xbf16>, vector<128x512xbf16>, vector<8x512xf32> -> vector<8x512xf32>
    %43 = arith.addf %39, %42 : vector<8x512xf32>
    %44 = vector.extract_strided_slice %43 {offsets = [0, 0], sizes = [8, 384], strides = [1, 1]} : vector<8x512xf32> to vector<8x384xf32>
    %45 = arith.negf %44 : vector<8x384xf32>
    %46 = math.exp %45 : vector<8x384xf32>
    %cst_20 = arith.constant 1.000000e+00 : f32
    %47 = vector.broadcast %cst_20 : f32 to vector<8x384xf32>
    %48 = arith.addf %47, %46 : vector<8x384xf32>
    %49 = arith.divf %47, %48 : vector<8x384xf32>
    %50 = vector.extract_strided_slice %49 {offsets = [0, 0], sizes = [8, 128], strides = [1, 1]} : vector<8x384xf32> to vector<8x128xf32>
    %51 = vector.extract_strided_slice %49 {offsets = [0, 128], sizes = [8, 128], strides = [1, 1]} : vector<8x384xf32> to vector<8x128xf32>
    %52 = vector.extract_strided_slice %49 {offsets = [0, 256], sizes = [8, 128], strides = [1, 1]} : vector<8x384xf32> to vector<8x128xf32>
    %53 = vector.extract_strided_slice %43 {offsets = [0, 384], sizes = [8, 128], strides = [1, 1]} : vector<8x512xf32> to vector<8x128xf32>
    %54 = math.tanh %53 : vector<8x128xf32>
    %55 = arith.mulf %51, %31 : vector<8x128xf32>
    %56 = arith.mulf %50, %54 : vector<8x128xf32>
    %57 = arith.addf %55, %56 : vector<8x128xf32>
    %58 = math.tanh %57 : vector<8x128xf32>
    %59 = arith.mulf %52, %58 : vector<8x128xf32>
    %60 = arith.index_cast %37 : i32 to index
    %c0_21 = arith.constant 0 : index
    %61 = vector.load %arg15[%60, %c0_21] : memref<64x128xf32, #tpu.memory_space<vmem>>, vector<8x128xf32>
    tpu.vector_store %arg15[%60, %c0_21], %59 {strides = array<i32>} : memref<64x128xf32, #tpu.memory_space<vmem>>, vector<8x128xf32>,
    %c2_i32 = arith.constant 2 : i32
    %c8_i32_22 = arith.constant 8 : i32
    %62 = arith.muli %c2_i32, %c8_i32_22 : i32
    %63 = tpu.assume_multiple %62, 8 : i32
    %64 = arith.index_cast %63 : i32 to index
    %c0_23 = arith.constant 0 : index
    %65 = vector.load %arg14[%64, %c0_23] : memref<64x512xf32, #tpu.memory_space<vmem>>, vector<8x512xf32>
    %66 = arith.truncf %59 : vector<8x128xf32> to vector<8x128xbf16>
    %c0_24 = arith.constant 0 : index
    %c0_25 = arith.constant 0 : index
    %67 = vector.load %arg3[%c0_24, %c0_25] : memref<128x512xbf16, #tpu.memory_space<vmem>>, vector<128x512xbf16>
    %cst_26 = arith.constant dense<0.000000e+00> : vector<8x512xf32>
    %68 = tpu.matmul %66, %67, %cst_26 {dimension_numbers = #tpu.dot_dimension_numbers<[1], [0], [0], [1], [0, 0, 1, 1], [], []>} : vector<8x128xbf16>, vector<128x512xbf16>, vector<8x512xf32> -> vector<8x512xf32>
    %69 = arith.addf %65, %68 : vector<8x512xf32>
    %70 = vector.extract_strided_slice %69 {offsets = [0, 0], sizes = [8, 384], strides = [1, 1]} : vector<8x512xf32> to vector<8x384xf32>
    %71 = arith.negf %70 : vector<8x384xf32>
    %72 = math.exp %71 : vector<8x384xf32>
    %cst_27 = arith.constant 1.000000e+00 : f32
    %73 = vector.broadcast %cst_27 : f32 to vector<8x384xf32>
    %74 = arith.addf %73, %72 : vector<8x384xf32>
    %75 = arith.divf %73, %74 : vector<8x384xf32>
    %76 = vector.extract_strided_slice %75 {offsets = [0, 0], sizes = [8, 128], strides = [1, 1]} : vector<8x384xf32> to vector<8x128xf32>
    %77 = vector.extract_strided_slice %75 {offsets = [0, 128], sizes = [8, 128], strides = [1, 1]} : vector<8x384xf32> to vector<8x128xf32>
    %78 = vector.extract_strided_slice %75 {offsets = [0, 256], sizes = [8, 128], strides = [1, 1]} : vector<8x384xf32> to vector<8x128xf32>
    %79 = vector.extract_strided_slice %69 {offsets = [0, 384], sizes = [8, 128], strides = [1, 1]} : vector<8x512xf32> to vector<8x128xf32>
    %80 = math.tanh %79 : vector<8x128xf32>
    %81 = arith.mulf %77, %57 : vector<8x128xf32>
    %82 = arith.mulf %76, %80 : vector<8x128xf32>
    %83 = arith.addf %81, %82 : vector<8x128xf32>
    %84 = math.tanh %83 : vector<8x128xf32>
    %85 = arith.mulf %78, %84 : vector<8x128xf32>
    %86 = arith.index_cast %63 : i32 to index
    %c0_28 = arith.constant 0 : index
    %87 = vector.load %arg15[%86, %c0_28] : memref<64x128xf32, #tpu.memory_space<vmem>>, vector<8x128xf32>
    tpu.vector_store %arg15[%86, %c0_28], %85 {strides = array<i32>} : memref<64x128xf32, #tpu.memory_space<vmem>>, vector<8x128xf32>,
    %c3_i32 = arith.constant 3 : i32
    %c8_i32_29 = arith.constant 8 : i32
    %88 = arith.muli %c3_i32, %c8_i32_29 : i32
    %89 = tpu.assume_multiple %88, 8 : i32
    %90 = arith.index_cast %89 : i32 to index
    %c0_30 = arith.constant 0 : index
    %91 = vector.load %arg14[%90, %c0_30] : memref<64x512xf32, #tpu.memory_space<vmem>>, vector<8x512xf32>
    %92 = arith.truncf %85 : vector<8x128xf32> to vector<8x128xbf16>
    %c0_31 = arith.constant 0 : index
    %c0_32 = arith.constant 0 : index
    %93 = vector.load %arg3[%c0_31, %c0_32] : memref<128x512xbf16, #tpu.memory_space<vmem>>, vector<128x512xbf16>
    %cst_33 = arith.constant dense<0.000000e+00> : vector<8x512xf32>
    %94 = tpu.matmul %92, %93, %cst_33 {dimension_numbers = #tpu.dot_dimension_numbers<[1], [0], [0], [1], [0, 0, 1, 1], [], []>} : vector<8x128xbf16>, vector<128x512xbf16>, vector<8x512xf32> -> vector<8x512xf32>
    %95 = arith.addf %91, %94 : vector<8x512xf32>
    %96 = vector.extract_strided_slice %95 {offsets = [0, 0], sizes = [8, 384], strides = [1, 1]} : vector<8x512xf32> to vector<8x384xf32>
    %97 = arith.negf %96 : vector<8x384xf32>
    %98 = math.exp %97 : vector<8x384xf32>
    %cst_34 = arith.constant 1.000000e+00 : f32
    %99 = vector.broadcast %cst_34 : f32 to vector<8x384xf32>
    %100 = arith.addf %99, %98 : vector<8x384xf32>
    %101 = arith.divf %99, %100 : vector<8x384xf32>
    %102 = vector.extract_strided_slice %101 {offsets = [0, 0], sizes = [8, 128], strides = [1, 1]} : vector<8x384xf32> to vector<8x128xf32>
    %103 = vector.extract_strided_slice %101 {offsets = [0, 128], sizes = [8, 128], strides = [1, 1]} : vector<8x384xf32> to vector<8x128xf32>
    %104 = vector.extract_strided_slice %101 {offsets = [0, 256], sizes = [8, 128], strides = [1, 1]} : vector<8x384xf32> to vector<8x128xf32>
    %105 = vector.extract_strided_slice %95 {offsets = [0, 384], sizes = [8, 128], strides = [1, 1]} : vector<8x512xf32> to vector<8x128xf32>
    %106 = math.tanh %105 : vector<8x128xf32>
    %107 = arith.mulf %103, %83 : vector<8x128xf32>
    %108 = arith.mulf %102, %106 : vector<8x128xf32>
    %109 = arith.addf %107, %108 : vector<8x128xf32>
    %110 = math.tanh %109 : vector<8x128xf32>
    %111 = arith.mulf %104, %110 : vector<8x128xf32>
    %112 = arith.index_cast %89 : i32 to index
    %c0_35 = arith.constant 0 : index
    %113 = vector.load %arg15[%112, %c0_35] : memref<64x128xf32, #tpu.memory_space<vmem>>, vector<8x128xf32>
    tpu.vector_store %arg15[%112, %c0_35], %111 {strides = array<i32>} : memref<64x128xf32, #tpu.memory_space<vmem>>, vector<8x128xf32>,
    %c4_i32 = arith.constant 4 : i32
    %c8_i32_36 = arith.constant 8 : i32
    %114 = arith.muli %c4_i32, %c8_i32_36 : i32
    %115 = tpu.assume_multiple %114, 8 : i32
    %116 = arith.index_cast %115 : i32 to index
    %c0_37 = arith.constant 0 : index
    %117 = vector.load %arg14[%116, %c0_37] : memref<64x512xf32, #tpu.memory_space<vmem>>, vector<8x512xf32>
    %118 = arith.truncf %111 : vector<8x128xf32> to vector<8x128xbf16>
    %c0_38 = arith.constant 0 : index
    %c0_39 = arith.constant 0 : index
    %119 = vector.load %arg3[%c0_38, %c0_39] : memref<128x512xbf16, #tpu.memory_space<vmem>>, vector<128x512xbf16>
    %cst_40 = arith.constant dense<0.000000e+00> : vector<8x512xf32>
    %120 = tpu.matmul %118, %119, %cst_40 {dimension_numbers = #tpu.dot_dimension_numbers<[1], [0], [0], [1], [0, 0, 1, 1], [], []>} : vector<8x128xbf16>, vector<128x512xbf16>, vector<8x512xf32> -> vector<8x512xf32>
    %121 = arith.addf %117, %120 : vector<8x512xf32>
    %122 = vector.extract_strided_slice %121 {offsets = [0, 0], sizes = [8, 384], strides = [1, 1]} : vector<8x512xf32> to vector<8x384xf32>
    %123 = arith.negf %122 : vector<8x384xf32>
    %124 = math.exp %123 : vector<8x384xf32>
    %cst_41 = arith.constant 1.000000e+00 : f32
    %125 = vector.broadcast %cst_41 : f32 to vector<8x384xf32>
    %126 = arith.addf %125, %124 : vector<8x384xf32>
    %127 = arith.divf %125, %126 : vector<8x384xf32>
    %128 = vector.extract_strided_slice %127 {offsets = [0, 0], sizes = [8, 128], strides = [1, 1]} : vector<8x384xf32> to vector<8x128xf32>
    %129 = vector.extract_strided_slice %127 {offsets = [0, 128], sizes = [8, 128], strides = [1, 1]} : vector<8x384xf32> to vector<8x128xf32>
    %130 = vector.extract_strided_slice %127 {offsets = [0, 256], sizes = [8, 128], strides = [1, 1]} : vector<8x384xf32> to vector<8x128xf32>
    %131 = vector.extract_strided_slice %121 {offsets = [0, 384], sizes = [8, 128], strides = [1, 1]} : vector<8x512xf32> to vector<8x128xf32>
    %132 = math.tanh %131 : vector<8x128xf32>
    %133 = arith.mulf %129, %109 : vector<8x128xf32>
    %134 = arith.mulf %128, %132 : vector<8x128xf32>
    %135 = arith.addf %133, %134 : vector<8x128xf32>
    %136 = math.tanh %135 : vector<8x128xf32>
    %137 = arith.mulf %130, %136 : vector<8x128xf32>
    %138 = arith.index_cast %115 : i32 to index
    %c0_42 = arith.constant 0 : index
    %139 = vector.load %arg15[%138, %c0_42] : memref<64x128xf32, #tpu.memory_space<vmem>>, vector<8x128xf32>
    tpu.vector_store %arg15[%138, %c0_42], %137 {strides = array<i32>} : memref<64x128xf32, #tpu.memory_space<vmem>>, vector<8x128xf32>,
    %c5_i32 = arith.constant 5 : i32
    %c8_i32_43 = arith.constant 8 : i32
    %140 = arith.muli %c5_i32, %c8_i32_43 : i32
    %141 = tpu.assume_multiple %140, 8 : i32
    %142 = arith.index_cast %141 : i32 to index
    %c0_44 = arith.constant 0 : index
    %143 = vector.load %arg14[%142, %c0_44] : memref<64x512xf32, #tpu.memory_space<vmem>>, vector<8x512xf32>
    %144 = arith.truncf %137 : vector<8x128xf32> to vector<8x128xbf16>
    %c0_45 = arith.constant 0 : index
    %c0_46 = arith.constant 0 : index
    %145 = vector.load %arg3[%c0_45, %c0_46] : memref<128x512xbf16, #tpu.memory_space<vmem>>, vector<128x512xbf16>
    %cst_47 = arith.constant dense<0.000000e+00> : vector<8x512xf32>
    %146 = tpu.matmul %144, %145, %cst_47 {dimension_numbers = #tpu.dot_dimension_numbers<[1], [0], [0], [1], [0, 0, 1, 1], [], []>} : vector<8x128xbf16>, vector<128x512xbf16>, vector<8x512xf32> -> vector<8x512xf32>
    %147 = arith.addf %143, %146 : vector<8x512xf32>
    %148 = vector.extract_strided_slice %147 {offsets = [0, 0], sizes = [8, 384], strides = [1, 1]} : vector<8x512xf32> to vector<8x384xf32>
    %149 = arith.negf %148 : vector<8x384xf32>
    %150 = math.exp %149 : vector<8x384xf32>
    %cst_48 = arith.constant 1.000000e+00 : f32
    %151 = vector.broadcast %cst_48 : f32 to vector<8x384xf32>
    %152 = arith.addf %151, %150 : vector<8x384xf32>
    %153 = arith.divf %151, %152 : vector<8x384xf32>
    %154 = vector.extract_strided_slice %153 {offsets = [0, 0], sizes = [8, 128], strides = [1, 1]} : vector<8x384xf32> to vector<8x128xf32>
    %155 = vector.extract_strided_slice %153 {offsets = [0, 128], sizes = [8, 128], strides = [1, 1]} : vector<8x384xf32> to vector<8x128xf32>
    %156 = vector.extract_strided_slice %153 {offsets = [0, 256], sizes = [8, 128], strides = [1, 1]} : vector<8x384xf32> to vector<8x128xf32>
    %157 = vector.extract_strided_slice %147 {offsets = [0, 384], sizes = [8, 128], strides = [1, 1]} : vector<8x512xf32> to vector<8x128xf32>
    %158 = math.tanh %157 : vector<8x128xf32>
    %159 = arith.mulf %155, %135 : vector<8x128xf32>
    %160 = arith.mulf %154, %158 : vector<8x128xf32>
    %161 = arith.addf %159, %160 : vector<8x128xf32>
    %162 = math.tanh %161 : vector<8x128xf32>
    %163 = arith.mulf %156, %162 : vector<8x128xf32>
    %164 = arith.index_cast %141 : i32 to index
    %c0_49 = arith.constant 0 : index
    %165 = vector.load %arg15[%164, %c0_49] : memref<64x128xf32, #tpu.memory_space<vmem>>, vector<8x128xf32>
    tpu.vector_store %arg15[%164, %c0_49], %163 {strides = array<i32>} : memref<64x128xf32, #tpu.memory_space<vmem>>, vector<8x128xf32>,
    %c6_i32 = arith.constant 6 : i32
    %c8_i32_50 = arith.constant 8 : i32
    %166 = arith.muli %c6_i32, %c8_i32_50 : i32
    %167 = tpu.assume_multiple %166, 8 : i32
    %168 = arith.index_cast %167 : i32 to index
    %c0_51 = arith.constant 0 : index
    %169 = vector.load %arg14[%168, %c0_51] : memref<64x512xf32, #tpu.memory_space<vmem>>, vector<8x512xf32>
    %170 = arith.truncf %163 : vector<8x128xf32> to vector<8x128xbf16>
    %c0_52 = arith.constant 0 : index
    %c0_53 = arith.constant 0 : index
    %171 = vector.load %arg3[%c0_52, %c0_53] : memref<128x512xbf16, #tpu.memory_space<vmem>>, vector<128x512xbf16>
    %cst_54 = arith.constant dense<0.000000e+00> : vector<8x512xf32>
    %172 = tpu.matmul %170, %171, %cst_54 {dimension_numbers = #tpu.dot_dimension_numbers<[1], [0], [0], [1], [0, 0, 1, 1], [], []>} : vector<8x128xbf16>, vector<128x512xbf16>, vector<8x512xf32> -> vector<8x512xf32>
    %173 = arith.addf %169, %172 : vector<8x512xf32>
    %174 = vector.extract_strided_slice %173 {offsets = [0, 0], sizes = [8, 384], strides = [1, 1]} : vector<8x512xf32> to vector<8x384xf32>
    %175 = arith.negf %174 : vector<8x384xf32>
    %176 = math.exp %175 : vector<8x384xf32>
    %cst_55 = arith.constant 1.000000e+00 : f32
    %177 = vector.broadcast %cst_55 : f32 to vector<8x384xf32>
    %178 = arith.addf %177, %176 : vector<8x384xf32>
    %179 = arith.divf %177, %178 : vector<8x384xf32>
    %180 = vector.extract_strided_slice %179 {offsets = [0, 0], sizes = [8, 128], strides = [1, 1]} : vector<8x384xf32> to vector<8x128xf32>
    %181 = vector.extract_strided_slice %179 {offsets = [0, 128], sizes = [8, 128], strides = [1, 1]} : vector<8x384xf32> to vector<8x128xf32>
    %182 = vector.extract_strided_slice %179 {offsets = [0, 256], sizes = [8, 128], strides = [1, 1]} : vector<8x384xf32> to vector<8x128xf32>
    %183 = vector.extract_strided_slice %173 {offsets = [0, 384], sizes = [8, 128], strides = [1, 1]} : vector<8x512xf32> to vector<8x128xf32>
    %184 = math.tanh %183 : vector<8x128xf32>
    %185 = arith.mulf %181, %161 : vector<8x128xf32>
    %186 = arith.mulf %180, %184 : vector<8x128xf32>
    %187 = arith.addf %185, %186 : vector<8x128xf32>
    %188 = math.tanh %187 : vector<8x128xf32>
    %189 = arith.mulf %182, %188 : vector<8x128xf32>
    %190 = arith.index_cast %167 : i32 to index
    %c0_56 = arith.constant 0 : index
    %191 = vector.load %arg15[%190, %c0_56] : memref<64x128xf32, #tpu.memory_space<vmem>>, vector<8x128xf32>
    tpu.vector_store %arg15[%190, %c0_56], %189 {strides = array<i32>} : memref<64x128xf32, #tpu.memory_space<vmem>>, vector<8x128xf32>,
    %c7_i32 = arith.constant 7 : i32
    %c8_i32_57 = arith.constant 8 : i32
    %192 = arith.muli %c7_i32, %c8_i32_57 : i32
    %193 = tpu.assume_multiple %192, 8 : i32
    %194 = arith.index_cast %193 : i32 to index
    %c0_58 = arith.constant 0 : index
    %195 = vector.load %arg14[%194, %c0_58] : memref<64x512xf32, #tpu.memory_space<vmem>>, vector<8x512xf32>
    %196 = arith.truncf %189 : vector<8x128xf32> to vector<8x128xbf16>
    %c0_59 = arith.constant 0 : index
    %c0_60 = arith.constant 0 : index
    %197 = vector.load %arg3[%c0_59, %c0_60] : memref<128x512xbf16, #tpu.memory_space<vmem>>, vector<128x512xbf16>
    %cst_61 = arith.constant dense<0.000000e+00> : vector<8x512xf32>
    %198 = tpu.matmul %196, %197, %cst_61 {dimension_numbers = #tpu.dot_dimension_numbers<[1], [0], [0], [1], [0, 0, 1, 1], [], []>} : vector<8x128xbf16>, vector<128x512xbf16>, vector<8x512xf32> -> vector<8x512xf32>
    %199 = arith.addf %195, %198 : vector<8x512xf32>
    %200 = vector.extract_strided_slice %199 {offsets = [0, 0], sizes = [8, 384], strides = [1, 1]} : vector<8x512xf32> to vector<8x384xf32>
    %201 = arith.negf %200 : vector<8x384xf32>
    %202 = math.exp %201 : vector<8x384xf32>
    %cst_62 = arith.constant 1.000000e+00 : f32
    %203 = vector.broadcast %cst_62 : f32 to vector<8x384xf32>
    %204 = arith.addf %203, %202 : vector<8x384xf32>
    %205 = arith.divf %203, %204 : vector<8x384xf32>
    %206 = vector.extract_strided_slice %205 {offsets = [0, 0], sizes = [8, 128], strides = [1, 1]} : vector<8x384xf32> to vector<8x128xf32>
    %207 = vector.extract_strided_slice %205 {offsets = [0, 128], sizes = [8, 128], strides = [1, 1]} : vector<8x384xf32> to vector<8x128xf32>
    %208 = vector.extract_strided_slice %205 {offsets = [0, 256], sizes = [8, 128], strides = [1, 1]} : vector<8x384xf32> to vector<8x128xf32>
    %209 = vector.extract_strided_slice %199 {offsets = [0, 384], sizes = [8, 128], strides = [1, 1]} : vector<8x512xf32> to vector<8x128xf32>
    %210 = math.tanh %209 : vector<8x128xf32>
    %211 = arith.mulf %207, %187 : vector<8x128xf32>
    %212 = arith.mulf %206, %210 : vector<8x128xf32>
    %213 = arith.addf %211, %212 : vector<8x128xf32>
    %214 = math.tanh %213 : vector<8x128xf32>
    %215 = arith.mulf %208, %214 : vector<8x128xf32>
    %216 = arith.index_cast %193 : i32 to index
    %c0_63 = arith.constant 0 : index
    %217 = vector.load %arg15[%216, %c0_63] : memref<64x128xf32, #tpu.memory_space<vmem>>, vector<8x128xf32>
    tpu.vector_store %arg15[%216, %c0_63], %215 {strides = array<i32>} : memref<64x128xf32, #tpu.memory_space<vmem>>, vector<8x128xf32>,
    %c8_i32_64 = arith.constant 8 : i32
    %c0_65 = arith.constant 0 : index
    %c0_66 = arith.constant 0 : index
    %218 = vector.load %arg15[%c0_65, %c0_66] : memref<64x128xf32, #tpu.memory_space<vmem>>, vector<64x128xf32>
    %219 = arith.truncf %218 : vector<64x128xf32> to vector<64x128xbf16>
    %c0_67 = arith.constant 0 : index
    %c0_68 = arith.constant 0 : index
    %220 = vector.load %arg5[%c0_67, %c0_68] : memref<128x512xbf16, #tpu.memory_space<vmem>>, vector<128x512xbf16>
    %cst_69 = arith.constant dense<0.000000e+00> : vector<64x512xf32>
    %221 = tpu.matmul %219, %220, %cst_69 {dimension_numbers = #tpu.dot_dimension_numbers<[1], [0], [0], [1], [0, 0, 1, 1], [], []>} : vector<64x128xbf16>, vector<128x512xbf16>, vector<64x512xf32> -> vector<64x512xf32>
    %c0_70 = arith.constant 0 : index
    %c0_71 = arith.constant 0 : index
    %222 = vector.load %arg7[%c0_70, %c0_71] : memref<1x512xf32, #tpu.memory_space<vmem>>, vector<1x512xf32>
    %223 = vector.broadcast %222 : vector<1x512xf32> to vector<64x512xf32>
    %224 = arith.addf %221, %223 : vector<64x512xf32>
    %c0_72 = arith.constant 0 : index
    %c0_73 = arith.constant 0 : index
    %225 = vector.load %arg14[%c0_72, %c0_73] : memref<64x512xf32, #tpu.memory_space<vmem>>, vector<64x512xf32>
    tpu.vector_store %arg14[%c0_72, %c0_73], %224 {strides = array<i32>} : memref<64x512xf32, #tpu.memory_space<vmem>>, vector<64x512xf32>,
    %cst_74 = arith.constant 0.000000e+00 : f32
    %226 = vector.broadcast %cst_74 : f32 to vector<8x128xf32>
    %cst_75 = arith.constant 0.000000e+00 : f32
    %227 = vector.broadcast %cst_75 : f32 to vector<8x128xf32>
    %c0_i32_76 = arith.constant 0 : i32
    %c8_i32_77 = arith.constant 8 : i32
    %228 = arith.muli %c0_i32_76, %c8_i32_77 : i32
    %229 = tpu.assume_multiple %228, 8 : i32
    %230 = arith.index_cast %229 : i32 to index
    %c0_78 = arith.constant 0 : index
    %231 = vector.load %arg14[%230, %c0_78] : memref<64x512xf32, #tpu.memory_space<vmem>>, vector<8x512xf32>
    %232 = arith.truncf %226 : vector<8x128xf32> to vector<8x128xbf16>
    %c0_79 = arith.constant 0 : index
    %c0_80 = arith.constant 0 : index
    %233 = vector.load %arg6[%c0_79, %c0_80] : memref<128x512xbf16, #tpu.memory_space<vmem>>, vector<128x512xbf16>
    %cst_81 = arith.constant dense<0.000000e+00> : vector<8x512xf32>
    %234 = tpu.matmul %232, %233, %cst_81 {dimension_numbers = #tpu.dot_dimension_numbers<[1], [0], [0], [1], [0, 0, 1, 1], [], []>} : vector<8x128xbf16>, vector<128x512xbf16>, vector<8x512xf32> -> vector<8x512xf32>
    %235 = arith.addf %231, %234 : vector<8x512xf32>
    %236 = vector.extract_strided_slice %235 {offsets = [0, 0], sizes = [8, 384], strides = [1, 1]} : vector<8x512xf32> to vector<8x384xf32>
    %237 = arith.negf %236 : vector<8x384xf32>
    %238 = math.exp %237 : vector<8x384xf32>
    %cst_82 = arith.constant 1.000000e+00 : f32
    %239 = vector.broadcast %cst_82 : f32 to vector<8x384xf32>
    %240 = arith.addf %239, %238 : vector<8x384xf32>
    %241 = arith.divf %239, %240 : vector<8x384xf32>
    %242 = vector.extract_strided_slice %241 {offsets = [0, 0], sizes = [8, 128], strides = [1, 1]} : vector<8x384xf32> to vector<8x128xf32>
    %243 = vector.extract_strided_slice %241 {offsets = [0, 128], sizes = [8, 128], strides = [1, 1]} : vector<8x384xf32> to vector<8x128xf32>
    %244 = vector.extract_strided_slice %241 {offsets = [0, 256], sizes = [8, 128], strides = [1, 1]} : vector<8x384xf32> to vector<8x128xf32>
    %245 = vector.extract_strided_slice %235 {offsets = [0, 384], sizes = [8, 128], strides = [1, 1]} : vector<8x512xf32> to vector<8x128xf32>
    %246 = math.tanh %245 : vector<8x128xf32>
    %247 = arith.mulf %243, %227 : vector<8x128xf32>
    %248 = arith.mulf %242, %246 : vector<8x128xf32>
    %249 = arith.addf %247, %248 : vector<8x128xf32>
    %250 = math.tanh %249 : vector<8x128xf32>
    %251 = arith.mulf %244, %250 : vector<8x128xf32>
    %252 = arith.index_cast %229 : i32 to index
    %c0_83 = arith.constant 0 : index
    %253 = vector.load %arg15[%252, %c0_83] : memref<64x128xf32, #tpu.memory_space<vmem>>, vector<8x128xf32>
    tpu.vector_store %arg15[%252, %c0_83], %251 {strides = array<i32>} : memref<64x128xf32, #tpu.memory_space<vmem>>, vector<8x128xf32>,
    %c1_i32_84 = arith.constant 1 : i32
    %c8_i32_85 = arith.constant 8 : i32
    %254 = arith.muli %c1_i32_84, %c8_i32_85 : i32
    %255 = tpu.assume_multiple %254, 8 : i32
    %256 = arith.index_cast %255 : i32 to index
    %c0_86 = arith.constant 0 : index
    %257 = vector.load %arg14[%256, %c0_86] : memref<64x512xf32, #tpu.memory_space<vmem>>, vector<8x512xf32>
    %258 = arith.truncf %251 : vector<8x128xf32> to vector<8x128xbf16>
    %c0_87 = arith.constant 0 : index
    %c0_88 = arith.constant 0 : index
    %259 = vector.load %arg6[%c0_87, %c0_88] : memref<128x512xbf16, #tpu.memory_space<vmem>>, vector<128x512xbf16>
    %cst_89 = arith.constant dense<0.000000e+00> : vector<8x512xf32>
    %260 = tpu.matmul %258, %259, %cst_89 {dimension_numbers = #tpu.dot_dimension_numbers<[1], [0], [0], [1], [0, 0, 1, 1], [], []>} : vector<8x128xbf16>, vector<128x512xbf16>, vector<8x512xf32> -> vector<8x512xf32>
    %261 = arith.addf %257, %260 : vector<8x512xf32>
    %262 = vector.extract_strided_slice %261 {offsets = [0, 0], sizes = [8, 384], strides = [1, 1]} : vector<8x512xf32> to vector<8x384xf32>
    %263 = arith.negf %262 : vector<8x384xf32>
    %264 = math.exp %263 : vector<8x384xf32>
    %cst_90 = arith.constant 1.000000e+00 : f32
    %265 = vector.broadcast %cst_90 : f32 to vector<8x384xf32>
    %266 = arith.addf %265, %264 : vector<8x384xf32>
    %267 = arith.divf %265, %266 : vector<8x384xf32>
    %268 = vector.extract_strided_slice %267 {offsets = [0, 0], sizes = [8, 128], strides = [1, 1]} : vector<8x384xf32> to vector<8x128xf32>
    %269 = vector.extract_strided_slice %267 {offsets = [0, 128], sizes = [8, 128], strides = [1, 1]} : vector<8x384xf32> to vector<8x128xf32>
    %270 = vector.extract_strided_slice %267 {offsets = [0, 256], sizes = [8, 128], strides = [1, 1]} : vector<8x384xf32> to vector<8x128xf32>
    %271 = vector.extract_strided_slice %261 {offsets = [0, 384], sizes = [8, 128], strides = [1, 1]} : vector<8x512xf32> to vector<8x128xf32>
    %272 = math.tanh %271 : vector<8x128xf32>
    %273 = arith.mulf %269, %249 : vector<8x128xf32>
    %274 = arith.mulf %268, %272 : vector<8x128xf32>
    %275 = arith.addf %273, %274 : vector<8x128xf32>
    %276 = math.tanh %275 : vector<8x128xf32>
    %277 = arith.mulf %270, %276 : vector<8x128xf32>
    %278 = arith.index_cast %255 : i32 to index
    %c0_91 = arith.constant 0 : index
    %279 = vector.load %arg15[%278, %c0_91] : memref<64x128xf32, #tpu.memory_space<vmem>>, vector<8x128xf32>
    tpu.vector_store %arg15[%278, %c0_91], %277 {strides = array<i32>} : memref<64x128xf32, #tpu.memory_space<vmem>>, vector<8x128xf32>,
    %c2_i32_92 = arith.constant 2 : i32
    %c8_i32_93 = arith.constant 8 : i32
    %280 = arith.muli %c2_i32_92, %c8_i32_93 : i32
    %281 = tpu.assume_multiple %280, 8 : i32
    %282 = arith.index_cast %281 : i32 to index
    %c0_94 = arith.constant 0 : index
    %283 = vector.load %arg14[%282, %c0_94] : memref<64x512xf32, #tpu.memory_space<vmem>>, vector<8x512xf32>
    %284 = arith.truncf %277 : vector<8x128xf32> to vector<8x128xbf16>
    %c0_95 = arith.constant 0 : index
    %c0_96 = arith.constant 0 : index
    %285 = vector.load %arg6[%c0_95, %c0_96] : memref<128x512xbf16, #tpu.memory_space<vmem>>, vector<128x512xbf16>
    %cst_97 = arith.constant dense<0.000000e+00> : vector<8x512xf32>
    %286 = tpu.matmul %284, %285, %cst_97 {dimension_numbers = #tpu.dot_dimension_numbers<[1], [0], [0], [1], [0, 0, 1, 1], [], []>} : vector<8x128xbf16>, vector<128x512xbf16>, vector<8x512xf32> -> vector<8x512xf32>
    %287 = arith.addf %283, %286 : vector<8x512xf32>
    %288 = vector.extract_strided_slice %287 {offsets = [0, 0], sizes = [8, 384], strides = [1, 1]} : vector<8x512xf32> to vector<8x384xf32>
    %289 = arith.negf %288 : vector<8x384xf32>
    %290 = math.exp %289 : vector<8x384xf32>
    %cst_98 = arith.constant 1.000000e+00 : f32
    %291 = vector.broadcast %cst_98 : f32 to vector<8x384xf32>
    %292 = arith.addf %291, %290 : vector<8x384xf32>
    %293 = arith.divf %291, %292 : vector<8x384xf32>
    %294 = vector.extract_strided_slice %293 {offsets = [0, 0], sizes = [8, 128], strides = [1, 1]} : vector<8x384xf32> to vector<8x128xf32>
    %295 = vector.extract_strided_slice %293 {offsets = [0, 128], sizes = [8, 128], strides = [1, 1]} : vector<8x384xf32> to vector<8x128xf32>
    %296 = vector.extract_strided_slice %293 {offsets = [0, 256], sizes = [8, 128], strides = [1, 1]} : vector<8x384xf32> to vector<8x128xf32>
    %297 = vector.extract_strided_slice %287 {offsets = [0, 384], sizes = [8, 128], strides = [1, 1]} : vector<8x512xf32> to vector<8x128xf32>
    %298 = math.tanh %297 : vector<8x128xf32>
    %299 = arith.mulf %295, %275 : vector<8x128xf32>
    %300 = arith.mulf %294, %298 : vector<8x128xf32>
    %301 = arith.addf %299, %300 : vector<8x128xf32>
    %302 = math.tanh %301 : vector<8x128xf32>
    %303 = arith.mulf %296, %302 : vector<8x128xf32>
    %304 = arith.index_cast %281 : i32 to index
    %c0_99 = arith.constant 0 : index
    %305 = vector.load %arg15[%304, %c0_99] : memref<64x128xf32, #tpu.memory_space<vmem>>, vector<8x128xf32>
    tpu.vector_store %arg15[%304, %c0_99], %303 {strides = array<i32>} : memref<64x128xf32, #tpu.memory_space<vmem>>, vector<8x128xf32>,
    %c3_i32_100 = arith.constant 3 : i32
    %c8_i32_101 = arith.constant 8 : i32
    %306 = arith.muli %c3_i32_100, %c8_i32_101 : i32
    %307 = tpu.assume_multiple %306, 8 : i32
    %308 = arith.index_cast %307 : i32 to index
    %c0_102 = arith.constant 0 : index
    %309 = vector.load %arg14[%308, %c0_102] : memref<64x512xf32, #tpu.memory_space<vmem>>, vector<8x512xf32>
    %310 = arith.truncf %303 : vector<8x128xf32> to vector<8x128xbf16>
    %c0_103 = arith.constant 0 : index
    %c0_104 = arith.constant 0 : index
    %311 = vector.load %arg6[%c0_103, %c0_104] : memref<128x512xbf16, #tpu.memory_space<vmem>>, vector<128x512xbf16>
    %cst_105 = arith.constant dense<0.000000e+00> : vector<8x512xf32>
    %312 = tpu.matmul %310, %311, %cst_105 {dimension_numbers = #tpu.dot_dimension_numbers<[1], [0], [0], [1], [0, 0, 1, 1], [], []>} : vector<8x128xbf16>, vector<128x512xbf16>, vector<8x512xf32> -> vector<8x512xf32>
    %313 = arith.addf %309, %312 : vector<8x512xf32>
    %314 = vector.extract_strided_slice %313 {offsets = [0, 0], sizes = [8, 384], strides = [1, 1]} : vector<8x512xf32> to vector<8x384xf32>
    %315 = arith.negf %314 : vector<8x384xf32>
    %316 = math.exp %315 : vector<8x384xf32>
    %cst_106 = arith.constant 1.000000e+00 : f32
    %317 = vector.broadcast %cst_106 : f32 to vector<8x384xf32>
    %318 = arith.addf %317, %316 : vector<8x384xf32>
    %319 = arith.divf %317, %318 : vector<8x384xf32>
    %320 = vector.extract_strided_slice %319 {offsets = [0, 0], sizes = [8, 128], strides = [1, 1]} : vector<8x384xf32> to vector<8x128xf32>
    %321 = vector.extract_strided_slice %319 {offsets = [0, 128], sizes = [8, 128], strides = [1, 1]} : vector<8x384xf32> to vector<8x128xf32>
    %322 = vector.extract_strided_slice %319 {offsets = [0, 256], sizes = [8, 128], strides = [1, 1]} : vector<8x384xf32> to vector<8x128xf32>
    %323 = vector.extract_strided_slice %313 {offsets = [0, 384], sizes = [8, 128], strides = [1, 1]} : vector<8x512xf32> to vector<8x128xf32>
    %324 = math.tanh %323 : vector<8x128xf32>
    %325 = arith.mulf %321, %301 : vector<8x128xf32>
    %326 = arith.mulf %320, %324 : vector<8x128xf32>
    %327 = arith.addf %325, %326 : vector<8x128xf32>
    %328 = math.tanh %327 : vector<8x128xf32>
    %329 = arith.mulf %322, %328 : vector<8x128xf32>
    %330 = arith.index_cast %307 : i32 to index
    %c0_107 = arith.constant 0 : index
    %331 = vector.load %arg15[%330, %c0_107] : memref<64x128xf32, #tpu.memory_space<vmem>>, vector<8x128xf32>
    tpu.vector_store %arg15[%330, %c0_107], %329 {strides = array<i32>} : memref<64x128xf32, #tpu.memory_space<vmem>>, vector<8x128xf32>,
    %c4_i32_108 = arith.constant 4 : i32
    %c8_i32_109 = arith.constant 8 : i32
    %332 = arith.muli %c4_i32_108, %c8_i32_109 : i32
    %333 = tpu.assume_multiple %332, 8 : i32
    %334 = arith.index_cast %333 : i32 to index
    %c0_110 = arith.constant 0 : index
    %335 = vector.load %arg14[%334, %c0_110] : memref<64x512xf32, #tpu.memory_space<vmem>>, vector<8x512xf32>
    %336 = arith.truncf %329 : vector<8x128xf32> to vector<8x128xbf16>
    %c0_111 = arith.constant 0 : index
    %c0_112 = arith.constant 0 : index
    %337 = vector.load %arg6[%c0_111, %c0_112] : memref<128x512xbf16, #tpu.memory_space<vmem>>, vector<128x512xbf16>
    %cst_113 = arith.constant dense<0.000000e+00> : vector<8x512xf32>
    %338 = tpu.matmul %336, %337, %cst_113 {dimension_numbers = #tpu.dot_dimension_numbers<[1], [0], [0], [1], [0, 0, 1, 1], [], []>} : vector<8x128xbf16>, vector<128x512xbf16>, vector<8x512xf32> -> vector<8x512xf32>
    %339 = arith.addf %335, %338 : vector<8x512xf32>
    %340 = vector.extract_strided_slice %339 {offsets = [0, 0], sizes = [8, 384], strides = [1, 1]} : vector<8x512xf32> to vector<8x384xf32>
    %341 = arith.negf %340 : vector<8x384xf32>
    %342 = math.exp %341 : vector<8x384xf32>
    %cst_114 = arith.constant 1.000000e+00 : f32
    %343 = vector.broadcast %cst_114 : f32 to vector<8x384xf32>
    %344 = arith.addf %343, %342 : vector<8x384xf32>
    %345 = arith.divf %343, %344 : vector<8x384xf32>
    %346 = vector.extract_strided_slice %345 {offsets = [0, 0], sizes = [8, 128], strides = [1, 1]} : vector<8x384xf32> to vector<8x128xf32>
    %347 = vector.extract_strided_slice %345 {offsets = [0, 128], sizes = [8, 128], strides = [1, 1]} : vector<8x384xf32> to vector<8x128xf32>
    %348 = vector.extract_strided_slice %345 {offsets = [0, 256], sizes = [8, 128], strides = [1, 1]} : vector<8x384xf32> to vector<8x128xf32>
    %349 = vector.extract_strided_slice %339 {offsets = [0, 384], sizes = [8, 128], strides = [1, 1]} : vector<8x512xf32> to vector<8x128xf32>
    %350 = math.tanh %349 : vector<8x128xf32>
    %351 = arith.mulf %347, %327 : vector<8x128xf32>
    %352 = arith.mulf %346, %350 : vector<8x128xf32>
    %353 = arith.addf %351, %352 : vector<8x128xf32>
    %354 = math.tanh %353 : vector<8x128xf32>
    %355 = arith.mulf %348, %354 : vector<8x128xf32>
    %356 = arith.index_cast %333 : i32 to index
    %c0_115 = arith.constant 0 : index
    %357 = vector.load %arg15[%356, %c0_115] : memref<64x128xf32, #tpu.memory_space<vmem>>, vector<8x128xf32>
    tpu.vector_store %arg15[%356, %c0_115], %355 {strides = array<i32>} : memref<64x128xf32, #tpu.memory_space<vmem>>, vector<8x128xf32>,
    %c5_i32_116 = arith.constant 5 : i32
    %c8_i32_117 = arith.constant 8 : i32
    %358 = arith.muli %c5_i32_116, %c8_i32_117 : i32
    %359 = tpu.assume_multiple %358, 8 : i32
    %360 = arith.index_cast %359 : i32 to index
    %c0_118 = arith.constant 0 : index
    %361 = vector.load %arg14[%360, %c0_118] : memref<64x512xf32, #tpu.memory_space<vmem>>, vector<8x512xf32>
    %362 = arith.truncf %355 : vector<8x128xf32> to vector<8x128xbf16>
    %c0_119 = arith.constant 0 : index
    %c0_120 = arith.constant 0 : index
    %363 = vector.load %arg6[%c0_119, %c0_120] : memref<128x512xbf16, #tpu.memory_space<vmem>>, vector<128x512xbf16>
    %cst_121 = arith.constant dense<0.000000e+00> : vector<8x512xf32>
    %364 = tpu.matmul %362, %363, %cst_121 {dimension_numbers = #tpu.dot_dimension_numbers<[1], [0], [0], [1], [0, 0, 1, 1], [], []>} : vector<8x128xbf16>, vector<128x512xbf16>, vector<8x512xf32> -> vector<8x512xf32>
    %365 = arith.addf %361, %364 : vector<8x512xf32>
    %366 = vector.extract_strided_slice %365 {offsets = [0, 0], sizes = [8, 384], strides = [1, 1]} : vector<8x512xf32> to vector<8x384xf32>
    %367 = arith.negf %366 : vector<8x384xf32>
    %368 = math.exp %367 : vector<8x384xf32>
    %cst_122 = arith.constant 1.000000e+00 : f32
    %369 = vector.broadcast %cst_122 : f32 to vector<8x384xf32>
    %370 = arith.addf %369, %368 : vector<8x384xf32>
    %371 = arith.divf %369, %370 : vector<8x384xf32>
    %372 = vector.extract_strided_slice %371 {offsets = [0, 0], sizes = [8, 128], strides = [1, 1]} : vector<8x384xf32> to vector<8x128xf32>
    %373 = vector.extract_strided_slice %371 {offsets = [0, 128], sizes = [8, 128], strides = [1, 1]} : vector<8x384xf32> to vector<8x128xf32>
    %374 = vector.extract_strided_slice %371 {offsets = [0, 256], sizes = [8, 128], strides = [1, 1]} : vector<8x384xf32> to vector<8x128xf32>
    %375 = vector.extract_strided_slice %365 {offsets = [0, 384], sizes = [8, 128], strides = [1, 1]} : vector<8x512xf32> to vector<8x128xf32>
    %376 = math.tanh %375 : vector<8x128xf32>
    %377 = arith.mulf %373, %353 : vector<8x128xf32>
    %378 = arith.mulf %372, %376 : vector<8x128xf32>
    %379 = arith.addf %377, %378 : vector<8x128xf32>
    %380 = math.tanh %379 : vector<8x128xf32>
    %381 = arith.mulf %374, %380 : vector<8x128xf32>
    %382 = arith.index_cast %359 : i32 to index
    %c0_123 = arith.constant 0 : index
    %383 = vector.load %arg15[%382, %c0_123] : memref<64x128xf32, #tpu.memory_space<vmem>>, vector<8x128xf32>
    tpu.vector_store %arg15[%382, %c0_123], %381 {strides = array<i32>} : memref<64x128xf32, #tpu.memory_space<vmem>>, vector<8x128xf32>,
    %c6_i32_124 = arith.constant 6 : i32
    %c8_i32_125 = arith.constant 8 : i32
    %384 = arith.muli %c6_i32_124, %c8_i32_125 : i32
    %385 = tpu.assume_multiple %384, 8 : i32
    %386 = arith.index_cast %385 : i32 to index
    %c0_126 = arith.constant 0 : index
    %387 = vector.load %arg14[%386, %c0_126] : memref<64x512xf32, #tpu.memory_space<vmem>>, vector<8x512xf32>
    %388 = arith.truncf %381 : vector<8x128xf32> to vector<8x128xbf16>
    %c0_127 = arith.constant 0 : index
    %c0_128 = arith.constant 0 : index
    %389 = vector.load %arg6[%c0_127, %c0_128] : memref<128x512xbf16, #tpu.memory_space<vmem>>, vector<128x512xbf16>
    %cst_129 = arith.constant dense<0.000000e+00> : vector<8x512xf32>
    %390 = tpu.matmul %388, %389, %cst_129 {dimension_numbers = #tpu.dot_dimension_numbers<[1], [0], [0], [1], [0, 0, 1, 1], [], []>} : vector<8x128xbf16>, vector<128x512xbf16>, vector<8x512xf32> -> vector<8x512xf32>
    %391 = arith.addf %387, %390 : vector<8x512xf32>
    %392 = vector.extract_strided_slice %391 {offsets = [0, 0], sizes = [8, 384], strides = [1, 1]} : vector<8x512xf32> to vector<8x384xf32>
    %393 = arith.negf %392 : vector<8x384xf32>
    %394 = math.exp %393 : vector<8x384xf32>
    %cst_130 = arith.constant 1.000000e+00 : f32
    %395 = vector.broadcast %cst_130 : f32 to vector<8x384xf32>
    %396 = arith.addf %395, %394 : vector<8x384xf32>
    %397 = arith.divf %395, %396 : vector<8x384xf32>
    %398 = vector.extract_strided_slice %397 {offsets = [0, 0], sizes = [8, 128], strides = [1, 1]} : vector<8x384xf32> to vector<8x128xf32>
    %399 = vector.extract_strided_slice %397 {offsets = [0, 128], sizes = [8, 128], strides = [1, 1]} : vector<8x384xf32> to vector<8x128xf32>
    %400 = vector.extract_strided_slice %397 {offsets = [0, 256], sizes = [8, 128], strides = [1, 1]} : vector<8x384xf32> to vector<8x128xf32>
    %401 = vector.extract_strided_slice %391 {offsets = [0, 384], sizes = [8, 128], strides = [1, 1]} : vector<8x512xf32> to vector<8x128xf32>
    %402 = math.tanh %401 : vector<8x128xf32>
    %403 = arith.mulf %399, %379 : vector<8x128xf32>
    %404 = arith.mulf %398, %402 : vector<8x128xf32>
    %405 = arith.addf %403, %404 : vector<8x128xf32>
    %406 = math.tanh %405 : vector<8x128xf32>
    %407 = arith.mulf %400, %406 : vector<8x128xf32>
    %408 = arith.index_cast %385 : i32 to index
    %c0_131 = arith.constant 0 : index
    %409 = vector.load %arg15[%408, %c0_131] : memref<64x128xf32, #tpu.memory_space<vmem>>, vector<8x128xf32>
    tpu.vector_store %arg15[%408, %c0_131], %407 {strides = array<i32>} : memref<64x128xf32, #tpu.memory_space<vmem>>, vector<8x128xf32>,
    %c7_i32_132 = arith.constant 7 : i32
    %c8_i32_133 = arith.constant 8 : i32
    %410 = arith.muli %c7_i32_132, %c8_i32_133 : i32
    %411 = tpu.assume_multiple %410, 8 : i32
    %412 = arith.index_cast %411 : i32 to index
    %c0_134 = arith.constant 0 : index
    %413 = vector.load %arg14[%412, %c0_134] : memref<64x512xf32, #tpu.memory_space<vmem>>, vector<8x512xf32>
    %414 = arith.truncf %407 : vector<8x128xf32> to vector<8x128xbf16>
    %c0_135 = arith.constant 0 : index
    %c0_136 = arith.constant 0 : index
    %415 = vector.load %arg6[%c0_135, %c0_136] : memref<128x512xbf16, #tpu.memory_space<vmem>>, vector<128x512xbf16>
    %cst_137 = arith.constant dense<0.000000e+00> : vector<8x512xf32>
    %416 = tpu.matmul %414, %415, %cst_137 {dimension_numbers = #tpu.dot_dimension_numbers<[1], [0], [0], [1], [0, 0, 1, 1], [], []>} : vector<8x128xbf16>, vector<128x512xbf16>, vector<8x512xf32> -> vector<8x512xf32>
    %417 = arith.addf %413, %416 : vector<8x512xf32>
    %418 = vector.extract_strided_slice %417 {offsets = [0, 0], sizes = [8, 384], strides = [1, 1]} : vector<8x512xf32> to vector<8x384xf32>
    %419 = arith.negf %418 : vector<8x384xf32>
    %420 = math.exp %419 : vector<8x384xf32>
    %cst_138 = arith.constant 1.000000e+00 : f32
    %421 = vector.broadcast %cst_138 : f32 to vector<8x384xf32>
    %422 = arith.addf %421, %420 : vector<8x384xf32>
    %423 = arith.divf %421, %422 : vector<8x384xf32>
    %424 = vector.extract_strided_slice %423 {offsets = [0, 0], sizes = [8, 128], strides = [1, 1]} : vector<8x384xf32> to vector<8x128xf32>
    %425 = vector.extract_strided_slice %423 {offsets = [0, 128], sizes = [8, 128], strides = [1, 1]} : vector<8x384xf32> to vector<8x128xf32>
    %426 = vector.extract_strided_slice %423 {offsets = [0, 256], sizes = [8, 128], strides = [1, 1]} : vector<8x384xf32> to vector<8x128xf32>
    %427 = vector.extract_strided_slice %417 {offsets = [0, 384], sizes = [8, 128], strides = [1, 1]} : vector<8x512xf32> to vector<8x128xf32>
    %428 = math.tanh %427 : vector<8x128xf32>
    %429 = arith.mulf %425, %405 : vector<8x128xf32>
    %430 = arith.mulf %424, %428 : vector<8x128xf32>
    %431 = arith.addf %429, %430 : vector<8x128xf32>
    %432 = math.tanh %431 : vector<8x128xf32>
    %433 = arith.mulf %426, %432 : vector<8x128xf32>
    %434 = arith.index_cast %411 : i32 to index
    %c0_139 = arith.constant 0 : index
    %435 = vector.load %arg15[%434, %c0_139] : memref<64x128xf32, #tpu.memory_space<vmem>>, vector<8x128xf32>
    tpu.vector_store %arg15[%434, %c0_139], %433 {strides = array<i32>} : memref<64x128xf32, #tpu.memory_space<vmem>>, vector<8x128xf32>,
    %c8_i32_140 = arith.constant 8 : i32
    %c0_141 = arith.constant 0 : index
    %c0_142 = arith.constant 0 : index
    %436 = vector.load %arg15[%c0_141, %c0_142] : memref<64x128xf32, #tpu.memory_space<vmem>>, vector<64x128xf32>
    %437 = arith.truncf %436 : vector<64x128xf32> to vector<64x128xbf16>
    %c0_143 = arith.constant 0 : index
    %c0_144 = arith.constant 0 : index
    %438 = vector.load %arg8[%c0_143, %c0_144] : memref<128x512xbf16, #tpu.memory_space<vmem>>, vector<128x512xbf16>
    %cst_145 = arith.constant dense<0.000000e+00> : vector<64x512xf32>
    %439 = tpu.matmul %437, %438, %cst_145 {dimension_numbers = #tpu.dot_dimension_numbers<[1], [0], [0], [1], [0, 0, 1, 1], [], []>} : vector<64x128xbf16>, vector<128x512xbf16>, vector<64x512xf32> -> vector<64x512xf32>
    %c0_146 = arith.constant 0 : index
    %c0_147 = arith.constant 0 : index
    %440 = vector.load %arg10[%c0_146, %c0_147] : memref<1x512xf32, #tpu.memory_space<vmem>>, vector<1x512xf32>
    %441 = vector.broadcast %440 : vector<1x512xf32> to vector<64x512xf32>
    %442 = arith.addf %439, %441 : vector<64x512xf32>
    %c0_148 = arith.constant 0 : index
    %c0_149 = arith.constant 0 : index
    %443 = vector.load %arg14[%c0_148, %c0_149] : memref<64x512xf32, #tpu.memory_space<vmem>>, vector<64x512xf32>
    tpu.vector_store %arg14[%c0_148, %c0_149], %442 {strides = array<i32>} : memref<64x512xf32, #tpu.memory_space<vmem>>, vector<64x512xf32>,
    %cst_150 = arith.constant 0.000000e+00 : f32
    %444 = vector.broadcast %cst_150 : f32 to vector<8x128xf32>
    %cst_151 = arith.constant 0.000000e+00 : f32
    %445 = vector.broadcast %cst_151 : f32 to vector<8x128xf32>
    %c0_i32_152 = arith.constant 0 : i32
    %c8_i32_153 = arith.constant 8 : i32
    %446 = arith.muli %c0_i32_152, %c8_i32_153 : i32
    %447 = tpu.assume_multiple %446, 8 : i32
    %448 = arith.index_cast %447 : i32 to index
    %c0_154 = arith.constant 0 : index
    %449 = vector.load %arg14[%448, %c0_154] : memref<64x512xf32, #tpu.memory_space<vmem>>, vector<8x512xf32>
    %450 = arith.truncf %444 : vector<8x128xf32> to vector<8x128xbf16>
    %c0_155 = arith.constant 0 : index
    %c0_156 = arith.constant 0 : index
    %451 = vector.load %arg9[%c0_155, %c0_156] : memref<128x512xbf16, #tpu.memory_space<vmem>>, vector<128x512xbf16>
    %cst_157 = arith.constant dense<0.000000e+00> : vector<8x512xf32>
    %452 = tpu.matmul %450, %451, %cst_157 {dimension_numbers = #tpu.dot_dimension_numbers<[1], [0], [0], [1], [0, 0, 1, 1], [], []>} : vector<8x128xbf16>, vector<128x512xbf16>, vector<8x512xf32> -> vector<8x512xf32>
    %453 = arith.addf %449, %452 : vector<8x512xf32>
    %454 = vector.extract_strided_slice %453 {offsets = [0, 0], sizes = [8, 384], strides = [1, 1]} : vector<8x512xf32> to vector<8x384xf32>
    %455 = arith.negf %454 : vector<8x384xf32>
    %456 = math.exp %455 : vector<8x384xf32>
    %cst_158 = arith.constant 1.000000e+00 : f32
    %457 = vector.broadcast %cst_158 : f32 to vector<8x384xf32>
    %458 = arith.addf %457, %456 : vector<8x384xf32>
    %459 = arith.divf %457, %458 : vector<8x384xf32>
    %460 = vector.extract_strided_slice %459 {offsets = [0, 0], sizes = [8, 128], strides = [1, 1]} : vector<8x384xf32> to vector<8x128xf32>
    %461 = vector.extract_strided_slice %459 {offsets = [0, 128], sizes = [8, 128], strides = [1, 1]} : vector<8x384xf32> to vector<8x128xf32>
    %462 = vector.extract_strided_slice %459 {offsets = [0, 256], sizes = [8, 128], strides = [1, 1]} : vector<8x384xf32> to vector<8x128xf32>
    %463 = vector.extract_strided_slice %453 {offsets = [0, 384], sizes = [8, 128], strides = [1, 1]} : vector<8x512xf32> to vector<8x128xf32>
    %464 = math.tanh %463 : vector<8x128xf32>
    %465 = arith.mulf %461, %445 : vector<8x128xf32>
    %466 = arith.mulf %460, %464 : vector<8x128xf32>
    %467 = arith.addf %465, %466 : vector<8x128xf32>
    %468 = math.tanh %467 : vector<8x128xf32>
    %469 = arith.mulf %462, %468 : vector<8x128xf32>
    %470 = arith.index_cast %447 : i32 to index
    %c0_159 = arith.constant 0 : index
    %471 = vector.load %arg15[%470, %c0_159] : memref<64x128xf32, #tpu.memory_space<vmem>>, vector<8x128xf32>
    tpu.vector_store %arg15[%470, %c0_159], %469 {strides = array<i32>} : memref<64x128xf32, #tpu.memory_space<vmem>>, vector<8x128xf32>,
    %c1_i32_160 = arith.constant 1 : i32
    %c8_i32_161 = arith.constant 8 : i32
    %472 = arith.muli %c1_i32_160, %c8_i32_161 : i32
    %473 = tpu.assume_multiple %472, 8 : i32
    %474 = arith.index_cast %473 : i32 to index
    %c0_162 = arith.constant 0 : index
    %475 = vector.load %arg14[%474, %c0_162] : memref<64x512xf32, #tpu.memory_space<vmem>>, vector<8x512xf32>
    %476 = arith.truncf %469 : vector<8x128xf32> to vector<8x128xbf16>
    %c0_163 = arith.constant 0 : index
    %c0_164 = arith.constant 0 : index
    %477 = vector.load %arg9[%c0_163, %c0_164] : memref<128x512xbf16, #tpu.memory_space<vmem>>, vector<128x512xbf16>
    %cst_165 = arith.constant dense<0.000000e+00> : vector<8x512xf32>
    %478 = tpu.matmul %476, %477, %cst_165 {dimension_numbers = #tpu.dot_dimension_numbers<[1], [0], [0], [1], [0, 0, 1, 1], [], []>} : vector<8x128xbf16>, vector<128x512xbf16>, vector<8x512xf32> -> vector<8x512xf32>
    %479 = arith.addf %475, %478 : vector<8x512xf32>
    %480 = vector.extract_strided_slice %479 {offsets = [0, 0], sizes = [8, 384], strides = [1, 1]} : vector<8x512xf32> to vector<8x384xf32>
    %481 = arith.negf %480 : vector<8x384xf32>
    %482 = math.exp %481 : vector<8x384xf32>
    %cst_166 = arith.constant 1.000000e+00 : f32
    %483 = vector.broadcast %cst_166 : f32 to vector<8x384xf32>
    %484 = arith.addf %483, %482 : vector<8x384xf32>
    %485 = arith.divf %483, %484 : vector<8x384xf32>
    %486 = vector.extract_strided_slice %485 {offsets = [0, 0], sizes = [8, 128], strides = [1, 1]} : vector<8x384xf32> to vector<8x128xf32>
    %487 = vector.extract_strided_slice %485 {offsets = [0, 128], sizes = [8, 128], strides = [1, 1]} : vector<8x384xf32> to vector<8x128xf32>
    %488 = vector.extract_strided_slice %485 {offsets = [0, 256], sizes = [8, 128], strides = [1, 1]} : vector<8x384xf32> to vector<8x128xf32>
    %489 = vector.extract_strided_slice %479 {offsets = [0, 384], sizes = [8, 128], strides = [1, 1]} : vector<8x512xf32> to vector<8x128xf32>
    %490 = math.tanh %489 : vector<8x128xf32>
    %491 = arith.mulf %487, %467 : vector<8x128xf32>
    %492 = arith.mulf %486, %490 : vector<8x128xf32>
    %493 = arith.addf %491, %492 : vector<8x128xf32>
    %494 = math.tanh %493 : vector<8x128xf32>
    %495 = arith.mulf %488, %494 : vector<8x128xf32>
    %496 = arith.index_cast %473 : i32 to index
    %c0_167 = arith.constant 0 : index
    %497 = vector.load %arg15[%496, %c0_167] : memref<64x128xf32, #tpu.memory_space<vmem>>, vector<8x128xf32>
    tpu.vector_store %arg15[%496, %c0_167], %495 {strides = array<i32>} : memref<64x128xf32, #tpu.memory_space<vmem>>, vector<8x128xf32>,
    %c2_i32_168 = arith.constant 2 : i32
    %c8_i32_169 = arith.constant 8 : i32
    %498 = arith.muli %c2_i32_168, %c8_i32_169 : i32
    %499 = tpu.assume_multiple %498, 8 : i32
    %500 = arith.index_cast %499 : i32 to index
    %c0_170 = arith.constant 0 : index
    %501 = vector.load %arg14[%500, %c0_170] : memref<64x512xf32, #tpu.memory_space<vmem>>, vector<8x512xf32>
    %502 = arith.truncf %495 : vector<8x128xf32> to vector<8x128xbf16>
    %c0_171 = arith.constant 0 : index
    %c0_172 = arith.constant 0 : index
    %503 = vector.load %arg9[%c0_171, %c0_172] : memref<128x512xbf16, #tpu.memory_space<vmem>>, vector<128x512xbf16>
    %cst_173 = arith.constant dense<0.000000e+00> : vector<8x512xf32>
    %504 = tpu.matmul %502, %503, %cst_173 {dimension_numbers = #tpu.dot_dimension_numbers<[1], [0], [0], [1], [0, 0, 1, 1], [], []>} : vector<8x128xbf16>, vector<128x512xbf16>, vector<8x512xf32> -> vector<8x512xf32>
    %505 = arith.addf %501, %504 : vector<8x512xf32>
    %506 = vector.extract_strided_slice %505 {offsets = [0, 0], sizes = [8, 384], strides = [1, 1]} : vector<8x512xf32> to vector<8x384xf32>
    %507 = arith.negf %506 : vector<8x384xf32>
    %508 = math.exp %507 : vector<8x384xf32>
    %cst_174 = arith.constant 1.000000e+00 : f32
    %509 = vector.broadcast %cst_174 : f32 to vector<8x384xf32>
    %510 = arith.addf %509, %508 : vector<8x384xf32>
    %511 = arith.divf %509, %510 : vector<8x384xf32>
    %512 = vector.extract_strided_slice %511 {offsets = [0, 0], sizes = [8, 128], strides = [1, 1]} : vector<8x384xf32> to vector<8x128xf32>
    %513 = vector.extract_strided_slice %511 {offsets = [0, 128], sizes = [8, 128], strides = [1, 1]} : vector<8x384xf32> to vector<8x128xf32>
    %514 = vector.extract_strided_slice %511 {offsets = [0, 256], sizes = [8, 128], strides = [1, 1]} : vector<8x384xf32> to vector<8x128xf32>
    %515 = vector.extract_strided_slice %505 {offsets = [0, 384], sizes = [8, 128], strides = [1, 1]} : vector<8x512xf32> to vector<8x128xf32>
    %516 = math.tanh %515 : vector<8x128xf32>
    %517 = arith.mulf %513, %493 : vector<8x128xf32>
    %518 = arith.mulf %512, %516 : vector<8x128xf32>
    %519 = arith.addf %517, %518 : vector<8x128xf32>
    %520 = math.tanh %519 : vector<8x128xf32>
    %521 = arith.mulf %514, %520 : vector<8x128xf32>
    %522 = arith.index_cast %499 : i32 to index
    %c0_175 = arith.constant 0 : index
    %523 = vector.load %arg15[%522, %c0_175] : memref<64x128xf32, #tpu.memory_space<vmem>>, vector<8x128xf32>
    tpu.vector_store %arg15[%522, %c0_175], %521 {strides = array<i32>} : memref<64x128xf32, #tpu.memory_space<vmem>>, vector<8x128xf32>,
    %c3_i32_176 = arith.constant 3 : i32
    %c8_i32_177 = arith.constant 8 : i32
    %524 = arith.muli %c3_i32_176, %c8_i32_177 : i32
    %525 = tpu.assume_multiple %524, 8 : i32
    %526 = arith.index_cast %525 : i32 to index
    %c0_178 = arith.constant 0 : index
    %527 = vector.load %arg14[%526, %c0_178] : memref<64x512xf32, #tpu.memory_space<vmem>>, vector<8x512xf32>
    %528 = arith.truncf %521 : vector<8x128xf32> to vector<8x128xbf16>
    %c0_179 = arith.constant 0 : index
    %c0_180 = arith.constant 0 : index
    %529 = vector.load %arg9[%c0_179, %c0_180] : memref<128x512xbf16, #tpu.memory_space<vmem>>, vector<128x512xbf16>
    %cst_181 = arith.constant dense<0.000000e+00> : vector<8x512xf32>
    %530 = tpu.matmul %528, %529, %cst_181 {dimension_numbers = #tpu.dot_dimension_numbers<[1], [0], [0], [1], [0, 0, 1, 1], [], []>} : vector<8x128xbf16>, vector<128x512xbf16>, vector<8x512xf32> -> vector<8x512xf32>
    %531 = arith.addf %527, %530 : vector<8x512xf32>
    %532 = vector.extract_strided_slice %531 {offsets = [0, 0], sizes = [8, 384], strides = [1, 1]} : vector<8x512xf32> to vector<8x384xf32>
    %533 = arith.negf %532 : vector<8x384xf32>
    %534 = math.exp %533 : vector<8x384xf32>
    %cst_182 = arith.constant 1.000000e+00 : f32
    %535 = vector.broadcast %cst_182 : f32 to vector<8x384xf32>
    %536 = arith.addf %535, %534 : vector<8x384xf32>
    %537 = arith.divf %535, %536 : vector<8x384xf32>
    %538 = vector.extract_strided_slice %537 {offsets = [0, 0], sizes = [8, 128], strides = [1, 1]} : vector<8x384xf32> to vector<8x128xf32>
    %539 = vector.extract_strided_slice %537 {offsets = [0, 128], sizes = [8, 128], strides = [1, 1]} : vector<8x384xf32> to vector<8x128xf32>
    %540 = vector.extract_strided_slice %537 {offsets = [0, 256], sizes = [8, 128], strides = [1, 1]} : vector<8x384xf32> to vector<8x128xf32>
    %541 = vector.extract_strided_slice %531 {offsets = [0, 384], sizes = [8, 128], strides = [1, 1]} : vector<8x512xf32> to vector<8x128xf32>
    %542 = math.tanh %541 : vector<8x128xf32>
    %543 = arith.mulf %539, %519 : vector<8x128xf32>
    %544 = arith.mulf %538, %542 : vector<8x128xf32>
    %545 = arith.addf %543, %544 : vector<8x128xf32>
    %546 = math.tanh %545 : vector<8x128xf32>
    %547 = arith.mulf %540, %546 : vector<8x128xf32>
    %548 = arith.index_cast %525 : i32 to index
    %c0_183 = arith.constant 0 : index
    %549 = vector.load %arg15[%548, %c0_183] : memref<64x128xf32, #tpu.memory_space<vmem>>, vector<8x128xf32>
    tpu.vector_store %arg15[%548, %c0_183], %547 {strides = array<i32>} : memref<64x128xf32, #tpu.memory_space<vmem>>, vector<8x128xf32>,
    %c4_i32_184 = arith.constant 4 : i32
    %c8_i32_185 = arith.constant 8 : i32
    %550 = arith.muli %c4_i32_184, %c8_i32_185 : i32
    %551 = tpu.assume_multiple %550, 8 : i32
    %552 = arith.index_cast %551 : i32 to index
    %c0_186 = arith.constant 0 : index
    %553 = vector.load %arg14[%552, %c0_186] : memref<64x512xf32, #tpu.memory_space<vmem>>, vector<8x512xf32>
    %554 = arith.truncf %547 : vector<8x128xf32> to vector<8x128xbf16>
    %c0_187 = arith.constant 0 : index
    %c0_188 = arith.constant 0 : index
    %555 = vector.load %arg9[%c0_187, %c0_188] : memref<128x512xbf16, #tpu.memory_space<vmem>>, vector<128x512xbf16>
    %cst_189 = arith.constant dense<0.000000e+00> : vector<8x512xf32>
    %556 = tpu.matmul %554, %555, %cst_189 {dimension_numbers = #tpu.dot_dimension_numbers<[1], [0], [0], [1], [0, 0, 1, 1], [], []>} : vector<8x128xbf16>, vector<128x512xbf16>, vector<8x512xf32> -> vector<8x512xf32>
    %557 = arith.addf %553, %556 : vector<8x512xf32>
    %558 = vector.extract_strided_slice %557 {offsets = [0, 0], sizes = [8, 384], strides = [1, 1]} : vector<8x512xf32> to vector<8x384xf32>
    %559 = arith.negf %558 : vector<8x384xf32>
    %560 = math.exp %559 : vector<8x384xf32>
    %cst_190 = arith.constant 1.000000e+00 : f32
    %561 = vector.broadcast %cst_190 : f32 to vector<8x384xf32>
    %562 = arith.addf %561, %560 : vector<8x384xf32>
    %563 = arith.divf %561, %562 : vector<8x384xf32>
    %564 = vector.extract_strided_slice %563 {offsets = [0, 0], sizes = [8, 128], strides = [1, 1]} : vector<8x384xf32> to vector<8x128xf32>
    %565 = vector.extract_strided_slice %563 {offsets = [0, 128], sizes = [8, 128], strides = [1, 1]} : vector<8x384xf32> to vector<8x128xf32>
    %566 = vector.extract_strided_slice %563 {offsets = [0, 256], sizes = [8, 128], strides = [1, 1]} : vector<8x384xf32> to vector<8x128xf32>
    %567 = vector.extract_strided_slice %557 {offsets = [0, 384], sizes = [8, 128], strides = [1, 1]} : vector<8x512xf32> to vector<8x128xf32>
    %568 = math.tanh %567 : vector<8x128xf32>
    %569 = arith.mulf %565, %545 : vector<8x128xf32>
    %570 = arith.mulf %564, %568 : vector<8x128xf32>
    %571 = arith.addf %569, %570 : vector<8x128xf32>
    %572 = math.tanh %571 : vector<8x128xf32>
    %573 = arith.mulf %566, %572 : vector<8x128xf32>
    %574 = arith.index_cast %551 : i32 to index
    %c0_191 = arith.constant 0 : index
    %575 = vector.load %arg15[%574, %c0_191] : memref<64x128xf32, #tpu.memory_space<vmem>>, vector<8x128xf32>
    tpu.vector_store %arg15[%574, %c0_191], %573 {strides = array<i32>} : memref<64x128xf32, #tpu.memory_space<vmem>>, vector<8x128xf32>,
    %c5_i32_192 = arith.constant 5 : i32
    %c8_i32_193 = arith.constant 8 : i32
    %576 = arith.muli %c5_i32_192, %c8_i32_193 : i32
    %577 = tpu.assume_multiple %576, 8 : i32
    %578 = arith.index_cast %577 : i32 to index
    %c0_194 = arith.constant 0 : index
    %579 = vector.load %arg14[%578, %c0_194] : memref<64x512xf32, #tpu.memory_space<vmem>>, vector<8x512xf32>
    %580 = arith.truncf %573 : vector<8x128xf32> to vector<8x128xbf16>
    %c0_195 = arith.constant 0 : index
    %c0_196 = arith.constant 0 : index
    %581 = vector.load %arg9[%c0_195, %c0_196] : memref<128x512xbf16, #tpu.memory_space<vmem>>, vector<128x512xbf16>
    %cst_197 = arith.constant dense<0.000000e+00> : vector<8x512xf32>
    %582 = tpu.matmul %580, %581, %cst_197 {dimension_numbers = #tpu.dot_dimension_numbers<[1], [0], [0], [1], [0, 0, 1, 1], [], []>} : vector<8x128xbf16>, vector<128x512xbf16>, vector<8x512xf32> -> vector<8x512xf32>
    %583 = arith.addf %579, %582 : vector<8x512xf32>
    %584 = vector.extract_strided_slice %583 {offsets = [0, 0], sizes = [8, 384], strides = [1, 1]} : vector<8x512xf32> to vector<8x384xf32>
    %585 = arith.negf %584 : vector<8x384xf32>
    %586 = math.exp %585 : vector<8x384xf32>
    %cst_198 = arith.constant 1.000000e+00 : f32
    %587 = vector.broadcast %cst_198 : f32 to vector<8x384xf32>
    %588 = arith.addf %587, %586 : vector<8x384xf32>
    %589 = arith.divf %587, %588 : vector<8x384xf32>
    %590 = vector.extract_strided_slice %589 {offsets = [0, 0], sizes = [8, 128], strides = [1, 1]} : vector<8x384xf32> to vector<8x128xf32>
    %591 = vector.extract_strided_slice %589 {offsets = [0, 128], sizes = [8, 128], strides = [1, 1]} : vector<8x384xf32> to vector<8x128xf32>
    %592 = vector.extract_strided_slice %589 {offsets = [0, 256], sizes = [8, 128], strides = [1, 1]} : vector<8x384xf32> to vector<8x128xf32>
    %593 = vector.extract_strided_slice %583 {offsets = [0, 384], sizes = [8, 128], strides = [1, 1]} : vector<8x512xf32> to vector<8x128xf32>
    %594 = math.tanh %593 : vector<8x128xf32>
    %595 = arith.mulf %591, %571 : vector<8x128xf32>
    %596 = arith.mulf %590, %594 : vector<8x128xf32>
    %597 = arith.addf %595, %596 : vector<8x128xf32>
    %598 = math.tanh %597 : vector<8x128xf32>
    %599 = arith.mulf %592, %598 : vector<8x128xf32>
    %600 = arith.index_cast %577 : i32 to index
    %c0_199 = arith.constant 0 : index
    %601 = vector.load %arg15[%600, %c0_199] : memref<64x128xf32, #tpu.memory_space<vmem>>, vector<8x128xf32>
    tpu.vector_store %arg15[%600, %c0_199], %599 {strides = array<i32>} : memref<64x128xf32, #tpu.memory_space<vmem>>, vector<8x128xf32>,
    %c6_i32_200 = arith.constant 6 : i32
    %c8_i32_201 = arith.constant 8 : i32
    %602 = arith.muli %c6_i32_200, %c8_i32_201 : i32
    %603 = tpu.assume_multiple %602, 8 : i32
    %604 = arith.index_cast %603 : i32 to index
    %c0_202 = arith.constant 0 : index
    %605 = vector.load %arg14[%604, %c0_202] : memref<64x512xf32, #tpu.memory_space<vmem>>, vector<8x512xf32>
    %606 = arith.truncf %599 : vector<8x128xf32> to vector<8x128xbf16>
    %c0_203 = arith.constant 0 : index
    %c0_204 = arith.constant 0 : index
    %607 = vector.load %arg9[%c0_203, %c0_204] : memref<128x512xbf16, #tpu.memory_space<vmem>>, vector<128x512xbf16>
    %cst_205 = arith.constant dense<0.000000e+00> : vector<8x512xf32>
    %608 = tpu.matmul %606, %607, %cst_205 {dimension_numbers = #tpu.dot_dimension_numbers<[1], [0], [0], [1], [0, 0, 1, 1], [], []>} : vector<8x128xbf16>, vector<128x512xbf16>, vector<8x512xf32> -> vector<8x512xf32>
    %609 = arith.addf %605, %608 : vector<8x512xf32>
    %610 = vector.extract_strided_slice %609 {offsets = [0, 0], sizes = [8, 384], strides = [1, 1]} : vector<8x512xf32> to vector<8x384xf32>
    %611 = arith.negf %610 : vector<8x384xf32>
    %612 = math.exp %611 : vector<8x384xf32>
    %cst_206 = arith.constant 1.000000e+00 : f32
    %613 = vector.broadcast %cst_206 : f32 to vector<8x384xf32>
    %614 = arith.addf %613, %612 : vector<8x384xf32>
    %615 = arith.divf %613, %614 : vector<8x384xf32>
    %616 = vector.extract_strided_slice %615 {offsets = [0, 0], sizes = [8, 128], strides = [1, 1]} : vector<8x384xf32> to vector<8x128xf32>
    %617 = vector.extract_strided_slice %615 {offsets = [0, 128], sizes = [8, 128], strides = [1, 1]} : vector<8x384xf32> to vector<8x128xf32>
    %618 = vector.extract_strided_slice %615 {offsets = [0, 256], sizes = [8, 128], strides = [1, 1]} : vector<8x384xf32> to vector<8x128xf32>
    %619 = vector.extract_strided_slice %609 {offsets = [0, 384], sizes = [8, 128], strides = [1, 1]} : vector<8x512xf32> to vector<8x128xf32>
    %620 = math.tanh %619 : vector<8x128xf32>
    %621 = arith.mulf %617, %597 : vector<8x128xf32>
    %622 = arith.mulf %616, %620 : vector<8x128xf32>
    %623 = arith.addf %621, %622 : vector<8x128xf32>
    %624 = math.tanh %623 : vector<8x128xf32>
    %625 = arith.mulf %618, %624 : vector<8x128xf32>
    %626 = arith.index_cast %603 : i32 to index
    %c0_207 = arith.constant 0 : index
    %627 = vector.load %arg15[%626, %c0_207] : memref<64x128xf32, #tpu.memory_space<vmem>>, vector<8x128xf32>
    tpu.vector_store %arg15[%626, %c0_207], %625 {strides = array<i32>} : memref<64x128xf32, #tpu.memory_space<vmem>>, vector<8x128xf32>,
    %c7_i32_208 = arith.constant 7 : i32
    %c8_i32_209 = arith.constant 8 : i32
    %628 = arith.muli %c7_i32_208, %c8_i32_209 : i32
    %629 = tpu.assume_multiple %628, 8 : i32
    %630 = arith.index_cast %629 : i32 to index
    %c0_210 = arith.constant 0 : index
    %631 = vector.load %arg14[%630, %c0_210] : memref<64x512xf32, #tpu.memory_space<vmem>>, vector<8x512xf32>
    %632 = arith.truncf %625 : vector<8x128xf32> to vector<8x128xbf16>
    %c0_211 = arith.constant 0 : index
    %c0_212 = arith.constant 0 : index
    %633 = vector.load %arg9[%c0_211, %c0_212] : memref<128x512xbf16, #tpu.memory_space<vmem>>, vector<128x512xbf16>
    %cst_213 = arith.constant dense<0.000000e+00> : vector<8x512xf32>
    %634 = tpu.matmul %632, %633, %cst_213 {dimension_numbers = #tpu.dot_dimension_numbers<[1], [0], [0], [1], [0, 0, 1, 1], [], []>} : vector<8x128xbf16>, vector<128x512xbf16>, vector<8x512xf32> -> vector<8x512xf32>
    %635 = arith.addf %631, %634 : vector<8x512xf32>
    %636 = vector.extract_strided_slice %635 {offsets = [0, 0], sizes = [8, 384], strides = [1, 1]} : vector<8x512xf32> to vector<8x384xf32>
    %637 = arith.negf %636 : vector<8x384xf32>
    %638 = math.exp %637 : vector<8x384xf32>
    %cst_214 = arith.constant 1.000000e+00 : f32
    %639 = vector.broadcast %cst_214 : f32 to vector<8x384xf32>
    %640 = arith.addf %639, %638 : vector<8x384xf32>
    %641 = arith.divf %639, %640 : vector<8x384xf32>
    %642 = vector.extract_strided_slice %641 {offsets = [0, 0], sizes = [8, 128], strides = [1, 1]} : vector<8x384xf32> to vector<8x128xf32>
    %643 = vector.extract_strided_slice %641 {offsets = [0, 128], sizes = [8, 128], strides = [1, 1]} : vector<8x384xf32> to vector<8x128xf32>
    %644 = vector.extract_strided_slice %641 {offsets = [0, 256], sizes = [8, 128], strides = [1, 1]} : vector<8x384xf32> to vector<8x128xf32>
    %645 = vector.extract_strided_slice %635 {offsets = [0, 384], sizes = [8, 128], strides = [1, 1]} : vector<8x512xf32> to vector<8x128xf32>
    %646 = math.tanh %645 : vector<8x128xf32>
    %647 = arith.mulf %643, %623 : vector<8x128xf32>
    %648 = arith.mulf %642, %646 : vector<8x128xf32>
    %649 = arith.addf %647, %648 : vector<8x128xf32>
    %650 = math.tanh %649 : vector<8x128xf32>
    %651 = arith.mulf %644, %650 : vector<8x128xf32>
    %652 = arith.index_cast %629 : i32 to index
    %c0_215 = arith.constant 0 : index
    %653 = vector.load %arg15[%652, %c0_215] : memref<64x128xf32, #tpu.memory_space<vmem>>, vector<8x128xf32>
    tpu.vector_store %arg15[%652, %c0_215], %651 {strides = array<i32>} : memref<64x128xf32, #tpu.memory_space<vmem>>, vector<8x128xf32>,
    %c8_i32_216 = arith.constant 8 : i32
    %c0_217 = arith.constant 0 : index
    %c0_218 = arith.constant 0 : index
    %654 = vector.load %arg15[%c0_217, %c0_218] : memref<64x128xf32, #tpu.memory_space<vmem>>, vector<64x128xf32>
    %655 = arith.truncf %654 : vector<64x128xf32> to vector<64x128xbf16>
    %c0_219 = arith.constant 0 : index
    %c0_220 = arith.constant 0 : index
    %656 = vector.load %arg11[%c0_219, %c0_220] : memref<128x128xbf16, #tpu.memory_space<vmem>>, vector<128x128xbf16>
    %cst_221 = arith.constant dense<0.000000e+00> : vector<64x128xf32>
    %657 = tpu.matmul %655, %656, %cst_221 {dimension_numbers = #tpu.dot_dimension_numbers<[1], [0], [0], [1], [0, 0, 1, 1], [], []>} : vector<64x128xbf16>, vector<128x128xbf16>, vector<64x128xf32> -> vector<64x128xf32>
    %c0_222 = arith.constant 0 : index
    %c0_223 = arith.constant 0 : index
    %658 = vector.load %arg12[%c0_222, %c0_223] : memref<1x128xf32, #tpu.memory_space<vmem>>, vector<1x128xf32>
    %659 = vector.broadcast %658 : vector<1x128xf32> to vector<64x128xf32>
    %660 = arith.addf %657, %659 : vector<64x128xf32>
    %c0_224 = arith.constant 0 : index
    %c0_225 = arith.constant 0 : index
    %661 = vector.load %arg13[%c0_224, %c0_225] : memref<64x128xf32, #tpu.memory_space<vmem>>, vector<64x128xf32>
    tpu.vector_store %arg13[%c0_224, %c0_225], %660 {strides = array<i32>} : memref<64x128xf32, #tpu.memory_space<vmem>>, vector<64x128xf32>,
    return
  }
  func.func @transform_0(%arg0: i32) -> (i32, i32) {
    %c0_i32 = arith.constant 0 : i32
    %c0_i32_0 = arith.constant 0 : i32
    return %arg0, %c0_i32 : i32, i32
  }
  func.func @transform_1(%arg0: i32) -> (i32, i32) {
    %c0_i32 = arith.constant 0 : i32
    %c0_i32_0 = arith.constant 0 : i32
    %c0_i32_1 = arith.constant 0 : i32
    return %c0_i32, %c0_i32_0 : i32, i32
  }
  func.func @transform_2(%arg0: i32) -> (i32, i32) {
    %c0_i32 = arith.constant 0 : i32
    %c0_i32_0 = arith.constant 0 : i32
    %c0_i32_1 = arith.constant 0 : i32
    return %c0_i32, %c0_i32_0 : i32, i32
  }
  func.func @transform_3(%arg0: i32) -> (i32, i32) {
    %c0_i32 = arith.constant 0 : i32
    %c0_i32_0 = arith.constant 0 : i32
    %c0_i32_1 = arith.constant 0 : i32
    return %c0_i32, %c0_i32_0 : i32, i32
  }
  func.func @transform_4(%arg0: i32) -> (i32, i32) {
    %c0_i32 = arith.constant 0 : i32
    %c0_i32_0 = arith.constant 0 : i32
    %c0_i32_1 = arith.constant 0 : i32
    return %c0_i32, %c0_i32_0 : i32, i32
  }
  func.func @transform_5(%arg0: i32) -> (i32, i32) {
    %c0_i32 = arith.constant 0 : i32
    %c0_i32_0 = arith.constant 0 : i32
    %c0_i32_1 = arith.constant 0 : i32
    return %c0_i32, %c0_i32_0 : i32, i32
  }
  func.func @transform_6(%arg0: i32) -> (i32, i32) {
    %c0_i32 = arith.constant 0 : i32
    %c0_i32_0 = arith.constant 0 : i32
    %c0_i32_1 = arith.constant 0 : i32
    return %c0_i32, %c0_i32_0 : i32, i32
  }
  func.func @transform_7(%arg0: i32) -> (i32, i32) {
    %c0_i32 = arith.constant 0 : i32
    %c0_i32_0 = arith.constant 0 : i32
    %c0_i32_1 = arith.constant 0 : i32
    return %c0_i32, %c0_i32_0 : i32, i32
  }
  func.func @transform_8(%arg0: i32) -> (i32, i32) {
    %c0_i32 = arith.constant 0 : i32
    %c0_i32_0 = arith.constant 0 : i32
    %c0_i32_1 = arith.constant 0 : i32
    return %c0_i32, %c0_i32_0 : i32, i32
  }
  func.func @transform_9(%arg0: i32) -> (i32, i32) {
    %c0_i32 = arith.constant 0 : i32
    %c0_i32_0 = arith.constant 0 : i32
    %c0_i32_1 = arith.constant 0 : i32
    return %c0_i32, %c0_i32_0 : i32, i32
  }
  func.func @transform_10(%arg0: i32) -> (i32, i32) {
    %c0_i32 = arith.constant 0 : i32
    %c0_i32_0 = arith.constant 0 : i32
    %c0_i32_1 = arith.constant 0 : i32
    return %c0_i32, %c0_i32_0 : i32, i32
  }
  func.func @transform_11(%arg0: i32) -> (i32, i32) {
    %c0_i32 = arith.constant 0 : i32
    %c0_i32_0 = arith.constant 0 : i32
    %c0_i32_1 = arith.constant 0 : i32
    return %c0_i32, %c0_i32_0 : i32, i32
  }
  func.func @transform_12(%arg0: i32) -> (i32, i32) {
    %c0_i32 = arith.constant 0 : i32
    %c0_i32_0 = arith.constant 0 : i32
    return %arg0, %c0_i32 : i32, i32
  }
}

</mosaic_0001>

<llo_original>
// kernel: lstm_reg_forward.1
$region0: #{lstm_reg_forward.1}
  #allocation0 [shape = 'u32[]', space=smem, size = 0x4, offset = 0x4, fixed_abs, tag = 'smem constant byte address 0x4 - core index']
  #allocation1 [shape = 'u32[144,128]{1,0:T(1,128)}', space=vmem, size = 0x12000, scoped, tag = 'internal scratch']
  #allocation2 [shape = 'f32[64,512]{1,0:T(8,128)}', space=vmem, size = 0x20000, scoped, tag = 'scratch operand']
  #allocation3 [shape = 'f32[64,128]{1,0:T(8,128)}', space=vmem, size = 0x8000, scoped, tag = 'scratch operand']
  %s0 = inlined_call_operand.vmem [shape: f32[64,4], index: 0, kind: input, shape index: {}]
  %s1 = inlined_call_operand.vmem [shape: bf16[4,512], index: 1, kind: input, shape index: {}]
  %s2 = inlined_call_operand.vmem [shape: bf16[128,512], index: 2, kind: input, shape index: {}]
  %s3 = inlined_call_operand.vmem [shape: f32[1,512], index: 3, kind: input, shape index: {}]
  %s4 = inlined_call_operand.hbm [shape: bf16[128,512], index: 4, kind: input, shape index: {}]
  %s5 = inlined_call_operand.hbm [shape: bf16[128,512], index: 5, kind: input, shape index: {}]
  %s6 = inlined_call_operand.vmem [shape: f32[1,512], index: 6, kind: input, shape index: {}]
  %s7 = inlined_call_operand.hbm [shape: bf16[128,512], index: 7, kind: input, shape index: {}]
  %s8 = inlined_call_operand.hbm [shape: bf16[128,512], index: 8, kind: input, shape index: {}]
  %s9 = inlined_call_operand.vmem [shape: f32[1,512], index: 9, kind: input, shape index: {}]
  %s10 = inlined_call_operand.vmem [shape: bf16[128,128], index: 10, kind: input, shape index: {}]
  %s11 = inlined_call_operand.vmem [shape: f32[1,128], index: 11, kind: input, shape index: {}]
  %s12 = inlined_call_operand.vmem [shape: f32[64,128], index: 12, kind: output, shape index: {}]
  %s13 = sld [smem:[#allocation0]]
  $region74: #{lstm_reg_forward.1} parent=0
    _
  %s15 = ssub.s32 1, %s13
  %s16 = scalar_select 0, %s15, %s13
  $region1: #{lstm_reg_forward.1} parent=0
    #allocation4 [shape = 'u8[131072]{0}', space=vmem, size = 0x20000, scoped, tag = 'input window, operand 4, single buffered']
    #allocation5 [shape = 's32[1]{0}', space=sflag, size = 0x4, scoped, tag = 'scoped memory for lstm_reg_forward.1']
    #allocation6 [shape = 'u8[131072]{0}', space=vmem, size = 0x20000, scoped, tag = 'input window, operand 5, single buffered']
    #allocation7 [shape = 's32[1]{0}', space=sflag, size = 0x4, scoped, tag = 'scoped memory for lstm_reg_forward.1']
    #allocation8 [shape = 'u8[131072]{0}', space=vmem, size = 0x20000, scoped, tag = 'input window, operand 7, single buffered']
    #allocation9 [shape = 'u8[131072]{0}', space=vmem, size = 0x20000, scoped, tag = 'input window, operand 8, single buffered']
    #allocation10 [shape = 's32[1]{0}', space=sflag, size = 0x4, scoped, tag = 'scoped memory for lstm_reg_forward.1']
    %17 = vsyncpa [#allocation5], 0
    %18 = vsyncpa [#allocation7], 0
    %19 = vsyncpa [#allocation10], 0
    // Predicated region
    $region2: #{lstm_reg_forward.1} parent=1 // pred_check
      _
    $region3: #{lstm_reg_forward.1} parent=1 // pred_check_branch
      %21 = sbr.rel (0) target = $region5
    $region4: #{lstm_reg_forward.1} parent=1 // pred_region
      _
    $region5: #{lstm_reg_forward.1} parent=1 // pred_fallthru
      _
    // Predicated region
    $region6: #{lstm_reg_forward.1} parent=1 // pred_check
      _
    $region7: #{lstm_reg_forward.1} parent=1 // pred_check_branch
      %23 = sbr.rel (0) target = $region9
    $region8: #{lstm_reg_forward.1} parent=1 // pred_region
      _
    $region9: #{lstm_reg_forward.1} parent=1 // pred_fallthru
      _
    // Predicated region
    $region10: #{lstm_reg_forward.1} parent=1 // pred_check
      _
    $region11: #{lstm_reg_forward.1} parent=1 // pred_check_branch
      %25 = sbr.rel (0) target = $region13
    $region12: #{lstm_reg_forward.1} parent=1 // pred_region
      _
    $region13: #{lstm_reg_forward.1} parent=1 // pred_fallthru
      _
    // Predicated region
    $region14: #{lstm_reg_forward.1} parent=1 // pred_check
      _
    $region15: #{lstm_reg_forward.1} parent=1 // pred_check_branch
      %27 = sbr.rel (0) target = $region17
    $region16: #{lstm_reg_forward.1} parent=1 // pred_region
      _
    $region17: #{lstm_reg_forward.1} parent=1 // pred_fallthru
      _
    // Predicated region
    $region18: #{lstm_reg_forward.1} parent=1 // pred_check
      _
    $region19: #{lstm_reg_forward.1} parent=1 // pred_check_branch
      %29 = sbr.rel (0) target = $region21
    $region20: #{lstm_reg_forward.1} parent=1 // pred_region
      %s31 = ssub.s32 4096, 4096
      %32 = vsyncadd [#allocation5], %s31
      %s33 = sshll.u32 [#allocation4], 4
      %s34 = int_to_ptr.vmem [resolvable:$true] %s33
      %39 = dma.hbm_to_vmem [thread:$0]  %s4, 4096, %s34, [#allocation5], 256, 256, 16
    $region21: #{lstm_reg_forward.1} parent=1 // pred_fallthru
      _
    // Predicated region
    $region22: #{lstm_reg_forward.1} parent=1 // pred_check
      _
    $region23: #{lstm_reg_forward.1} parent=1 // pred_check_branch
      %41 = sbr.rel (0) target = $region25
    $region24: #{lstm_reg_forward.1} parent=1 // pred_region
      %s43 = ssub.s32 4096, 4096
      %44 = vsyncadd [#allocation7], %s43
      %s45 = sshll.u32 [#allocation6], 4
      %s46 = int_to_ptr.vmem [resolvable:$true] %s45
      %51 = dma.hbm_to_vmem [thread:$0]  %s5, 4096, %s46, [#allocation7], 256, 256, 16
    $region25: #{lstm_reg_forward.1} parent=1 // pred_fallthru
      _
    // Predicated region
    $region26: #{lstm_reg_forward.1} parent=1 // pred_check
      _
    $region27: #{lstm_reg_forward.1} parent=1 // pred_check_branch
      %53 = sbr.rel (0) target = $region29
    $region28: #{lstm_reg_forward.1} parent=1 // pred_region
      _
    $region29: #{lstm_reg_forward.1} parent=1 // pred_fallthru
      _
    // Predicated region
    $region30: #{lstm_reg_forward.1} parent=1 // pred_check
      _
    $region31: #{lstm_reg_forward.1} parent=1 // pred_check_branch
      %55 = sbr.rel (0) target = $region33
    $region32: #{lstm_reg_forward.1} parent=1 // pred_region
      %s57 = ssub.s32 4096, 4096
      %58 = vsyncadd [#allocation7], %s57
      %s59 = sshll.u32 [#allocation8], 4
      %s60 = int_to_ptr.vmem [resolvable:$true] %s59
      %65 = dma.hbm_to_vmem [thread:$0]  %s7, 4096, %s60, [#allocation7], 256, 256, 16
    $region33: #{lstm_reg_forward.1} parent=1 // pred_fallthru
      _
    // Predicated region
    $region34: #{lstm_reg_forward.1} parent=1 // pred_check
      _
    $region35: #{lstm_reg_forward.1} parent=1 // pred_check_branch
      %67 = sbr.rel (0) target = $region37
    $region36: #{lstm_reg_forward.1} parent=1 // pred_region
      %s69 = ssub.s32 4096, 4096
      %70 = vsyncadd [#allocation10], %s69
      %s71 = sshll.u32 [#allocation9], 4
      %s72 = int_to_ptr.vmem [resolvable:$true] %s71
      %77 = dma.hbm_to_vmem [thread:$0]  %s8, 4096, %s72, [#allocation10], 256, 256, 16
    $region37: #{lstm_reg_forward.1} parent=1 // pred_fallthru
      _
    // Predicated region
    $region38: #{lstm_reg_forward.1} parent=1 // pred_check
      _
    $region39: #{lstm_reg_forward.1} parent=1 // pred_check_branch
      %79 = sbr.rel (0) target = $region41
    $region40: #{lstm_reg_forward.1} parent=1 // pred_region
      _
    $region41: #{lstm_reg_forward.1} parent=1 // pred_fallthru
      _
    // Predicated region
    $region42: #{lstm_reg_forward.1} parent=1 // pred_check
      _
    $region43: #{lstm_reg_forward.1} parent=1 // pred_check_branch
      %81 = sbr.rel (0) target = $region45
    $region44: #{lstm_reg_forward.1} parent=1 // pred_region
      _
    $region45: #{lstm_reg_forward.1} parent=1 // pred_fallthru
      _
    // Predicated region
    $region46: #{lstm_reg_forward.1} parent=1 // pred_check
      _
    $region47: #{lstm_reg_forward.1} parent=1 // pred_check_branch
      %83 = sbr.rel (0) target = $region49
    $region48: #{lstm_reg_forward.1} parent=1 // pred_region
      _
    $region49: #{lstm_reg_forward.1} parent=1 // pred_fallthru
      _
    // Predicated region
    $region50: #{lstm_reg_forward.1} parent=1 // pred_check
      _
    $region51: #{lstm_reg_forward.1} parent=1 // pred_check_branch
      %85 = sbr.rel (0) target = $region53
    $region52: #{lstm_reg_forward.1} parent=1 // pred_region
      %86 = dma.done [#allocation5], 4096
    $region53: #{lstm_reg_forward.1} parent=1 // pred_fallthru
      _
    // Predicated region
    $region54: #{lstm_reg_forward.1} parent=1 // pred_check
      _
    $region55: #{lstm_reg_forward.1} parent=1 // pred_check_branch
      %88 = sbr.rel (0) target = $region57
    $region56: #{lstm_reg_forward.1} parent=1 // pred_region
      %89 = dma.done [#allocation7], 4096
    $region57: #{lstm_reg_forward.1} parent=1 // pred_fallthru
      _
    // Predicated region
    $region58: #{lstm_reg_forward.1} parent=1 // pred_check
      _
    $region59: #{lstm_reg_forward.1} parent=1 // pred_check_branch
      %91 = sbr.rel (0) target = $region61
    $region60: #{lstm_reg_forward.1} parent=1 // pred_region
      %92 = dma.done [#allocation7], 4096
    $region61: #{lstm_reg_forward.1} parent=1 // pred_fallthru
      _
    // Predicated region
    $region62: #{lstm_reg_forward.1} parent=1 // pred_check
      _
    $region63: #{lstm_reg_forward.1} parent=1 // pred_check_branch
      %94 = sbr.rel (0) target = $region65
    $region64: #{lstm_reg_forward.1} parent=1 // pred_region
      %95 = dma.done [#allocation10], 4096
    $region65: #{lstm_reg_forward.1} parent=1 // pred_fallthru
      _
    %v97 = vld [vmem:[%s0] sm:$0xff]
    %v98 = vld [vmem:[%s0 + $0x8] sm:$0xff]
    %v99 = vld [vmem:[%s0 + $0x10] sm:$0xff]
    %v100 = vld [vmem:[%s0 + $0x18] sm:$0xff]
    %v101 = vld [vmem:[%s0 + $0x20] sm:$0xff]
    %v102 = vld [vmem:[%s0 + $0x28] sm:$0xff]
    %v103 = vld [vmem:[%s0 + $0x30] sm:$0xff]
    %v104 = vld [vmem:[%s0 + $0x38] sm:$0xff]
    %v105 = vpack.c.bf16 %v98, %v97
    %v106 = vpack.c.bf16 %v100, %v99
    %v107 = vpack.c.bf16 %v102, %v101
    %v108 = vpack.c.bf16 %v104, %v103
    %v109 = vld [vmem:[%s1] sm:$0xff]
    %v110 = vld [vmem:[%s3] sm:$0xf]
    %v112 = vlaneseq
    %v113 = vshrl.u32 %v112, 7
    %v114 = vsub.s32 0, %v113
    %v115 = vrot.slane %v110, %v114
    %v116 = vlaneseq
    %v117 = vshrl.u32 %v116, 7
    %v118 = vsub.s32 1, %v117
    %v119 = vrot.slane %v110, %v118
    %v120 = vlaneseq
    %v121 = vshrl.u32 %v120, 7
    %v122 = vsub.s32 2, %v121
    %v123 = vrot.slane %v110, %v122
    %v124 = vlaneseq
    %v125 = vshrl.u32 %v124, 7
    %v126 = vsub.s32 3, %v125
    %v127 = vrot.slane %v110, %v126
    %v133 = vcombine.high %v109, %v109
    %v135 = vunpack.c.l.s4 1983009808
    %v136 = vunpack.c.0.s8 %v135
    %v137 = vlaneseq
    %v138 = vshrl.u32 %v137, 7
    %v139 = vsub.s32 %v136, %v138
    %v140 = vrot.slane %v109, %v139
    %v142 = vunpack.c.l.s4 1983009808
    %v143 = vunpack.c.0.s8 %v142
    %v144 = vlaneseq
    %v145 = vshrl.u32 %v144, 7
    %v146 = vsub.s32 %v143, %v145
    %v147 = vrot.slane %v133, %v146
    %v148 = vcombine.high %v140, %v140
    %v149 = vcombine.high %v147, %v147
    %vm150 = vcmask 31744
    %v152 = vsel %vm150, %v105, 0
    %v155 = vsel %vm150, %v106, 0
    %v158 = vsel %vm150, %v107, 0
    %v161 = vsel %vm150, %v108, 0
    %vm163 = vcmask 1041408
    %v165 = vsel %vm163, %v140, 0
    %v168 = vsel %vm163, %v148, 0
    %v171 = vsel %vm163, %v147, 0
    %v174 = vsel %vm163, %v149, 0
    %176 = vmatprep.subr.bf16.mxu0 %v168
    %177 = vmatpush1.bf16.msra.mxu0 %v165
    %178 = vmatprep.subr.bf16.mxu0 0
    %179 = vmatpush1.bf16.msra.mxu0 0
    %180 = vmatprep.subr.bf16.mxu0 0
    %181 = vmatpush1.bf16.msra.mxu0 0
    %182 = vmatprep.subr.bf16.mxu0 0
    %183 = vmatpush1.bf16.msra.mxu0 0
    %184 = vmatprep.subr.bf16.mxu0 0
    %185 = vmatpush1.bf16.msra.mxu0 0
    %186 = vmatprep.subr.bf16.mxu0 0
    %187 = vmatpush1.bf16.msra.mxu0 0
    %188 = vmatprep.subr.bf16.mxu0 0
    %189 = vmatpush1.bf16.msra.mxu0 0
    %190 = vmatprep.subr.bf16.mxu0 0
    %191 = vmatpush1.bf16.msra.mxu0 0
    %192 = vmatprep.subr.bf16.mxu0 0
    %193 = vmatpush1.bf16.msra.mxu0 0
    %194 = vmatprep.subr.bf16.mxu0 0
    %195 = vmatpush1.bf16.msra.mxu0 0
    %196 = vmatprep.subr.bf16.mxu0 0
    %197 = vmatpush1.bf16.msra.mxu0 0
    %198 = vmatprep.subr.bf16.mxu0 0
    %199 = vmatpush1.bf16.msra.mxu0 0
    %200 = vmatprep.subr.bf16.mxu0 0
    %201 = vmatpush1.bf16.msra.mxu0 0
    %202 = vmatprep.subr.bf16.mxu0 0
    %203 = vmatpush1.bf16.msra.mxu0 0
    %204 = vmatprep.subr.bf16.mxu0 0
    %205 = vmatpush1.bf16.msra.mxu0 0
    %206 = vmatprep.subr.bf16.mxu0 0
    %207 = vmatpush1.bf16.msra.mxu0 0
    %208 = vmatprep.mubr.bf16.mxu0 0
    %209 = vmatmul.mubr.bf16.gmra.mrb[0].mxu0 %v152
    %v210 = vpop.f32.mrb[0].mxu0
    %v211 = vadd.f32 %v115, %v210
    %v212 = vpop.f32.mrb[0].mxu0
    %v213 = vadd.f32 %v119, %v212
    %v214 = vpop.f32.mrb[0].mxu0
    %v215 = vadd.f32 %v115, %v214
    %v216 = vpop.f32.mrb[0].mxu0
    %v217 = vadd.f32 %v119, %v216
    %218 = vmatprep.mubr.bf16.mxu0 0
    %219 = vmatmul.mubr.bf16.gmra.mrb[0].mxu0 %v155
    %v220 = vpop.f32.mrb[0].mxu0
    %v221 = vadd.f32 %v115, %v220
    %v222 = vpop.f32.mrb[0].mxu0
    %v223 = vadd.f32 %v119, %v222
    %v224 = vpop.f32.mrb[0].mxu0
    %v225 = vadd.f32 %v115, %v224
    %v226 = vpop.f32.mrb[0].mxu0
    %v227 = vadd.f32 %v119, %v226
    %228 = vmatprep.mubr.bf16.mxu0 0
    %229 = vmatmul.mubr.bf16.gmra.mrb[0].mxu0 %v158
    %v230 = vpop.f32.mrb[0].mxu0
    %v231 = vadd.f32 %v115, %v230
    %v232 = vpop.f32.mrb[0].mxu0
    %v233 = vadd.f32 %v119, %v232
    %v234 = vpop.f32.mrb[0].mxu0
    %v235 = vadd.f32 %v115, %v234
    %v236 = vpop.f32.mrb[0].mxu0
    %v237 = vadd.f32 %v119, %v236
    %238 = vmatprep.mubr.bf16.mxu0 0
    %239 = vmatmul.mubr.bf16.gmra.mrb[0].mxu0 %v161
    %v240 = vpop.f32.mrb[0].mxu0
    %v241 = vadd.f32 %v115, %v240
    %v242 = vpop.f32.mrb[0].mxu0
    %v243 = vadd.f32 %v119, %v242
    %v244 = vpop.f32.mrb[0].mxu0
    %v245 = vadd.f32 %v115, %v244
    %v246 = vpop.f32.mrb[0].mxu0
    %v247 = vadd.f32 %v119, %v246
    %248 = vdwg.mxu0
    %249 = vmatprep.subr.bf16.mxu0 %v174
    %250 = vmatpush1.bf16.msra.mxu0 %v171
    %251 = vmatprep.subr.bf16.mxu0 0
    %252 = vmatpush1.bf16.msra.mxu0 0
    %253 = vmatprep.subr.bf16.mxu0 0
    %254 = vmatpush1.bf16.msra.mxu0 0
    %255 = vmatprep.subr.bf16.mxu0 0
    %256 = vmatpush1.bf16.msra.mxu0 0
    %257 = vmatprep.subr.bf16.mxu0 0
    %258 = vmatpush1.bf16.msra.mxu0 0
    %259 = vmatprep.subr.bf16.mxu0 0
    %260 = vmatpush1.bf16.msra.mxu0 0
    %261 = vmatprep.subr.bf16.mxu0 0
    %262 = vmatpush1.bf16.msra.mxu0 0
    %263 = vmatprep.subr.bf16.mxu0 0
    %264 = vmatpush1.bf16.msra.mxu0 0
    %265 = vmatprep.subr.bf16.mxu0 0
    %266 = vmatpush1.bf16.msra.mxu0 0
    %267 = vmatprep.subr.bf16.mxu0 0
    %268 = vmatpush1.bf16.msra.mxu0 0
    %269 = vmatprep.subr.bf16.mxu0 0
    %270 = vmatpush1.bf16.msra.mxu0 0
    %271 = vmatprep.subr.bf16.mxu0 0
    %272 = vmatpush1.bf16.msra.mxu0 0
    %273 = vmatprep.subr.bf16.mxu0 0
    %274 = vmatpush1.bf16.msra.mxu0 0
    %275 = vmatprep.subr.bf16.mxu0 0
    %276 = vmatpush1.bf16.msra.mxu0 0
    %277 = vmatprep.subr.bf16.mxu0 0
    %278 = vmatpush1.bf16.msra.mxu0 0
    %279 = vmatprep.subr.bf16.mxu0 0
    %280 = vmatpush1.bf16.msra.mxu0 0
    %281 = vmatprep.mubr.bf16.mxu0 0
    %282 = vmatmul.mubr.bf16.gmra.mrb[0].mxu0 %v152
    %v283 = vpop.f32.mrb[0].mxu0
    %v284 = vadd.f32 %v123, %v283
    %v285 = vpop.f32.mrb[0].mxu0
    %v286 = vadd.f32 %v127, %v285
    %v287 = vpop.f32.mrb[0].mxu0
    %v288 = vadd.f32 %v123, %v287
    %v289 = vpop.f32.mrb[0].mxu0
    %v290 = vadd.f32 %v127, %v289
    %291 = vmatprep.mubr.bf16.mxu0 0
    %292 = vmatmul.mubr.bf16.gmra.mrb[0].mxu0 %v155
    %v293 = vpop.f32.mrb[0].mxu0
    %v294 = vadd.f32 %v123, %v293
    %v295 = vpop.f32.mrb[0].mxu0
    %v296 = vadd.f32 %v127, %v295
    %v297 = vpop.f32.mrb[0].mxu0
    %v298 = vadd.f32 %v123, %v297
    %v299 = vpop.f32.mrb[0].mxu0
    %v300 = vadd.f32 %v127, %v299
    %301 = vmatprep.mubr.bf16.mxu0 0
    %302 = vmatmul.mubr.bf16.gmra.mrb[0].mxu0 %v158
    %v303 = vpop.f32.mrb[0].mxu0
    %v304 = vadd.f32 %v123, %v303
    %v305 = vpop.f32.mrb[0].mxu0
    %v306 = vadd.f32 %v127, %v305
    %v307 = vpop.f32.mrb[0].mxu0
    %v308 = vadd.f32 %v123, %v307
    %v309 = vpop.f32.mrb[0].mxu0
    %v310 = vadd.f32 %v127, %v309
    %311 = vmatprep.mubr.bf16.mxu0 0
    %312 = vmatmul.mubr.bf16.gmra.mrb[0].mxu0 %v161
    %v313 = vpop.f32.mrb[0].mxu0
    %v314 = vadd.f32 %v123, %v313
    %v315 = vpop.f32.mrb[0].mxu0
    %v316 = vadd.f32 %v127, %v315
    %v317 = vpop.f32.mrb[0].mxu0
    %v318 = vadd.f32 %v123, %v317
    %v319 = vpop.f32.mrb[0].mxu0
    %v320 = vadd.f32 %v127, %v319
    %321 = vdwg.mxu0
    %322 = vst [vmem:[#allocation2] sm:$0xff] %v211
    %323 = vst [vmem:[#allocation2 + $0x8] sm:$0xff] %v213
    %324 = vst [vmem:[#allocation2 + $0x10] sm:$0xff] %v284
    %325 = vst [vmem:[#allocation2 + $0x18] sm:$0xff] %v286
    %326 = vst [vmem:[#allocation2 + $0x20] sm:$0xff] %v215
    %327 = vst [vmem:[#allocation2 + $0x28] sm:$0xff] %v217
    %328 = vst [vmem:[#allocation2 + $0x30] sm:$0xff] %v288
    %329 = vst [vmem:[#allocation2 + $0x38] sm:$0xff] %v290
    %330 = vst [vmem:[#allocation2 + $0x40] sm:$0xff] %v221
    %331 = vst [vmem:[#allocation2 + $0x48] sm:$0xff] %v223
    %332 = vst [vmem:[#allocation2 + $0x50] sm:$0xff] %v294
    %333 = vst [vmem:[#allocation2 + $0x58] sm:$0xff] %v296
    %334 = vst [vmem:[#allocation2 + $0x60] sm:$0xff] %v225
    %335 = vst [vmem:[#allocation2 + $0x68] sm:$0xff] %v227
    %336 = vst [vmem:[#allocation2 + $0x70] sm:$0xff] %v298
    %337 = vst [vmem:[#allocation2 + $0x78] sm:$0xff] %v300
    %338 = vst [vmem:[#allocation2 + $0x80] sm:$0xff] %v231
    %339 = vst [vmem:[#allocation2 + $0x88] sm:$0xff] %v233
    %340 = vst [vmem:[#allocation2 + $0x90] sm:$0xff] %v304
    %341 = vst [vmem:[#allocation2 + $0x98] sm:$0xff] %v306
    %342 = vst [vmem:[#allocation2 + $0xa0] sm:$0xff] %v235
    %343 = vst [vmem:[#allocation2 + $0xa8] sm:$0xff] %v237
    %344 = vst [vmem:[#allocation2 + $0xb0] sm:$0xff] %v308
    %345 = vst [vmem:[#allocation2 + $0xb8] sm:$0xff] %v310
    %346 = vst [vmem:[#allocation2 + $0xc0] sm:$0xff] %v241
    %347 = vst [vmem:[#allocation2 + $0xc8] sm:$0xff] %v243
    %348 = vst [vmem:[#allocation2 + $0xd0] sm:$0xff] %v314
    %349 = vst [vmem:[#allocation2 + $0xd8] sm:$0xff] %v316
    %350 = vst [vmem:[#allocation2 + $0xe0] sm:$0xff] %v245
    %351 = vst [vmem:[#allocation2 + $0xe8] sm:$0xff] %v247
    %352 = vst [vmem:[#allocation2 + $0xf0] sm:$0xff] %v318
    %353 = vst [vmem:[#allocation2 + $0xf8] sm:$0xff] %v320
    %s354 = smul.u32 0, 4
    %s355 = smul.addr %s354, 8
    %s356 = scalar_lea.vmem [#allocation2], %s355
    %v357 = vld [vmem:[%s356] sm:$0xff]
    %v358 = vld [vmem:[%s356 + $0x8] sm:$0xff]
    %v359 = vld [vmem:[%s356 + $0x10] sm:$0xff]
    %v360 = vld [vmem:[%s356 + $0x18] sm:$0xff]
    %v361 = vld [vmem:[%s2] sm:$0xff]
    %v362 = vld [vmem:[%s2 + $0x8] sm:$0xff]
    %v363 = vld [vmem:[%s2 + $0x10] sm:$0xff]
    %v364 = vld [vmem:[%s2 + $0x18] sm:$0xff]
    %v365 = vld [vmem:[%s2 + $0x20] sm:$0xff]
    %v366 = vld [vmem:[%s2 + $0x28] sm:$0xff]
    %v367 = vld [vmem:[%s2 + $0x30] sm:$0xff]
    %v368 = vld [vmem:[%s2 + $0x38] sm:$0xff]
    %v369 = vld [vmem:[%s2 + $0x40] sm:$0xff]
    %v370 = vld [vmem:[%s2 + $0x48] sm:$0xff]
    %v371 = vld [vmem:[%s2 + $0x50] sm:$0xff]
    %v372 = vld [vmem:[%s2 + $0x58] sm:$0xff]
    %v373 = vld [vmem:[%s2 + $0x60] sm:$0xff]
    %v374 = vld [vmem:[%s2 + $0x68] sm:$0xff]
    %v375 = vld [vmem:[%s2 + $0x70] sm:$0xff]
    %v376 = vld [vmem:[%s2 + $0x78] sm:$0xff]
    %v377 = vld [vmem:[%s2 + $0x80] sm:$0xff]
    %v378 = vld [vmem:[%s2 + $0x88] sm:$0xff]
    %v379 = vld [vmem:[%s2 + $0x90] sm:$0xff]
    %v380 = vld [vmem:[%s2 + $0x98] sm:$0xff]
    %v381 = vld [vmem:[%s2 + $0xa0] sm:$0xff]
    %v382 = vld [vmem:[%s2 + $0xa8] sm:$0xff]
    %v383 = vld [vmem:[%s2 + $0xb0] sm:$0xff]
    %v384 = vld [vmem:[%s2 + $0xb8] sm:$0xff]
    %v385 = vld [vmem:[%s2 + $0xc0] sm:$0xff]
    %v386 = vld [vmem:[%s2 + $0xc8] sm:$0xff]
    %v387 = vld [vmem:[%s2 + $0xd0] sm:$0xff]
    %v388 = vld [vmem:[%s2 + $0xd8] sm:$0xff]
    %v389 = vld [vmem:[%s2 + $0xe0] sm:$0xff]
    %v390 = vld [vmem:[%s2 + $0xe8] sm:$0xff]
    %v391 = vld [vmem:[%s2 + $0xf0] sm:$0xff]
    %v392 = vld [vmem:[%s2 + $0xf8] sm:$0xff]
    %v425 = vunpack.c.l.b16 %v361
    %v426 = vunpack.c.h.b16 %v361
    %v427 = vunpack.c.l.b16 %v362
    %v428 = vunpack.c.h.b16 %v362
    %v429 = vunpack.c.l.b16 %v363
    %v430 = vunpack.c.h.b16 %v363
    %v431 = vunpack.c.l.b16 %v364
    %v432 = vunpack.c.h.b16 %v364
    %v433 = vunpack.c.l.b16 %v365
    %v434 = vunpack.c.h.b16 %v365
    %v435 = vunpack.c.l.b16 %v366
    %v436 = vunpack.c.h.b16 %v366
    %v437 = vunpack.c.l.b16 %v367
    %v438 = vunpack.c.h.b16 %v367
    %v439 = vunpack.c.l.b16 %v368
    %v440 = vunpack.c.h.b16 %v368
    %v441 = vunpack.c.l.b16 %v369
    %v442 = vunpack.c.h.b16 %v369
    %v443 = vunpack.c.l.b16 %v370
    %v444 = vunpack.c.h.b16 %v370
    %v445 = vunpack.c.l.b16 %v371
    %v446 = vunpack.c.h.b16 %v371
    %v447 = vunpack.c.l.b16 %v372
    %v448 = vunpack.c.h.b16 %v372
    %v449 = vunpack.c.l.b16 %v373
    %v450 = vunpack.c.h.b16 %v373
    %v451 = vunpack.c.l.b16 %v374
    %v452 = vunpack.c.h.b16 %v374
    %v453 = vunpack.c.l.b16 %v375
    %v454 = vunpack.c.h.b16 %v375
    %v455 = vunpack.c.l.b16 %v376
    %v456 = vunpack.c.h.b16 %v376
    %v457 = vunpack.c.l.b16 %v377
    %v458 = vunpack.c.h.b16 %v377
    %v459 = vunpack.c.l.b16 %v378
    %v460 = vunpack.c.h.b16 %v378
    %v461 = vunpack.c.l.b16 %v379
    %v462 = vunpack.c.h.b16 %v379
    %v463 = vunpack.c.l.b16 %v380
    %v464 = vunpack.c.h.b16 %v380
    %v465 = vunpack.c.l.b16 %v381
    %v466 = vunpack.c.h.b16 %v381
    %v467 = vunpack.c.l.b16 %v382
    %v468 = vunpack.c.h.b16 %v382
    %v469 = vunpack.c.l.b16 %v383
    %v470 = vunpack.c.h.b16 %v383
    %v471 = vunpack.c.l.b16 %v384
    %v472 = vunpack.c.h.b16 %v384
    %v473 = vunpack.c.l.b16 %v385
    %v474 = vunpack.c.h.b16 %v385
    %v475 = vunpack.c.l.b16 %v386
    %v476 = vunpack.c.h.b16 %v386
    %v477 = vunpack.c.l.b16 %v387
    %v478 = vunpack.c.h.b16 %v387
    %v479 = vunpack.c.l.b16 %v388
    %v480 = vunpack.c.h.b16 %v388
    %v481 = vunpack.c.l.b16 %v389
    %v482 = vunpack.c.h.b16 %v389
    %v483 = vunpack.c.l.b16 %v390
    %v484 = vunpack.c.h.b16 %v390
    %v485 = vunpack.c.l.b16 %v391
    %v486 = vunpack.c.h.b16 %v391
    %v487 = vunpack.c.l.b16 %v392
    %v488 = vunpack.c.h.b16 %v392
    %v489 = vpack.c.b16 %v429, %v425
    %v490 = vpack.c.b16 %v430, %v426
    %v491 = vpack.c.b16 %v431, %v427
    %v492 = vpack.c.b16 %v432, %v428
    %v493 = vpack.c.b16 %v437, %v433
    %v494 = vpack.c.b16 %v438, %v434
    %v495 = vpack.c.b16 %v439, %v435
    %v496 = vpack.c.b16 %v440, %v436
    %v497 = vpack.c.b16 %v445, %v441
    %v498 = vpack.c.b16 %v446, %v442
    %v499 = vpack.c.b16 %v447, %v443
    %v500 = vpack.c.b16 %v448, %v444
    %v501 = vpack.c.b16 %v453, %v449
    %v502 = vpack.c.b16 %v454, %v450
    %v503 = vpack.c.b16 %v455, %v451
    %v504 = vpack.c.b16 %v456, %v452
    %v505 = vpack.c.b16 %v461, %v457
    %v506 = vpack.c.b16 %v462, %v458
    %v507 = vpack.c.b16 %v463, %v459
    %v508 = vpack.c.b16 %v464, %v460
    %v509 = vpack.c.b16 %v469, %v465
    %v510 = vpack.c.b16 %v470, %v466
    %v511 = vpack.c.b16 %v471, %v467
    %v512 = vpack.c.b16 %v472, %v468
    %v513 = vpack.c.b16 %v477, %v473
    %v514 = vpack.c.b16 %v478, %v474
    %v515 = vpack.c.b16 %v479, %v475
    %v516 = vpack.c.b16 %v480, %v476
    %v517 = vpack.c.b16 %v485, %v481
    %v518 = vpack.c.b16 %v486, %v482
    %v519 = vpack.c.b16 %v487, %v483
    %v520 = vpack.c.b16 %v488, %v484
    %553 = vmatprep.subr.bf16.mxu0 %v490
    %554 = vmatpush1.bf16.msra.mxu0 %v489
    %555 = vmatprep.subr.bf16.mxu0 %v494
    %556 = vmatpush1.bf16.msra.mxu0 %v493
    %557 = vmatprep.subr.bf16.mxu0 %v498
    %558 = vmatpush1.bf16.msra.mxu0 %v497
    %559 = vmatprep.subr.bf16.mxu0 %v502
    %560 = vmatpush1.bf16.msra.mxu0 %v501
    %561 = vmatprep.subr.bf16.mxu0 %v506
    %562 = vmatpush1.bf16.msra.mxu0 %v505
    %563 = vmatprep.subr.bf16.mxu0 %v510
    %564 = vmatpush1.bf16.msra.mxu0 %v509
    %565 = vmatprep.subr.bf16.mxu0 %v514
    %566 = vmatpush1.bf16.msra.mxu0 %v513
    %567 = vmatprep.subr.bf16.mxu0 %v518
    %568 = vmatpush1.bf16.msra.mxu0 %v517
    %569 = vmatprep.subr.bf16.mxu0 0
    %570 = vmatpush1.bf16.msra.mxu0 0
    %571 = vmatprep.subr.bf16.mxu0 0
    %572 = vmatpush1.bf16.msra.mxu0 0
    %573 = vmatprep.subr.bf16.mxu0 0
    %574 = vmatpush1.bf16.msra.mxu0 0
    %575 = vmatprep.subr.bf16.mxu0 0
    %576 = vmatpush1.bf16.msra.mxu0 0
    %577 = vmatprep.subr.bf16.mxu0 0
    %578 = vmatpush1.bf16.msra.mxu0 0
    %579 = vmatprep.subr.bf16.mxu0 0
    %580 = vmatpush1.bf16.msra.mxu0 0
    %581 = vmatprep.subr.bf16.mxu0 0
    %582 = vmatpush1.bf16.msra.mxu0 0
    %583 = vmatprep.subr.bf16.mxu0 0
    %584 = vmatpush1.bf16.msra.mxu0 0
    %585 = vmatprep.mubr.bf16.mxu0 0
    %586 = vmatmul.mubr.bf16.gmra.mrb[0].mxu0 0
    %v587 = vpop.f32.mrb[0].mxu0
    %v588 = vadd.f32 0.0, %v587
    %v589 = vpop.f32.mrb[0].mxu0
    %v590 = vadd.f32 0.0, %v589
    %v591 = vpop.f32.mrb[0].mxu0
    %v592 = vpop.f32.mrb[0].mxu0
    %593 = vdwg.mxu0
    %594 = vmatprep.subr.bf16.mxu0 %v492
    %595 = vmatpush1.bf16.msra.mxu0 %v491
    %596 = vmatprep.subr.bf16.mxu0 %v496
    %597 = vmatpush1.bf16.msra.mxu0 %v495
    %598 = vmatprep.subr.bf16.mxu0 %v500
    %599 = vmatpush1.bf16.msra.mxu0 %v499
    %600 = vmatprep.subr.bf16.mxu0 %v504
    %601 = vmatpush1.bf16.msra.mxu0 %v503
    %602 = vmatprep.subr.bf16.mxu0 %v508
    %603 = vmatpush1.bf16.msra.mxu0 %v507
    %604 = vmatprep.subr.bf16.mxu0 %v512
    %605 = vmatpush1.bf16.msra.mxu0 %v511
    %606 = vmatprep.subr.bf16.mxu0 %v516
    %607 = vmatpush1.bf16.msra.mxu0 %v515
    %608 = vmatprep.subr.bf16.mxu0 %v520
    %609 = vmatpush1.bf16.msra.mxu0 %v519
    %610 = vmatprep.subr.bf16.mxu0 0
    %611 = vmatpush1.bf16.msra.mxu0 0
    %612 = vmatprep.subr.bf16.mxu0 0
    %613 = vmatpush1.bf16.msra.mxu0 0
    %614 = vmatprep.subr.bf16.mxu0 0
    %615 = vmatpush1.bf16.msra.mxu0 0
    %616 = vmatprep.subr.bf16.mxu0 0
    %617 = vmatpush1.bf16.msra.mxu0 0
    %618 = vmatprep.subr.bf16.mxu0 0
    %619 = vmatpush1.bf16.msra.mxu0 0
    %620 = vmatprep.subr.bf16.mxu0 0
    %621 = vmatpush1.bf16.msra.mxu0 0
    %622 = vmatprep.subr.bf16.mxu0 0
    %623 = vmatpush1.bf16.msra.mxu0 0
    %624 = vmatprep.subr.bf16.mxu0 0
    %625 = vmatpush1.bf16.msra.mxu0 0
    %626 = vmatprep.mubr.bf16.mxu0 0
    %627 = vmatmul.mubr.bf16.gmra.mrb[0].mxu0 0
    %v628 = vpop.f32.mrb[0].mxu0
    %v629 = vadd.f32 0.0, %v628
    %v630 = vpop.f32.mrb[0].mxu0
    %v631 = vadd.f32 0.0, %v630
    %v632 = vpop.f32.mrb[0].mxu0
    %v633 = vpop.f32.mrb[0].mxu0
    %634 = vdwg.mxu0
    %v635 = vadd.f32 %v357, %v588
    %v636 = vadd.f32 %v358, %v590
    %v637 = vadd.f32 %v359, %v629
    %v638 = vadd.f32 %v360, %v631
    %v639 = vxor.u32 %v635, 2147483648
    %v640 = vxor.u32 %v636, 2147483648
    %v641 = vxor.u32 %v637, 2147483648
    %v642 = vmul.f32 %v639, 1.442695
    %v643 = vpow.pop %v642
    %v644 = vmul.f32 %v640, 1.442695
    %v645 = vpow.pop %v644
    %v646 = vmul.f32 %v641, 1.442695
    %v647 = vpow.pop %v646
    %v648 = vadd.f32 %v643, 1.0
    %v649 = vadd.f32 %v645, 1.0
    %v650 = vadd.f32 %v647, 1.0
    %v651 = vrcp.pop %v648
    %v652 = vmul.f32 1.0, %v651
    %v653 = vrcp.pop %v649
    %v654 = vmul.f32 1.0, %v653
    %v655 = vrcp.pop %v650
    %v656 = vmul.f32 1.0, %v655
    %v657 = vtanh.pop %v638
    %v658 = vmul.f32 %v654, 0.0
    %v659 = vmul.f32 %v652, %v657
    %v660 = vadd.f32 %v658, %v659
    %v661 = vtanh.pop %v660
    %v662 = vmul.f32 %v656, %v661
    %663 = vst [vmem:[#allocation3] sm:$0xff] %v662
    %s664 = smul.u32 1, 4
    %s665 = smul.addr %s664, 8
    %s666 = scalar_lea.vmem [#allocation2], %s665
    %v667 = vld [vmem:[%s666] sm:$0xff]
    %v668 = vld [vmem:[%s666 + $0x8] sm:$0xff]
    %v669 = vld [vmem:[%s666 + $0x10] sm:$0xff]
    %v670 = vld [vmem:[%s666 + $0x18] sm:$0xff]
    %v671 = vpack.c.bf16 %v662, %v662
    %v672 = vld [vmem:[%s2] sm:$0xff]
    %v673 = vld [vmem:[%s2 + $0x8] sm:$0xff]
    %v674 = vld [vmem:[%s2 + $0x10] sm:$0xff]
    %v675 = vld [vmem:[%s2 + $0x18] sm:$0xff]
    %v676 = vld [vmem:[%s2 + $0x20] sm:$0xff]
    %v677 = vld [vmem:[%s2 + $0x28] sm:$0xff]
    %v678 = vld [vmem:[%s2 + $0x30] sm:$0xff]
    %v679 = vld [vmem:[%s2 + $0x38] sm:$0xff]
    %v680 = vld [vmem:[%s2 + $0x40] sm:$0xff]
    %v681 = vld [vmem:[%s2 + $0x48] sm:$0xff]
    %v682 = vld [vmem:[%s2 + $0x50] sm:$0xff]
    %v683 = vld [vmem:[%s2 + $0x58] sm:$0xff]
    %v684 = vld [vmem:[%s2 + $0x60] sm:$0xff]
    %v685 = vld [vmem:[%s2 + $0x68] sm:$0xff]
    %v686 = vld [vmem:[%s2 + $0x70] sm:$0xff]
    %v687 = vld [vmem:[%s2 + $0x78] sm:$0xff]
    %v688 = vld [vmem:[%s2 + $0x80] sm:$0xff]
    %v689 = vld [vmem:[%s2 + $0x88] sm:$0xff]
    %v690 = vld [vmem:[%s2 + $0x90] sm:$0xff]
    %v691 = vld [vmem:[%s2 + $0x98] sm:$0xff]
    %v692 = vld [vmem:[%s2 + $0xa0] sm:$0xff]
    %v693 = vld [vmem:[%s2 + $0xa8] sm:$0xff]
    %v694 = vld [vmem:[%s2 + $0xb0] sm:$0xff]
    %v695 = vld [vmem:[%s2 + $0xb8] sm:$0xff]
    %v696 = vld [vmem:[%s2 + $0xc0] sm:$0xff]
    %v697 = vld [vmem:[%s2 + $0xc8] sm:$0xff]
    %v698 = vld [vmem:[%s2 + $0xd0] sm:$0xff]
    %v699 = vld [vmem:[%s2 + $0xd8] sm:$0xff]
    %v700 = vld [vmem:[%s2 + $0xe0] sm:$0xff]
    %v701 = vld [vmem:[%s2 + $0xe8] sm:$0xff]
    %v702 = vld [vmem:[%s2 + $0xf0] sm:$0xff]
    %v703 = vld [vmem:[%s2 + $0xf8] sm:$0xff]
    %v736 = vunpack.c.l.b16 %v672
    %v737 = vunpack.c.h.b16 %v672
    %v738 = vunpack.c.l.b16 %v673
    %v739 = vunpack.c.h.b16 %v673
    %v740 = vunpack.c.l.b16 %v674
    %v741 = vunpack.c.h.b16 %v674
    %v742 = vunpack.c.l.b16 %v675
    %v743 = vunpack.c.h.b16 %v675
    %v744 = vunpack.c.l.b16 %v676
    %v745 = vunpack.c.h.b16 %v676
    %v746 = vunpack.c.l.b16 %v677
    %v747 = vunpack.c.h.b16 %v677
    %v748 = vunpack.c.l.b16 %v678
    %v749 = vunpack.c.h.b16 %v678
    %v750 = vunpack.c.l.b16 %v679
    %v751 = vunpack.c.h.b16 %v679
    %v752 = vunpack.c.l.b16 %v680
    %v753 = vunpack.c.h.b16 %v680
    %v754 = vunpack.c.l.b16 %v681
    %v755 = vunpack.c.h.b16 %v681
    %v756 = vunpack.c.l.b16 %v682
    %v757 = vunpack.c.h.b16 %v682
    %v758 = vunpack.c.l.b16 %v683
    %v759 = vunpack.c.h.b16 %v683
    %v760 = vunpack.c.l.b16 %v684
    %v761 = vunpack.c.h.b16 %v684
    %v762 = vunpack.c.l.b16 %v685
    %v763 = vunpack.c.h.b16 %v685
    %v764 = vunpack.c.l.b16 %v686
    %v765 = vunpack.c.h.b16 %v686
    %v766 = vunpack.c.l.b16 %v687
    %v767 = vunpack.c.h.b16 %v687
    %v768 = vunpack.c.l.b16 %v688
    %v769 = vunpack.c.h.b16 %v688
    %v770 = vunpack.c.l.b16 %v689
    %v771 = vunpack.c.h.b16 %v689
    %v772 = vunpack.c.l.b16 %v690
    %v773 = vunpack.c.h.b16 %v690
    %v774 = vunpack.c.l.b16 %v691
    %v775 = vunpack.c.h.b16 %v691
    %v776 = vunpack.c.l.b16 %v692
    %v777 = vunpack.c.h.b16 %v692
    %v778 = vunpack.c.l.b16 %v693
    %v779 = vunpack.c.h.b16 %v693
    %v780 = vunpack.c.l.b16 %v694
    %v781 = vunpack.c.h.b16 %v694
    %v782 = vunpack.c.l.b16 %v695
    %v783 = vunpack.c.h.b16 %v695
    %v784 = vunpack.c.l.b16 %v696
    %v785 = vunpack.c.h.b16 %v696
    %v786 = vunpack.c.l.b16 %v697
    %v787 = vunpack.c.h.b16 %v697
    %v788 = vunpack.c.l.b16 %v698
    %v789 = vunpack.c.h.b16 %v698
    %v790 = vunpack.c.l.b16 %v699
    %v791 = vunpack.c.h.b16 %v699
    %v792 = vunpack.c.l.b16 %v700
    %v793 = vunpack.c.h.b16 %v700
    %v794 = vunpack.c.l.b16 %v701
    %v795 = vunpack.c.h.b16 %v701
    %v796 = vunpack.c.l.b16 %v702
    %v797 = vunpack.c.h.b16 %v702
    %v798 = vunpack.c.l.b16 %v703
    %v799 = vunpack.c.h.b16 %v703
    %v800 = vpack.c.b16 %v740, %v736
    %v801 = vpack.c.b16 %v741, %v737
    %v802 = vpack.c.b16 %v742, %v738
    %v803 = vpack.c.b16 %v743, %v739
    %v804 = vpack.c.b16 %v748, %v744
    %v805 = vpack.c.b16 %v749, %v745
    %v806 = vpack.c.b16 %v750, %v746
    %v807 = vpack.c.b16 %v751, %v747
    %v808 = vpack.c.b16 %v756, %v752
    %v809 = vpack.c.b16 %v757, %v753
    %v810 = vpack.c.b16 %v758, %v754
    %v811 = vpack.c.b16 %v759, %v755
    %v812 = vpack.c.b16 %v764, %v760
    %v813 = vpack.c.b16 %v765, %v761
    %v814 = vpack.c.b16 %v766, %v762
    %v815 = vpack.c.b16 %v767, %v763
    %v816 = vpack.c.b16 %v772, %v768
    %v817 = vpack.c.b16 %v773, %v769
    %v818 = vpack.c.b16 %v774, %v770
    %v819 = vpack.c.b16 %v775, %v771
    %v820 = vpack.c.b16 %v780, %v776
    %v821 = vpack.c.b16 %v781, %v777
    %v822 = vpack.c.b16 %v782, %v778
    %v823 = vpack.c.b16 %v783, %v779
    %v824 = vpack.c.b16 %v788, %v784
    %v825 = vpack.c.b16 %v789, %v785
    %v826 = vpack.c.b16 %v790, %v786
    %v827 = vpack.c.b16 %v791, %v787
    %v828 = vpack.c.b16 %v796, %v792
    %v829 = vpack.c.b16 %v797, %v793
    %v830 = vpack.c.b16 %v798, %v794
    %v831 = vpack.c.b16 %v799, %v795
    %864 = vmatprep.subr.bf16.mxu0 %v801
    %865 = vmatpush1.bf16.msra.mxu0 %v800
    %866 = vmatprep.subr.bf16.mxu0 %v805
    %867 = vmatpush1.bf16.msra.mxu0 %v804
    %868 = vmatprep.subr.bf16.mxu0 %v809
    %869 = vmatpush1.bf16.msra.mxu0 %v808
    %870 = vmatprep.subr.bf16.mxu0 %v813
    %871 = vmatpush1.bf16.msra.mxu0 %v812
    %872 = vmatprep.subr.bf16.mxu0 %v817
    %873 = vmatpush1.bf16.msra.mxu0 %v816
    %874 = vmatprep.subr.bf16.mxu0 %v821
    %875 = vmatpush1.bf16.msra.mxu0 %v820
    %876 = vmatprep.subr.bf16.mxu0 %v825
    %877 = vmatpush1.bf16.msra.mxu0 %v824
    %878 = vmatprep.subr.bf16.mxu0 %v829
    %879 = vmatpush1.bf16.msra.mxu0 %v828
    %880 = vmatprep.subr.bf16.mxu0 0
    %881 = vmatpush1.bf16.msra.mxu0 0
    %882 = vmatprep.subr.bf16.mxu0 0
    %883 = vmatpush1.bf16.msra.mxu0 0
    %884 = vmatprep.subr.bf16.mxu0 0
    %885 = vmatpush1.bf16.msra.mxu0 0
    %886 = vmatprep.subr.bf16.mxu0 0
    %887 = vmatpush1.bf16.msra.mxu0 0
    %888 = vmatprep.subr.bf16.mxu0 0
    %889 = vmatpush1.bf16.msra.mxu0 0
    %890 = vmatprep.subr.bf16.mxu0 0
    %891 = vmatpush1.bf16.msra.mxu0 0
    %892 = vmatprep.subr.bf16.mxu0 0
    %893 = vmatpush1.bf16.msra.mxu0 0
    %894 = vmatprep.subr.bf16.mxu0 0
    %895 = vmatpush1.bf16.msra.mxu0 0
    %896 = vmatprep.mubr.bf16.mxu0 0
    %897 = vmatmul.mubr.bf16.gmra.mrb[0].mxu0 %v671
    %v898 = vpop.f32.mrb[0].mxu0
    %v899 = vadd.f32 0.0, %v898
    %v900 = vpop.f32.mrb[0].mxu0
    %v901 = vadd.f32 0.0, %v900
    %v902 = vpop.f32.mrb[0].mxu0
    %v903 = vpop.f32.mrb[0].mxu0
    %904 = vdwg.mxu0
    %905 = vmatprep.subr.bf16.mxu0 %v803
    %906 = vmatpush1.bf16.msra.mxu0 %v802
    %907 = vmatprep.subr.bf16.mxu0 %v807
    %908 = vmatpush1.bf16.msra.mxu0 %v806
    %909 = vmatprep.subr.bf16.mxu0 %v811
    %910 = vmatpush1.bf16.msra.mxu0 %v810
    %911 = vmatprep.subr.bf16.mxu0 %v815
    %912 = vmatpush1.bf16.msra.mxu0 %v814
    %913 = vmatprep.subr.bf16.mxu0 %v819
    %914 = vmatpush1.bf16.msra.mxu0 %v818
    %915 = vmatprep.subr.bf16.mxu0 %v823
    %916 = vmatpush1.bf16.msra.mxu0 %v822
    %917 = vmatprep.subr.bf16.mxu0 %v827
    %918 = vmatpush1.bf16.msra.mxu0 %v826
    %919 = vmatprep.subr.bf16.mxu0 %v831
    %920 = vmatpush1.bf16.msra.mxu0 %v830
    %921 = vmatprep.subr.bf16.mxu0 0
    %922 = vmatpush1.bf16.msra.mxu0 0
    %923 = vmatprep.subr.bf16.mxu0 0
    %924 = vmatpush1.bf16.msra.mxu0 0
    %925 = vmatprep.subr.bf16.mxu0 0
    %926 = vmatpush1.bf16.msra.mxu0 0
    %927 = vmatprep.subr.bf16.mxu0 0
    %928 = vmatpush1.bf16.msra.mxu0 0
    %929 = vmatprep.subr.bf16.mxu0 0
    %930 = vmatpush1.bf16.msra.mxu0 0
    %931 = vmatprep.subr.bf16.mxu0 0
    %932 = vmatpush1.bf16.msra.mxu0 0
    %933 = vmatprep.subr.bf16.mxu0 0
    %934 = vmatpush1.bf16.msra.mxu0 0
    %935 = vmatprep.subr.bf16.mxu0 0
    %936 = vmatpush1.bf16.msra.mxu0 0
    %937 = vmatprep.mubr.bf16.mxu0 0
    %938 = vmatmul.mubr.bf16.gmra.mrb[0].mxu0 %v671
    %v939 = vpop.f32.mrb[0].mxu0
    %v940 = vadd.f32 0.0, %v939
    %v941 = vpop.f32.mrb[0].mxu0
    %v942 = vadd.f32 0.0, %v941
    %v943 = vpop.f32.mrb[0].mxu0
    %v944 = vpop.f32.mrb[0].mxu0
    %945 = vdwg.mxu0
    %v946 = vadd.f32 %v667, %v899
    %v947 = vadd.f32 %v668, %v901
    %v948 = vadd.f32 %v669, %v940
    %v949 = vadd.f32 %v670, %v942
    %v950 = vxor.u32 %v946, 2147483648
    %v951 = vxor.u32 %v947, 2147483648
    %v952 = vxor.u32 %v948, 2147483648
    %v953 = vmul.f32 %v950, 1.442695
    %v954 = vpow.pop %v953
    %v955 = vmul.f32 %v951, 1.442695
    %v956 = vpow.pop %v955
    %v957 = vmul.f32 %v952, 1.442695
    %v958 = vpow.pop %v957
    %v959 = vadd.f32 %v954, 1.0
    %v960 = vadd.f32 %v956, 1.0
    %v961 = vadd.f32 %v958, 1.0
    %v962 = vrcp.pop %v959
    %v963 = vmul.f32 1.0, %v962
    %v964 = vrcp.pop %v960
    %v965 = vmul.f32 1.0, %v964
    %v966 = vrcp.pop %v961
    %v967 = vmul.f32 1.0, %v966
    %v968 = vtanh.pop %v949
    %v969 = vmul.f32 %v965, %v660
    %v970 = vmul.f32 %v963, %v968
    %v971 = vadd.f32 %v969, %v970
    %v972 = vtanh.pop %v971
    %v973 = vmul.f32 %v967, %v972
    %s974 = scalar_lea.vmem [#allocation3], 8
    %975 = vst [vmem:[%s974] sm:$0xff] %v973
    %s976 = smul.u32 2, 4
    %s977 = smul.addr %s976, 8
    %s978 = scalar_lea.vmem [#allocation2], %s977
    %v979 = vld [vmem:[%s978] sm:$0xff]
    %v980 = vld [vmem:[%s978 + $0x8] sm:$0xff]
    %v981 = vld [vmem:[%s978 + $0x10] sm:$0xff]
    %v982 = vld [vmem:[%s978 + $0x18] sm:$0xff]
    %v983 = vpack.c.bf16 %v973, %v973
    %v984 = vld [vmem:[%s2] sm:$0xff]
    %v985 = vld [vmem:[%s2 + $0x8] sm:$0xff]
    %v986 = vld [vmem:[%s2 + $0x10] sm:$0xff]
    %v987 = vld [vmem:[%s2 + $0x18] sm:$0xff]
    %v988 = vld [vmem:[%s2 + $0x20] sm:$0xff]
    %v989 = vld [vmem:[%s2 + $0x28] sm:$0xff]
    %v990 = vld [vmem:[%s2 + $0x30] sm:$0xff]
    %v991 = vld [vmem:[%s2 + $0x38] sm:$0xff]
    %v992 = vld [vmem:[%s2 + $0x40] sm:$0xff]
    %v993 = vld [vmem:[%s2 + $0x48] sm:$0xff]
    %v994 = vld [vmem:[%s2 + $0x50] sm:$0xff]
    %v995 = vld [vmem:[%s2 + $0x58] sm:$0xff]
    %v996 = vld [vmem:[%s2 + $0x60] sm:$0xff]
    %v997 = vld [vmem:[%s2 + $0x68] sm:$0xff]
    %v998 = vld [vmem:[%s2 + $0x70] sm:$0xff]
    %v999 = vld [vmem:[%s2 + $0x78] sm:$0xff]
    %v1000 = vld [vmem:[%s2 + $0x80] sm:$0xff]
    %v1001 = vld [vmem:[%s2 + $0x88] sm:$0xff]
    %v1002 = vld [vmem:[%s2 + $0x90] sm:$0xff]
    %v1003 = vld [vmem:[%s2 + $0x98] sm:$0xff]
    %v1004 = vld [vmem:[%s2 + $0xa0] sm:$0xff]
    %v1005 = vld [vmem:[%s2 + $0xa8] sm:$0xff]
    %v1006 = vld [vmem:[%s2 + $0xb0] sm:$0xff]
    %v1007 = vld [vmem:[%s2 + $0xb8] sm:$0xff]
    %v1008 = vld [vmem:[%s2 + $0xc0] sm:$0xff]
    %v1009 = vld [vmem:[%s2 + $0xc8] sm:$0xff]
    %v1010 = vld [vmem:[%s2 + $0xd0] sm:$0xff]
    %v1011 = vld [vmem:[%s2 + $0xd8] sm:$0xff]
    %v1012 = vld [vmem:[%s2 + $0xe0] sm:$0xff]
    %v1013 = vld [vmem:[%s2 + $0xe8] sm:$0xff]
    %v1014 = vld [vmem:[%s2 + $0xf0] sm:$0xff]
    %v1015 = vld [vmem:[%s2 + $0xf8] sm:$0xff]
    %v1048 = vunpack.c.l.b16 %v984
    %v1049 = vunpack.c.h.b16 %v984
    %v1050 = vunpack.c.l.b16 %v985
    %v1051 = vunpack.c.h.b16 %v985
    %v1052 = vunpack.c.l.b16 %v986
    %v1053 = vunpack.c.h.b16 %v986
    %v1054 = vunpack.c.l.b16 %v987
    %v1055 = vunpack.c.h.b16 %v987
    %v1056 = vunpack.c.l.b16 %v988
    %v1057 = vunpack.c.h.b16 %v988
    %v1058 = vunpack.c.l.b16 %v989
    %v1059 = vunpack.c.h.b16 %v989
    %v1060 = vunpack.c.l.b16 %v990
    %v1061 = vunpack.c.h.b16 %v990
    %v1062 = vunpack.c.l.b16 %v991
    %v1063 = vunpack.c.h.b16 %v991
    %v1064 = vunpack.c.l.b16 %v992
    %v1065 = vunpack.c.h.b16 %v992
    %v1066 = vunpack.c.l.b16 %v993
    %v1067 = vunpack.c.h.b16 %v993
    %v1068 = vunpack.c.l.b16 %v994
    %v1069 = vunpack.c.h.b16 %v994
    %v1070 = vunpack.c.l.b16 %v995
    %v1071 = vunpack.c.h.b16 %v995
    %v1072 = vunpack.c.l.b16 %v996
    %v1073 = vunpack.c.h.b16 %v996
    %v1074 = vunpack.c.l.b16 %v997
    %v1075 = vunpack.c.h.b16 %v997
    %v1076 = vunpack.c.l.b16 %v998
    %v1077 = vunpack.c.h.b16 %v998
    %v1078 = vunpack.c.l.b16 %v999
    %v1079 = vunpack.c.h.b16 %v999
    %v1080 = vunpack.c.l.b16 %v1000
    %v1081 = vunpack.c.h.b16 %v1000
    %v1082 = vunpack.c.l.b16 %v1001
    %v1083 = vunpack.c.h.b16 %v1001
    %v1084 = vunpack.c.l.b16 %v1002
    %v1085 = vunpack.c.h.b16 %v1002
    %v1086 = vunpack.c.l.b16 %v1003
    %v1087 = vunpack.c.h.b16 %v1003
    %v1088 = vunpack.c.l.b16 %v1004
    %v1089 = vunpack.c.h.b16 %v1004
    %v1090 = vunpack.c.l.b16 %v1005
    %v1091 = vunpack.c.h.b16 %v1005
    %v1092 = vunpack.c.l.b16 %v1006
    %v1093 = vunpack.c.h.b16 %v1006
    %v1094 = vunpack.c.l.b16 %v1007
    %v1095 = vunpack.c.h.b16 %v1007
    %v1096 = vunpack.c.l.b16 %v1008
    %v1097 = vunpack.c.h.b16 %v1008
    %v1098 = vunpack.c.l.b16 %v1009
    %v1099 = vunpack.c.h.b16 %v1009
    %v1100 = vunpack.c.l.b16 %v1010
    %v1101 = vunpack.c.h.b16 %v1010
    %v1102 = vunpack.c.l.b16 %v1011
    %v1103 = vunpack.c.h.b16 %v1011
    %v1104 = vunpack.c.l.b16 %v1012
    %v1105 = vunpack.c.h.b16 %v1012
    %v1106 = vunpack.c.l.b16 %v1013
    %v1107 = vunpack.c.h.b16 %v1013
    %v1108 = vunpack.c.l.b16 %v1014
    %v1109 = vunpack.c.h.b16 %v1014
    %v1110 = vunpack.c.l.b16 %v1015
    %v1111 = vunpack.c.h.b16 %v1015
    %v1112 = vpack.c.b16 %v1052, %v1048
    %v1113 = vpack.c.b16 %v1053, %v1049
    %v1114 = vpack.c.b16 %v1054, %v1050
    %v1115 = vpack.c.b16 %v1055, %v1051
    %v1116 = vpack.c.b16 %v1060, %v1056
    %v1117 = vpack.c.b16 %v1061, %v1057
    %v1118 = vpack.c.b16 %v1062, %v1058
    %v1119 = vpack.c.b16 %v1063, %v1059
    %v1120 = vpack.c.b16 %v1068, %v1064
    %v1121 = vpack.c.b16 %v1069, %v1065
    %v1122 = vpack.c.b16 %v1070, %v1066
    %v1123 = vpack.c.b16 %v1071, %v1067
    %v1124 = vpack.c.b16 %v1076, %v1072
    %v1125 = vpack.c.b16 %v1077, %v1073
    %v1126 = vpack.c.b16 %v1078, %v1074
    %v1127 = vpack.c.b16 %v1079, %v1075
    %v1128 = vpack.c.b16 %v1084, %v1080
    %v1129 = vpack.c.b16 %v1085, %v1081
    %v1130 = vpack.c.b16 %v1086, %v1082
    %v1131 = vpack.c.b16 %v1087, %v1083
    %v1132 = vpack.c.b16 %v1092, %v1088
    %v1133 = vpack.c.b16 %v1093, %v1089
    %v1134 = vpack.c.b16 %v1094, %v1090
    %v1135 = vpack.c.b16 %v1095, %v1091
    %v1136 = vpack.c.b16 %v1100, %v1096
    %v1137 = vpack.c.b16 %v1101, %v1097
    %v1138 = vpack.c.b16 %v1102, %v1098
    %v1139 = vpack.c.b16 %v1103, %v1099
    %v1140 = vpack.c.b16 %v1108, %v1104
    %v1141 = vpack.c.b16 %v1109, %v1105
    %v1142 = vpack.c.b16 %v1110, %v1106
    %v1143 = vpack.c.b16 %v1111, %v1107
    %1176 = vmatprep.subr.bf16.mxu0 %v1113
    %1177 = vmatpush1.bf16.msra.mxu0 %v1112
    %1178 = vmatprep.subr.bf16.mxu0 %v1117
    %1179 = vmatpush1.bf16.msra.mxu0 %v1116
    %1180 = vmatprep.subr.bf16.mxu0 %v1121
    %1181 = vmatpush1.bf16.msra.mxu0 %v1120
    %1182 = vmatprep.subr.bf16.mxu0 %v1125
    %1183 = vmatpush1.bf16.msra.mxu0 %v1124
    %1184 = vmatprep.subr.bf16.mxu0 %v1129
    %1185 = vmatpush1.bf16.msra.mxu0 %v1128
    %1186 = vmatprep.subr.bf16.mxu0 %v1133
    %1187 = vmatpush1.bf16.msra.mxu0 %v1132
    %1188 = vmatprep.subr.bf16.mxu0 %v1137
    %1189 = vmatpush1.bf16.msra.mxu0 %v1136
    %1190 = vmatprep.subr.bf16.mxu0 %v1141
    %1191 = vmatpush1.bf16.msra.mxu0 %v1140
    %1192 = vmatprep.subr.bf16.mxu0 0
    %1193 = vmatpush1.bf16.msra.mxu0 0
    %1194 = vmatprep.subr.bf16.mxu0 0
    %1195 = vmatpush1.bf16.msra.mxu0 0
    %1196 = vmatprep.subr.bf16.mxu0 0
    %1197 = vmatpush1.bf16.msra.mxu0 0
    %1198 = vmatprep.subr.bf16.mxu0 0
    %1199 = vmatpush1.bf16.msra.mxu0 0
    %1200 = vmatprep.subr.bf16.mxu0 0
    %1201 = vmatpush1.bf16.msra.mxu0 0
    %1202 = vmatprep.subr.bf16.mxu0 0
    %1203 = vmatpush1.bf16.msra.mxu0 0
    %1204 = vmatprep.subr.bf16.mxu0 0
    %1205 = vmatpush1.bf16.msra.mxu0 0
    %1206 = vmatprep.subr.bf16.mxu0 0
    %1207 = vmatpush1.bf16.msra.mxu0 0
    %1208 = vmatprep.mubr.bf16.mxu0 0
    %1209 = vmatmul.mubr.bf16.gmra.mrb[0].mxu0 %v983
    %v1210 = vpop.f32.mrb[0].mxu0
    %v1211 = vadd.f32 0.0, %v1210
    %v1212 = vpop.f32.mrb[0].mxu0
    %v1213 = vadd.f32 0.0, %v1212
    %v1214 = vpop.f32.mrb[0].mxu0
    %v1215 = vpop.f32.mrb[0].mxu0
    %1216 = vdwg.mxu0
    %1217 = vmatprep.subr.bf16.mxu0 %v1115
    %1218 = vmatpush1.bf16.msra.mxu0 %v1114
    %1219 = vmatprep.subr.bf16.mxu0 %v1119
    %1220 = vmatpush1.bf16.msra.mxu0 %v1118
    %1221 = vmatprep.subr.bf16.mxu0 %v1123
    %1222 = vmatpush1.bf16.msra.mxu0 %v1122
    %1223 = vmatprep.subr.bf16.mxu0 %v1127
    %1224 = vmatpush1.bf16.msra.mxu0 %v1126
    %1225 = vmatprep.subr.bf16.mxu0 %v1131
    %1226 = vmatpush1.bf16.msra.mxu0 %v1130
    %1227 = vmatprep.subr.bf16.mxu0 %v1135
    %1228 = vmatpush1.bf16.msra.mxu0 %v1134
    %1229 = vmatprep.subr.bf16.mxu0 %v1139
    %1230 = vmatpush1.bf16.msra.mxu0 %v1138
    %1231 = vmatprep.subr.bf16.mxu0 %v1143
    %1232 = vmatpush1.bf16.msra.mxu0 %v1142
    %1233 = vmatprep.subr.bf16.mxu0 0
    %1234 = vmatpush1.bf16.msra.mxu0 0
    %1235 = vmatprep.subr.bf16.mxu0 0
    %1236 = vmatpush1.bf16.msra.mxu0 0
    %1237 = vmatprep.subr.bf16.mxu0 0
    %1238 = vmatpush1.bf16.msra.mxu0 0
    %1239 = vmatprep.subr.bf16.mxu0 0
    %1240 = vmatpush1.bf16.msra.mxu0 0
    %1241 = vmatprep.subr.bf16.mxu0 0
    %1242 = vmatpush1.bf16.msra.mxu0 0
    %1243 = vmatprep.subr.bf16.mxu0 0
    %1244 = vmatpush1.bf16.msra.mxu0 0
    %1245 = vmatprep.subr.bf16.mxu0 0
    %1246 = vmatpush1.bf16.msra.mxu0 0
    %1247 = vmatprep.subr.bf16.mxu0 0
    %1248 = vmatpush1.bf16.msra.mxu0 0
    %1249 = vmatprep.mubr.bf16.mxu0 0
    %1250 = vmatmul.mubr.bf16.gmra.mrb[0].mxu0 %v983
    %v1251 = vpop.f32.mrb[0].mxu0
    %v1252 = vadd.f32 0.0, %v1251
    %v1253 = vpop.f32.mrb[0].mxu0
    %v1254 = vadd.f32 0.0, %v1253
    %v1255 = vpop.f32.mrb[0].mxu0
    %v1256 = vpop.f32.mrb[0].mxu0
    %1257 = vdwg.mxu0
    %v1258 = vadd.f32 %v979, %v1211
    %v1259 = vadd.f32 %v980, %v1213
    %v1260 = vadd.f32 %v981, %v1252
    %v1261 = vadd.f32 %v982, %v1254
    %v1262 = vxor.u32 %v1258, 2147483648
    %v1263 = vxor.u32 %v1259, 2147483648
    %v1264 = vxor.u32 %v1260, 2147483648
    %v1265 = vmul.f32 %v1262, 1.442695
    %v1266 = vpow.pop %v1265
    %v1267 = vmul.f32 %v1263, 1.442695
    %v1268 = vpow.pop %v1267
    %v1269 = vmul.f32 %v1264, 1.442695
    %v1270 = vpow.pop %v1269
    %v1271 = vadd.f32 %v1266, 1.0
    %v1272 = vadd.f32 %v1268, 1.0
    %v1273 = vadd.f32 %v1270, 1.0
    %v1274 = vrcp.pop %v1271
    %v1275 = vmul.f32 1.0, %v1274
    %v1276 = vrcp.pop %v1272
    %v1277 = vmul.f32 1.0, %v1276
    %v1278 = vrcp.pop %v1273
    %v1279 = vmul.f32 1.0, %v1278
    %v1280 = vtanh.pop %v1261
    %v1281 = vmul.f32 %v1277, %v971
    %v1282 = vmul.f32 %v1275, %v1280
    %v1283 = vadd.f32 %v1281, %v1282
    %v1284 = vtanh.pop %v1283
    %v1285 = vmul.f32 %v1279, %v1284
    %s1286 = scalar_lea.vmem [#allocation3], 16
    %1287 = vst [vmem:[%s1286] sm:$0xff] %v1285
    %s1288 = smul.u32 3, 4
    %s1289 = smul.addr %s1288, 8
    %s1290 = scalar_lea.vmem [#allocation2], %s1289
    %v1291 = vld [vmem:[%s1290] sm:$0xff]
    %v1292 = vld [vmem:[%s1290 + $0x8] sm:$0xff]
    %v1293 = vld [vmem:[%s1290 + $0x10] sm:$0xff]
    %v1294 = vld [vmem:[%s1290 + $0x18] sm:$0xff]
    %v1295 = vpack.c.bf16 %v1285, %v1285
    %v1296 = vld [vmem:[%s2] sm:$0xff]
    %v1297 = vld [vmem:[%s2 + $0x8] sm:$0xff]
    %v1298 = vld [vmem:[%s2 + $0x10] sm:$0xff]
    %v1299 = vld [vmem:[%s2 + $0x18] sm:$0xff]
    %v1300 = vld [vmem:[%s2 + $0x20] sm:$0xff]
    %v1301 = vld [vmem:[%s2 + $0x28] sm:$0xff]
    %v1302 = vld [vmem:[%s2 + $0x30] sm:$0xff]
    %v1303 = vld [vmem:[%s2 + $0x38] sm:$0xff]
    %v1304 = vld [vmem:[%s2 + $0x40] sm:$0xff]
    %v1305 = vld [vmem:[%s2 + $0x48] sm:$0xff]
    %v1306 = vld [vmem:[%s2 + $0x50] sm:$0xff]
    %v1307 = vld [vmem:[%s2 + $0x58] sm:$0xff]
    %v1308 = vld [vmem:[%s2 + $0x60] sm:$0xff]
    %v1309 = vld [vmem:[%s2 + $0x68] sm:$0xff]
    %v1310 = vld [vmem:[%s2 + $0x70] sm:$0xff]
    %v1311 = vld [vmem:[%s2 + $0x78] sm:$0xff]
    %v1312 = vld [vmem:[%s2 + $0x80] sm:$0xff]
    %v1313 = vld [vmem:[%s2 + $0x88] sm:$0xff]
    %v1314 = vld [vmem:[%s2 + $0x90] sm:$0xff]
    %v1315 = vld [vmem:[%s2 + $0x98] sm:$0xff]
    %v1316 = vld [vmem:[%s2 + $0xa0] sm:$0xff]
    %v1317 = vld [vmem:[%s2 + $0xa8] sm:$0xff]
    %v1318 = vld [vmem:[%s2 + $0xb0] sm:$0xff]
    %v1319 = vld [vmem:[%s2 + $0xb8] sm:$0xff]
    %v1320 = vld [vmem:[%s2 + $0xc0] sm:$0xff]
    %v1321 = vld [vmem:[%s2 + $0xc8] sm:$0xff]
    %v1322 = vld [vmem:[%s2 + $0xd0] sm:$0xff]
    %v1323 = vld [vmem:[%s2 + $0xd8] sm:$0xff]
    %v1324 = vld [vmem:[%s2 + $0xe0] sm:$0xff]
    %v1325 = vld [vmem:[%s2 + $0xe8] sm:$0xff]
    %v1326 = vld [vmem:[%s2 + $0xf0] sm:$0xff]
    %v1327 = vld [vmem:[%s2 + $0xf8] sm:$0xff]
    %v1360 = vunpack.c.l.b16 %v1296
    %v1361 = vunpack.c.h.b16 %v1296
    %v1362 = vunpack.c.l.b16 %v1297
    %v1363 = vunpack.c.h.b16 %v1297
    %v1364 = vunpack.c.l.b16 %v1298
    %v1365 = vunpack.c.h.b16 %v1298
    %v1366 = vunpack.c.l.b16 %v1299
    %v1367 = vunpack.c.h.b16 %v1299
    %v1368 = vunpack.c.l.b16 %v1300
    %v1369 = vunpack.c.h.b16 %v1300
    %v1370 = vunpack.c.l.b16 %v1301
    %v1371 = vunpack.c.h.b16 %v1301
    %v1372 = vunpack.c.l.b16 %v1302
    %v1373 = vunpack.c.h.b16 %v1302
    %v1374 = vunpack.c.l.b16 %v1303
    %v1375 = vunpack.c.h.b16 %v1303
    %v1376 = vunpack.c.l.b16 %v1304
    %v1377 = vunpack.c.h.b16 %v1304
    %v1378 = vunpack.c.l.b16 %v1305
    %v1379 = vunpack.c.h.b16 %v1305
    %v1380 = vunpack.c.l.b16 %v1306
    %v1381 = vunpack.c.h.b16 %v1306
    %v1382 = vunpack.c.l.b16 %v1307
    %v1383 = vunpack.c.h.b16 %v1307
    %v1384 = vunpack.c.l.b16 %v1308
    %v1385 = vunpack.c.h.b16 %v1308
    %v1386 = vunpack.c.l.b16 %v1309
    %v1387 = vunpack.c.h.b16 %v1309
    %v1388 = vunpack.c.l.b16 %v1310
    %v1389 = vunpack.c.h.b16 %v1310
    %v1390 = vunpack.c.l.b16 %v1311
    %v1391 = vunpack.c.h.b16 %v1311
    %v1392 = vunpack.c.l.b16 %v1312
    %v1393 = vunpack.c.h.b16 %v1312
    %v1394 = vunpack.c.l.b16 %v1313
    %v1395 = vunpack.c.h.b16 %v1313
    %v1396 = vunpack.c.l.b16 %v1314
    %v1397 = vunpack.c.h.b16 %v1314
    %v1398 = vunpack.c.l.b16 %v1315
    %v1399 = vunpack.c.h.b16 %v1315
    %v1400 = vunpack.c.l.b16 %v1316
    %v1401 = vunpack.c.h.b16 %v1316
    %v1402 = vunpack.c.l.b16 %v1317
    %v1403 = vunpack.c.h.b16 %v1317
    %v1404 = vunpack.c.l.b16 %v1318
    %v1405 = vunpack.c.h.b16 %v1318
    %v1406 = vunpack.c.l.b16 %v1319
    %v1407 = vunpack.c.h.b16 %v1319
    %v1408 = vunpack.c.l.b16 %v1320
    %v1409 = vunpack.c.h.b16 %v1320
    %v1410 = vunpack.c.l.b16 %v1321
    %v1411 = vunpack.c.h.b16 %v1321
    %v1412 = vunpack.c.l.b16 %v1322
    %v1413 = vunpack.c.h.b16 %v1322
    %v1414 = vunpack.c.l.b16 %v1323
    %v1415 = vunpack.c.h.b16 %v1323
    %v1416 = vunpack.c.l.b16 %v1324
    %v1417 = vunpack.c.h.b16 %v1324
    %v1418 = vunpack.c.l.b16 %v1325
    %v1419 = vunpack.c.h.b16 %v1325
    %v1420 = vunpack.c.l.b16 %v1326
    %v1421 = vunpack.c.h.b16 %v1326
    %v1422 = vunpack.c.l.b16 %v1327
    %v1423 = vunpack.c.h.b16 %v1327
    %v1424 = vpack.c.b16 %v1364, %v1360
    %v1425 = vpack.c.b16 %v1365, %v1361
    %v1426 = vpack.c.b16 %v1366, %v1362
    %v1427 = vpack.c.b16 %v1367, %v1363
    %v1428 = vpack.c.b16 %v1372, %v1368
    %v1429 = vpack.c.b16 %v1373, %v1369
    %v1430 = vpack.c.b16 %v1374, %v1370
    %v1431 = vpack.c.b16 %v1375, %v1371
    %v1432 = vpack.c.b16 %v1380, %v1376
    %v1433 = vpack.c.b16 %v1381, %v1377
    %v1434 = vpack.c.b16 %v1382, %v1378
    %v1435 = vpack.c.b16 %v1383, %v1379
    %v1436 = vpack.c.b16 %v1388, %v1384
    %v1437 = vpack.c.b16 %v1389, %v1385
    %v1438 = vpack.c.b16 %v1390, %v1386
    %v1439 = vpack.c.b16 %v1391, %v1387
    %v1440 = vpack.c.b16 %v1396, %v1392
    %v1441 = vpack.c.b16 %v1397, %v1393
    %v1442 = vpack.c.b16 %v1398, %v1394
    %v1443 = vpack.c.b16 %v1399, %v1395
    %v1444 = vpack.c.b16 %v1404, %v1400
    %v1445 = vpack.c.b16 %v1405, %v1401
    %v1446 = vpack.c.b16 %v1406, %v1402
    %v1447 = vpack.c.b16 %v1407, %v1403
    %v1448 = vpack.c.b16 %v1412, %v1408
    %v1449 = vpack.c.b16 %v1413, %v1409
    %v1450 = vpack.c.b16 %v1414, %v1410
    %v1451 = vpack.c.b16 %v1415, %v1411
    %v1452 = vpack.c.b16 %v1420, %v1416
    %v1453 = vpack.c.b16 %v1421, %v1417
    %v1454 = vpack.c.b16 %v1422, %v1418
    %v1455 = vpack.c.b16 %v1423, %v1419
    %1488 = vmatprep.subr.bf16.mxu0 %v1425
    %1489 = vmatpush1.bf16.msra.mxu0 %v1424
    %1490 = vmatprep.subr.bf16.mxu0 %v1429
    %1491 = vmatpush1.bf16.msra.mxu0 %v1428
    %1492 = vmatprep.subr.bf16.mxu0 %v1433
    %1493 = vmatpush1.bf16.msra.mxu0 %v1432
    %1494 = vmatprep.subr.bf16.mxu0 %v1437
    %1495 = vmatpush1.bf16.msra.mxu0 %v1436
    %1496 = vmatprep.subr.bf16.mxu0 %v1441
    %1497 = vmatpush1.bf16.msra.mxu0 %v1440
    %1498 = vmatprep.subr.bf16.mxu0 %v1445
    %1499 = vmatpush1.bf16.msra.mxu0 %v1444
    %1500 = vmatprep.subr.bf16.mxu0 %v1449
    %1501 = vmatpush1.bf16.msra.mxu0 %v1448
    %1502 = vmatprep.subr.bf16.mxu0 %v1453
    %1503 = vmatpush1.bf16.msra.mxu0 %v1452
    %1504 = vmatprep.subr.bf16.mxu0 0
    %1505 = vmatpush1.bf16.msra.mxu0 0
    %1506 = vmatprep.subr.bf16.mxu0 0
    %1507 = vmatpush1.bf16.msra.mxu0 0
    %1508 = vmatprep.subr.bf16.mxu0 0
    %1509 = vmatpush1.bf16.msra.mxu0 0
    %1510 = vmatprep.subr.bf16.mxu0 0
    %1511 = vmatpush1.bf16.msra.mxu0 0
    %1512 = vmatprep.subr.bf16.mxu0 0
    %1513 = vmatpush1.bf16.msra.mxu0 0
    %1514 = vmatprep.subr.bf16.mxu0 0
    %1515 = vmatpush1.bf16.msra.mxu0 0
    %1516 = vmatprep.subr.bf16.mxu0 0
    %1517 = vmatpush1.bf16.msra.mxu0 0
    %1518 = vmatprep.subr.bf16.mxu0 0
    %1519 = vmatpush1.bf16.msra.mxu0 0
    %1520 = vmatprep.mubr.bf16.mxu0 0
    %1521 = vmatmul.mubr.bf16.gmra.mrb[0].mxu0 %v1295
    %v1522 = vpop.f32.mrb[0].mxu0
    %v1523 = vadd.f32 0.0, %v1522
    %v1524 = vpop.f32.mrb[0].mxu0
    %v1525 = vadd.f32 0.0, %v1524
    %v1526 = vpop.f32.mrb[0].mxu0
    %v1527 = vpop.f32.mrb[0].mxu0
    %1528 = vdwg.mxu0
    %1529 = vmatprep.subr.bf16.mxu0 %v1427
    %1530 = vmatpush1.bf16.msra.mxu0 %v1426
    %1531 = vmatprep.subr.bf16.mxu0 %v1431
    %1532 = vmatpush1.bf16.msra.mxu0 %v1430
    %1533 = vmatprep.subr.bf16.mxu0 %v1435
    %1534 = vmatpush1.bf16.msra.mxu0 %v1434
    %1535 = vmatprep.subr.bf16.mxu0 %v1439
    %1536 = vmatpush1.bf16.msra.mxu0 %v1438
    %1537 = vmatprep.subr.bf16.mxu0 %v1443
    %1538 = vmatpush1.bf16.msra.mxu0 %v1442
    %1539 = vmatprep.subr.bf16.mxu0 %v1447
    %1540 = vmatpush1.bf16.msra.mxu0 %v1446
    %1541 = vmatprep.subr.bf16.mxu0 %v1451
    %1542 = vmatpush1.bf16.msra.mxu0 %v1450
    %1543 = vmatprep.subr.bf16.mxu0 %v1455
    %1544 = vmatpush1.bf16.msra.mxu0 %v1454
    %1545 = vmatprep.subr.bf16.mxu0 0
    %1546 = vmatpush1.bf16.msra.mxu0 0
    %1547 = vmatprep.subr.bf16.mxu0 0
    %1548 = vmatpush1.bf16.msra.mxu0 0
    %1549 = vmatprep.subr.bf16.mxu0 0
    %1550 = vmatpush1.bf16.msra.mxu0 0
    %1551 = vmatprep.subr.bf16.mxu0 0
    %1552 = vmatpush1.bf16.msra.mxu0 0
    %1553 = vmatprep.subr.bf16.mxu0 0
    %1554 = vmatpush1.bf16.msra.mxu0 0
    %1555 = vmatprep.subr.bf16.mxu0 0
    %1556 = vmatpush1.bf16.msra.mxu0 0
    %1557 = vmatprep.subr.bf16.mxu0 0
    %1558 = vmatpush1.bf16.msra.mxu0 0
    %1559 = vmatprep.subr.bf16.mxu0 0
    %1560 = vmatpush1.bf16.msra.mxu0 0
    %1561 = vmatprep.mubr.bf16.mxu0 0
    %1562 = vmatmul.mubr.bf16.gmra.mrb[0].mxu0 %v1295
    %v1563 = vpop.f32.mrb[0].mxu0
    %v1564 = vadd.f32 0.0, %v1563
    %v1565 = vpop.f32.mrb[0].mxu0
    %v1566 = vadd.f32 0.0, %v1565
    %v1567 = vpop.f32.mrb[0].mxu0
    %v1568 = vpop.f32.mrb[0].mxu0
    %1569 = vdwg.mxu0
    %v1570 = vadd.f32 %v1291, %v1523
    %v1571 = vadd.f32 %v1292, %v1525
    %v1572 = vadd.f32 %v1293, %v1564
    %v1573 = vadd.f32 %v1294, %v1566
    %v1574 = vxor.u32 %v1570, 2147483648
    %v1575 = vxor.u32 %v1571, 2147483648
    %v1576 = vxor.u32 %v1572, 2147483648
    %v1577 = vmul.f32 %v1574, 1.442695
    %v1578 = vpow.pop %v1577
    %v1579 = vmul.f32 %v1575, 1.442695
    %v1580 = vpow.pop %v1579
    %v1581 = vmul.f32 %v1576, 1.442695
    %v1582 = vpow.pop %v1581
    %v1583 = vadd.f32 %v1578, 1.0
    %v1584 = vadd.f32 %v1580, 1.0
    %v1585 = vadd.f32 %v1582, 1.0
    %v1586 = vrcp.pop %v1583
    %v1587 = vmul.f32 1.0, %v1586
    %v1588 = vrcp.pop %v1584
    %v1589 = vmul.f32 1.0, %v1588
    %v1590 = vrcp.pop %v1585
    %v1591 = vmul.f32 1.0, %v1590
    %v1592 = vtanh.pop %v1573
    %v1593 = vmul.f32 %v1589, %v1283
    %v1594 = vmul.f32 %v1587, %v1592
    %v1595 = vadd.f32 %v1593, %v1594
    %v1596 = vtanh.pop %v1595
    %v1597 = vmul.f32 %v1591, %v1596
    %s1598 = scalar_lea.vmem [#allocation3], 24
    %1599 = vst [vmem:[%s1598] sm:$0xff] %v1597
    %s1600 = smul.u32 4, 4
    %s1601 = smul.addr %s1600, 8
    %s1602 = scalar_lea.vmem [#allocation2], %s1601
    %v1603 = vld [vmem:[%s1602] sm:$0xff]
    %v1604 = vld [vmem:[%s1602 + $0x8] sm:$0xff]
    %v1605 = vld [vmem:[%s1602 + $0x10] sm:$0xff]
    %v1606 = vld [vmem:[%s1602 + $0x18] sm:$0xff]
    %v1607 = vpack.c.bf16 %v1597, %v1597
    %v1608 = vld [vmem:[%s2] sm:$0xff]
    %v1609 = vld [vmem:[%s2 + $0x8] sm:$0xff]
    %v1610 = vld [vmem:[%s2 + $0x10] sm:$0xff]
    %v1611 = vld [vmem:[%s2 + $0x18] sm:$0xff]
    %v1612 = vld [vmem:[%s2 + $0x20] sm:$0xff]
    %v1613 = vld [vmem:[%s2 + $0x28] sm:$0xff]
    %v1614 = vld [vmem:[%s2 + $0x30] sm:$0xff]
    %v1615 = vld [vmem:[%s2 + $0x38] sm:$0xff]
    %v1616 = vld [vmem:[%s2 + $0x40] sm:$0xff]
    %v1617 = vld [vmem:[%s2 + $0x48] sm:$0xff]
    %v1618 = vld [vmem:[%s2 + $0x50] sm:$0xff]
    %v1619 = vld [vmem:[%s2 + $0x58] sm:$0xff]
    %v1620 = vld [vmem:[%s2 + $0x60] sm:$0xff]
    %v1621 = vld [vmem:[%s2 + $0x68] sm:$0xff]
    %v1622 = vld [vmem:[%s2 + $0x70] sm:$0xff]
    %v1623 = vld [vmem:[%s2 + $0x78] sm:$0xff]
    %v1624 = vld [vmem:[%s2 + $0x80] sm:$0xff]
    %v1625 = vld [vmem:[%s2 + $0x88] sm:$0xff]
    %v1626 = vld [vmem:[%s2 + $0x90] sm:$0xff]
    %v1627 = vld [vmem:[%s2 + $0x98] sm:$0xff]
    %v1628 = vld [vmem:[%s2 + $0xa0] sm:$0xff]
    %v1629 = vld [vmem:[%s2 + $0xa8] sm:$0xff]
    %v1630 = vld [vmem:[%s2 + $0xb0] sm:$0xff]
    %v1631 = vld [vmem:[%s2 + $0xb8] sm:$0xff]
    %v1632 = vld [vmem:[%s2 + $0xc0] sm:$0xff]
    %v1633 = vld [vmem:[%s2 + $0xc8] sm:$0xff]
    %v1634 = vld [vmem:[%s2 + $0xd0] sm:$0xff]
    %v1635 = vld [vmem:[%s2 + $0xd8] sm:$0xff]
    %v1636 = vld [vmem:[%s2 + $0xe0] sm:$0xff]
    %v1637 = vld [vmem:[%s2 + $0xe8] sm:$0xff]
    %v1638 = vld [vmem:[%s2 + $0xf0] sm:$0xff]
    %v1639 = vld [vmem:[%s2 + $0xf8] sm:$0xff]
    %v1672 = vunpack.c.l.b16 %v1608
    %v1673 = vunpack.c.h.b16 %v1608
    %v1674 = vunpack.c.l.b16 %v1609
    %v1675 = vunpack.c.h.b16 %v1609
    %v1676 = vunpack.c.l.b16 %v1610
    %v1677 = vunpack.c.h.b16 %v1610
    %v1678 = vunpack.c.l.b16 %v1611
    %v1679 = vunpack.c.h.b16 %v1611
    %v1680 = vunpack.c.l.b16 %v1612
    %v1681 = vunpack.c.h.b16 %v1612
    %v1682 = vunpack.c.l.b16 %v1613
    %v1683 = vunpack.c.h.b16 %v1613
    %v1684 = vunpack.c.l.b16 %v1614
    %v1685 = vunpack.c.h.b16 %v1614
    %v1686 = vunpack.c.l.b16 %v1615
    %v1687 = vunpack.c.h.b16 %v1615
    %v1688 = vunpack.c.l.b16 %v1616
    %v1689 = vunpack.c.h.b16 %v1616
    %v1690 = vunpack.c.l.b16 %v1617
    %v1691 = vunpack.c.h.b16 %v1617
    %v1692 = vunpack.c.l.b16 %v1618
    %v1693 = vunpack.c.h.b16 %v1618
    %v1694 = vunpack.c.l.b16 %v1619
    %v1695 = vunpack.c.h.b16 %v1619
    %v1696 = vunpack.c.l.b16 %v1620
    %v1697 = vunpack.c.h.b16 %v1620
    %v1698 = vunpack.c.l.b16 %v1621
    %v1699 = vunpack.c.h.b16 %v1621
    %v1700 = vunpack.c.l.b16 %v1622
    %v1701 = vunpack.c.h.b16 %v1622
    %v1702 = vunpack.c.l.b16 %v1623
    %v1703 = vunpack.c.h.b16 %v1623
    %v1704 = vunpack.c.l.b16 %v1624
    %v1705 = vunpack.c.h.b16 %v1624
    %v1706 = vunpack.c.l.b16 %v1625
    %v1707 = vunpack.c.h.b16 %v1625
    %v1708 = vunpack.c.l.b16 %v1626
    %v1709 = vunpack.c.h.b16 %v1626
    %v1710 = vunpack.c.l.b16 %v1627
    %v1711 = vunpack.c.h.b16 %v1627
    %v1712 = vunpack.c.l.b16 %v1628
    %v1713 = vunpack.c.h.b16 %v1628
    %v1714 = vunpack.c.l.b16 %v1629
    %v1715 = vunpack.c.h.b16 %v1629
    %v1716 = vunpack.c.l.b16 %v1630
    %v1717 = vunpack.c.h.b16 %v1630
    %v1718 = vunpack.c.l.b16 %v1631
    %v1719 = vunpack.c.h.b16 %v1631
    %v1720 = vunpack.c.l.b16 %v1632
    %v1721 = vunpack.c.h.b16 %v1632
    %v1722 = vunpack.c.l.b16 %v1633
    %v1723 = vunpack.c.h.b16 %v1633
    %v1724 = vunpack.c.l.b16 %v1634
    %v1725 = vunpack.c.h.b16 %v1634
    %v1726 = vunpack.c.l.b16 %v1635
    %v1727 = vunpack.c.h.b16 %v1635
    %v1728 = vunpack.c.l.b16 %v1636
    %v1729 = vunpack.c.h.b16 %v1636
    %v1730 = vunpack.c.l.b16 %v1637
    %v1731 = vunpack.c.h.b16 %v1637
    %v1732 = vunpack.c.l.b16 %v1638
    %v1733 = vunpack.c.h.b16 %v1638
    %v1734 = vunpack.c.l.b16 %v1639
    %v1735 = vunpack.c.h.b16 %v1639
    %v1736 = vpack.c.b16 %v1676, %v1672
    %v1737 = vpack.c.b16 %v1677, %v1673
    %v1738 = vpack.c.b16 %v1678, %v1674
    %v1739 = vpack.c.b16 %v1679, %v1675
    %v1740 = vpack.c.b16 %v1684, %v1680
    %v1741 = vpack.c.b16 %v1685, %v1681
    %v1742 = vpack.c.b16 %v1686, %v1682
    %v1743 = vpack.c.b16 %v1687, %v1683
    %v1744 = vpack.c.b16 %v1692, %v1688
    %v1745 = vpack.c.b16 %v1693, %v1689
    %v1746 = vpack.c.b16 %v1694, %v1690
    %v1747 = vpack.c.b16 %v1695, %v1691
    %v1748 = vpack.c.b16 %v1700, %v1696
    %v1749 = vpack.c.b16 %v1701, %v1697
    %v1750 = vpack.c.b16 %v1702, %v1698
    %v1751 = vpack.c.b16 %v1703, %v1699
    %v1752 = vpack.c.b16 %v1708, %v1704
    %v1753 = vpack.c.b16 %v1709, %v1705
    %v1754 = vpack.c.b16 %v1710, %v1706
    %v1755 = vpack.c.b16 %v1711, %v1707
    %v1756 = vpack.c.b16 %v1716, %v1712
    %v1757 = vpack.c.b16 %v1717, %v1713
    %v1758 = vpack.c.b16 %v1718, %v1714
    %v1759 = vpack.c.b16 %v1719, %v1715
    %v1760 = vpack.c.b16 %v1724, %v1720
    %v1761 = vpack.c.b16 %v1725, %v1721
    %v1762 = vpack.c.b16 %v1726, %v1722
    %v1763 = vpack.c.b16 %v1727, %v1723
    %v1764 = vpack.c.b16 %v1732, %v1728
    %v1765 = vpack.c.b16 %v1733, %v1729
    %v1766 = vpack.c.b16 %v1734, %v1730
    %v1767 = vpack.c.b16 %v1735, %v1731
    %1800 = vmatprep.subr.bf16.mxu0 %v1737
    %1801 = vmatpush1.bf16.msra.mxu0 %v1736
    %1802 = vmatprep.subr.bf16.mxu0 %v1741
    %1803 = vmatpush1.bf16.msra.mxu0 %v1740
    %1804 = vmatprep.subr.bf16.mxu0 %v1745
    %1805 = vmatpush1.bf16.msra.mxu0 %v1744
    %1806 = vmatprep.subr.bf16.mxu0 %v1749
    %1807 = vmatpush1.bf16.msra.mxu0 %v1748
    %1808 = vmatprep.subr.bf16.mxu0 %v1753
    %1809 = vmatpush1.bf16.msra.mxu0 %v1752
    %1810 = vmatprep.subr.bf16.mxu0 %v1757
    %1811 = vmatpush1.bf16.msra.mxu0 %v1756
    %1812 = vmatprep.subr.bf16.mxu0 %v1761
    %1813 = vmatpush1.bf16.msra.mxu0 %v1760
    %1814 = vmatprep.subr.bf16.mxu0 %v1765
    %1815 = vmatpush1.bf16.msra.mxu0 %v1764
    %1816 = vmatprep.subr.bf16.mxu0 0
    %1817 = vmatpush1.bf16.msra.mxu0 0
    %1818 = vmatprep.subr.bf16.mxu0 0
    %1819 = vmatpush1.bf16.msra.mxu0 0
    %1820 = vmatprep.subr.bf16.mxu0 0
    %1821 = vmatpush1.bf16.msra.mxu0 0
    %1822 = vmatprep.subr.bf16.mxu0 0
    %1823 = vmatpush1.bf16.msra.mxu0 0
    %1824 = vmatprep.subr.bf16.mxu0 0
    %1825 = vmatpush1.bf16.msra.mxu0 0
    %1826 = vmatprep.subr.bf16.mxu0 0
    %1827 = vmatpush1.bf16.msra.mxu0 0
    %1828 = vmatprep.subr.bf16.mxu0 0
    %1829 = vmatpush1.bf16.msra.mxu0 0
    %1830 = vmatprep.subr.bf16.mxu0 0
    %1831 = vmatpush1.bf16.msra.mxu0 0
    %1832 = vmatprep.mubr.bf16.mxu0 0
    %1833 = vmatmul.mubr.bf16.gmra.mrb[0].mxu0 %v1607
    %v1834 = vpop.f32.mrb[0].mxu0
    %v1835 = vadd.f32 0.0, %v1834
    %v1836 = vpop.f32.mrb[0].mxu0
    %v1837 = vadd.f32 0.0, %v1836
    %v1838 = vpop.f32.mrb[0].mxu0
    %v1839 = vpop.f32.mrb[0].mxu0
    %1840 = vdwg.mxu0
    %1841 = vmatprep.subr.bf16.mxu0 %v1739
    %1842 = vmatpush1.bf16.msra.mxu0 %v1738
    %1843 = vmatprep.subr.bf16.mxu0 %v1743
    %1844 = vmatpush1.bf16.msra.mxu0 %v1742
    %1845 = vmatprep.subr.bf16.mxu0 %v1747
    %1846 = vmatpush1.bf16.msra.mxu0 %v1746
    %1847 = vmatprep.subr.bf16.mxu0 %v1751
    %1848 = vmatpush1.bf16.msra.mxu0 %v1750
    %1849 = vmatprep.subr.bf16.mxu0 %v1755
    %1850 = vmatpush1.bf16.msra.mxu0 %v1754
    %1851 = vmatprep.subr.bf16.mxu0 %v1759
    %1852 = vmatpush1.bf16.msra.mxu0 %v1758
    %1853 = vmatprep.subr.bf16.mxu0 %v1763
    %1854 = vmatpush1.bf16.msra.mxu0 %v1762
    %1855 = vmatprep.subr.bf16.mxu0 %v1767
    %1856 = vmatpush1.bf16.msra.mxu0 %v1766
    %1857 = vmatprep.subr.bf16.mxu0 0
    %1858 = vmatpush1.bf16.msra.mxu0 0
    %1859 = vmatprep.subr.bf16.mxu0 0
    %1860 = vmatpush1.bf16.msra.mxu0 0
    %1861 = vmatprep.subr.bf16.mxu0 0
    %1862 = vmatpush1.bf16.msra.mxu0 0
    %1863 = vmatprep.subr.bf16.mxu0 0
    %1864 = vmatpush1.bf16.msra.mxu0 0
    %1865 = vmatprep.subr.bf16.mxu0 0
    %1866 = vmatpush1.bf16.msra.mxu0 0
    %1867 = vmatprep.subr.bf16.mxu0 0
    %1868 = vmatpush1.bf16.msra.mxu0 0
    %1869 = vmatprep.subr.bf16.mxu0 0
    %1870 = vmatpush1.bf16.msra.mxu0 0
    %1871 = vmatprep.subr.bf16.mxu0 0
    %1872 = vmatpush1.bf16.msra.mxu0 0
    %1873 = vmatprep.mubr.bf16.mxu0 0
    %1874 = vmatmul.mubr.bf16.gmra.mrb[0].mxu0 %v1607
    %v1875 = vpop.f32.mrb[0].mxu0
    %v1876 = vadd.f32 0.0, %v1875
    %v1877 = vpop.f32.mrb[0].mxu0
    %v1878 = vadd.f32 0.0, %v1877
    %v1879 = vpop.f32.mrb[0].mxu0
    %v1880 = vpop.f32.mrb[0].mxu0
    %1881 = vdwg.mxu0
    %v1882 = vadd.f32 %v1603, %v1835
    %v1883 = vadd.f32 %v1604, %v1837
    %v1884 = vadd.f32 %v1605, %v1876
    %v1885 = vadd.f32 %v1606, %v1878
    %v1886 = vxor.u32 %v1882, 2147483648
    %v1887 = vxor.u32 %v1883, 2147483648
    %v1888 = vxor.u32 %v1884, 2147483648
    %v1889 = vmul.f32 %v1886, 1.442695
    %v1890 = vpow.pop %v1889
    %v1891 = vmul.f32 %v1887, 1.442695
    %v1892 = vpow.pop %v1891
    %v1893 = vmul.f32 %v1888, 1.442695
    %v1894 = vpow.pop %v1893
    %v1895 = vadd.f32 %v1890, 1.0
    %v1896 = vadd.f32 %v1892, 1.0
    %v1897 = vadd.f32 %v1894, 1.0
    %v1898 = vrcp.pop %v1895
    %v1899 = vmul.f32 1.0, %v1898
    %v1900 = vrcp.pop %v1896
    %v1901 = vmul.f32 1.0, %v1900
    %v1902 = vrcp.pop %v1897
    %v1903 = vmul.f32 1.0, %v1902
    %v1904 = vtanh.pop %v1885
    %v1905 = vmul.f32 %v1901, %v1595
    %v1906 = vmul.f32 %v1899, %v1904
    %v1907 = vadd.f32 %v1905, %v1906
    %v1908 = vtanh.pop %v1907
    %v1909 = vmul.f32 %v1903, %v1908
    %s1910 = scalar_lea.vmem [#allocation3], 32
    %1911 = vst [vmem:[%s1910] sm:$0xff] %v1909
    %s1912 = smul.u32 5, 4
    %s1913 = smul.addr %s1912, 8
    %s1914 = scalar_lea.vmem [#allocation2], %s1913
    %v1915 = vld [vmem:[%s1914] sm:$0xff]
    %v1916 = vld [vmem:[%s1914 + $0x8] sm:$0xff]
    %v1917 = vld [vmem:[%s1914 + $0x10] sm:$0xff]
    %v1918 = vld [vmem:[%s1914 + $0x18] sm:$0xff]
    %v1919 = vpack.c.bf16 %v1909, %v1909
    %v1920 = vld [vmem:[%s2] sm:$0xff]
    %v1921 = vld [vmem:[%s2 + $0x8] sm:$0xff]
    %v1922 = vld [vmem:[%s2 + $0x10] sm:$0xff]
    %v1923 = vld [vmem:[%s2 + $0x18] sm:$0xff]
    %v1924 = vld [vmem:[%s2 + $0x20] sm:$0xff]
    %v1925 = vld [vmem:[%s2 + $0x28] sm:$0xff]
    %v1926 = vld [vmem:[%s2 + $0x30] sm:$0xff]
    %v1927 = vld [vmem:[%s2 + $0x38] sm:$0xff]
    %v1928 = vld [vmem:[%s2 + $0x40] sm:$0xff]
    %v1929 = vld [vmem:[%s2 + $0x48] sm:$0xff]
    %v1930 = vld [vmem:[%s2 + $0x50] sm:$0xff]
    %v1931 = vld [vmem:[%s2 + $0x58] sm:$0xff]
    %v1932 = vld [vmem:[%s2 + $0x60] sm:$0xff]
    %v1933 = vld [vmem:[%s2 + $0x68] sm:$0xff]
    %v1934 = vld [vmem:[%s2 + $0x70] sm:$0xff]
    %v1935 = vld [vmem:[%s2 + $0x78] sm:$0xff]
    %v1936 = vld [vmem:[%s2 + $0x80] sm:$0xff]
    %v1937 = vld [vmem:[%s2 + $0x88] sm:$0xff]
    %v1938 = vld [vmem:[%s2 + $0x90] sm:$0xff]
    %v1939 = vld [vmem:[%s2 + $0x98] sm:$0xff]
    %v1940 = vld [vmem:[%s2 + $0xa0] sm:$0xff]
    %v1941 = vld [vmem:[%s2 + $0xa8] sm:$0xff]
    %v1942 = vld [vmem:[%s2 + $0xb0] sm:$0xff]
    %v1943 = vld [vmem:[%s2 + $0xb8] sm:$0xff]
    %v1944 = vld [vmem:[%s2 + $0xc0] sm:$0xff]
    %v1945 = vld [vmem:[%s2 + $0xc8] sm:$0xff]
    %v1946 = vld [vmem:[%s2 + $0xd0] sm:$0xff]
    %v1947 = vld [vmem:[%s2 + $0xd8] sm:$0xff]
    %v1948 = vld [vmem:[%s2 + $0xe0] sm:$0xff]
    %v1949 = vld [vmem:[%s2 + $0xe8] sm:$0xff]
    %v1950 = vld [vmem:[%s2 + $0xf0] sm:$0xff]
    %v1951 = vld [vmem:[%s2 + $0xf8] sm:$0xff]
    %v1984 = vunpack.c.l.b16 %v1920
    %v1985 = vunpack.c.h.b16 %v1920
    %v1986 = vunpack.c.l.b16 %v1921
    %v1987 = vunpack.c.h.b16 %v1921
    %v1988 = vunpack.c.l.b16 %v1922
    %v1989 = vunpack.c.h.b16 %v1922
    %v1990 = vunpack.c.l.b16 %v1923
    %v1991 = vunpack.c.h.b16 %v1923
    %v1992 = vunpack.c.l.b16 %v1924
    %v1993 = vunpack.c.h.b16 %v1924
    %v1994 = vunpack.c.l.b16 %v1925
    %v1995 = vunpack.c.h.b16 %v1925
    %v1996 = vunpack.c.l.b16 %v1926
    %v1997 = vunpack.c.h.b16 %v1926
    %v1998 = vunpack.c.l.b16 %v1927
    %v1999 = vunpack.c.h.b16 %v1927
    %v2000 = vunpack.c.l.b16 %v1928
    %v2001 = vunpack.c.h.b16 %v1928
    %v2002 = vunpack.c.l.b16 %v1929
    %v2003 = vunpack.c.h.b16 %v1929
    %v2004 = vunpack.c.l.b16 %v1930
    %v2005 = vunpack.c.h.b16 %v1930
    %v2006 = vunpack.c.l.b16 %v1931
    %v2007 = vunpack.c.h.b16 %v1931
    %v2008 = vunpack.c.l.b16 %v1932
    %v2009 = vunpack.c.h.b16 %v1932
    %v2010 = vunpack.c.l.b16 %v1933
    %v2011 = vunpack.c.h.b16 %v1933
    %v2012 = vunpack.c.l.b16 %v1934
    %v2013 = vunpack.c.h.b16 %v1934
    %v2014 = vunpack.c.l.b16 %v1935
    %v2015 = vunpack.c.h.b16 %v1935
    %v2016 = vunpack.c.l.b16 %v1936
    %v2017 = vunpack.c.h.b16 %v1936
    %v2018 = vunpack.c.l.b16 %v1937
    %v2019 = vunpack.c.h.b16 %v1937
    %v2020 = vunpack.c.l.b16 %v1938
    %v2021 = vunpack.c.h.b16 %v1938
    %v2022 = vunpack.c.l.b16 %v1939
    %v2023 = vunpack.c.h.b16 %v1939
    %v2024 = vunpack.c.l.b16 %v1940
    %v2025 = vunpack.c.h.b16 %v1940
    %v2026 = vunpack.c.l.b16 %v1941
    %v2027 = vunpack.c.h.b16 %v1941
    %v2028 = vunpack.c.l.b16 %v1942
    %v2029 = vunpack.c.h.b16 %v1942
    %v2030 = vunpack.c.l.b16 %v1943
    %v2031 = vunpack.c.h.b16 %v1943
    %v2032 = vunpack.c.l.b16 %v1944
    %v2033 = vunpack.c.h.b16 %v1944
    %v2034 = vunpack.c.l.b16 %v1945
    %v2035 = vunpack.c.h.b16 %v1945
    %v2036 = vunpack.c.l.b16 %v1946
    %v2037 = vunpack.c.h.b16 %v1946
    %v2038 = vunpack.c.l.b16 %v1947
    %v2039 = vunpack.c.h.b16 %v1947
    %v2040 = vunpack.c.l.b16 %v1948
    %v2041 = vunpack.c.h.b16 %v1948
    %v2042 = vunpack.c.l.b16 %v1949
    %v2043 = vunpack.c.h.b16 %v1949
    %v2044 = vunpack.c.l.b16 %v1950
    %v2045 = vunpack.c.h.b16 %v1950
    %v2046 = vunpack.c.l.b16 %v1951
    %v2047 = vunpack.c.h.b16 %v1951
    %v2048 = vpack.c.b16 %v1988, %v1984
    %v2049 = vpack.c.b16 %v1989, %v1985
    %v2050 = vpack.c.b16 %v1990, %v1986
    %v2051 = vpack.c.b16 %v1991, %v1987
    %v2052 = vpack.c.b16 %v1996, %v1992
    %v2053 = vpack.c.b16 %v1997, %v1993
    %v2054 = vpack.c.b16 %v1998, %v1994
    %v2055 = vpack.c.b16 %v1999, %v1995
    %v2056 = vpack.c.b16 %v2004, %v2000
    %v2057 = vpack.c.b16 %v2005, %v2001
    %v2058 = vpack.c.b16 %v2006, %v2002
    %v2059 = vpack.c.b16 %v2007, %v2003
    %v2060 = vpack.c.b16 %v2012, %v2008
    %v2061 = vpack.c.b16 %v2013, %v2009
    %v2062 = vpack.c.b16 %v2014, %v2010
    %v2063 = vpack.c.b16 %v2015, %v2011
    %v2064 = vpack.c.b16 %v2020, %v2016
    %v2065 = vpack.c.b16 %v2021, %v2017
    %v2066 = vpack.c.b16 %v2022, %v2018
    %v2067 = vpack.c.b16 %v2023, %v2019
    %v2068 = vpack.c.b16 %v2028, %v2024
    %v2069 = vpack.c.b16 %v2029, %v2025
    %v2070 = vpack.c.b16 %v2030, %v2026
    %v2071 = vpack.c.b16 %v2031, %v2027
    %v2072 = vpack.c.b16 %v2036, %v2032
    %v2073 = vpack.c.b16 %v2037, %v2033
    %v2074 = vpack.c.b16 %v2038, %v2034
    %v2075 = vpack.c.b16 %v2039, %v2035
    %v2076 = vpack.c.b16 %v2044, %v2040
    %v2077 = vpack.c.b16 %v2045, %v2041
    %v2078 = vpack.c.b16 %v2046, %v2042
    %v2079 = vpack.c.b16 %v2047, %v2043
    %2112 = vmatprep.subr.bf16.mxu0 %v2049
    %2113 = vmatpush1.bf16.msra.mxu0 %v2048
    %2114 = vmatprep.subr.bf16.mxu0 %v2053
    %2115 = vmatpush1.bf16.msra.mxu0 %v2052
    %2116 = vmatprep.subr.bf16.mxu0 %v2057
    %2117 = vmatpush1.bf16.msra.mxu0 %v2056
    %2118 = vmatprep.subr.bf16.mxu0 %v2061
    %2119 = vmatpush1.bf16.msra.mxu0 %v2060
    %2120 = vmatprep.subr.bf16.mxu0 %v2065
    %2121 = vmatpush1.bf16.msra.mxu0 %v2064
    %2122 = vmatprep.subr.bf16.mxu0 %v2069
    %2123 = vmatpush1.bf16.msra.mxu0 %v2068
    %2124 = vmatprep.subr.bf16.mxu0 %v2073
    %2125 = vmatpush1.bf16.msra.mxu0 %v2072
    %2126 = vmatprep.subr.bf16.mxu0 %v2077
    %2127 = vmatpush1.bf16.msra.mxu0 %v2076
    %2128 = vmatprep.subr.bf16.mxu0 0
    %2129 = vmatpush1.bf16.msra.mxu0 0
    %2130 = vmatprep.subr.bf16.mxu0 0
    %2131 = vmatpush1.bf16.msra.mxu0 0
    %2132 = vmatprep.subr.bf16.mxu0 0
    %2133 = vmatpush1.bf16.msra.mxu0 0
    %2134 = vmatprep.subr.bf16.mxu0 0
    %2135 = vmatpush1.bf16.msra.mxu0 0
    %2136 = vmatprep.subr.bf16.mxu0 0
    %2137 = vmatpush1.bf16.msra.mxu0 0
    %2138 = vmatprep.subr.bf16.mxu0 0
    %2139 = vmatpush1.bf16.msra.mxu0 0
    %2140 = vmatprep.subr.bf16.mxu0 0
    %2141 = vmatpush1.bf16.msra.mxu0 0
    %2142 = vmatprep.subr.bf16.mxu0 0
    %2143 = vmatpush1.bf16.msra.mxu0 0
    %2144 = vmatprep.mubr.bf16.mxu0 0
    %2145 = vmatmul.mubr.bf16.gmra.mrb[0].mxu0 %v1919
    %v2146 = vpop.f32.mrb[0].mxu0
    %v2147 = vadd.f32 0.0, %v2146
    %v2148 = vpop.f32.mrb[0].mxu0
    %v2149 = vadd.f32 0.0, %v2148
    %v2150 = vpop.f32.mrb[0].mxu0
    %v2151 = vpop.f32.mrb[0].mxu0
    %2152 = vdwg.mxu0
    %2153 = vmatprep.subr.bf16.mxu0 %v2051
    %2154 = vmatpush1.bf16.msra.mxu0 %v2050
    %2155 = vmatprep.subr.bf16.mxu0 %v2055
    %2156 = vmatpush1.bf16.msra.mxu0 %v2054
    %2157 = vmatprep.subr.bf16.mxu0 %v2059
    %2158 = vmatpush1.bf16.msra.mxu0 %v2058
    %2159 = vmatprep.subr.bf16.mxu0 %v2063
    %2160 = vmatpush1.bf16.msra.mxu0 %v2062
    %2161 = vmatprep.subr.bf16.mxu0 %v2067
    %2162 = vmatpush1.bf16.msra.mxu0 %v2066
    %2163 = vmatprep.subr.bf16.mxu0 %v2071
    %2164 = vmatpush1.bf16.msra.mxu0 %v2070
    %2165 = vmatprep.subr.bf16.mxu0 %v2075
    %2166 = vmatpush1.bf16.msra.mxu0 %v2074
    %2167 = vmatprep.subr.bf16.mxu0 %v2079
    %2168 = vmatpush1.bf16.msra.mxu0 %v2078
    %2169 = vmatprep.subr.bf16.mxu0 0
    %2170 = vmatpush1.bf16.msra.mxu0 0
    %2171 = vmatprep.subr.bf16.mxu0 0
    %2172 = vmatpush1.bf16.msra.mxu0 0
    %2173 = vmatprep.subr.bf16.mxu0 0
    %2174 = vmatpush1.bf16.msra.mxu0 0
    %2175 = vmatprep.subr.bf16.mxu0 0
    %2176 = vmatpush1.bf16.msra.mxu0 0
    %2177 = vmatprep.subr.bf16.mxu0 0
    %2178 = vmatpush1.bf16.msra.mxu0 0
    %2179 = vmatprep.subr.bf16.mxu0 0
    %2180 = vmatpush1.bf16.msra.mxu0 0
    %2181 = vmatprep.subr.bf16.mxu0 0
    %2182 = vmatpush1.bf16.msra.mxu0 0
    %2183 = vmatprep.subr.bf16.mxu0 0
    %2184 = vmatpush1.bf16.msra.mxu0 0
    %2185 = vmatprep.mubr.bf16.mxu0 0
    %2186 = vmatmul.mubr.bf16.gmra.mrb[0].mxu0 %v1919
    %v2187 = vpop.f32.mrb[0].mxu0
    %v2188 = vadd.f32 0.0, %v2187
    %v2189 = vpop.f32.mrb[0].mxu0
    %v2190 = vadd.f32 0.0, %v2189
    %v2191 = vpop.f32.mrb[0].mxu0
    %v2192 = vpop.f32.mrb[0].mxu0
    %2193 = vdwg.mxu0
    %v2194 = vadd.f32 %v1915, %v2147
    %v2195 = vadd.f32 %v1916, %v2149
    %v2196 = vadd.f32 %v1917, %v2188
    %v2197 = vadd.f32 %v1918, %v2190
    %v2198 = vxor.u32 %v2194, 2147483648
    %v2199 = vxor.u32 %v2195, 2147483648
    %v2200 = vxor.u32 %v2196, 2147483648
    %v2201 = vmul.f32 %v2198, 1.442695
    %v2202 = vpow.pop %v2201
    %v2203 = vmul.f32 %v2199, 1.442695
    %v2204 = vpow.pop %v2203
    %v2205 = vmul.f32 %v2200, 1.442695
    %v2206 = vpow.pop %v2205
    %v2207 = vadd.f32 %v2202, 1.0
    %v2208 = vadd.f32 %v2204, 1.0
    %v2209 = vadd.f32 %v2206, 1.0
    %v2210 = vrcp.pop %v2207
    %v2211 = vmul.f32 1.0, %v2210
    %v2212 = vrcp.pop %v2208
    %v2213 = vmul.f32 1.0, %v2212
    %v2214 = vrcp.pop %v2209
    %v2215 = vmul.f32 1.0, %v2214
    %v2216 = vtanh.pop %v2197
    %v2217 = vmul.f32 %v2213, %v1907
    %v2218 = vmul.f32 %v2211, %v2216
    %v2219 = vadd.f32 %v2217, %v2218
    %v2220 = vtanh.pop %v2219
    %v2221 = vmul.f32 %v2215, %v2220
    %s2222 = scalar_lea.vmem [#allocation3], 40
    %2223 = vst [vmem:[%s2222] sm:$0xff] %v2221
    %s2224 = smul.u32 6, 4
    %s2225 = smul.addr %s2224, 8
    %s2226 = scalar_lea.vmem [#allocation2], %s2225
    %v2227 = vld [vmem:[%s2226] sm:$0xff]
    %v2228 = vld [vmem:[%s2226 + $0x8] sm:$0xff]
    %v2229 = vld [vmem:[%s2226 + $0x10] sm:$0xff]
    %v2230 = vld [vmem:[%s2226 + $0x18] sm:$0xff]
    %v2231 = vpack.c.bf16 %v2221, %v2221
    %v2232 = vld [vmem:[%s2] sm:$0xff]
    %v2233 = vld [vmem:[%s2 + $0x8] sm:$0xff]
    %v2234 = vld [vmem:[%s2 + $0x10] sm:$0xff]
    %v2235 = vld [vmem:[%s2 + $0x18] sm:$0xff]
    %v2236 = vld [vmem:[%s2 + $0x20] sm:$0xff]
    %v2237 = vld [vmem:[%s2 + $0x28] sm:$0xff]
    %v2238 = vld [vmem:[%s2 + $0x30] sm:$0xff]
    %v2239 = vld [vmem:[%s2 + $0x38] sm:$0xff]
    %v2240 = vld [vmem:[%s2 + $0x40] sm:$0xff]
    %v2241 = vld [vmem:[%s2 + $0x48] sm:$0xff]
    %v2242 = vld [vmem:[%s2 + $0x50] sm:$0xff]
    %v2243 = vld [vmem:[%s2 + $0x58] sm:$0xff]
    %v2244 = vld [vmem:[%s2 + $0x60] sm:$0xff]
    %v2245 = vld [vmem:[%s2 + $0x68] sm:$0xff]
    %v2246 = vld [vmem:[%s2 + $0x70] sm:$0xff]
    %v2247 = vld [vmem:[%s2 + $0x78] sm:$0xff]
    %v2248 = vld [vmem:[%s2 + $0x80] sm:$0xff]
    %v2249 = vld [vmem:[%s2 + $0x88] sm:$0xff]
    %v2250 = vld [vmem:[%s2 + $0x90] sm:$0xff]
    %v2251 = vld [vmem:[%s2 + $0x98] sm:$0xff]
    %v2252 = vld [vmem:[%s2 + $0xa0] sm:$0xff]
    %v2253 = vld [vmem:[%s2 + $0xa8] sm:$0xff]
    %v2254 = vld [vmem:[%s2 + $0xb0] sm:$0xff]
    %v2255 = vld [vmem:[%s2 + $0xb8] sm:$0xff]
    %v2256 = vld [vmem:[%s2 + $0xc0] sm:$0xff]
    %v2257 = vld [vmem:[%s2 + $0xc8] sm:$0xff]
    %v2258 = vld [vmem:[%s2 + $0xd0] sm:$0xff]
    %v2259 = vld [vmem:[%s2 + $0xd8] sm:$0xff]
    %v2260 = vld [vmem:[%s2 + $0xe0] sm:$0xff]
    %v2261 = vld [vmem:[%s2 + $0xe8] sm:$0xff]
    %v2262 = vld [vmem:[%s2 + $0xf0] sm:$0xff]
    %v2263 = vld [vmem:[%s2 + $0xf8] sm:$0xff]
    %v2296 = vunpack.c.l.b16 %v2232
    %v2297 = vunpack.c.h.b16 %v2232
    %v2298 = vunpack.c.l.b16 %v2233
    %v2299 = vunpack.c.h.b16 %v2233
    %v2300 = vunpack.c.l.b16 %v2234
    %v2301 = vunpack.c.h.b16 %v2234
    %v2302 = vunpack.c.l.b16 %v2235
    %v2303 = vunpack.c.h.b16 %v2235
    %v2304 = vunpack.c.l.b16 %v2236
    %v2305 = vunpack.c.h.b16 %v2236
    %v2306 = vunpack.c.l.b16 %v2237
    %v2307 = vunpack.c.h.b16 %v2237
    %v2308 = vunpack.c.l.b16 %v2238
    %v2309 = vunpack.c.h.b16 %v2238
    %v2310 = vunpack.c.l.b16 %v2239
    %v2311 = vunpack.c.h.b16 %v2239
    %v2312 = vunpack.c.l.b16 %v2240
    %v2313 = vunpack.c.h.b16 %v2240
    %v2314 = vunpack.c.l.b16 %v2241
    %v2315 = vunpack.c.h.b16 %v2241
    %v2316 = vunpack.c.l.b16 %v2242
    %v2317 = vunpack.c.h.b16 %v2242
    %v2318 = vunpack.c.l.b16 %v2243
    %v2319 = vunpack.c.h.b16 %v2243
    %v2320 = vunpack.c.l.b16 %v2244
    %v2321 = vunpack.c.h.b16 %v2244
    %v2322 = vunpack.c.l.b16 %v2245
    %v2323 = vunpack.c.h.b16 %v2245
    %v2324 = vunpack.c.l.b16 %v2246
    %v2325 = vunpack.c.h.b16 %v2246
    %v2326 = vunpack.c.l.b16 %v2247
    %v2327 = vunpack.c.h.b16 %v2247
    %v2328 = vunpack.c.l.b16 %v2248
    %v2329 = vunpack.c.h.b16 %v2248
    %v2330 = vunpack.c.l.b16 %v2249
    %v2331 = vunpack.c.h.b16 %v2249
    %v2332 = vunpack.c.l.b16 %v2250
    %v2333 = vunpack.c.h.b16 %v2250
    %v2334 = vunpack.c.l.b16 %v2251
    %v2335 = vunpack.c.h.b16 %v2251
    %v2336 = vunpack.c.l.b16 %v2252
    %v2337 = vunpack.c.h.b16 %v2252
    %v2338 = vunpack.c.l.b16 %v2253
    %v2339 = vunpack.c.h.b16 %v2253
    %v2340 = vunpack.c.l.b16 %v2254
    %v2341 = vunpack.c.h.b16 %v2254
    %v2342 = vunpack.c.l.b16 %v2255
    %v2343 = vunpack.c.h.b16 %v2255
    %v2344 = vunpack.c.l.b16 %v2256
    %v2345 = vunpack.c.h.b16 %v2256
    %v2346 = vunpack.c.l.b16 %v2257
    %v2347 = vunpack.c.h.b16 %v2257
    %v2348 = vunpack.c.l.b16 %v2258
    %v2349 = vunpack.c.h.b16 %v2258
    %v2350 = vunpack.c.l.b16 %v2259
    %v2351 = vunpack.c.h.b16 %v2259
    %v2352 = vunpack.c.l.b16 %v2260
    %v2353 = vunpack.c.h.b16 %v2260
    %v2354 = vunpack.c.l.b16 %v2261
    %v2355 = vunpack.c.h.b16 %v2261
    %v2356 = vunpack.c.l.b16 %v2262
    %v2357 = vunpack.c.h.b16 %v2262
    %v2358 = vunpack.c.l.b16 %v2263
    %v2359 = vunpack.c.h.b16 %v2263
    %v2360 = vpack.c.b16 %v2300, %v2296
    %v2361 = vpack.c.b16 %v2301, %v2297
    %v2362 = vpack.c.b16 %v2302, %v2298
    %v2363 = vpack.c.b16 %v2303, %v2299
    %v2364 = vpack.c.b16 %v2308, %v2304
    %v2365 = vpack.c.b16 %v2309, %v2305
    %v2366 = vpack.c.b16 %v2310, %v2306
    %v2367 = vpack.c.b16 %v2311, %v2307
    %v2368 = vpack.c.b16 %v2316, %v2312
    %v2369 = vpack.c.b16 %v2317, %v2313
    %v2370 = vpack.c.b16 %v2318, %v2314
    %v2371 = vpack.c.b16 %v2319, %v2315
    %v2372 = vpack.c.b16 %v2324, %v2320
    %v2373 = vpack.c.b16 %v2325, %v2321
    %v2374 = vpack.c.b16 %v2326, %v2322
    %v2375 = vpack.c.b16 %v2327, %v2323
    %v2376 = vpack.c.b16 %v2332, %v2328
    %v2377 = vpack.c.b16 %v2333, %v2329
    %v2378 = vpack.c.b16 %v2334, %v2330
    %v2379 = vpack.c.b16 %v2335, %v2331
    %v2380 = vpack.c.b16 %v2340, %v2336
    %v2381 = vpack.c.b16 %v2341, %v2337
    %v2382 = vpack.c.b16 %v2342, %v2338
    %v2383 = vpack.c.b16 %v2343, %v2339
    %v2384 = vpack.c.b16 %v2348, %v2344
    %v2385 = vpack.c.b16 %v2349, %v2345
    %v2386 = vpack.c.b16 %v2350, %v2346
    %v2387 = vpack.c.b16 %v2351, %v2347
    %v2388 = vpack.c.b16 %v2356, %v2352
    %v2389 = vpack.c.b16 %v2357, %v2353
    %v2390 = vpack.c.b16 %v2358, %v2354
    %v2391 = vpack.c.b16 %v2359, %v2355
    %2424 = vmatprep.subr.bf16.mxu0 %v2361
    %2425 = vmatpush1.bf16.msra.mxu0 %v2360
    %2426 = vmatprep.subr.bf16.mxu0 %v2365
    %2427 = vmatpush1.bf16.msra.mxu0 %v2364
    %2428 = vmatprep.subr.bf16.mxu0 %v2369
    %2429 = vmatpush1.bf16.msra.mxu0 %v2368
    %2430 = vmatprep.subr.bf16.mxu0 %v2373
    %2431 = vmatpush1.bf16.msra.mxu0 %v2372
    %2432 = vmatprep.subr.bf16.mxu0 %v2377
    %2433 = vmatpush1.bf16.msra.mxu0 %v2376
    %2434 = vmatprep.subr.bf16.mxu0 %v2381
    %2435 = vmatpush1.bf16.msra.mxu0 %v2380
    %2436 = vmatprep.subr.bf16.mxu0 %v2385
    %2437 = vmatpush1.bf16.msra.mxu0 %v2384
    %2438 = vmatprep.subr.bf16.mxu0 %v2389
    %2439 = vmatpush1.bf16.msra.mxu0 %v2388
    %2440 = vmatprep.subr.bf16.mxu0 0
    %2441 = vmatpush1.bf16.msra.mxu0 0
    %2442 = vmatprep.subr.bf16.mxu0 0
    %2443 = vmatpush1.bf16.msra.mxu0 0
    %2444 = vmatprep.subr.bf16.mxu0 0
    %2445 = vmatpush1.bf16.msra.mxu0 0
    %2446 = vmatprep.subr.bf16.mxu0 0
    %2447 = vmatpush1.bf16.msra.mxu0 0
    %2448 = vmatprep.subr.bf16.mxu0 0
    %2449 = vmatpush1.bf16.msra.mxu0 0
    %2450 = vmatprep.subr.bf16.mxu0 0
    %2451 = vmatpush1.bf16.msra.mxu0 0
    %2452 = vmatprep.subr.bf16.mxu0 0
    %2453 = vmatpush1.bf16.msra.mxu0 0
    %2454 = vmatprep.subr.bf16.mxu0 0
    %2455 = vmatpush1.bf16.msra.mxu0 0
    %2456 = vmatprep.mubr.bf16.mxu0 0
    %2457 = vmatmul.mubr.bf16.gmra.mrb[0].mxu0 %v2231
    %v2458 = vpop.f32.mrb[0].mxu0
    %v2459 = vadd.f32 0.0, %v2458
    %v2460 = vpop.f32.mrb[0].mxu0
    %v2461 = vadd.f32 0.0, %v2460
    %v2462 = vpop.f32.mrb[0].mxu0
    %v2463 = vpop.f32.mrb[0].mxu0
    %2464 = vdwg.mxu0
    %2465 = vmatprep.subr.bf16.mxu0 %v2363
    %2466 = vmatpush1.bf16.msra.mxu0 %v2362
    %2467 = vmatprep.subr.bf16.mxu0 %v2367
    %2468 = vmatpush1.bf16.msra.mxu0 %v2366
    %2469 = vmatprep.subr.bf16.mxu0 %v2371
    %2470 = vmatpush1.bf16.msra.mxu0 %v2370
    %2471 = vmatprep.subr.bf16.mxu0 %v2375
    %2472 = vmatpush1.bf16.msra.mxu0 %v2374
    %2473 = vmatprep.subr.bf16.mxu0 %v2379
    %2474 = vmatpush1.bf16.msra.mxu0 %v2378
    %2475 = vmatprep.subr.bf16.mxu0 %v2383
    %2476 = vmatpush1.bf16.msra.mxu0 %v2382
    %2477 = vmatprep.subr.bf16.mxu0 %v2387
    %2478 = vmatpush1.bf16.msra.mxu0 %v2386
    %2479 = vmatprep.subr.bf16.mxu0 %v2391
    %2480 = vmatpush1.bf16.msra.mxu0 %v2390
    %2481 = vmatprep.subr.bf16.mxu0 0
    %2482 = vmatpush1.bf16.msra.mxu0 0
    %2483 = vmatprep.subr.bf16.mxu0 0
    %2484 = vmatpush1.bf16.msra.mxu0 0
    %2485 = vmatprep.subr.bf16.mxu0 0
    %2486 = vmatpush1.bf16.msra.mxu0 0
    %2487 = vmatprep.subr.bf16.mxu0 0
    %2488 = vmatpush1.bf16.msra.mxu0 0
    %2489 = vmatprep.subr.bf16.mxu0 0
    %2490 = vmatpush1.bf16.msra.mxu0 0
    %2491 = vmatprep.subr.bf16.mxu0 0
    %2492 = vmatpush1.bf16.msra.mxu0 0
    %2493 = vmatprep.subr.bf16.mxu0 0
    %2494 = vmatpush1.bf16.msra.mxu0 0
    %2495 = vmatprep.subr.bf16.mxu0 0
    %2496 = vmatpush1.bf16.msra.mxu0 0
    %2497 = vmatprep.mubr.bf16.mxu0 0
    %2498 = vmatmul.mubr.bf16.gmra.mrb[0].mxu0 %v2231
    %v2499 = vpop.f32.mrb[0].mxu0
    %v2500 = vadd.f32 0.0, %v2499
    %v2501 = vpop.f32.mrb[0].mxu0
    %v2502 = vadd.f32 0.0, %v2501
    %v2503 = vpop.f32.mrb[0].mxu0
    %v2504 = vpop.f32.mrb[0].mxu0
    %2505 = vdwg.mxu0
    %v2506 = vadd.f32 %v2227, %v2459
    %v2507 = vadd.f32 %v2228, %v2461
    %v2508 = vadd.f32 %v2229, %v2500
    %v2509 = vadd.f32 %v2230, %v2502
    %v2510 = vxor.u32 %v2506, 2147483648
    %v2511 = vxor.u32 %v2507, 2147483648
    %v2512 = vxor.u32 %v2508, 2147483648
    %v2513 = vmul.f32 %v2510, 1.442695
    %v2514 = vpow.pop %v2513
    %v2515 = vmul.f32 %v2511, 1.442695
    %v2516 = vpow.pop %v2515
    %v2517 = vmul.f32 %v2512, 1.442695
    %v2518 = vpow.pop %v2517
    %v2519 = vadd.f32 %v2514, 1.0
    %v2520 = vadd.f32 %v2516, 1.0
    %v2521 = vadd.f32 %v2518, 1.0
    %v2522 = vrcp.pop %v2519
    %v2523 = vmul.f32 1.0, %v2522
    %v2524 = vrcp.pop %v2520
    %v2525 = vmul.f32 1.0, %v2524
    %v2526 = vrcp.pop %v2521
    %v2527 = vmul.f32 1.0, %v2526
    %v2528 = vtanh.pop %v2509
    %v2529 = vmul.f32 %v2525, %v2219
    %v2530 = vmul.f32 %v2523, %v2528
    %v2531 = vadd.f32 %v2529, %v2530
    %v2532 = vtanh.pop %v2531
    %v2533 = vmul.f32 %v2527, %v2532
    %s2534 = scalar_lea.vmem [#allocation3], 48
    %2535 = vst [vmem:[%s2534] sm:$0xff] %v2533
    %s2536 = smul.u32 7, 4
    %s2537 = smul.addr %s2536, 8
    %s2538 = scalar_lea.vmem [#allocation2], %s2537
    %v2539 = vld [vmem:[%s2538] sm:$0xff]
    %v2540 = vld [vmem:[%s2538 + $0x8] sm:$0xff]
    %v2541 = vld [vmem:[%s2538 + $0x10] sm:$0xff]
    %v2542 = vld [vmem:[%s2538 + $0x18] sm:$0xff]
    %v2543 = vpack.c.bf16 %v2533, %v2533
    %v2544 = vld [vmem:[%s2] sm:$0xff]
    %v2545 = vld [vmem:[%s2 + $0x8] sm:$0xff]
    %v2546 = vld [vmem:[%s2 + $0x10] sm:$0xff]
    %v2547 = vld [vmem:[%s2 + $0x18] sm:$0xff]
    %v2548 = vld [vmem:[%s2 + $0x20] sm:$0xff]
    %v2549 = vld [vmem:[%s2 + $0x28] sm:$0xff]
    %v2550 = vld [vmem:[%s2 + $0x30] sm:$0xff]
    %v2551 = vld [vmem:[%s2 + $0x38] sm:$0xff]
    %v2552 = vld [vmem:[%s2 + $0x40] sm:$0xff]
    %v2553 = vld [vmem:[%s2 + $0x48] sm:$0xff]
    %v2554 = vld [vmem:[%s2 + $0x50] sm:$0xff]
    %v2555 = vld [vmem:[%s2 + $0x58] sm:$0xff]
    %v2556 = vld [vmem:[%s2 + $0x60] sm:$0xff]
    %v2557 = vld [vmem:[%s2 + $0x68] sm:$0xff]
    %v2558 = vld [vmem:[%s2 + $0x70] sm:$0xff]
    %v2559 = vld [vmem:[%s2 + $0x78] sm:$0xff]
    %v2560 = vld [vmem:[%s2 + $0x80] sm:$0xff]
    %v2561 = vld [vmem:[%s2 + $0x88] sm:$0xff]
    %v2562 = vld [vmem:[%s2 + $0x90] sm:$0xff]
    %v2563 = vld [vmem:[%s2 + $0x98] sm:$0xff]
    %v2564 = vld [vmem:[%s2 + $0xa0] sm:$0xff]
    %v2565 = vld [vmem:[%s2 + $0xa8] sm:$0xff]
    %v2566 = vld [vmem:[%s2 + $0xb0] sm:$0xff]
    %v2567 = vld [vmem:[%s2 + $0xb8] sm:$0xff]
    %v2568 = vld [vmem:[%s2 + $0xc0] sm:$0xff]
    %v2569 = vld [vmem:[%s2 + $0xc8] sm:$0xff]
    %v2570 = vld [vmem:[%s2 + $0xd0] sm:$0xff]
    %v2571 = vld [vmem:[%s2 + $0xd8] sm:$0xff]
    %v2572 = vld [vmem:[%s2 + $0xe0] sm:$0xff]
    %v2573 = vld [vmem:[%s2 + $0xe8] sm:$0xff]
    %v2574 = vld [vmem:[%s2 + $0xf0] sm:$0xff]
    %v2575 = vld [vmem:[%s2 + $0xf8] sm:$0xff]
    %v2608 = vunpack.c.l.b16 %v2544
    %v2609 = vunpack.c.h.b16 %v2544
    %v2610 = vunpack.c.l.b16 %v2545
    %v2611 = vunpack.c.h.b16 %v2545
    %v2612 = vunpack.c.l.b16 %v2546
    %v2613 = vunpack.c.h.b16 %v2546
    %v2614 = vunpack.c.l.b16 %v2547
    %v2615 = vunpack.c.h.b16 %v2547
    %v2616 = vunpack.c.l.b16 %v2548
    %v2617 = vunpack.c.h.b16 %v2548
    %v2618 = vunpack.c.l.b16 %v2549
    %v2619 = vunpack.c.h.b16 %v2549
    %v2620 = vunpack.c.l.b16 %v2550
    %v2621 = vunpack.c.h.b16 %v2550
    %v2622 = vunpack.c.l.b16 %v2551
    %v2623 = vunpack.c.h.b16 %v2551
    %v2624 = vunpack.c.l.b16 %v2552
    %v2625 = vunpack.c.h.b16 %v2552
    %v2626 = vunpack.c.l.b16 %v2553
    %v2627 = vunpack.c.h.b16 %v2553
    %v2628 = vunpack.c.l.b16 %v2554
    %v2629 = vunpack.c.h.b16 %v2554
    %v2630 = vunpack.c.l.b16 %v2555
    %v2631 = vunpack.c.h.b16 %v2555
    %v2632 = vunpack.c.l.b16 %v2556
    %v2633 = vunpack.c.h.b16 %v2556
    %v2634 = vunpack.c.l.b16 %v2557
    %v2635 = vunpack.c.h.b16 %v2557
    %v2636 = vunpack.c.l.b16 %v2558
    %v2637 = vunpack.c.h.b16 %v2558
    %v2638 = vunpack.c.l.b16 %v2559
    %v2639 = vunpack.c.h.b16 %v2559
    %v2640 = vunpack.c.l.b16 %v2560
    %v2641 = vunpack.c.h.b16 %v2560
    %v2642 = vunpack.c.l.b16 %v2561
    %v2643 = vunpack.c.h.b16 %v2561
    %v2644 = vunpack.c.l.b16 %v2562
    %v2645 = vunpack.c.h.b16 %v2562
    %v2646 = vunpack.c.l.b16 %v2563
    %v2647 = vunpack.c.h.b16 %v2563
    %v2648 = vunpack.c.l.b16 %v2564
    %v2649 = vunpack.c.h.b16 %v2564
    %v2650 = vunpack.c.l.b16 %v2565
    %v2651 = vunpack.c.h.b16 %v2565
    %v2652 = vunpack.c.l.b16 %v2566
    %v2653 = vunpack.c.h.b16 %v2566
    %v2654 = vunpack.c.l.b16 %v2567
    %v2655 = vunpack.c.h.b16 %v2567
    %v2656 = vunpack.c.l.b16 %v2568
    %v2657 = vunpack.c.h.b16 %v2568
    %v2658 = vunpack.c.l.b16 %v2569
    %v2659 = vunpack.c.h.b16 %v2569
    %v2660 = vunpack.c.l.b16 %v2570
    %v2661 = vunpack.c.h.b16 %v2570
    %v2662 = vunpack.c.l.b16 %v2571
    %v2663 = vunpack.c.h.b16 %v2571
    %v2664 = vunpack.c.l.b16 %v2572
    %v2665 = vunpack.c.h.b16 %v2572
    %v2666 = vunpack.c.l.b16 %v2573
    %v2667 = vunpack.c.h.b16 %v2573
    %v2668 = vunpack.c.l.b16 %v2574
    %v2669 = vunpack.c.h.b16 %v2574
    %v2670 = vunpack.c.l.b16 %v2575
    %v2671 = vunpack.c.h.b16 %v2575
    %v2672 = vpack.c.b16 %v2612, %v2608
    %v2673 = vpack.c.b16 %v2613, %v2609
    %v2674 = vpack.c.b16 %v2614, %v2610
    %v2675 = vpack.c.b16 %v2615, %v2611
    %v2676 = vpack.c.b16 %v2620, %v2616
    %v2677 = vpack.c.b16 %v2621, %v2617
    %v2678 = vpack.c.b16 %v2622, %v2618
    %v2679 = vpack.c.b16 %v2623, %v2619
    %v2680 = vpack.c.b16 %v2628, %v2624
    %v2681 = vpack.c.b16 %v2629, %v2625
    %v2682 = vpack.c.b16 %v2630, %v2626
    %v2683 = vpack.c.b16 %v2631, %v2627
    %v2684 = vpack.c.b16 %v2636, %v2632
    %v2685 = vpack.c.b16 %v2637, %v2633
    %v2686 = vpack.c.b16 %v2638, %v2634
    %v2687 = vpack.c.b16 %v2639, %v2635
    %v2688 = vpack.c.b16 %v2644, %v2640
    %v2689 = vpack.c.b16 %v2645, %v2641
    %v2690 = vpack.c.b16 %v2646, %v2642
    %v2691 = vpack.c.b16 %v2647, %v2643
    %v2692 = vpack.c.b16 %v2652, %v2648
    %v2693 = vpack.c.b16 %v2653, %v2649
    %v2694 = vpack.c.b16 %v2654, %v2650
    %v2695 = vpack.c.b16 %v2655, %v2651
    %v2696 = vpack.c.b16 %v2660, %v2656
    %v2697 = vpack.c.b16 %v2661, %v2657
    %v2698 = vpack.c.b16 %v2662, %v2658
    %v2699 = vpack.c.b16 %v2663, %v2659
    %v2700 = vpack.c.b16 %v2668, %v2664
    %v2701 = vpack.c.b16 %v2669, %v2665
    %v2702 = vpack.c.b16 %v2670, %v2666
    %v2703 = vpack.c.b16 %v2671, %v2667
    %2736 = vmatprep.subr.bf16.mxu0 %v2673
    %2737 = vmatpush1.bf16.msra.mxu0 %v2672
    %2738 = vmatprep.subr.bf16.mxu0 %v2677
    %2739 = vmatpush1.bf16.msra.mxu0 %v2676
    %2740 = vmatprep.subr.bf16.mxu0 %v2681
    %2741 = vmatpush1.bf16.msra.mxu0 %v2680
    %2742 = vmatprep.subr.bf16.mxu0 %v2685
    %2743 = vmatpush1.bf16.msra.mxu0 %v2684
    %2744 = vmatprep.subr.bf16.mxu0 %v2689
    %2745 = vmatpush1.bf16.msra.mxu0 %v2688
    %2746 = vmatprep.subr.bf16.mxu0 %v2693
    %2747 = vmatpush1.bf16.msra.mxu0 %v2692
    %2748 = vmatprep.subr.bf16.mxu0 %v2697
    %2749 = vmatpush1.bf16.msra.mxu0 %v2696
    %2750 = vmatprep.subr.bf16.mxu0 %v2701
    %2751 = vmatpush1.bf16.msra.mxu0 %v2700
    %2752 = vmatprep.subr.bf16.mxu0 0
    %2753 = vmatpush1.bf16.msra.mxu0 0
    %2754 = vmatprep.subr.bf16.mxu0 0
    %2755 = vmatpush1.bf16.msra.mxu0 0
    %2756 = vmatprep.subr.bf16.mxu0 0
    %2757 = vmatpush1.bf16.msra.mxu0 0
    %2758 = vmatprep.subr.bf16.mxu0 0
    %2759 = vmatpush1.bf16.msra.mxu0 0
    %2760 = vmatprep.subr.bf16.mxu0 0
    %2761 = vmatpush1.bf16.msra.mxu0 0
    %2762 = vmatprep.subr.bf16.mxu0 0
    %2763 = vmatpush1.bf16.msra.mxu0 0
    %2764 = vmatprep.subr.bf16.mxu0 0
    %2765 = vmatpush1.bf16.msra.mxu0 0
    %2766 = vmatprep.subr.bf16.mxu0 0
    %2767 = vmatpush1.bf16.msra.mxu0 0
    %2768 = vmatprep.mubr.bf16.mxu0 0
    %2769 = vmatmul.mubr.bf16.gmra.mrb[0].mxu0 %v2543
    %v2770 = vpop.f32.mrb[0].mxu0
    %v2771 = vadd.f32 0.0, %v2770
    %v2772 = vpop.f32.mrb[0].mxu0
    %v2773 = vadd.f32 0.0, %v2772
    %v2774 = vpop.f32.mrb[0].mxu0
    %v2775 = vpop.f32.mrb[0].mxu0
    %2776 = vdwg.mxu0
    %2777 = vmatprep.subr.bf16.mxu0 %v2675
    %2778 = vmatpush1.bf16.msra.mxu0 %v2674
    %2779 = vmatprep.subr.bf16.mxu0 %v2679
    %2780 = vmatpush1.bf16.msra.mxu0 %v2678
    %2781 = vmatprep.subr.bf16.mxu0 %v2683
    %2782 = vmatpush1.bf16.msra.mxu0 %v2682
    %2783 = vmatprep.subr.bf16.mxu0 %v2687
    %2784 = vmatpush1.bf16.msra.mxu0 %v2686
    %2785 = vmatprep.subr.bf16.mxu0 %v2691
    %2786 = vmatpush1.bf16.msra.mxu0 %v2690
    %2787 = vmatprep.subr.bf16.mxu0 %v2695
    %2788 = vmatpush1.bf16.msra.mxu0 %v2694
    %2789 = vmatprep.subr.bf16.mxu0 %v2699
    %2790 = vmatpush1.bf16.msra.mxu0 %v2698
    %2791 = vmatprep.subr.bf16.mxu0 %v2703
    %2792 = vmatpush1.bf16.msra.mxu0 %v2702
    %2793 = vmatprep.subr.bf16.mxu0 0
    %2794 = vmatpush1.bf16.msra.mxu0 0
    %2795 = vmatprep.subr.bf16.mxu0 0
    %2796 = vmatpush1.bf16.msra.mxu0 0
    %2797 = vmatprep.subr.bf16.mxu0 0
    %2798 = vmatpush1.bf16.msra.mxu0 0
    %2799 = vmatprep.subr.bf16.mxu0 0
    %2800 = vmatpush1.bf16.msra.mxu0 0
    %2801 = vmatprep.subr.bf16.mxu0 0
    %2802 = vmatpush1.bf16.msra.mxu0 0
    %2803 = vmatprep.subr.bf16.mxu0 0
    %2804 = vmatpush1.bf16.msra.mxu0 0
    %2805 = vmatprep.subr.bf16.mxu0 0
    %2806 = vmatpush1.bf16.msra.mxu0 0
    %2807 = vmatprep.subr.bf16.mxu0 0
    %2808 = vmatpush1.bf16.msra.mxu0 0
    %2809 = vmatprep.mubr.bf16.mxu0 0
    %2810 = vmatmul.mubr.bf16.gmra.mrb[0].mxu0 %v2543
    %v2811 = vpop.f32.mrb[0].mxu0
    %v2812 = vadd.f32 0.0, %v2811
    %v2813 = vpop.f32.mrb[0].mxu0
    %v2814 = vadd.f32 0.0, %v2813
    %v2815 = vpop.f32.mrb[0].mxu0
    %v2816 = vpop.f32.mrb[0].mxu0
    %2817 = vdwg.mxu0
    %v2818 = vadd.f32 %v2539, %v2771
    %v2819 = vadd.f32 %v2540, %v2773
    %v2820 = vadd.f32 %v2541, %v2812
    %v2821 = vadd.f32 %v2542, %v2814
    %v2822 = vxor.u32 %v2818, 2147483648
    %v2823 = vxor.u32 %v2819, 2147483648
    %v2824 = vxor.u32 %v2820, 2147483648
    %v2825 = vmul.f32 %v2822, 1.442695
    %v2826 = vpow.pop %v2825
    %v2827 = vmul.f32 %v2823, 1.442695
    %v2828 = vpow.pop %v2827
    %v2829 = vmul.f32 %v2824, 1.442695
    %v2830 = vpow.pop %v2829
    %v2831 = vadd.f32 %v2826, 1.0
    %v2832 = vadd.f32 %v2828, 1.0
    %v2833 = vadd.f32 %v2830, 1.0
    %v2834 = vrcp.pop %v2831
    %v2835 = vmul.f32 1.0, %v2834
    %v2836 = vrcp.pop %v2832
    %v2837 = vmul.f32 1.0, %v2836
    %v2838 = vrcp.pop %v2833
    %v2839 = vmul.f32 1.0, %v2838
    %v2840 = vtanh.pop %v2821
    %v2841 = vmul.f32 %v2837, %v2531
    %v2842 = vmul.f32 %v2835, %v2840
    %v2843 = vadd.f32 %v2841, %v2842
    %v2844 = vtanh.pop %v2843
    %v2845 = vmul.f32 %v2839, %v2844
    %s2846 = scalar_lea.vmem [#allocation3], 56
    %2847 = vst [vmem:[%s2846] sm:$0xff] %v2845
    %v2848 = vld [vmem:[#allocation3] sm:$0xff]
    %v2849 = vld [vmem:[#allocation3 + $0x8] sm:$0xff]
    %v2850 = vld [vmem:[#allocation3 + $0x10] sm:$0xff]
    %v2851 = vld [vmem:[#allocation3 + $0x18] sm:$0xff]
    %v2852 = vld [vmem:[#allocation3 + $0x20] sm:$0xff]
    %v2853 = vld [vmem:[#allocation3 + $0x28] sm:$0xff]
    %v2854 = vld [vmem:[#allocation3 + $0x30] sm:$0xff]
    %v2855 = vld [vmem:[#allocation3 + $0x38] sm:$0xff]
    %v2856 = vpack.c.bf16 %v2849, %v2848
    %v2857 = vpack.c.bf16 %v2851, %v2850
    %v2858 = vpack.c.bf16 %v2853, %v2852
    %v2859 = vpack.c.bf16 %v2855, %v2854
    %v2860 = vld [vmem:[#allocation4] sm:$0xff]
    %v2861 = vld [vmem:[#allocation4 + $0x8] sm:$0xff]
    %v2862 = vld [vmem:[#allocation4 + $0x10] sm:$0xff]
    %v2863 = vld [vmem:[#allocation4 + $0x18] sm:$0xff]
    %v2864 = vld [vmem:[#allocation4 + $0x20] sm:$0xff]
    %v2865 = vld [vmem:[#allocation4 + $0x28] sm:$0xff]
    %v2866 = vld [vmem:[#allocation4 + $0x30] sm:$0xff]
    %v2867 = vld [vmem:[#allocation4 + $0x38] sm:$0xff]
    %v2868 = vld [vmem:[#allocation4 + $0x40] sm:$0xff]
    %v2869 = vld [vmem:[#allocation4 + $0x48] sm:$0xff]
    %v2870 = vld [vmem:[#allocation4 + $0x50] sm:$0xff]
    %v2871 = vld [vmem:[#allocation4 + $0x58] sm:$0xff]
    %v2872 = vld [vmem:[#allocation4 + $0x60] sm:$0xff]
    %v2873 = vld [vmem:[#allocation4 + $0x68] sm:$0xff]
    %v2874 = vld [vmem:[#allocation4 + $0x70] sm:$0xff]
    %v2875 = vld [vmem:[#allocation4 + $0x78] sm:$0xff]
    %v2876 = vld [vmem:[#allocation4 + $0x80] sm:$0xff]
    %v2877 = vld [vmem:[#allocation4 + $0x88] sm:$0xff]
    %v2878 = vld [vmem:[#allocation4 + $0x90] sm:$0xff]
    %v2879 = vld [vmem:[#allocation4 + $0x98] sm:$0xff]
    %v2880 = vld [vmem:[#allocation4 + $0xa0] sm:$0xff]
    %v2881 = vld [vmem:[#allocation4 + $0xa8] sm:$0xff]
    %v2882 = vld [vmem:[#allocation4 + $0xb0] sm:$0xff]
    %v2883 = vld [vmem:[#allocation4 + $0xb8] sm:$0xff]
    %v2884 = vld [vmem:[#allocation4 + $0xc0] sm:$0xff]
    %v2885 = vld [vmem:[#allocation4 + $0xc8] sm:$0xff]
    %v2886 = vld [vmem:[#allocation4 + $0xd0] sm:$0xff]
    %v2887 = vld [vmem:[#allocation4 + $0xd8] sm:$0xff]
    %v2888 = vld [vmem:[#allocation4 + $0xe0] sm:$0xff]
    %v2889 = vld [vmem:[#allocation4 + $0xe8] sm:$0xff]
    %v2890 = vld [vmem:[#allocation4 + $0xf0] sm:$0xff]
    %v2891 = vld [vmem:[#allocation4 + $0xf8] sm:$0xff]
    %v2892 = vld [vmem:[%s6] sm:$0xf]
    %v2894 = vlaneseq
    %v2895 = vshrl.u32 %v2894, 7
    %v2896 = vsub.s32 0, %v2895
    %v2897 = vrot.slane %v2892, %v2896
    %v2898 = vlaneseq
    %v2899 = vshrl.u32 %v2898, 7
    %v2900 = vsub.s32 1, %v2899
    %v2901 = vrot.slane %v2892, %v2900
    %v2902 = vlaneseq
    %v2903 = vshrl.u32 %v2902, 7
    %v2904 = vsub.s32 2, %v2903
    %v2905 = vrot.slane %v2892, %v2904
    %v2906 = vlaneseq
    %v2907 = vshrl.u32 %v2906, 7
    %v2908 = vsub.s32 3, %v2907
    %v2909 = vrot.slane %v2892, %v2908
    %v2946 = vunpack.c.l.b16 %v2860
    %v2947 = vunpack.c.h.b16 %v2860
    %v2948 = vunpack.c.l.b16 %v2861
    %v2949 = vunpack.c.h.b16 %v2861
    %v2950 = vunpack.c.l.b16 %v2862
    %v2951 = vunpack.c.h.b16 %v2862
    %v2952 = vunpack.c.l.b16 %v2863
    %v2953 = vunpack.c.h.b16 %v2863
    %v2954 = vunpack.c.l.b16 %v2864
    %v2955 = vunpack.c.h.b16 %v2864
    %v2956 = vunpack.c.l.b16 %v2865
    %v2957 = vunpack.c.h.b16 %v2865
    %v2958 = vunpack.c.l.b16 %v2866
    %v2959 = vunpack.c.h.b16 %v2866
    %v2960 = vunpack.c.l.b16 %v2867
    %v2961 = vunpack.c.h.b16 %v2867
    %v2962 = vunpack.c.l.b16 %v2868
    %v2963 = vunpack.c.h.b16 %v2868
    %v2964 = vunpack.c.l.b16 %v2869
    %v2965 = vunpack.c.h.b16 %v2869
    %v2966 = vunpack.c.l.b16 %v2870
    %v2967 = vunpack.c.h.b16 %v2870
    %v2968 = vunpack.c.l.b16 %v2871
    %v2969 = vunpack.c.h.b16 %v2871
    %v2970 = vunpack.c.l.b16 %v2872
    %v2971 = vunpack.c.h.b16 %v2872
    %v2972 = vunpack.c.l.b16 %v2873
    %v2973 = vunpack.c.h.b16 %v2873
    %v2974 = vunpack.c.l.b16 %v2874
    %v2975 = vunpack.c.h.b16 %v2874
    %v2976 = vunpack.c.l.b16 %v2875
    %v2977 = vunpack.c.h.b16 %v2875
    %v2978 = vunpack.c.l.b16 %v2876
    %v2979 = vunpack.c.h.b16 %v2876
    %v2980 = vunpack.c.l.b16 %v2877
    %v2981 = vunpack.c.h.b16 %v2877
    %v2982 = vunpack.c.l.b16 %v2878
    %v2983 = vunpack.c.h.b16 %v2878
    %v2984 = vunpack.c.l.b16 %v2879
    %v2985 = vunpack.c.h.b16 %v2879
    %v2986 = vunpack.c.l.b16 %v2880
    %v2987 = vunpack.c.h.b16 %v2880
    %v2988 = vunpack.c.l.b16 %v2881
    %v2989 = vunpack.c.h.b16 %v2881
    %v2990 = vunpack.c.l.b16 %v2882
    %v2991 = vunpack.c.h.b16 %v2882
    %v2992 = vunpack.c.l.b16 %v2883
    %v2993 = vunpack.c.h.b16 %v2883
    %v2994 = vunpack.c.l.b16 %v2884
    %v2995 = vunpack.c.h.b16 %v2884
    %v2996 = vunpack.c.l.b16 %v2885
    %v2997 = vunpack.c.h.b16 %v2885
    %v2998 = vunpack.c.l.b16 %v2886
    %v2999 = vunpack.c.h.b16 %v2886
    %v3000 = vunpack.c.l.b16 %v2887
    %v3001 = vunpack.c.h.b16 %v2887
    %v3002 = vunpack.c.l.b16 %v2888
    %v3003 = vunpack.c.h.b16 %v2888
    %v3004 = vunpack.c.l.b16 %v2889
    %v3005 = vunpack.c.h.b16 %v2889
    %v3006 = vunpack.c.l.b16 %v2890
    %v3007 = vunpack.c.h.b16 %v2890
    %v3008 = vunpack.c.l.b16 %v2891
    %v3009 = vunpack.c.h.b16 %v2891
    %v3010 = vpack.c.b16 %v2950, %v2946
    %v3011 = vpack.c.b16 %v2951, %v2947
    %v3012 = vpack.c.b16 %v2952, %v2948
    %v3013 = vpack.c.b16 %v2953, %v2949
    %v3014 = vpack.c.b16 %v2958, %v2954
    %v3015 = vpack.c.b16 %v2959, %v2955
    %v3016 = vpack.c.b16 %v2960, %v2956
    %v3017 = vpack.c.b16 %v2961, %v2957
    %v3018 = vpack.c.b16 %v2966, %v2962
    %v3019 = vpack.c.b16 %v2967, %v2963
    %v3020 = vpack.c.b16 %v2968, %v2964
    %v3021 = vpack.c.b16 %v2969, %v2965
    %v3022 = vpack.c.b16 %v2974, %v2970
    %v3023 = vpack.c.b16 %v2975, %v2971
    %v3024 = vpack.c.b16 %v2976, %v2972
    %v3025 = vpack.c.b16 %v2977, %v2973
    %v3026 = vpack.c.b16 %v2982, %v2978
    %v3027 = vpack.c.b16 %v2983, %v2979
    %v3028 = vpack.c.b16 %v2984, %v2980
    %v3029 = vpack.c.b16 %v2985, %v2981
    %v3030 = vpack.c.b16 %v2990, %v2986
    %v3031 = vpack.c.b16 %v2991, %v2987
    %v3032 = vpack.c.b16 %v2992, %v2988
    %v3033 = vpack.c.b16 %v2993, %v2989
    %v3034 = vpack.c.b16 %v2998, %v2994
    %v3035 = vpack.c.b16 %v2999, %v2995
    %v3036 = vpack.c.b16 %v3000, %v2996
    %v3037 = vpack.c.b16 %v3001, %v2997
    %v3038 = vpack.c.b16 %v3006, %v3002
    %v3039 = vpack.c.b16 %v3007, %v3003
    %v3040 = vpack.c.b16 %v3008, %v3004
    %v3041 = vpack.c.b16 %v3009, %v3005
    %3074 = vmatprep.subr.bf16.mxu0 %v3011
    %3075 = vmatpush1.bf16.msra.mxu0 %v3010
    %3076 = vmatprep.subr.bf16.mxu0 %v3015
    %3077 = vmatpush1.bf16.msra.mxu0 %v3014
    %3078 = vmatprep.subr.bf16.mxu0 %v3019
    %3079 = vmatpush1.bf16.msra.mxu0 %v3018
    %3080 = vmatprep.subr.bf16.mxu0 %v3023
    %3081 = vmatpush1.bf16.msra.mxu0 %v3022
    %3082 = vmatprep.subr.bf16.mxu0 %v3027
    %3083 = vmatpush1.bf16.msra.mxu0 %v3026
    %3084 = vmatprep.subr.bf16.mxu0 %v3031
    %3085 = vmatpush1.bf16.msra.mxu0 %v3030
    %3086 = vmatprep.subr.bf16.mxu0 %v3035
    %3087 = vmatpush1.bf16.msra.mxu0 %v3034
    %3088 = vmatprep.subr.bf16.mxu0 %v3039
    %3089 = vmatpush1.bf16.msra.mxu0 %v3038
    %3090 = vmatprep.subr.bf16.mxu0 0
    %3091 = vmatpush1.bf16.msra.mxu0 0
    %3092 = vmatprep.subr.bf16.mxu0 0
    %3093 = vmatpush1.bf16.msra.mxu0 0
    %3094 = vmatprep.subr.bf16.mxu0 0
    %3095 = vmatpush1.bf16.msra.mxu0 0
    %3096 = vmatprep.subr.bf16.mxu0 0
    %3097 = vmatpush1.bf16.msra.mxu0 0
    %3098 = vmatprep.subr.bf16.mxu0 0
    %3099 = vmatpush1.bf16.msra.mxu0 0
    %3100 = vmatprep.subr.bf16.mxu0 0
    %3101 = vmatpush1.bf16.msra.mxu0 0
    %3102 = vmatprep.subr.bf16.mxu0 0
    %3103 = vmatpush1.bf16.msra.mxu0 0
    %3104 = vmatprep.subr.bf16.mxu0 0
    %3105 = vmatpush1.bf16.msra.mxu0 0
    %3106 = vmatprep.mubr.bf16.mxu0 0
    %3107 = vmatmul.mubr.bf16.gmra.mrb[0].mxu0 %v2856
    %v3108 = vpop.f32.mrb[0].mxu0
    %v3109 = vadd.f32 %v2897, %v3108
    %v3110 = vpop.f32.mrb[0].mxu0
    %v3111 = vadd.f32 %v2901, %v3110
    %v3112 = vpop.f32.mrb[0].mxu0
    %v3113 = vadd.f32 %v2897, %v3112
    %v3114 = vpop.f32.mrb[0].mxu0
    %v3115 = vadd.f32 %v2901, %v3114
    %3116 = vmatprep.mubr.bf16.mxu0 0
    %3117 = vmatmul.mubr.bf16.gmra.mrb[0].mxu0 %v2857
    %v3118 = vpop.f32.mrb[0].mxu0
    %v3119 = vadd.f32 %v2897, %v3118
    %v3120 = vpop.f32.mrb[0].mxu0
    %v3121 = vadd.f32 %v2901, %v3120
    %v3122 = vpop.f32.mrb[0].mxu0
    %v3123 = vadd.f32 %v2897, %v3122
    %v3124 = vpop.f32.mrb[0].mxu0
    %v3125 = vadd.f32 %v2901, %v3124
    %3126 = vmatprep.mubr.bf16.mxu0 0
    %3127 = vmatmul.mubr.bf16.gmra.mrb[0].mxu0 %v2858
    %v3128 = vpop.f32.mrb[0].mxu0
    %v3129 = vadd.f32 %v2897, %v3128
    %v3130 = vpop.f32.mrb[0].mxu0
    %v3131 = vadd.f32 %v2901, %v3130
    %v3132 = vpop.f32.mrb[0].mxu0
    %v3133 = vadd.f32 %v2897, %v3132
    %v3134 = vpop.f32.mrb[0].mxu0
    %v3135 = vadd.f32 %v2901, %v3134
    %3136 = vmatprep.mubr.bf16.mxu0 0
    %3137 = vmatmul.mubr.bf16.gmra.mrb[0].mxu0 %v2859
    %v3138 = vpop.f32.mrb[0].mxu0
    %v3139 = vadd.f32 %v2897, %v3138
    %v3140 = vpop.f32.mrb[0].mxu0
    %v3141 = vadd.f32 %v2901, %v3140
    %v3142 = vpop.f32.mrb[0].mxu0
    %v3143 = vadd.f32 %v2897, %v3142
    %v3144 = vpop.f32.mrb[0].mxu0
    %v3145 = vadd.f32 %v2901, %v3144
    %3146 = vdwg.mxu0
    %3147 = vmatprep.subr.bf16.mxu0 %v3013
    %3148 = vmatpush1.bf16.msra.mxu0 %v3012
    %3149 = vmatprep.subr.bf16.mxu0 %v3017
    %3150 = vmatpush1.bf16.msra.mxu0 %v3016
    %3151 = vmatprep.subr.bf16.mxu0 %v3021
    %3152 = vmatpush1.bf16.msra.mxu0 %v3020
    %3153 = vmatprep.subr.bf16.mxu0 %v3025
    %3154 = vmatpush1.bf16.msra.mxu0 %v3024
    %3155 = vmatprep.subr.bf16.mxu0 %v3029
    %3156 = vmatpush1.bf16.msra.mxu0 %v3028
    %3157 = vmatprep.subr.bf16.mxu0 %v3033
    %3158 = vmatpush1.bf16.msra.mxu0 %v3032
    %3159 = vmatprep.subr.bf16.mxu0 %v3037
    %3160 = vmatpush1.bf16.msra.mxu0 %v3036
    %3161 = vmatprep.subr.bf16.mxu0 %v3041
    %3162 = vmatpush1.bf16.msra.mxu0 %v3040
    %3163 = vmatprep.subr.bf16.mxu0 0
    %3164 = vmatpush1.bf16.msra.mxu0 0
    %3165 = vmatprep.subr.bf16.mxu0 0
    %3166 = vmatpush1.bf16.msra.mxu0 0
    %3167 = vmatprep.subr.bf16.mxu0 0
    %3168 = vmatpush1.bf16.msra.mxu0 0
    %3169 = vmatprep.subr.bf16.mxu0 0
    %3170 = vmatpush1.bf16.msra.mxu0 0
    %3171 = vmatprep.subr.bf16.mxu0 0
    %3172 = vmatpush1.bf16.msra.mxu0 0
    %3173 = vmatprep.subr.bf16.mxu0 0
    %3174 = vmatpush1.bf16.msra.mxu0 0
    %3175 = vmatprep.subr.bf16.mxu0 0
    %3176 = vmatpush1.bf16.msra.mxu0 0
    %3177 = vmatprep.subr.bf16.mxu0 0
    %3178 = vmatpush1.bf16.msra.mxu0 0
    %3179 = vmatprep.mubr.bf16.mxu0 0
    %3180 = vmatmul.mubr.bf16.gmra.mrb[0].mxu0 %v2856
    %v3181 = vpop.f32.mrb[0].mxu0
    %v3182 = vadd.f32 %v2905, %v3181
    %v3183 = vpop.f32.mrb[0].mxu0
    %v3184 = vadd.f32 %v2909, %v3183
    %v3185 = vpop.f32.mrb[0].mxu0
    %v3186 = vadd.f32 %v2905, %v3185
    %v3187 = vpop.f32.mrb[0].mxu0
    %v3188 = vadd.f32 %v2909, %v3187
    %3189 = vmatprep.mubr.bf16.mxu0 0
    %3190 = vmatmul.mubr.bf16.gmra.mrb[0].mxu0 %v2857
    %v3191 = vpop.f32.mrb[0].mxu0
    %v3192 = vadd.f32 %v2905, %v3191
    %v3193 = vpop.f32.mrb[0].mxu0
    %v3194 = vadd.f32 %v2909, %v3193
    %v3195 = vpop.f32.mrb[0].mxu0
    %v3196 = vadd.f32 %v2905, %v3195
    %v3197 = vpop.f32.mrb[0].mxu0
    %v3198 = vadd.f32 %v2909, %v3197
    %3199 = vmatprep.mubr.bf16.mxu0 0
    %3200 = vmatmul.mubr.bf16.gmra.mrb[0].mxu0 %v2858
    %v3201 = vpop.f32.mrb[0].mxu0
    %v3202 = vadd.f32 %v2905, %v3201
    %v3203 = vpop.f32.mrb[0].mxu0
    %v3204 = vadd.f32 %v2909, %v3203
    %v3205 = vpop.f32.mrb[0].mxu0
    %v3206 = vadd.f32 %v2905, %v3205
    %v3207 = vpop.f32.mrb[0].mxu0
    %v3208 = vadd.f32 %v2909, %v3207
    %3209 = vmatprep.mubr.bf16.mxu0 0
    %3210 = vmatmul.mubr.bf16.gmra.mrb[0].mxu0 %v2859
    %v3211 = vpop.f32.mrb[0].mxu0
    %v3212 = vadd.f32 %v2905, %v3211
    %v3213 = vpop.f32.mrb[0].mxu0
    %v3214 = vadd.f32 %v2909, %v3213
    %v3215 = vpop.f32.mrb[0].mxu0
    %v3216 = vadd.f32 %v2905, %v3215
    %v3217 = vpop.f32.mrb[0].mxu0
    %v3218 = vadd.f32 %v2909, %v3217
    %3219 = vdwg.mxu0
    %3220 = vst [vmem:[#allocation2] sm:$0xff] %v3109
    %3221 = vst [vmem:[#allocation2 + $0x8] sm:$0xff] %v3111
    %3222 = vst [vmem:[#allocation2 + $0x10] sm:$0xff] %v3182
    %3223 = vst [vmem:[#allocation2 + $0x18] sm:$0xff] %v3184
    %3224 = vst [vmem:[#allocation2 + $0x20] sm:$0xff] %v3113
    %3225 = vst [vmem:[#allocation2 + $0x28] sm:$0xff] %v3115
    %3226 = vst [vmem:[#allocation2 + $0x30] sm:$0xff] %v3186
    %3227 = vst [vmem:[#allocation2 + $0x38] sm:$0xff] %v3188
    %3228 = vst [vmem:[#allocation2 + $0x40] sm:$0xff] %v3119
    %3229 = vst [vmem:[#allocation2 + $0x48] sm:$0xff] %v3121
    %3230 = vst [vmem:[#allocation2 + $0x50] sm:$0xff] %v3192
    %3231 = vst [vmem:[#allocation2 + $0x58] sm:$0xff] %v3194
    %3232 = vst [vmem:[#allocation2 + $0x60] sm:$0xff] %v3123
    %3233 = vst [vmem:[#allocation2 + $0x68] sm:$0xff] %v3125
    %3234 = vst [vmem:[#allocation2 + $0x70] sm:$0xff] %v3196
    %3235 = vst [vmem:[#allocation2 + $0x78] sm:$0xff] %v3198
    %3236 = vst [vmem:[#allocation2 + $0x80] sm:$0xff] %v3129
    %3237 = vst [vmem:[#allocation2 + $0x88] sm:$0xff] %v3131
    %3238 = vst [vmem:[#allocation2 + $0x90] sm:$0xff] %v3202
    %3239 = vst [vmem:[#allocation2 + $0x98] sm:$0xff] %v3204
    %3240 = vst [vmem:[#allocation2 + $0xa0] sm:$0xff] %v3133
    %3241 = vst [vmem:[#allocation2 + $0xa8] sm:$0xff] %v3135
    %3242 = vst [vmem:[#allocation2 + $0xb0] sm:$0xff] %v3206
    %3243 = vst [vmem:[#allocation2 + $0xb8] sm:$0xff] %v3208
    %3244 = vst [vmem:[#allocation2 + $0xc0] sm:$0xff] %v3139
    %3245 = vst [vmem:[#allocation2 + $0xc8] sm:$0xff] %v3141
    %3246 = vst [vmem:[#allocation2 + $0xd0] sm:$0xff] %v3212
    %3247 = vst [vmem:[#allocation2 + $0xd8] sm:$0xff] %v3214
    %3248 = vst [vmem:[#allocation2 + $0xe0] sm:$0xff] %v3143
    %3249 = vst [vmem:[#allocation2 + $0xe8] sm:$0xff] %v3145
    %3250 = vst [vmem:[#allocation2 + $0xf0] sm:$0xff] %v3216
    %3251 = vst [vmem:[#allocation2 + $0xf8] sm:$0xff] %v3218
    %v3252 = vld [vmem:[%s356] sm:$0xff]
    %v3253 = vld [vmem:[%s356 + $0x8] sm:$0xff]
    %v3254 = vld [vmem:[%s356 + $0x10] sm:$0xff]
    %v3255 = vld [vmem:[%s356 + $0x18] sm:$0xff]
    %v3256 = vld [vmem:[#allocation6] sm:$0xff]
    %v3257 = vld [vmem:[#allocation6 + $0x8] sm:$0xff]
    %v3258 = vld [vmem:[#allocation6 + $0x10] sm:$0xff]
    %v3259 = vld [vmem:[#allocation6 + $0x18] sm:$0xff]
    %v3260 = vld [vmem:[#allocation6 + $0x20] sm:$0xff]
    %v3261 = vld [vmem:[#allocation6 + $0x28] sm:$0xff]
    %v3262 = vld [vmem:[#allocation6 + $0x30] sm:$0xff]
    %v3263 = vld [vmem:[#allocation6 + $0x38] sm:$0xff]
    %v3264 = vld [vmem:[#allocation6 + $0x40] sm:$0xff]
    %v3265 = vld [vmem:[#allocation6 + $0x48] sm:$0xff]
    %v3266 = vld [vmem:[#allocation6 + $0x50] sm:$0xff]
    %v3267 = vld [vmem:[#allocation6 + $0x58] sm:$0xff]
    %v3268 = vld [vmem:[#allocation6 + $0x60] sm:$0xff]
    %v3269 = vld [vmem:[#allocation6 + $0x68] sm:$0xff]
    %v3270 = vld [vmem:[#allocation6 + $0x70] sm:$0xff]
    %v3271 = vld [vmem:[#allocation6 + $0x78] sm:$0xff]
    %v3272 = vld [vmem:[#allocation6 + $0x80] sm:$0xff]
    %v3273 = vld [vmem:[#allocation6 + $0x88] sm:$0xff]
    %v3274 = vld [vmem:[#allocation6 + $0x90] sm:$0xff]
    %v3275 = vld [vmem:[#allocation6 + $0x98] sm:$0xff]
    %v3276 = vld [vmem:[#allocation6 + $0xa0] sm:$0xff]
    %v3277 = vld [vmem:[#allocation6 + $0xa8] sm:$0xff]
    %v3278 = vld [vmem:[#allocation6 + $0xb0] sm:$0xff]
    %v3279 = vld [vmem:[#allocation6 + $0xb8] sm:$0xff]
    %v3280 = vld [vmem:[#allocation6 + $0xc0] sm:$0xff]
    %v3281 = vld [vmem:[#allocation6 + $0xc8] sm:$0xff]
    %v3282 = vld [vmem:[#allocation6 + $0xd0] sm:$0xff]
    %v3283 = vld [vmem:[#allocation6 + $0xd8] sm:$0xff]
    %v3284 = vld [vmem:[#allocation6 + $0xe0] sm:$0xff]
    %v3285 = vld [vmem:[#allocation6 + $0xe8] sm:$0xff]
    %v3286 = vld [vmem:[#allocation6 + $0xf0] sm:$0xff]
    %v3287 = vld [vmem:[#allocation6 + $0xf8] sm:$0xff]
    %v3320 = vunpack.c.l.b16 %v3256
    %v3321 = vunpack.c.h.b16 %v3256
    %v3322 = vunpack.c.l.b16 %v3257
    %v3323 = vunpack.c.h.b16 %v3257
    %v3324 = vunpack.c.l.b16 %v3258
    %v3325 = vunpack.c.h.b16 %v3258
    %v3326 = vunpack.c.l.b16 %v3259
    %v3327 = vunpack.c.h.b16 %v3259
    %v3328 = vunpack.c.l.b16 %v3260
    %v3329 = vunpack.c.h.b16 %v3260
    %v3330 = vunpack.c.l.b16 %v3261
    %v3331 = vunpack.c.h.b16 %v3261
    %v3332 = vunpack.c.l.b16 %v3262
    %v3333 = vunpack.c.h.b16 %v3262
    %v3334 = vunpack.c.l.b16 %v3263
    %v3335 = vunpack.c.h.b16 %v3263
    %v3336 = vunpack.c.l.b16 %v3264
    %v3337 = vunpack.c.h.b16 %v3264
    %v3338 = vunpack.c.l.b16 %v3265
    %v3339 = vunpack.c.h.b16 %v3265
    %v3340 = vunpack.c.l.b16 %v3266
    %v3341 = vunpack.c.h.b16 %v3266
    %v3342 = vunpack.c.l.b16 %v3267
    %v3343 = vunpack.c.h.b16 %v3267
    %v3344 = vunpack.c.l.b16 %v3268
    %v3345 = vunpack.c.h.b16 %v3268
    %v3346 = vunpack.c.l.b16 %v3269
    %v3347 = vunpack.c.h.b16 %v3269
    %v3348 = vunpack.c.l.b16 %v3270
    %v3349 = vunpack.c.h.b16 %v3270
    %v3350 = vunpack.c.l.b16 %v3271
    %v3351 = vunpack.c.h.b16 %v3271
    %v3352 = vunpack.c.l.b16 %v3272
    %v3353 = vunpack.c.h.b16 %v3272
    %v3354 = vunpack.c.l.b16 %v3273
    %v3355 = vunpack.c.h.b16 %v3273
    %v3356 = vunpack.c.l.b16 %v3274
    %v3357 = vunpack.c.h.b16 %v3274
    %v3358 = vunpack.c.l.b16 %v3275
    %v3359 = vunpack.c.h.b16 %v3275
    %v3360 = vunpack.c.l.b16 %v3276
    %v3361 = vunpack.c.h.b16 %v3276
    %v3362 = vunpack.c.l.b16 %v3277
    %v3363 = vunpack.c.h.b16 %v3277
    %v3364 = vunpack.c.l.b16 %v3278
    %v3365 = vunpack.c.h.b16 %v3278
    %v3366 = vunpack.c.l.b16 %v3279
    %v3367 = vunpack.c.h.b16 %v3279
    %v3368 = vunpack.c.l.b16 %v3280
    %v3369 = vunpack.c.h.b16 %v3280
    %v3370 = vunpack.c.l.b16 %v3281
    %v3371 = vunpack.c.h.b16 %v3281
    %v3372 = vunpack.c.l.b16 %v3282
    %v3373 = vunpack.c.h.b16 %v3282
    %v3374 = vunpack.c.l.b16 %v3283
    %v3375 = vunpack.c.h.b16 %v3283
    %v3376 = vunpack.c.l.b16 %v3284
    %v3377 = vunpack.c.h.b16 %v3284
    %v3378 = vunpack.c.l.b16 %v3285
    %v3379 = vunpack.c.h.b16 %v3285
    %v3380 = vunpack.c.l.b16 %v3286
    %v3381 = vunpack.c.h.b16 %v3286
    %v3382 = vunpack.c.l.b16 %v3287
    %v3383 = vunpack.c.h.b16 %v3287
    %v3384 = vpack.c.b16 %v3324, %v3320
    %v3385 = vpack.c.b16 %v3325, %v3321
    %v3386 = vpack.c.b16 %v3326, %v3322
    %v3387 = vpack.c.b16 %v3327, %v3323
    %v3388 = vpack.c.b16 %v3332, %v3328
    %v3389 = vpack.c.b16 %v3333, %v3329
    %v3390 = vpack.c.b16 %v3334, %v3330
    %v3391 = vpack.c.b16 %v3335, %v3331
    %v3392 = vpack.c.b16 %v3340, %v3336
    %v3393 = vpack.c.b16 %v3341, %v3337
    %v3394 = vpack.c.b16 %v3342, %v3338
    %v3395 = vpack.c.b16 %v3343, %v3339
    %v3396 = vpack.c.b16 %v3348, %v3344
    %v3397 = vpack.c.b16 %v3349, %v3345
    %v3398 = vpack.c.b16 %v3350, %v3346
    %v3399 = vpack.c.b16 %v3351, %v3347
    %v3400 = vpack.c.b16 %v3356, %v3352
    %v3401 = vpack.c.b16 %v3357, %v3353
    %v3402 = vpack.c.b16 %v3358, %v3354
    %v3403 = vpack.c.b16 %v3359, %v3355
    %v3404 = vpack.c.b16 %v3364, %v3360
    %v3405 = vpack.c.b16 %v3365, %v3361
    %v3406 = vpack.c.b16 %v3366, %v3362
    %v3407 = vpack.c.b16 %v3367, %v3363
    %v3408 = vpack.c.b16 %v3372, %v3368
    %v3409 = vpack.c.b16 %v3373, %v3369
    %v3410 = vpack.c.b16 %v3374, %v3370
    %v3411 = vpack.c.b16 %v3375, %v3371
    %v3412 = vpack.c.b16 %v3380, %v3376
    %v3413 = vpack.c.b16 %v3381, %v3377
    %v3414 = vpack.c.b16 %v3382, %v3378
    %v3415 = vpack.c.b16 %v3383, %v3379
    %3448 = vmatprep.subr.bf16.mxu0 %v3385
    %3449 = vmatpush1.bf16.msra.mxu0 %v3384
    %3450 = vmatprep.subr.bf16.mxu0 %v3389
    %3451 = vmatpush1.bf16.msra.mxu0 %v3388
    %3452 = vmatprep.subr.bf16.mxu0 %v3393
    %3453 = vmatpush1.bf16.msra.mxu0 %v3392
    %3454 = vmatprep.subr.bf16.mxu0 %v3397
    %3455 = vmatpush1.bf16.msra.mxu0 %v3396
    %3456 = vmatprep.subr.bf16.mxu0 %v3401
    %3457 = vmatpush1.bf16.msra.mxu0 %v3400
    %3458 = vmatprep.subr.bf16.mxu0 %v3405
    %3459 = vmatpush1.bf16.msra.mxu0 %v3404
    %3460 = vmatprep.subr.bf16.mxu0 %v3409
    %3461 = vmatpush1.bf16.msra.mxu0 %v3408
    %3462 = vmatprep.subr.bf16.mxu0 %v3413
    %3463 = vmatpush1.bf16.msra.mxu0 %v3412
    %3464 = vmatprep.subr.bf16.mxu0 0
    %3465 = vmatpush1.bf16.msra.mxu0 0
    %3466 = vmatprep.subr.bf16.mxu0 0
    %3467 = vmatpush1.bf16.msra.mxu0 0
    %3468 = vmatprep.subr.bf16.mxu0 0
    %3469 = vmatpush1.bf16.msra.mxu0 0
    %3470 = vmatprep.subr.bf16.mxu0 0
    %3471 = vmatpush1.bf16.msra.mxu0 0
    %3472 = vmatprep.subr.bf16.mxu0 0
    %3473 = vmatpush1.bf16.msra.mxu0 0
    %3474 = vmatprep.subr.bf16.mxu0 0
    %3475 = vmatpush1.bf16.msra.mxu0 0
    %3476 = vmatprep.subr.bf16.mxu0 0
    %3477 = vmatpush1.bf16.msra.mxu0 0
    %3478 = vmatprep.subr.bf16.mxu0 0
    %3479 = vmatpush1.bf16.msra.mxu0 0
    %3480 = vmatprep.mubr.bf16.mxu0 0
    %3481 = vmatmul.mubr.bf16.gmra.mrb[0].mxu0 0
    %v3482 = vpop.f32.mrb[0].mxu0
    %v3483 = vadd.f32 0.0, %v3482
    %v3484 = vpop.f32.mrb[0].mxu0
    %v3485 = vadd.f32 0.0, %v3484
    %v3486 = vpop.f32.mrb[0].mxu0
    %v3487 = vpop.f32.mrb[0].mxu0
    %3488 = vdwg.mxu0
    %3489 = vmatprep.subr.bf16.mxu0 %v3387
    %3490 = vmatpush1.bf16.msra.mxu0 %v3386
    %3491 = vmatprep.subr.bf16.mxu0 %v3391
    %3492 = vmatpush1.bf16.msra.mxu0 %v3390
    %3493 = vmatprep.subr.bf16.mxu0 %v3395
    %3494 = vmatpush1.bf16.msra.mxu0 %v3394
    %3495 = vmatprep.subr.bf16.mxu0 %v3399
    %3496 = vmatpush1.bf16.msra.mxu0 %v3398
    %3497 = vmatprep.subr.bf16.mxu0 %v3403
    %3498 = vmatpush1.bf16.msra.mxu0 %v3402
    %3499 = vmatprep.subr.bf16.mxu0 %v3407
    %3500 = vmatpush1.bf16.msra.mxu0 %v3406
    %3501 = vmatprep.subr.bf16.mxu0 %v3411
    %3502 = vmatpush1.bf16.msra.mxu0 %v3410
    %3503 = vmatprep.subr.bf16.mxu0 %v3415
    %3504 = vmatpush1.bf16.msra.mxu0 %v3414
    %3505 = vmatprep.subr.bf16.mxu0 0
    %3506 = vmatpush1.bf16.msra.mxu0 0
    %3507 = vmatprep.subr.bf16.mxu0 0
    %3508 = vmatpush1.bf16.msra.mxu0 0
    %3509 = vmatprep.subr.bf16.mxu0 0
    %3510 = vmatpush1.bf16.msra.mxu0 0
    %3511 = vmatprep.subr.bf16.mxu0 0
    %3512 = vmatpush1.bf16.msra.mxu0 0
    %3513 = vmatprep.subr.bf16.mxu0 0
    %3514 = vmatpush1.bf16.msra.mxu0 0
    %3515 = vmatprep.subr.bf16.mxu0 0
    %3516 = vmatpush1.bf16.msra.mxu0 0
    %3517 = vmatprep.subr.bf16.mxu0 0
    %3518 = vmatpush1.bf16.msra.mxu0 0
    %3519 = vmatprep.subr.bf16.mxu0 0
    %3520 = vmatpush1.bf16.msra.mxu0 0
    %3521 = vmatprep.mubr.bf16.mxu0 0
    %3522 = vmatmul.mubr.bf16.gmra.mrb[0].mxu0 0
    %v3523 = vpop.f32.mrb[0].mxu0
    %v3524 = vadd.f32 0.0, %v3523
    %v3525 = vpop.f32.mrb[0].mxu0
    %v3526 = vadd.f32 0.0, %v3525
    %v3527 = vpop.f32.mrb[0].mxu0
    %v3528 = vpop.f32.mrb[0].mxu0
    %3529 = vdwg.mxu0
    %v3530 = vadd.f32 %v3252, %v3483
    %v3531 = vadd.f32 %v3253, %v3485
    %v3532 = vadd.f32 %v3254, %v3524
    %v3533 = vadd.f32 %v3255, %v3526
    %v3534 = vxor.u32 %v3530, 2147483648
    %v3535 = vxor.u32 %v3531, 2147483648
    %v3536 = vxor.u32 %v3532, 2147483648
    %v3537 = vmul.f32 %v3534, 1.442695
    %v3538 = vpow.pop %v3537
    %v3539 = vmul.f32 %v3535, 1.442695
    %v3540 = vpow.pop %v3539
    %v3541 = vmul.f32 %v3536, 1.442695
    %v3542 = vpow.pop %v3541
    %v3543 = vadd.f32 %v3538, 1.0
    %v3544 = vadd.f32 %v3540, 1.0
    %v3545 = vadd.f32 %v3542, 1.0
    %v3546 = vrcp.pop %v3543
    %v3547 = vmul.f32 1.0, %v3546
    %v3548 = vrcp.pop %v3544
    %v3549 = vmul.f32 1.0, %v3548
    %v3550 = vrcp.pop %v3545
    %v3551 = vmul.f32 1.0, %v3550
    %v3552 = vtanh.pop %v3533
    %v3553 = vmul.f32 %v3549, 0.0
    %v3554 = vmul.f32 %v3547, %v3552
    %v3555 = vadd.f32 %v3553, %v3554
    %v3556 = vtanh.pop %v3555
    %v3557 = vmul.f32 %v3551, %v3556
    %3558 = vst [vmem:[#allocation3] sm:$0xff] %v3557
    %v3559 = vld [vmem:[%s666] sm:$0xff]
    %v3560 = vld [vmem:[%s666 + $0x8] sm:$0xff]
    %v3561 = vld [vmem:[%s666 + $0x10] sm:$0xff]
    %v3562 = vld [vmem:[%s666 + $0x18] sm:$0xff]
    %v3563 = vpack.c.bf16 %v3557, %v3557
    %v3564 = vld [vmem:[#allocation6] sm:$0xff]
    %v3565 = vld [vmem:[#allocation6 + $0x8] sm:$0xff]
    %v3566 = vld [vmem:[#allocation6 + $0x10] sm:$0xff]
    %v3567 = vld [vmem:[#allocation6 + $0x18] sm:$0xff]
    %v3568 = vld [vmem:[#allocation6 + $0x20] sm:$0xff]
    %v3569 = vld [vmem:[#allocation6 + $0x28] sm:$0xff]
    %v3570 = vld [vmem:[#allocation6 + $0x30] sm:$0xff]
    %v3571 = vld [vmem:[#allocation6 + $0x38] sm:$0xff]
    %v3572 = vld [vmem:[#allocation6 + $0x40] sm:$0xff]
    %v3573 = vld [vmem:[#allocation6 + $0x48] sm:$0xff]
    %v3574 = vld [vmem:[#allocation6 + $0x50] sm:$0xff]
    %v3575 = vld [vmem:[#allocation6 + $0x58] sm:$0xff]
    %v3576 = vld [vmem:[#allocation6 + $0x60] sm:$0xff]
    %v3577 = vld [vmem:[#allocation6 + $0x68] sm:$0xff]
    %v3578 = vld [vmem:[#allocation6 + $0x70] sm:$0xff]
    %v3579 = vld [vmem:[#allocation6 + $0x78] sm:$0xff]
    %v3580 = vld [vmem:[#allocation6 + $0x80] sm:$0xff]
    %v3581 = vld [vmem:[#allocation6 + $0x88] sm:$0xff]
    %v3582 = vld [vmem:[#allocation6 + $0x90] sm:$0xff]
    %v3583 = vld [vmem:[#allocation6 + $0x98] sm:$0xff]
    %v3584 = vld [vmem:[#allocation6 + $0xa0] sm:$0xff]
    %v3585 = vld [vmem:[#allocation6 + $0xa8] sm:$0xff]
    %v3586 = vld [vmem:[#allocation6 + $0xb0] sm:$0xff]
    %v3587 = vld [vmem:[#allocation6 + $0xb8] sm:$0xff]
    %v3588 = vld [vmem:[#allocation6 + $0xc0] sm:$0xff]
    %v3589 = vld [vmem:[#allocation6 + $0xc8] sm:$0xff]
    %v3590 = vld [vmem:[#allocation6 + $0xd0] sm:$0xff]
    %v3591 = vld [vmem:[#allocation6 + $0xd8] sm:$0xff]
    %v3592 = vld [vmem:[#allocation6 + $0xe0] sm:$0xff]
    %v3593 = vld [vmem:[#allocation6 + $0xe8] sm:$0xff]
    %v3594 = vld [vmem:[#allocation6 + $0xf0] sm:$0xff]
    %v3595 = vld [vmem:[#allocation6 + $0xf8] sm:$0xff]
    %v3628 = vunpack.c.l.b16 %v3564
    %v3629 = vunpack.c.h.b16 %v3564
    %v3630 = vunpack.c.l.b16 %v3565
    %v3631 = vunpack.c.h.b16 %v3565
    %v3632 = vunpack.c.l.b16 %v3566
    %v3633 = vunpack.c.h.b16 %v3566
    %v3634 = vunpack.c.l.b16 %v3567
    %v3635 = vunpack.c.h.b16 %v3567
    %v3636 = vunpack.c.l.b16 %v3568
    %v3637 = vunpack.c.h.b16 %v3568
    %v3638 = vunpack.c.l.b16 %v3569
    %v3639 = vunpack.c.h.b16 %v3569
    %v3640 = vunpack.c.l.b16 %v3570
    %v3641 = vunpack.c.h.b16 %v3570
    %v3642 = vunpack.c.l.b16 %v3571
    %v3643 = vunpack.c.h.b16 %v3571
    %v3644 = vunpack.c.l.b16 %v3572
    %v3645 = vunpack.c.h.b16 %v3572
    %v3646 = vunpack.c.l.b16 %v3573
    %v3647 = vunpack.c.h.b16 %v3573
    %v3648 = vunpack.c.l.b16 %v3574
    %v3649 = vunpack.c.h.b16 %v3574
    %v3650 = vunpack.c.l.b16 %v3575
    %v3651 = vunpack.c.h.b16 %v3575
    %v3652 = vunpack.c.l.b16 %v3576
    %v3653 = vunpack.c.h.b16 %v3576
    %v3654 = vunpack.c.l.b16 %v3577
    %v3655 = vunpack.c.h.b16 %v3577
    %v3656 = vunpack.c.l.b16 %v3578
    %v3657 = vunpack.c.h.b16 %v3578
    %v3658 = vunpack.c.l.b16 %v3579
    %v3659 = vunpack.c.h.b16 %v3579
    %v3660 = vunpack.c.l.b16 %v3580
    %v3661 = vunpack.c.h.b16 %v3580
    %v3662 = vunpack.c.l.b16 %v3581
    %v3663 = vunpack.c.h.b16 %v3581
    %v3664 = vunpack.c.l.b16 %v3582
    %v3665 = vunpack.c.h.b16 %v3582
    %v3666 = vunpack.c.l.b16 %v3583
    %v3667 = vunpack.c.h.b16 %v3583
    %v3668 = vunpack.c.l.b16 %v3584
    %v3669 = vunpack.c.h.b16 %v3584
    %v3670 = vunpack.c.l.b16 %v3585
    %v3671 = vunpack.c.h.b16 %v3585
    %v3672 = vunpack.c.l.b16 %v3586
    %v3673 = vunpack.c.h.b16 %v3586
    %v3674 = vunpack.c.l.b16 %v3587
    %v3675 = vunpack.c.h.b16 %v3587
    %v3676 = vunpack.c.l.b16 %v3588
    %v3677 = vunpack.c.h.b16 %v3588
    %v3678 = vunpack.c.l.b16 %v3589
    %v3679 = vunpack.c.h.b16 %v3589
    %v3680 = vunpack.c.l.b16 %v3590
    %v3681 = vunpack.c.h.b16 %v3590
    %v3682 = vunpack.c.l.b16 %v3591
    %v3683 = vunpack.c.h.b16 %v3591
    %v3684 = vunpack.c.l.b16 %v3592
    %v3685 = vunpack.c.h.b16 %v3592
    %v3686 = vunpack.c.l.b16 %v3593
    %v3687 = vunpack.c.h.b16 %v3593
    %v3688 = vunpack.c.l.b16 %v3594
    %v3689 = vunpack.c.h.b16 %v3594
    %v3690 = vunpack.c.l.b16 %v3595
    %v3691 = vunpack.c.h.b16 %v3595
    %v3692 = vpack.c.b16 %v3632, %v3628
    %v3693 = vpack.c.b16 %v3633, %v3629
    %v3694 = vpack.c.b16 %v3634, %v3630
    %v3695 = vpack.c.b16 %v3635, %v3631
    %v3696 = vpack.c.b16 %v3640, %v3636
    %v3697 = vpack.c.b16 %v3641, %v3637
    %v3698 = vpack.c.b16 %v3642, %v3638
    %v3699 = vpack.c.b16 %v3643, %v3639
    %v3700 = vpack.c.b16 %v3648, %v3644
    %v3701 = vpack.c.b16 %v3649, %v3645
    %v3702 = vpack.c.b16 %v3650, %v3646
    %v3703 = vpack.c.b16 %v3651, %v3647
    %v3704 = vpack.c.b16 %v3656, %v3652
    %v3705 = vpack.c.b16 %v3657, %v3653
    %v3706 = vpack.c.b16 %v3658, %v3654
    %v3707 = vpack.c.b16 %v3659, %v3655
    %v3708 = vpack.c.b16 %v3664, %v3660
    %v3709 = vpack.c.b16 %v3665, %v3661
    %v3710 = vpack.c.b16 %v3666, %v3662
    %v3711 = vpack.c.b16 %v3667, %v3663
    %v3712 = vpack.c.b16 %v3672, %v3668
    %v3713 = vpack.c.b16 %v3673, %v3669
    %v3714 = vpack.c.b16 %v3674, %v3670
    %v3715 = vpack.c.b16 %v3675, %v3671
    %v3716 = vpack.c.b16 %v3680, %v3676
    %v3717 = vpack.c.b16 %v3681, %v3677
    %v3718 = vpack.c.b16 %v3682, %v3678
    %v3719 = vpack.c.b16 %v3683, %v3679
    %v3720 = vpack.c.b16 %v3688, %v3684
    %v3721 = vpack.c.b16 %v3689, %v3685
    %v3722 = vpack.c.b16 %v3690, %v3686
    %v3723 = vpack.c.b16 %v3691, %v3687
    %3756 = vmatprep.subr.bf16.mxu0 %v3693
    %3757 = vmatpush1.bf16.msra.mxu0 %v3692
    %3758 = vmatprep.subr.bf16.mxu0 %v3697
    %3759 = vmatpush1.bf16.msra.mxu0 %v3696
    %3760 = vmatprep.subr.bf16.mxu0 %v3701
    %3761 = vmatpush1.bf16.msra.mxu0 %v3700
    %3762 = vmatprep.subr.bf16.mxu0 %v3705
    %3763 = vmatpush1.bf16.msra.mxu0 %v3704
    %3764 = vmatprep.subr.bf16.mxu0 %v3709
    %3765 = vmatpush1.bf16.msra.mxu0 %v3708
    %3766 = vmatprep.subr.bf16.mxu0 %v3713
    %3767 = vmatpush1.bf16.msra.mxu0 %v3712
    %3768 = vmatprep.subr.bf16.mxu0 %v3717
    %3769 = vmatpush1.bf16.msra.mxu0 %v3716
    %3770 = vmatprep.subr.bf16.mxu0 %v3721
    %3771 = vmatpush1.bf16.msra.mxu0 %v3720
    %3772 = vmatprep.subr.bf16.mxu0 0
    %3773 = vmatpush1.bf16.msra.mxu0 0
    %3774 = vmatprep.subr.bf16.mxu0 0
    %3775 = vmatpush1.bf16.msra.mxu0 0
    %3776 = vmatprep.subr.bf16.mxu0 0
    %3777 = vmatpush1.bf16.msra.mxu0 0
    %3778 = vmatprep.subr.bf16.mxu0 0
    %3779 = vmatpush1.bf16.msra.mxu0 0
    %3780 = vmatprep.subr.bf16.mxu0 0
    %3781 = vmatpush1.bf16.msra.mxu0 0
    %3782 = vmatprep.subr.bf16.mxu0 0
    %3783 = vmatpush1.bf16.msra.mxu0 0
    %3784 = vmatprep.subr.bf16.mxu0 0
    %3785 = vmatpush1.bf16.msra.mxu0 0
    %3786 = vmatprep.subr.bf16.mxu0 0
    %3787 = vmatpush1.bf16.msra.mxu0 0
    %3788 = vmatprep.mubr.bf16.mxu0 0
    %3789 = vmatmul.mubr.bf16.gmra.mrb[0].mxu0 %v3563
    %v3790 = vpop.f32.mrb[0].mxu0
    %v3791 = vadd.f32 0.0, %v3790
    %v3792 = vpop.f32.mrb[0].mxu0
    %v3793 = vadd.f32 0.0, %v3792
    %v3794 = vpop.f32.mrb[0].mxu0
    %v3795 = vpop.f32.mrb[0].mxu0
    %3796 = vdwg.mxu0
    %3797 = vmatprep.subr.bf16.mxu0 %v3695
    %3798 = vmatpush1.bf16.msra.mxu0 %v3694
    %3799 = vmatprep.subr.bf16.mxu0 %v3699
    %3800 = vmatpush1.bf16.msra.mxu0 %v3698
    %3801 = vmatprep.subr.bf16.mxu0 %v3703
    %3802 = vmatpush1.bf16.msra.mxu0 %v3702
    %3803 = vmatprep.subr.bf16.mxu0 %v3707
    %3804 = vmatpush1.bf16.msra.mxu0 %v3706
    %3805 = vmatprep.subr.bf16.mxu0 %v3711
    %3806 = vmatpush1.bf16.msra.mxu0 %v3710
    %3807 = vmatprep.subr.bf16.mxu0 %v3715
    %3808 = vmatpush1.bf16.msra.mxu0 %v3714
    %3809 = vmatprep.subr.bf16.mxu0 %v3719
    %3810 = vmatpush1.bf16.msra.mxu0 %v3718
    %3811 = vmatprep.subr.bf16.mxu0 %v3723
    %3812 = vmatpush1.bf16.msra.mxu0 %v3722
    %3813 = vmatprep.subr.bf16.mxu0 0
    %3814 = vmatpush1.bf16.msra.mxu0 0
    %3815 = vmatprep.subr.bf16.mxu0 0
    %3816 = vmatpush1.bf16.msra.mxu0 0
    %3817 = vmatprep.subr.bf16.mxu0 0
    %3818 = vmatpush1.bf16.msra.mxu0 0
    %3819 = vmatprep.subr.bf16.mxu0 0
    %3820 = vmatpush1.bf16.msra.mxu0 0
    %3821 = vmatprep.subr.bf16.mxu0 0
    %3822 = vmatpush1.bf16.msra.mxu0 0
    %3823 = vmatprep.subr.bf16.mxu0 0
    %3824 = vmatpush1.bf16.msra.mxu0 0
    %3825 = vmatprep.subr.bf16.mxu0 0
    %3826 = vmatpush1.bf16.msra.mxu0 0
    %3827 = vmatprep.subr.bf16.mxu0 0
    %3828 = vmatpush1.bf16.msra.mxu0 0
    %3829 = vmatprep.mubr.bf16.mxu0 0
    %3830 = vmatmul.mubr.bf16.gmra.mrb[0].mxu0 %v3563
    %v3831 = vpop.f32.mrb[0].mxu0
    %v3832 = vadd.f32 0.0, %v3831
    %v3833 = vpop.f32.mrb[0].mxu0
    %v3834 = vadd.f32 0.0, %v3833
    %v3835 = vpop.f32.mrb[0].mxu0
    %v3836 = vpop.f32.mrb[0].mxu0
    %3837 = vdwg.mxu0
    %v3838 = vadd.f32 %v3559, %v3791
    %v3839 = vadd.f32 %v3560, %v3793
    %v3840 = vadd.f32 %v3561, %v3832
    %v3841 = vadd.f32 %v3562, %v3834
    %v3842 = vxor.u32 %v3838, 2147483648
    %v3843 = vxor.u32 %v3839, 2147483648
    %v3844 = vxor.u32 %v3840, 2147483648
    %v3845 = vmul.f32 %v3842, 1.442695
    %v3846 = vpow.pop %v3845
    %v3847 = vmul.f32 %v3843, 1.442695
    %v3848 = vpow.pop %v3847
    %v3849 = vmul.f32 %v3844, 1.442695
    %v3850 = vpow.pop %v3849
    %v3851 = vadd.f32 %v3846, 1.0
    %v3852 = vadd.f32 %v3848, 1.0
    %v3853 = vadd.f32 %v3850, 1.0
    %v3854 = vrcp.pop %v3851
    %v3855 = vmul.f32 1.0, %v3854
    %v3856 = vrcp.pop %v3852
    %v3857 = vmul.f32 1.0, %v3856
    %v3858 = vrcp.pop %v3853
    %v3859 = vmul.f32 1.0, %v3858
    %v3860 = vtanh.pop %v3841
    %v3861 = vmul.f32 %v3857, %v3555
    %v3862 = vmul.f32 %v3855, %v3860
    %v3863 = vadd.f32 %v3861, %v3862
    %v3864 = vtanh.pop %v3863
    %v3865 = vmul.f32 %v3859, %v3864
    %3866 = vst [vmem:[%s974] sm:$0xff] %v3865
    %v3867 = vld [vmem:[%s978] sm:$0xff]
    %v3868 = vld [vmem:[%s978 + $0x8] sm:$0xff]
    %v3869 = vld [vmem:[%s978 + $0x10] sm:$0xff]
    %v3870 = vld [vmem:[%s978 + $0x18] sm:$0xff]
    %v3871 = vpack.c.bf16 %v3865, %v3865
    %v3872 = vld [vmem:[#allocation6] sm:$0xff]
    %v3873 = vld [vmem:[#allocation6 + $0x8] sm:$0xff]
    %v3874 = vld [vmem:[#allocation6 + $0x10] sm:$0xff]
    %v3875 = vld [vmem:[#allocation6 + $0x18] sm:$0xff]
    %v3876 = vld [vmem:[#allocation6 + $0x20] sm:$0xff]
    %v3877 = vld [vmem:[#allocation6 + $0x28] sm:$0xff]
    %v3878 = vld [vmem:[#allocation6 + $0x30] sm:$0xff]
    %v3879 = vld [vmem:[#allocation6 + $0x38] sm:$0xff]
    %v3880 = vld [vmem:[#allocation6 + $0x40] sm:$0xff]
    %v3881 = vld [vmem:[#allocation6 + $0x48] sm:$0xff]
    %v3882 = vld [vmem:[#allocation6 + $0x50] sm:$0xff]
    %v3883 = vld [vmem:[#allocation6 + $0x58] sm:$0xff]
    %v3884 = vld [vmem:[#allocation6 + $0x60] sm:$0xff]
    %v3885 = vld [vmem:[#allocation6 + $0x68] sm:$0xff]
    %v3886 = vld [vmem:[#allocation6 + $0x70] sm:$0xff]
    %v3887 = vld [vmem:[#allocation6 + $0x78] sm:$0xff]
    %v3888 = vld [vmem:[#allocation6 + $0x80] sm:$0xff]
    %v3889 = vld [vmem:[#allocation6 + $0x88] sm:$0xff]
    %v3890 = vld [vmem:[#allocation6 + $0x90] sm:$0xff]
    %v3891 = vld [vmem:[#allocation6 + $0x98] sm:$0xff]
    %v3892 = vld [vmem:[#allocation6 + $0xa0] sm:$0xff]
    %v3893 = vld [vmem:[#allocation6 + $0xa8] sm:$0xff]
    %v3894 = vld [vmem:[#allocation6 + $0xb0] sm:$0xff]
    %v3895 = vld [vmem:[#allocation6 + $0xb8] sm:$0xff]
    %v3896 = vld [vmem:[#allocation6 + $0xc0] sm:$0xff]
    %v3897 = vld [vmem:[#allocation6 + $0xc8] sm:$0xff]
    %v3898 = vld [vmem:[#allocation6 + $0xd0] sm:$0xff]
    %v3899 = vld [vmem:[#allocation6 + $0xd8] sm:$0xff]
    %v3900 = vld [vmem:[#allocation6 + $0xe0] sm:$0xff]
    %v3901 = vld [vmem:[#allocation6 + $0xe8] sm:$0xff]
    %v3902 = vld [vmem:[#allocation6 + $0xf0] sm:$0xff]
    %v3903 = vld [vmem:[#allocation6 + $0xf8] sm:$0xff]
    %v3936 = vunpack.c.l.b16 %v3872
    %v3937 = vunpack.c.h.b16 %v3872
    %v3938 = vunpack.c.l.b16 %v3873
    %v3939 = vunpack.c.h.b16 %v3873
    %v3940 = vunpack.c.l.b16 %v3874
    %v3941 = vunpack.c.h.b16 %v3874
    %v3942 = vunpack.c.l.b16 %v3875
    %v3943 = vunpack.c.h.b16 %v3875
    %v3944 = vunpack.c.l.b16 %v3876
    %v3945 = vunpack.c.h.b16 %v3876
    %v3946 = vunpack.c.l.b16 %v3877
    %v3947 = vunpack.c.h.b16 %v3877
    %v3948 = vunpack.c.l.b16 %v3878
    %v3949 = vunpack.c.h.b16 %v3878
    %v3950 = vunpack.c.l.b16 %v3879
    %v3951 = vunpack.c.h.b16 %v3879
    %v3952 = vunpack.c.l.b16 %v3880
    %v3953 = vunpack.c.h.b16 %v3880
    %v3954 = vunpack.c.l.b16 %v3881
    %v3955 = vunpack.c.h.b16 %v3881
    %v3956 = vunpack.c.l.b16 %v3882
    %v3957 = vunpack.c.h.b16 %v3882
    %v3958 = vunpack.c.l.b16 %v3883
    %v3959 = vunpack.c.h.b16 %v3883
    %v3960 = vunpack.c.l.b16 %v3884
    %v3961 = vunpack.c.h.b16 %v3884
    %v3962 = vunpack.c.l.b16 %v3885
    %v3963 = vunpack.c.h.b16 %v3885
    %v3964 = vunpack.c.l.b16 %v3886
    %v3965 = vunpack.c.h.b16 %v3886
    %v3966 = vunpack.c.l.b16 %v3887
    %v3967 = vunpack.c.h.b16 %v3887
    %v3968 = vunpack.c.l.b16 %v3888
    %v3969 = vunpack.c.h.b16 %v3888
    %v3970 = vunpack.c.l.b16 %v3889
    %v3971 = vunpack.c.h.b16 %v3889
    %v3972 = vunpack.c.l.b16 %v3890
    %v3973 = vunpack.c.h.b16 %v3890
    %v3974 = vunpack.c.l.b16 %v3891
    %v3975 = vunpack.c.h.b16 %v3891
    %v3976 = vunpack.c.l.b16 %v3892
    %v3977 = vunpack.c.h.b16 %v3892
    %v3978 = vunpack.c.l.b16 %v3893
    %v3979 = vunpack.c.h.b16 %v3893
    %v3980 = vunpack.c.l.b16 %v3894
    %v3981 = vunpack.c.h.b16 %v3894
    %v3982 = vunpack.c.l.b16 %v3895
    %v3983 = vunpack.c.h.b16 %v3895
    %v3984 = vunpack.c.l.b16 %v3896
    %v3985 = vunpack.c.h.b16 %v3896
    %v3986 = vunpack.c.l.b16 %v3897
    %v3987 = vunpack.c.h.b16 %v3897
    %v3988 = vunpack.c.l.b16 %v3898
    %v3989 = vunpack.c.h.b16 %v3898
    %v3990 = vunpack.c.l.b16 %v3899
    %v3991 = vunpack.c.h.b16 %v3899
    %v3992 = vunpack.c.l.b16 %v3900
    %v3993 = vunpack.c.h.b16 %v3900
    %v3994 = vunpack.c.l.b16 %v3901
    %v3995 = vunpack.c.h.b16 %v3901
    %v3996 = vunpack.c.l.b16 %v3902
    %v3997 = vunpack.c.h.b16 %v3902
    %v3998 = vunpack.c.l.b16 %v3903
    %v3999 = vunpack.c.h.b16 %v3903
    %v4000 = vpack.c.b16 %v3940, %v3936
    %v4001 = vpack.c.b16 %v3941, %v3937
    %v4002 = vpack.c.b16 %v3942, %v3938
    %v4003 = vpack.c.b16 %v3943, %v3939
    %v4004 = vpack.c.b16 %v3948, %v3944
    %v4005 = vpack.c.b16 %v3949, %v3945
    %v4006 = vpack.c.b16 %v3950, %v3946
    %v4007 = vpack.c.b16 %v3951, %v3947
    %v4008 = vpack.c.b16 %v3956, %v3952
    %v4009 = vpack.c.b16 %v3957, %v3953
    %v4010 = vpack.c.b16 %v3958, %v3954
    %v4011 = vpack.c.b16 %v3959, %v3955
    %v4012 = vpack.c.b16 %v3964, %v3960
    %v4013 = vpack.c.b16 %v3965, %v3961
    %v4014 = vpack.c.b16 %v3966, %v3962
    %v4015 = vpack.c.b16 %v3967, %v3963
    %v4016 = vpack.c.b16 %v3972, %v3968
    %v4017 = vpack.c.b16 %v3973, %v3969
    %v4018 = vpack.c.b16 %v3974, %v3970
    %v4019 = vpack.c.b16 %v3975, %v3971
    %v4020 = vpack.c.b16 %v3980, %v3976
    %v4021 = vpack.c.b16 %v3981, %v3977
    %v4022 = vpack.c.b16 %v3982, %v3978
    %v4023 = vpack.c.b16 %v3983, %v3979
    %v4024 = vpack.c.b16 %v3988, %v3984
    %v4025 = vpack.c.b16 %v3989, %v3985
    %v4026 = vpack.c.b16 %v3990, %v3986
    %v4027 = vpack.c.b16 %v3991, %v3987
    %v4028 = vpack.c.b16 %v3996, %v3992
    %v4029 = vpack.c.b16 %v3997, %v3993
    %v4030 = vpack.c.b16 %v3998, %v3994
    %v4031 = vpack.c.b16 %v3999, %v3995
    %4064 = vmatprep.subr.bf16.mxu0 %v4001
    %4065 = vmatpush1.bf16.msra.mxu0 %v4000
    %4066 = vmatprep.subr.bf16.mxu0 %v4005
    %4067 = vmatpush1.bf16.msra.mxu0 %v4004
    %4068 = vmatprep.subr.bf16.mxu0 %v4009
    %4069 = vmatpush1.bf16.msra.mxu0 %v4008
    %4070 = vmatprep.subr.bf16.mxu0 %v4013
    %4071 = vmatpush1.bf16.msra.mxu0 %v4012
    %4072 = vmatprep.subr.bf16.mxu0 %v4017
    %4073 = vmatpush1.bf16.msra.mxu0 %v4016
    %4074 = vmatprep.subr.bf16.mxu0 %v4021
    %4075 = vmatpush1.bf16.msra.mxu0 %v4020
    %4076 = vmatprep.subr.bf16.mxu0 %v4025
    %4077 = vmatpush1.bf16.msra.mxu0 %v4024
    %4078 = vmatprep.subr.bf16.mxu0 %v4029
    %4079 = vmatpush1.bf16.msra.mxu0 %v4028
    %4080 = vmatprep.subr.bf16.mxu0 0
    %4081 = vmatpush1.bf16.msra.mxu0 0
    %4082 = vmatprep.subr.bf16.mxu0 0
    %4083 = vmatpush1.bf16.msra.mxu0 0
    %4084 = vmatprep.subr.bf16.mxu0 0
    %4085 = vmatpush1.bf16.msra.mxu0 0
    %4086 = vmatprep.subr.bf16.mxu0 0
    %4087 = vmatpush1.bf16.msra.mxu0 0
    %4088 = vmatprep.subr.bf16.mxu0 0
    %4089 = vmatpush1.bf16.msra.mxu0 0
    %4090 = vmatprep.subr.bf16.mxu0 0
    %4091 = vmatpush1.bf16.msra.mxu0 0
    %4092 = vmatprep.subr.bf16.mxu0 0
    %4093 = vmatpush1.bf16.msra.mxu0 0
    %4094 = vmatprep.subr.bf16.mxu0 0
    %4095 = vmatpush1.bf16.msra.mxu0 0
    %4096 = vmatprep.mubr.bf16.mxu0 0
    %4097 = vmatmul.mubr.bf16.gmra.mrb[0].mxu0 %v3871
    %v4098 = vpop.f32.mrb[0].mxu0
    %v4099 = vadd.f32 0.0, %v4098
    %v4100 = vpop.f32.mrb[0].mxu0
    %v4101 = vadd.f32 0.0, %v4100
    %v4102 = vpop.f32.mrb[0].mxu0
    %v4103 = vpop.f32.mrb[0].mxu0
    %4104 = vdwg.mxu0
    %4105 = vmatprep.subr.bf16.mxu0 %v4003
    %4106 = vmatpush1.bf16.msra.mxu0 %v4002
    %4107 = vmatprep.subr.bf16.mxu0 %v4007
    %4108 = vmatpush1.bf16.msra.mxu0 %v4006
    %4109 = vmatprep.subr.bf16.mxu0 %v4011
    %4110 = vmatpush1.bf16.msra.mxu0 %v4010
    %4111 = vmatprep.subr.bf16.mxu0 %v4015
    %4112 = vmatpush1.bf16.msra.mxu0 %v4014
    %4113 = vmatprep.subr.bf16.mxu0 %v4019
    %4114 = vmatpush1.bf16.msra.mxu0 %v4018
    %4115 = vmatprep.subr.bf16.mxu0 %v4023
    %4116 = vmatpush1.bf16.msra.mxu0 %v4022
    %4117 = vmatprep.subr.bf16.mxu0 %v4027
    %4118 = vmatpush1.bf16.msra.mxu0 %v4026
    %4119 = vmatprep.subr.bf16.mxu0 %v4031
    %4120 = vmatpush1.bf16.msra.mxu0 %v4030
    %4121 = vmatprep.subr.bf16.mxu0 0
    %4122 = vmatpush1.bf16.msra.mxu0 0
    %4123 = vmatprep.subr.bf16.mxu0 0
    %4124 = vmatpush1.bf16.msra.mxu0 0
    %4125 = vmatprep.subr.bf16.mxu0 0
    %4126 = vmatpush1.bf16.msra.mxu0 0
    %4127 = vmatprep.subr.bf16.mxu0 0
    %4128 = vmatpush1.bf16.msra.mxu0 0
    %4129 = vmatprep.subr.bf16.mxu0 0
    %4130 = vmatpush1.bf16.msra.mxu0 0
    %4131 = vmatprep.subr.bf16.mxu0 0
    %4132 = vmatpush1.bf16.msra.mxu0 0
    %4133 = vmatprep.subr.bf16.mxu0 0
    %4134 = vmatpush1.bf16.msra.mxu0 0
    %4135 = vmatprep.subr.bf16.mxu0 0
    %4136 = vmatpush1.bf16.msra.mxu0 0
    %4137 = vmatprep.mubr.bf16.mxu0 0
    %4138 = vmatmul.mubr.bf16.gmra.mrb[0].mxu0 %v3871
    %v4139 = vpop.f32.mrb[0].mxu0
    %v4140 = vadd.f32 0.0, %v4139
    %v4141 = vpop.f32.mrb[0].mxu0
    %v4142 = vadd.f32 0.0, %v4141
    %v4143 = vpop.f32.mrb[0].mxu0
    %v4144 = vpop.f32.mrb[0].mxu0
    %4145 = vdwg.mxu0
    %v4146 = vadd.f32 %v3867, %v4099
    %v4147 = vadd.f32 %v3868, %v4101
    %v4148 = vadd.f32 %v3869, %v4140
    %v4149 = vadd.f32 %v3870, %v4142
    %v4150 = vxor.u32 %v4146, 2147483648
    %v4151 = vxor.u32 %v4147, 2147483648
    %v4152 = vxor.u32 %v4148, 2147483648
    %v4153 = vmul.f32 %v4150, 1.442695
    %v4154 = vpow.pop %v4153
    %v4155 = vmul.f32 %v4151, 1.442695
    %v4156 = vpow.pop %v4155
    %v4157 = vmul.f32 %v4152, 1.442695
    %v4158 = vpow.pop %v4157
    %v4159 = vadd.f32 %v4154, 1.0
    %v4160 = vadd.f32 %v4156, 1.0
    %v4161 = vadd.f32 %v4158, 1.0
    %v4162 = vrcp.pop %v4159
    %v4163 = vmul.f32 1.0, %v4162
    %v4164 = vrcp.pop %v4160
    %v4165 = vmul.f32 1.0, %v4164
    %v4166 = vrcp.pop %v4161
    %v4167 = vmul.f32 1.0, %v4166
    %v4168 = vtanh.pop %v4149
    %v4169 = vmul.f32 %v4165, %v3863
    %v4170 = vmul.f32 %v4163, %v4168
    %v4171 = vadd.f32 %v4169, %v4170
    %v4172 = vtanh.pop %v4171
    %v4173 = vmul.f32 %v4167, %v4172
    %4174 = vst [vmem:[%s1286] sm:$0xff] %v4173
    %v4175 = vld [vmem:[%s1290] sm:$0xff]
    %v4176 = vld [vmem:[%s1290 + $0x8] sm:$0xff]
    %v4177 = vld [vmem:[%s1290 + $0x10] sm:$0xff]
    %v4178 = vld [vmem:[%s1290 + $0x18] sm:$0xff]
    %v4179 = vpack.c.bf16 %v4173, %v4173
    %v4180 = vld [vmem:[#allocation6] sm:$0xff]
    %v4181 = vld [vmem:[#allocation6 + $0x8] sm:$0xff]
    %v4182 = vld [vmem:[#allocation6 + $0x10] sm:$0xff]
    %v4183 = vld [vmem:[#allocation6 + $0x18] sm:$0xff]
    %v4184 = vld [vmem:[#allocation6 + $0x20] sm:$0xff]
    %v4185 = vld [vmem:[#allocation6 + $0x28] sm:$0xff]
    %v4186 = vld [vmem:[#allocation6 + $0x30] sm:$0xff]
    %v4187 = vld [vmem:[#allocation6 + $0x38] sm:$0xff]
    %v4188 = vld [vmem:[#allocation6 + $0x40] sm:$0xff]
    %v4189 = vld [vmem:[#allocation6 + $0x48] sm:$0xff]
    %v4190 = vld [vmem:[#allocation6 + $0x50] sm:$0xff]
    %v4191 = vld [vmem:[#allocation6 + $0x58] sm:$0xff]
    %v4192 = vld [vmem:[#allocation6 + $0x60] sm:$0xff]
    %v4193 = vld [vmem:[#allocation6 + $0x68] sm:$0xff]
    %v4194 = vld [vmem:[#allocation6 + $0x70] sm:$0xff]
    %v4195 = vld [vmem:[#allocation6 + $0x78] sm:$0xff]
    %v4196 = vld [vmem:[#allocation6 + $0x80] sm:$0xff]
    %v4197 = vld [vmem:[#allocation6 + $0x88] sm:$0xff]
    %v4198 = vld [vmem:[#allocation6 + $0x90] sm:$0xff]
    %v4199 = vld [vmem:[#allocation6 + $0x98] sm:$0xff]
    %v4200 = vld [vmem:[#allocation6 + $0xa0] sm:$0xff]
    %v4201 = vld [vmem:[#allocation6 + $0xa8] sm:$0xff]
    %v4202 = vld [vmem:[#allocation6 + $0xb0] sm:$0xff]
    %v4203 = vld [vmem:[#allocation6 + $0xb8] sm:$0xff]
    %v4204 = vld [vmem:[#allocation6 + $0xc0] sm:$0xff]
    %v4205 = vld [vmem:[#allocation6 + $0xc8] sm:$0xff]
    %v4206 = vld [vmem:[#allocation6 + $0xd0] sm:$0xff]
    %v4207 = vld [vmem:[#allocation6 + $0xd8] sm:$0xff]
    %v4208 = vld [vmem:[#allocation6 + $0xe0] sm:$0xff]
    %v4209 = vld [vmem:[#allocation6 + $0xe8] sm:$0xff]
    %v4210 = vld [vmem:[#allocation6 + $0xf0] sm:$0xff]
    %v4211 = vld [vmem:[#allocation6 + $0xf8] sm:$0xff]
    %v4244 = vunpack.c.l.b16 %v4180
    %v4245 = vunpack.c.h.b16 %v4180
    %v4246 = vunpack.c.l.b16 %v4181
    %v4247 = vunpack.c.h.b16 %v4181
    %v4248 = vunpack.c.l.b16 %v4182
    %v4249 = vunpack.c.h.b16 %v4182
    %v4250 = vunpack.c.l.b16 %v4183
    %v4251 = vunpack.c.h.b16 %v4183
    %v4252 = vunpack.c.l.b16 %v4184
    %v4253 = vunpack.c.h.b16 %v4184
    %v4254 = vunpack.c.l.b16 %v4185
    %v4255 = vunpack.c.h.b16 %v4185
    %v4256 = vunpack.c.l.b16 %v4186
    %v4257 = vunpack.c.h.b16 %v4186
    %v4258 = vunpack.c.l.b16 %v4187
    %v4259 = vunpack.c.h.b16 %v4187
    %v4260 = vunpack.c.l.b16 %v4188
    %v4261 = vunpack.c.h.b16 %v4188
    %v4262 = vunpack.c.l.b16 %v4189
    %v4263 = vunpack.c.h.b16 %v4189
    %v4264 = vunpack.c.l.b16 %v4190
    %v4265 = vunpack.c.h.b16 %v4190
    %v4266 = vunpack.c.l.b16 %v4191
    %v4267 = vunpack.c.h.b16 %v4191
    %v4268 = vunpack.c.l.b16 %v4192
    %v4269 = vunpack.c.h.b16 %v4192
    %v4270 = vunpack.c.l.b16 %v4193
    %v4271 = vunpack.c.h.b16 %v4193
    %v4272 = vunpack.c.l.b16 %v4194
    %v4273 = vunpack.c.h.b16 %v4194
    %v4274 = vunpack.c.l.b16 %v4195
    %v4275 = vunpack.c.h.b16 %v4195
    %v4276 = vunpack.c.l.b16 %v4196
    %v4277 = vunpack.c.h.b16 %v4196
    %v4278 = vunpack.c.l.b16 %v4197
    %v4279 = vunpack.c.h.b16 %v4197
    %v4280 = vunpack.c.l.b16 %v4198
    %v4281 = vunpack.c.h.b16 %v4198
    %v4282 = vunpack.c.l.b16 %v4199
    %v4283 = vunpack.c.h.b16 %v4199
    %v4284 = vunpack.c.l.b16 %v4200
    %v4285 = vunpack.c.h.b16 %v4200
    %v4286 = vunpack.c.l.b16 %v4201
    %v4287 = vunpack.c.h.b16 %v4201
    %v4288 = vunpack.c.l.b16 %v4202
    %v4289 = vunpack.c.h.b16 %v4202
    %v4290 = vunpack.c.l.b16 %v4203
    %v4291 = vunpack.c.h.b16 %v4203
    %v4292 = vunpack.c.l.b16 %v4204
    %v4293 = vunpack.c.h.b16 %v4204
    %v4294 = vunpack.c.l.b16 %v4205
    %v4295 = vunpack.c.h.b16 %v4205
    %v4296 = vunpack.c.l.b16 %v4206
    %v4297 = vunpack.c.h.b16 %v4206
    %v4298 = vunpack.c.l.b16 %v4207
    %v4299 = vunpack.c.h.b16 %v4207
    %v4300 = vunpack.c.l.b16 %v4208
    %v4301 = vunpack.c.h.b16 %v4208
    %v4302 = vunpack.c.l.b16 %v4209
    %v4303 = vunpack.c.h.b16 %v4209
    %v4304 = vunpack.c.l.b16 %v4210
    %v4305 = vunpack.c.h.b16 %v4210
    %v4306 = vunpack.c.l.b16 %v4211
    %v4307 = vunpack.c.h.b16 %v4211
    %v4308 = vpack.c.b16 %v4248, %v4244
    %v4309 = vpack.c.b16 %v4249, %v4245
    %v4310 = vpack.c.b16 %v4250, %v4246
    %v4311 = vpack.c.b16 %v4251, %v4247
    %v4312 = vpack.c.b16 %v4256, %v4252
    %v4313 = vpack.c.b16 %v4257, %v4253
    %v4314 = vpack.c.b16 %v4258, %v4254
    %v4315 = vpack.c.b16 %v4259, %v4255
    %v4316 = vpack.c.b16 %v4264, %v4260
    %v4317 = vpack.c.b16 %v4265, %v4261
    %v4318 = vpack.c.b16 %v4266, %v4262
    %v4319 = vpack.c.b16 %v4267, %v4263
    %v4320 = vpack.c.b16 %v4272, %v4268
    %v4321 = vpack.c.b16 %v4273, %v4269
    %v4322 = vpack.c.b16 %v4274, %v4270
    %v4323 = vpack.c.b16 %v4275, %v4271
    %v4324 = vpack.c.b16 %v4280, %v4276
    %v4325 = vpack.c.b16 %v4281, %v4277
    %v4326 = vpack.c.b16 %v4282, %v4278
    %v4327 = vpack.c.b16 %v4283, %v4279
    %v4328 = vpack.c.b16 %v4288, %v4284
    %v4329 = vpack.c.b16 %v4289, %v4285
    %v4330 = vpack.c.b16 %v4290, %v4286
    %v4331 = vpack.c.b16 %v4291, %v4287
    %v4332 = vpack.c.b16 %v4296, %v4292
    %v4333 = vpack.c.b16 %v4297, %v4293
    %v4334 = vpack.c.b16 %v4298, %v4294
    %v4335 = vpack.c.b16 %v4299, %v4295
    %v4336 = vpack.c.b16 %v4304, %v4300
    %v4337 = vpack.c.b16 %v4305, %v4301
    %v4338 = vpack.c.b16 %v4306, %v4302
    %v4339 = vpack.c.b16 %v4307, %v4303
    %4372 = vmatprep.subr.bf16.mxu0 %v4309
    %4373 = vmatpush1.bf16.msra.mxu0 %v4308
    %4374 = vmatprep.subr.bf16.mxu0 %v4313
    %4375 = vmatpush1.bf16.msra.mxu0 %v4312
    %4376 = vmatprep.subr.bf16.mxu0 %v4317
    %4377 = vmatpush1.bf16.msra.mxu0 %v4316
    %4378 = vmatprep.subr.bf16.mxu0 %v4321
    %4379 = vmatpush1.bf16.msra.mxu0 %v4320
    %4380 = vmatprep.subr.bf16.mxu0 %v4325
    %4381 = vmatpush1.bf16.msra.mxu0 %v4324
    %4382 = vmatprep.subr.bf16.mxu0 %v4329
    %4383 = vmatpush1.bf16.msra.mxu0 %v4328
    %4384 = vmatprep.subr.bf16.mxu0 %v4333
    %4385 = vmatpush1.bf16.msra.mxu0 %v4332
    %4386 = vmatprep.subr.bf16.mxu0 %v4337
    %4387 = vmatpush1.bf16.msra.mxu0 %v4336
    %4388 = vmatprep.subr.bf16.mxu0 0
    %4389 = vmatpush1.bf16.msra.mxu0 0
    %4390 = vmatprep.subr.bf16.mxu0 0
    %4391 = vmatpush1.bf16.msra.mxu0 0
    %4392 = vmatprep.subr.bf16.mxu0 0
    %4393 = vmatpush1.bf16.msra.mxu0 0
    %4394 = vmatprep.subr.bf16.mxu0 0
    %4395 = vmatpush1.bf16.msra.mxu0 0
    %4396 = vmatprep.subr.bf16.mxu0 0
    %4397 = vmatpush1.bf16.msra.mxu0 0
    %4398 = vmatprep.subr.bf16.mxu0 0
    %4399 = vmatpush1.bf16.msra.mxu0 0
    %4400 = vmatprep.subr.bf16.mxu0 0
    %4401 = vmatpush1.bf16.msra.mxu0 0
    %4402 = vmatprep.subr.bf16.mxu0 0
    %4403 = vmatpush1.bf16.msra.mxu0 0
    %4404 = vmatprep.mubr.bf16.mxu0 0
    %4405 = vmatmul.mubr.bf16.gmra.mrb[0].mxu0 %v4179
    %v4406 = vpop.f32.mrb[0].mxu0
    %v4407 = vadd.f32 0.0, %v4406
    %v4408 = vpop.f32.mrb[0].mxu0
    %v4409 = vadd.f32 0.0, %v4408
    %v4410 = vpop.f32.mrb[0].mxu0
    %v4411 = vpop.f32.mrb[0].mxu0
    %4412 = vdwg.mxu0
    %4413 = vmatprep.subr.bf16.mxu0 %v4311
    %4414 = vmatpush1.bf16.msra.mxu0 %v4310
    %4415 = vmatprep.subr.bf16.mxu0 %v4315
    %4416 = vmatpush1.bf16.msra.mxu0 %v4314
    %4417 = vmatprep.subr.bf16.mxu0 %v4319
    %4418 = vmatpush1.bf16.msra.mxu0 %v4318
    %4419 = vmatprep.subr.bf16.mxu0 %v4323
    %4420 = vmatpush1.bf16.msra.mxu0 %v4322
    %4421 = vmatprep.subr.bf16.mxu0 %v4327
    %4422 = vmatpush1.bf16.msra.mxu0 %v4326
    %4423 = vmatprep.subr.bf16.mxu0 %v4331
    %4424 = vmatpush1.bf16.msra.mxu0 %v4330
    %4425 = vmatprep.subr.bf16.mxu0 %v4335
    %4426 = vmatpush1.bf16.msra.mxu0 %v4334
    %4427 = vmatprep.subr.bf16.mxu0 %v4339
    %4428 = vmatpush1.bf16.msra.mxu0 %v4338
    %4429 = vmatprep.subr.bf16.mxu0 0
    %4430 = vmatpush1.bf16.msra.mxu0 0
    %4431 = vmatprep.subr.bf16.mxu0 0
    %4432 = vmatpush1.bf16.msra.mxu0 0
    %4433 = vmatprep.subr.bf16.mxu0 0
    %4434 = vmatpush1.bf16.msra.mxu0 0
    %4435 = vmatprep.subr.bf16.mxu0 0
    %4436 = vmatpush1.bf16.msra.mxu0 0
    %4437 = vmatprep.subr.bf16.mxu0 0
    %4438 = vmatpush1.bf16.msra.mxu0 0
    %4439 = vmatprep.subr.bf16.mxu0 0
    %4440 = vmatpush1.bf16.msra.mxu0 0
    %4441 = vmatprep.subr.bf16.mxu0 0
    %4442 = vmatpush1.bf16.msra.mxu0 0
    %4443 = vmatprep.subr.bf16.mxu0 0
    %4444 = vmatpush1.bf16.msra.mxu0 0
    %4445 = vmatprep.mubr.bf16.mxu0 0
    %4446 = vmatmul.mubr.bf16.gmra.mrb[0].mxu0 %v4179
    %v4447 = vpop.f32.mrb[0].mxu0
    %v4448 = vadd.f32 0.0, %v4447
    %v4449 = vpop.f32.mrb[0].mxu0
    %v4450 = vadd.f32 0.0, %v4449
    %v4451 = vpop.f32.mrb[0].mxu0
    %v4452 = vpop.f32.mrb[0].mxu0
    %4453 = vdwg.mxu0
    %v4454 = vadd.f32 %v4175, %v4407
    %v4455 = vadd.f32 %v4176, %v4409
    %v4456 = vadd.f32 %v4177, %v4448
    %v4457 = vadd.f32 %v4178, %v4450
    %v4458 = vxor.u32 %v4454, 2147483648
    %v4459 = vxor.u32 %v4455, 2147483648
    %v4460 = vxor.u32 %v4456, 2147483648
    %v4461 = vmul.f32 %v4458, 1.442695
    %v4462 = vpow.pop %v4461
    %v4463 = vmul.f32 %v4459, 1.442695
    %v4464 = vpow.pop %v4463
    %v4465 = vmul.f32 %v4460, 1.442695
    %v4466 = vpow.pop %v4465
    %v4467 = vadd.f32 %v4462, 1.0
    %v4468 = vadd.f32 %v4464, 1.0
    %v4469 = vadd.f32 %v4466, 1.0
    %v4470 = vrcp.pop %v4467
    %v4471 = vmul.f32 1.0, %v4470
    %v4472 = vrcp.pop %v4468
    %v4473 = vmul.f32 1.0, %v4472
    %v4474 = vrcp.pop %v4469
    %v4475 = vmul.f32 1.0, %v4474
    %v4476 = vtanh.pop %v4457
    %v4477 = vmul.f32 %v4473, %v4171
    %v4478 = vmul.f32 %v4471, %v4476
    %v4479 = vadd.f32 %v4477, %v4478
    %v4480 = vtanh.pop %v4479
    %v4481 = vmul.f32 %v4475, %v4480
    %4482 = vst [vmem:[%s1598] sm:$0xff] %v4481
    %v4483 = vld [vmem:[%s1602] sm:$0xff]
    %v4484 = vld [vmem:[%s1602 + $0x8] sm:$0xff]
    %v4485 = vld [vmem:[%s1602 + $0x10] sm:$0xff]
    %v4486 = vld [vmem:[%s1602 + $0x18] sm:$0xff]
    %v4487 = vpack.c.bf16 %v4481, %v4481
    %v4488 = vld [vmem:[#allocation6] sm:$0xff]
    %v4489 = vld [vmem:[#allocation6 + $0x8] sm:$0xff]
    %v4490 = vld [vmem:[#allocation6 + $0x10] sm:$0xff]
    %v4491 = vld [vmem:[#allocation6 + $0x18] sm:$0xff]
    %v4492 = vld [vmem:[#allocation6 + $0x20] sm:$0xff]
    %v4493 = vld [vmem:[#allocation6 + $0x28] sm:$0xff]
    %v4494 = vld [vmem:[#allocation6 + $0x30] sm:$0xff]
    %v4495 = vld [vmem:[#allocation6 + $0x38] sm:$0xff]
    %v4496 = vld [vmem:[#allocation6 + $0x40] sm:$0xff]
    %v4497 = vld [vmem:[#allocation6 + $0x48] sm:$0xff]
    %v4498 = vld [vmem:[#allocation6 + $0x50] sm:$0xff]
    %v4499 = vld [vmem:[#allocation6 + $0x58] sm:$0xff]
    %v4500 = vld [vmem:[#allocation6 + $0x60] sm:$0xff]
    %v4501 = vld [vmem:[#allocation6 + $0x68] sm:$0xff]
    %v4502 = vld [vmem:[#allocation6 + $0x70] sm:$0xff]
    %v4503 = vld [vmem:[#allocation6 + $0x78] sm:$0xff]
    %v4504 = vld [vmem:[#allocation6 + $0x80] sm:$0xff]
    %v4505 = vld [vmem:[#allocation6 + $0x88] sm:$0xff]
    %v4506 = vld [vmem:[#allocation6 + $0x90] sm:$0xff]
    %v4507 = vld [vmem:[#allocation6 + $0x98] sm:$0xff]
    %v4508 = vld [vmem:[#allocation6 + $0xa0] sm:$0xff]
    %v4509 = vld [vmem:[#allocation6 + $0xa8] sm:$0xff]
    %v4510 = vld [vmem:[#allocation6 + $0xb0] sm:$0xff]
    %v4511 = vld [vmem:[#allocation6 + $0xb8] sm:$0xff]
    %v4512 = vld [vmem:[#allocation6 + $0xc0] sm:$0xff]
    %v4513 = vld [vmem:[#allocation6 + $0xc8] sm:$0xff]
    %v4514 = vld [vmem:[#allocation6 + $0xd0] sm:$0xff]
    %v4515 = vld [vmem:[#allocation6 + $0xd8] sm:$0xff]
    %v4516 = vld [vmem:[#allocation6 + $0xe0] sm:$0xff]
    %v4517 = vld [vmem:[#allocation6 + $0xe8] sm:$0xff]
    %v4518 = vld [vmem:[#allocation6 + $0xf0] sm:$0xff]
    %v4519 = vld [vmem:[#allocation6 + $0xf8] sm:$0xff]
    %v4552 = vunpack.c.l.b16 %v4488
    %v4553 = vunpack.c.h.b16 %v4488
    %v4554 = vunpack.c.l.b16 %v4489
    %v4555 = vunpack.c.h.b16 %v4489
    %v4556 = vunpack.c.l.b16 %v4490
    %v4557 = vunpack.c.h.b16 %v4490
    %v4558 = vunpack.c.l.b16 %v4491
    %v4559 = vunpack.c.h.b16 %v4491
    %v4560 = vunpack.c.l.b16 %v4492
    %v4561 = vunpack.c.h.b16 %v4492
    %v4562 = vunpack.c.l.b16 %v4493
    %v4563 = vunpack.c.h.b16 %v4493
    %v4564 = vunpack.c.l.b16 %v4494
    %v4565 = vunpack.c.h.b16 %v4494
    %v4566 = vunpack.c.l.b16 %v4495
    %v4567 = vunpack.c.h.b16 %v4495
    %v4568 = vunpack.c.l.b16 %v4496
    %v4569 = vunpack.c.h.b16 %v4496
    %v4570 = vunpack.c.l.b16 %v4497
    %v4571 = vunpack.c.h.b16 %v4497
    %v4572 = vunpack.c.l.b16 %v4498
    %v4573 = vunpack.c.h.b16 %v4498
    %v4574 = vunpack.c.l.b16 %v4499
    %v4575 = vunpack.c.h.b16 %v4499
    %v4576 = vunpack.c.l.b16 %v4500
    %v4577 = vunpack.c.h.b16 %v4500
    %v4578 = vunpack.c.l.b16 %v4501
    %v4579 = vunpack.c.h.b16 %v4501
    %v4580 = vunpack.c.l.b16 %v4502
    %v4581 = vunpack.c.h.b16 %v4502
    %v4582 = vunpack.c.l.b16 %v4503
    %v4583 = vunpack.c.h.b16 %v4503
    %v4584 = vunpack.c.l.b16 %v4504
    %v4585 = vunpack.c.h.b16 %v4504
    %v4586 = vunpack.c.l.b16 %v4505
    %v4587 = vunpack.c.h.b16 %v4505
    %v4588 = vunpack.c.l.b16 %v4506
    %v4589 = vunpack.c.h.b16 %v4506
    %v4590 = vunpack.c.l.b16 %v4507
    %v4591 = vunpack.c.h.b16 %v4507
    %v4592 = vunpack.c.l.b16 %v4508
    %v4593 = vunpack.c.h.b16 %v4508
    %v4594 = vunpack.c.l.b16 %v4509
    %v4595 = vunpack.c.h.b16 %v4509
    %v4596 = vunpack.c.l.b16 %v4510
    %v4597 = vunpack.c.h.b16 %v4510
    %v4598 = vunpack.c.l.b16 %v4511
    %v4599 = vunpack.c.h.b16 %v4511
    %v4600 = vunpack.c.l.b16 %v4512
    %v4601 = vunpack.c.h.b16 %v4512
    %v4602 = vunpack.c.l.b16 %v4513
    %v4603 = vunpack.c.h.b16 %v4513
    %v4604 = vunpack.c.l.b16 %v4514
    %v4605 = vunpack.c.h.b16 %v4514
    %v4606 = vunpack.c.l.b16 %v4515
    %v4607 = vunpack.c.h.b16 %v4515
    %v4608 = vunpack.c.l.b16 %v4516
    %v4609 = vunpack.c.h.b16 %v4516
    %v4610 = vunpack.c.l.b16 %v4517
    %v4611 = vunpack.c.h.b16 %v4517
    %v4612 = vunpack.c.l.b16 %v4518
    %v4613 = vunpack.c.h.b16 %v4518
    %v4614 = vunpack.c.l.b16 %v4519
    %v4615 = vunpack.c.h.b16 %v4519
    %v4616 = vpack.c.b16 %v4556, %v4552
    %v4617 = vpack.c.b16 %v4557, %v4553
    %v4618 = vpack.c.b16 %v4558, %v4554
    %v4619 = vpack.c.b16 %v4559, %v4555
    %v4620 = vpack.c.b16 %v4564, %v4560
    %v4621 = vpack.c.b16 %v4565, %v4561
    %v4622 = vpack.c.b16 %v4566, %v4562
    %v4623 = vpack.c.b16 %v4567, %v4563
    %v4624 = vpack.c.b16 %v4572, %v4568
    %v4625 = vpack.c.b16 %v4573, %v4569
    %v4626 = vpack.c.b16 %v4574, %v4570
    %v4627 = vpack.c.b16 %v4575, %v4571
    %v4628 = vpack.c.b16 %v4580, %v4576
    %v4629 = vpack.c.b16 %v4581, %v4577
    %v4630 = vpack.c.b16 %v4582, %v4578
    %v4631 = vpack.c.b16 %v4583, %v4579
    %v4632 = vpack.c.b16 %v4588, %v4584
    %v4633 = vpack.c.b16 %v4589, %v4585
    %v4634 = vpack.c.b16 %v4590, %v4586
    %v4635 = vpack.c.b16 %v4591, %v4587
    %v4636 = vpack.c.b16 %v4596, %v4592
    %v4637 = vpack.c.b16 %v4597, %v4593
    %v4638 = vpack.c.b16 %v4598, %v4594
    %v4639 = vpack.c.b16 %v4599, %v4595
    %v4640 = vpack.c.b16 %v4604, %v4600
    %v4641 = vpack.c.b16 %v4605, %v4601
    %v4642 = vpack.c.b16 %v4606, %v4602
    %v4643 = vpack.c.b16 %v4607, %v4603
    %v4644 = vpack.c.b16 %v4612, %v4608
    %v4645 = vpack.c.b16 %v4613, %v4609
    %v4646 = vpack.c.b16 %v4614, %v4610
    %v4647 = vpack.c.b16 %v4615, %v4611
    %4680 = vmatprep.subr.bf16.mxu0 %v4617
    %4681 = vmatpush1.bf16.msra.mxu0 %v4616
    %4682 = vmatprep.subr.bf16.mxu0 %v4621
    %4683 = vmatpush1.bf16.msra.mxu0 %v4620
    %4684 = vmatprep.subr.bf16.mxu0 %v4625
    %4685 = vmatpush1.bf16.msra.mxu0 %v4624
    %4686 = vmatprep.subr.bf16.mxu0 %v4629
    %4687 = vmatpush1.bf16.msra.mxu0 %v4628
    %4688 = vmatprep.subr.bf16.mxu0 %v4633
    %4689 = vmatpush1.bf16.msra.mxu0 %v4632
    %4690 = vmatprep.subr.bf16.mxu0 %v4637
    %4691 = vmatpush1.bf16.msra.mxu0 %v4636
    %4692 = vmatprep.subr.bf16.mxu0 %v4641
    %4693 = vmatpush1.bf16.msra.mxu0 %v4640
    %4694 = vmatprep.subr.bf16.mxu0 %v4645
    %4695 = vmatpush1.bf16.msra.mxu0 %v4644
    %4696 = vmatprep.subr.bf16.mxu0 0
    %4697 = vmatpush1.bf16.msra.mxu0 0
    %4698 = vmatprep.subr.bf16.mxu0 0
    %4699 = vmatpush1.bf16.msra.mxu0 0
    %4700 = vmatprep.subr.bf16.mxu0 0
    %4701 = vmatpush1.bf16.msra.mxu0 0
    %4702 = vmatprep.subr.bf16.mxu0 0
    %4703 = vmatpush1.bf16.msra.mxu0 0
    %4704 = vmatprep.subr.bf16.mxu0 0
    %4705 = vmatpush1.bf16.msra.mxu0 0
    %4706 = vmatprep.subr.bf16.mxu0 0
    %4707 = vmatpush1.bf16.msra.mxu0 0
    %4708 = vmatprep.subr.bf16.mxu0 0
    %4709 = vmatpush1.bf16.msra.mxu0 0
    %4710 = vmatprep.subr.bf16.mxu0 0
    %4711 = vmatpush1.bf16.msra.mxu0 0
    %4712 = vmatprep.mubr.bf16.mxu0 0
    %4713 = vmatmul.mubr.bf16.gmra.mrb[0].mxu0 %v4487
    %v4714 = vpop.f32.mrb[0].mxu0
    %v4715 = vadd.f32 0.0, %v4714
    %v4716 = vpop.f32.mrb[0].mxu0
    %v4717 = vadd.f32 0.0, %v4716
    %v4718 = vpop.f32.mrb[0].mxu0
    %v4719 = vpop.f32.mrb[0].mxu0
    %4720 = vdwg.mxu0
    %4721 = vmatprep.subr.bf16.mxu0 %v4619
    %4722 = vmatpush1.bf16.msra.mxu0 %v4618
    %4723 = vmatprep.subr.bf16.mxu0 %v4623
    %4724 = vmatpush1.bf16.msra.mxu0 %v4622
    %4725 = vmatprep.subr.bf16.mxu0 %v4627
    %4726 = vmatpush1.bf16.msra.mxu0 %v4626
    %4727 = vmatprep.subr.bf16.mxu0 %v4631
    %4728 = vmatpush1.bf16.msra.mxu0 %v4630
    %4729 = vmatprep.subr.bf16.mxu0 %v4635
    %4730 = vmatpush1.bf16.msra.mxu0 %v4634
    %4731 = vmatprep.subr.bf16.mxu0 %v4639
    %4732 = vmatpush1.bf16.msra.mxu0 %v4638
    %4733 = vmatprep.subr.bf16.mxu0 %v4643
    %4734 = vmatpush1.bf16.msra.mxu0 %v4642
    %4735 = vmatprep.subr.bf16.mxu0 %v4647
    %4736 = vmatpush1.bf16.msra.mxu0 %v4646
    %4737 = vmatprep.subr.bf16.mxu0 0
    %4738 = vmatpush1.bf16.msra.mxu0 0
    %4739 = vmatprep.subr.bf16.mxu0 0
    %4740 = vmatpush1.bf16.msra.mxu0 0
    %4741 = vmatprep.subr.bf16.mxu0 0
    %4742 = vmatpush1.bf16.msra.mxu0 0
    %4743 = vmatprep.subr.bf16.mxu0 0
    %4744 = vmatpush1.bf16.msra.mxu0 0
    %4745 = vmatprep.subr.bf16.mxu0 0
    %4746 = vmatpush1.bf16.msra.mxu0 0
    %4747 = vmatprep.subr.bf16.mxu0 0
    %4748 = vmatpush1.bf16.msra.mxu0 0
    %4749 = vmatprep.subr.bf16.mxu0 0
    %4750 = vmatpush1.bf16.msra.mxu0 0
    %4751 = vmatprep.subr.bf16.mxu0 0
    %4752 = vmatpush1.bf16.msra.mxu0 0
    %4753 = vmatprep.mubr.bf16.mxu0 0
    %4754 = vmatmul.mubr.bf16.gmra.mrb[0].mxu0 %v4487
    %v4755 = vpop.f32.mrb[0].mxu0
    %v4756 = vadd.f32 0.0, %v4755
    %v4757 = vpop.f32.mrb[0].mxu0
    %v4758 = vadd.f32 0.0, %v4757
    %v4759 = vpop.f32.mrb[0].mxu0
    %v4760 = vpop.f32.mrb[0].mxu0
    %4761 = vdwg.mxu0
    %v4762 = vadd.f32 %v4483, %v4715
    %v4763 = vadd.f32 %v4484, %v4717
    %v4764 = vadd.f32 %v4485, %v4756
    %v4765 = vadd.f32 %v4486, %v4758
    %v4766 = vxor.u32 %v4762, 2147483648
    %v4767 = vxor.u32 %v4763, 2147483648
    %v4768 = vxor.u32 %v4764, 2147483648
    %v4769 = vmul.f32 %v4766, 1.442695
    %v4770 = vpow.pop %v4769
    %v4771 = vmul.f32 %v4767, 1.442695
    %v4772 = vpow.pop %v4771
    %v4773 = vmul.f32 %v4768, 1.442695
    %v4774 = vpow.pop %v4773
    %v4775 = vadd.f32 %v4770, 1.0
    %v4776 = vadd.f32 %v4772, 1.0
    %v4777 = vadd.f32 %v4774, 1.0
    %v4778 = vrcp.pop %v4775
    %v4779 = vmul.f32 1.0, %v4778
    %v4780 = vrcp.pop %v4776
    %v4781 = vmul.f32 1.0, %v4780
    %v4782 = vrcp.pop %v4777
    %v4783 = vmul.f32 1.0, %v4782
    %v4784 = vtanh.pop %v4765
    %v4785 = vmul.f32 %v4781, %v4479
    %v4786 = vmul.f32 %v4779, %v4784
    %v4787 = vadd.f32 %v4785, %v4786
    %v4788 = vtanh.pop %v4787
    %v4789 = vmul.f32 %v4783, %v4788
    %4790 = vst [vmem:[%s1910] sm:$0xff] %v4789
    %v4791 = vld [vmem:[%s1914] sm:$0xff]
    %v4792 = vld [vmem:[%s1914 + $0x8] sm:$0xff]
    %v4793 = vld [vmem:[%s1914 + $0x10] sm:$0xff]
    %v4794 = vld [vmem:[%s1914 + $0x18] sm:$0xff]
    %v4795 = vpack.c.bf16 %v4789, %v4789
    %v4796 = vld [vmem:[#allocation6] sm:$0xff]
    %v4797 = vld [vmem:[#allocation6 + $0x8] sm:$0xff]
    %v4798 = vld [vmem:[#allocation6 + $0x10] sm:$0xff]
    %v4799 = vld [vmem:[#allocation6 + $0x18] sm:$0xff]
    %v4800 = vld [vmem:[#allocation6 + $0x20] sm:$0xff]
    %v4801 = vld [vmem:[#allocation6 + $0x28] sm:$0xff]
    %v4802 = vld [vmem:[#allocation6 + $0x30] sm:$0xff]
    %v4803 = vld [vmem:[#allocation6 + $0x38] sm:$0xff]
    %v4804 = vld [vmem:[#allocation6 + $0x40] sm:$0xff]
    %v4805 = vld [vmem:[#allocation6 + $0x48] sm:$0xff]
    %v4806 = vld [vmem:[#allocation6 + $0x50] sm:$0xff]
    %v4807 = vld [vmem:[#allocation6 + $0x58] sm:$0xff]
    %v4808 = vld [vmem:[#allocation6 + $0x60] sm:$0xff]
    %v4809 = vld [vmem:[#allocation6 + $0x68] sm:$0xff]
    %v4810 = vld [vmem:[#allocation6 + $0x70] sm:$0xff]
    %v4811 = vld [vmem:[#allocation6 + $0x78] sm:$0xff]
    %v4812 = vld [vmem:[#allocation6 + $0x80] sm:$0xff]
    %v4813 = vld [vmem:[#allocation6 + $0x88] sm:$0xff]
    %v4814 = vld [vmem:[#allocation6 + $0x90] sm:$0xff]
    %v4815 = vld [vmem:[#allocation6 + $0x98] sm:$0xff]
    %v4816 = vld [vmem:[#allocation6 + $0xa0] sm:$0xff]
    %v4817 = vld [vmem:[#allocation6 + $0xa8] sm:$0xff]
    %v4818 = vld [vmem:[#allocation6 + $0xb0] sm:$0xff]
    %v4819 = vld [vmem:[#allocation6 + $0xb8] sm:$0xff]
    %v4820 = vld [vmem:[#allocation6 + $0xc0] sm:$0xff]
    %v4821 = vld [vmem:[#allocation6 + $0xc8] sm:$0xff]
    %v4822 = vld [vmem:[#allocation6 + $0xd0] sm:$0xff]
    %v4823 = vld [vmem:[#allocation6 + $0xd8] sm:$0xff]
    %v4824 = vld [vmem:[#allocation6 + $0xe0] sm:$0xff]
    %v4825 = vld [vmem:[#allocation6 + $0xe8] sm:$0xff]
    %v4826 = vld [vmem:[#allocation6 + $0xf0] sm:$0xff]
    %v4827 = vld [vmem:[#allocation6 + $0xf8] sm:$0xff]
    %v4860 = vunpack.c.l.b16 %v4796
    %v4861 = vunpack.c.h.b16 %v4796
    %v4862 = vunpack.c.l.b16 %v4797
    %v4863 = vunpack.c.h.b16 %v4797
    %v4864 = vunpack.c.l.b16 %v4798
    %v4865 = vunpack.c.h.b16 %v4798
    %v4866 = vunpack.c.l.b16 %v4799
    %v4867 = vunpack.c.h.b16 %v4799
    %v4868 = vunpack.c.l.b16 %v4800
    %v4869 = vunpack.c.h.b16 %v4800
    %v4870 = vunpack.c.l.b16 %v4801
    %v4871 = vunpack.c.h.b16 %v4801
    %v4872 = vunpack.c.l.b16 %v4802
    %v4873 = vunpack.c.h.b16 %v4802
    %v4874 = vunpack.c.l.b16 %v4803
    %v4875 = vunpack.c.h.b16 %v4803
    %v4876 = vunpack.c.l.b16 %v4804
    %v4877 = vunpack.c.h.b16 %v4804
    %v4878 = vunpack.c.l.b16 %v4805
    %v4879 = vunpack.c.h.b16 %v4805
    %v4880 = vunpack.c.l.b16 %v4806
    %v4881 = vunpack.c.h.b16 %v4806
    %v4882 = vunpack.c.l.b16 %v4807
    %v4883 = vunpack.c.h.b16 %v4807
    %v4884 = vunpack.c.l.b16 %v4808
    %v4885 = vunpack.c.h.b16 %v4808
    %v4886 = vunpack.c.l.b16 %v4809
    %v4887 = vunpack.c.h.b16 %v4809
    %v4888 = vunpack.c.l.b16 %v4810
    %v4889 = vunpack.c.h.b16 %v4810
    %v4890 = vunpack.c.l.b16 %v4811
    %v4891 = vunpack.c.h.b16 %v4811
    %v4892 = vunpack.c.l.b16 %v4812
    %v4893 = vunpack.c.h.b16 %v4812
    %v4894 = vunpack.c.l.b16 %v4813
    %v4895 = vunpack.c.h.b16 %v4813
    %v4896 = vunpack.c.l.b16 %v4814
    %v4897 = vunpack.c.h.b16 %v4814
    %v4898 = vunpack.c.l.b16 %v4815
    %v4899 = vunpack.c.h.b16 %v4815
    %v4900 = vunpack.c.l.b16 %v4816
    %v4901 = vunpack.c.h.b16 %v4816
    %v4902 = vunpack.c.l.b16 %v4817
    %v4903 = vunpack.c.h.b16 %v4817
    %v4904 = vunpack.c.l.b16 %v4818
    %v4905 = vunpack.c.h.b16 %v4818
    %v4906 = vunpack.c.l.b16 %v4819
    %v4907 = vunpack.c.h.b16 %v4819
    %v4908 = vunpack.c.l.b16 %v4820
    %v4909 = vunpack.c.h.b16 %v4820
    %v4910 = vunpack.c.l.b16 %v4821
    %v4911 = vunpack.c.h.b16 %v4821
    %v4912 = vunpack.c.l.b16 %v4822
    %v4913 = vunpack.c.h.b16 %v4822
    %v4914 = vunpack.c.l.b16 %v4823
    %v4915 = vunpack.c.h.b16 %v4823
    %v4916 = vunpack.c.l.b16 %v4824
    %v4917 = vunpack.c.h.b16 %v4824
    %v4918 = vunpack.c.l.b16 %v4825
    %v4919 = vunpack.c.h.b16 %v4825
    %v4920 = vunpack.c.l.b16 %v4826
    %v4921 = vunpack.c.h.b16 %v4826
    %v4922 = vunpack.c.l.b16 %v4827
    %v4923 = vunpack.c.h.b16 %v4827
    %v4924 = vpack.c.b16 %v4864, %v4860
    %v4925 = vpack.c.b16 %v4865, %v4861
    %v4926 = vpack.c.b16 %v4866, %v4862
    %v4927 = vpack.c.b16 %v4867, %v4863
    %v4928 = vpack.c.b16 %v4872, %v4868
    %v4929 = vpack.c.b16 %v4873, %v4869
    %v4930 = vpack.c.b16 %v4874, %v4870
    %v4931 = vpack.c.b16 %v4875, %v4871
    %v4932 = vpack.c.b16 %v4880, %v4876
    %v4933 = vpack.c.b16 %v4881, %v4877
    %v4934 = vpack.c.b16 %v4882, %v4878
    %v4935 = vpack.c.b16 %v4883, %v4879
    %v4936 = vpack.c.b16 %v4888, %v4884
    %v4937 = vpack.c.b16 %v4889, %v4885
    %v4938 = vpack.c.b16 %v4890, %v4886
    %v4939 = vpack.c.b16 %v4891, %v4887
    %v4940 = vpack.c.b16 %v4896, %v4892
    %v4941 = vpack.c.b16 %v4897, %v4893
    %v4942 = vpack.c.b16 %v4898, %v4894
    %v4943 = vpack.c.b16 %v4899, %v4895
    %v4944 = vpack.c.b16 %v4904, %v4900
    %v4945 = vpack.c.b16 %v4905, %v4901
    %v4946 = vpack.c.b16 %v4906, %v4902
    %v4947 = vpack.c.b16 %v4907, %v4903
    %v4948 = vpack.c.b16 %v4912, %v4908
    %v4949 = vpack.c.b16 %v4913, %v4909
    %v4950 = vpack.c.b16 %v4914, %v4910
    %v4951 = vpack.c.b16 %v4915, %v4911
    %v4952 = vpack.c.b16 %v4920, %v4916
    %v4953 = vpack.c.b16 %v4921, %v4917
    %v4954 = vpack.c.b16 %v4922, %v4918
    %v4955 = vpack.c.b16 %v4923, %v4919
    %4988 = vmatprep.subr.bf16.mxu0 %v4925
    %4989 = vmatpush1.bf16.msra.mxu0 %v4924
    %4990 = vmatprep.subr.bf16.mxu0 %v4929
    %4991 = vmatpush1.bf16.msra.mxu0 %v4928
    %4992 = vmatprep.subr.bf16.mxu0 %v4933
    %4993 = vmatpush1.bf16.msra.mxu0 %v4932
    %4994 = vmatprep.subr.bf16.mxu0 %v4937
    %4995 = vmatpush1.bf16.msra.mxu0 %v4936
    %4996 = vmatprep.subr.bf16.mxu0 %v4941
    %4997 = vmatpush1.bf16.msra.mxu0 %v4940
    %4998 = vmatprep.subr.bf16.mxu0 %v4945
    %4999 = vmatpush1.bf16.msra.mxu0 %v4944
    %5000 = vmatprep.subr.bf16.mxu0 %v4949
    %5001 = vmatpush1.bf16.msra.mxu0 %v4948
    %5002 = vmatprep.subr.bf16.mxu0 %v4953
    %5003 = vmatpush1.bf16.msra.mxu0 %v4952
    %5004 = vmatprep.subr.bf16.mxu0 0
    %5005 = vmatpush1.bf16.msra.mxu0 0
    %5006 = vmatprep.subr.bf16.mxu0 0
    %5007 = vmatpush1.bf16.msra.mxu0 0
    %5008 = vmatprep.subr.bf16.mxu0 0
    %5009 = vmatpush1.bf16.msra.mxu0 0
    %5010 = vmatprep.subr.bf16.mxu0 0
    %5011 = vmatpush1.bf16.msra.mxu0 0
    %5012 = vmatprep.subr.bf16.mxu0 0
    %5013 = vmatpush1.bf16.msra.mxu0 0
    %5014 = vmatprep.subr.bf16.mxu0 0
    %5015 = vmatpush1.bf16.msra.mxu0 0
    %5016 = vmatprep.subr.bf16.mxu0 0
    %5017 = vmatpush1.bf16.msra.mxu0 0
    %5018 = vmatprep.subr.bf16.mxu0 0
    %5019 = vmatpush1.bf16.msra.mxu0 0
    %5020 = vmatprep.mubr.bf16.mxu0 0
    %5021 = vmatmul.mubr.bf16.gmra.mrb[0].mxu0 %v4795
    %v5022 = vpop.f32.mrb[0].mxu0
    %v5023 = vadd.f32 0.0, %v5022
    %v5024 = vpop.f32.mrb[0].mxu0
    %v5025 = vadd.f32 0.0, %v5024
    %v5026 = vpop.f32.mrb[0].mxu0
    %v5027 = vpop.f32.mrb[0].mxu0
    %5028 = vdwg.mxu0
    %5029 = vmatprep.subr.bf16.mxu0 %v4927
    %5030 = vmatpush1.bf16.msra.mxu0 %v4926
    %5031 = vmatprep.subr.bf16.mxu0 %v4931
    %5032 = vmatpush1.bf16.msra.mxu0 %v4930
    %5033 = vmatprep.subr.bf16.mxu0 %v4935
    %5034 = vmatpush1.bf16.msra.mxu0 %v4934
    %5035 = vmatprep.subr.bf16.mxu0 %v4939
    %5036 = vmatpush1.bf16.msra.mxu0 %v4938
    %5037 = vmatprep.subr.bf16.mxu0 %v4943
    %5038 = vmatpush1.bf16.msra.mxu0 %v4942
    %5039 = vmatprep.subr.bf16.mxu0 %v4947
    %5040 = vmatpush1.bf16.msra.mxu0 %v4946
    %5041 = vmatprep.subr.bf16.mxu0 %v4951
    %5042 = vmatpush1.bf16.msra.mxu0 %v4950
    %5043 = vmatprep.subr.bf16.mxu0 %v4955
    %5044 = vmatpush1.bf16.msra.mxu0 %v4954
    %5045 = vmatprep.subr.bf16.mxu0 0
    %5046 = vmatpush1.bf16.msra.mxu0 0
    %5047 = vmatprep.subr.bf16.mxu0 0
    %5048 = vmatpush1.bf16.msra.mxu0 0
    %5049 = vmatprep.subr.bf16.mxu0 0
    %5050 = vmatpush1.bf16.msra.mxu0 0
    %5051 = vmatprep.subr.bf16.mxu0 0
    %5052 = vmatpush1.bf16.msra.mxu0 0
    %5053 = vmatprep.subr.bf16.mxu0 0
    %5054 = vmatpush1.bf16.msra.mxu0 0
    %5055 = vmatprep.subr.bf16.mxu0 0
    %5056 = vmatpush1.bf16.msra.mxu0 0
    %5057 = vmatprep.subr.bf16.mxu0 0
    %5058 = vmatpush1.bf16.msra.mxu0 0
    %5059 = vmatprep.subr.bf16.mxu0 0
    %5060 = vmatpush1.bf16.msra.mxu0 0
    %5061 = vmatprep.mubr.bf16.mxu0 0
    %5062 = vmatmul.mubr.bf16.gmra.mrb[0].mxu0 %v4795
    %v5063 = vpop.f32.mrb[0].mxu0
    %v5064 = vadd.f32 0.0, %v5063
    %v5065 = vpop.f32.mrb[0].mxu0
    %v5066 = vadd.f32 0.0, %v5065
    %v5067 = vpop.f32.mrb[0].mxu0
    %v5068 = vpop.f32.mrb[0].mxu0
    %5069 = vdwg.mxu0
    %v5070 = vadd.f32 %v4791, %v5023
    %v5071 = vadd.f32 %v4792, %v5025
    %v5072 = vadd.f32 %v4793, %v5064
    %v5073 = vadd.f32 %v4794, %v5066
    %v5074 = vxor.u32 %v5070, 2147483648
    %v5075 = vxor.u32 %v5071, 2147483648
    %v5076 = vxor.u32 %v5072, 2147483648
    %v5077 = vmul.f32 %v5074, 1.442695
    %v5078 = vpow.pop %v5077
    %v5079 = vmul.f32 %v5075, 1.442695
    %v5080 = vpow.pop %v5079
    %v5081 = vmul.f32 %v5076, 1.442695
    %v5082 = vpow.pop %v5081
    %v5083 = vadd.f32 %v5078, 1.0
    %v5084 = vadd.f32 %v5080, 1.0
    %v5085 = vadd.f32 %v5082, 1.0
    %v5086 = vrcp.pop %v5083
    %v5087 = vmul.f32 1.0, %v5086
    %v5088 = vrcp.pop %v5084
    %v5089 = vmul.f32 1.0, %v5088
    %v5090 = vrcp.pop %v5085
    %v5091 = vmul.f32 1.0, %v5090
    %v5092 = vtanh.pop %v5073
    %v5093 = vmul.f32 %v5089, %v4787
    %v5094 = vmul.f32 %v5087, %v5092
    %v5095 = vadd.f32 %v5093, %v5094
    %v5096 = vtanh.pop %v5095
    %v5097 = vmul.f32 %v5091, %v5096
    %5098 = vst [vmem:[%s2222] sm:$0xff] %v5097
    %v5099 = vld [vmem:[%s2226] sm:$0xff]
    %v5100 = vld [vmem:[%s2226 + $0x8] sm:$0xff]
    %v5101 = vld [vmem:[%s2226 + $0x10] sm:$0xff]
    %v5102 = vld [vmem:[%s2226 + $0x18] sm:$0xff]
    %v5103 = vpack.c.bf16 %v5097, %v5097
    %v5104 = vld [vmem:[#allocation6] sm:$0xff]
    %v5105 = vld [vmem:[#allocation6 + $0x8] sm:$0xff]
    %v5106 = vld [vmem:[#allocation6 + $0x10] sm:$0xff]
    %v5107 = vld [vmem:[#allocation6 + $0x18] sm:$0xff]
    %v5108 = vld [vmem:[#allocation6 + $0x20] sm:$0xff]
    %v5109 = vld [vmem:[#allocation6 + $0x28] sm:$0xff]
    %v5110 = vld [vmem:[#allocation6 + $0x30] sm:$0xff]
    %v5111 = vld [vmem:[#allocation6 + $0x38] sm:$0xff]
    %v5112 = vld [vmem:[#allocation6 + $0x40] sm:$0xff]
    %v5113 = vld [vmem:[#allocation6 + $0x48] sm:$0xff]
    %v5114 = vld [vmem:[#allocation6 + $0x50] sm:$0xff]
    %v5115 = vld [vmem:[#allocation6 + $0x58] sm:$0xff]
    %v5116 = vld [vmem:[#allocation6 + $0x60] sm:$0xff]
    %v5117 = vld [vmem:[#allocation6 + $0x68] sm:$0xff]
    %v5118 = vld [vmem:[#allocation6 + $0x70] sm:$0xff]
    %v5119 = vld [vmem:[#allocation6 + $0x78] sm:$0xff]
    %v5120 = vld [vmem:[#allocation6 + $0x80] sm:$0xff]
    %v5121 = vld [vmem:[#allocation6 + $0x88] sm:$0xff]
    %v5122 = vld [vmem:[#allocation6 + $0x90] sm:$0xff]
    %v5123 = vld [vmem:[#allocation6 + $0x98] sm:$0xff]
    %v5124 = vld [vmem:[#allocation6 + $0xa0] sm:$0xff]
    %v5125 = vld [vmem:[#allocation6 + $0xa8] sm:$0xff]
    %v5126 = vld [vmem:[#allocation6 + $0xb0] sm:$0xff]
    %v5127 = vld [vmem:[#allocation6 + $0xb8] sm:$0xff]
    %v5128 = vld [vmem:[#allocation6 + $0xc0] sm:$0xff]
    %v5129 = vld [vmem:[#allocation6 + $0xc8] sm:$0xff]
    %v5130 = vld [vmem:[#allocation6 + $0xd0] sm:$0xff]
    %v5131 = vld [vmem:[#allocation6 + $0xd8] sm:$0xff]
    %v5132 = vld [vmem:[#allocation6 + $0xe0] sm:$0xff]
    %v5133 = vld [vmem:[#allocation6 + $0xe8] sm:$0xff]
    %v5134 = vld [vmem:[#allocation6 + $0xf0] sm:$0xff]
    %v5135 = vld [vmem:[#allocation6 + $0xf8] sm:$0xff]
    %v5168 = vunpack.c.l.b16 %v5104
    %v5169 = vunpack.c.h.b16 %v5104
    %v5170 = vunpack.c.l.b16 %v5105
    %v5171 = vunpack.c.h.b16 %v5105
    %v5172 = vunpack.c.l.b16 %v5106
    %v5173 = vunpack.c.h.b16 %v5106
    %v5174 = vunpack.c.l.b16 %v5107
    %v5175 = vunpack.c.h.b16 %v5107
    %v5176 = vunpack.c.l.b16 %v5108
    %v5177 = vunpack.c.h.b16 %v5108
    %v5178 = vunpack.c.l.b16 %v5109
    %v5179 = vunpack.c.h.b16 %v5109
    %v5180 = vunpack.c.l.b16 %v5110
    %v5181 = vunpack.c.h.b16 %v5110
    %v5182 = vunpack.c.l.b16 %v5111
    %v5183 = vunpack.c.h.b16 %v5111
    %v5184 = vunpack.c.l.b16 %v5112
    %v5185 = vunpack.c.h.b16 %v5112
    %v5186 = vunpack.c.l.b16 %v5113
    %v5187 = vunpack.c.h.b16 %v5113
    %v5188 = vunpack.c.l.b16 %v5114
    %v5189 = vunpack.c.h.b16 %v5114
    %v5190 = vunpack.c.l.b16 %v5115
    %v5191 = vunpack.c.h.b16 %v5115
    %v5192 = vunpack.c.l.b16 %v5116
    %v5193 = vunpack.c.h.b16 %v5116
    %v5194 = vunpack.c.l.b16 %v5117
    %v5195 = vunpack.c.h.b16 %v5117
    %v5196 = vunpack.c.l.b16 %v5118
    %v5197 = vunpack.c.h.b16 %v5118
    %v5198 = vunpack.c.l.b16 %v5119
    %v5199 = vunpack.c.h.b16 %v5119
    %v5200 = vunpack.c.l.b16 %v5120
    %v5201 = vunpack.c.h.b16 %v5120
    %v5202 = vunpack.c.l.b16 %v5121
    %v5203 = vunpack.c.h.b16 %v5121
    %v5204 = vunpack.c.l.b16 %v5122
    %v5205 = vunpack.c.h.b16 %v5122
    %v5206 = vunpack.c.l.b16 %v5123
    %v5207 = vunpack.c.h.b16 %v5123
    %v5208 = vunpack.c.l.b16 %v5124
    %v5209 = vunpack.c.h.b16 %v5124
    %v5210 = vunpack.c.l.b16 %v5125
    %v5211 = vunpack.c.h.b16 %v5125
    %v5212 = vunpack.c.l.b16 %v5126
    %v5213 = vunpack.c.h.b16 %v5126
    %v5214 = vunpack.c.l.b16 %v5127
    %v5215 = vunpack.c.h.b16 %v5127
    %v5216 = vunpack.c.l.b16 %v5128
    %v5217 = vunpack.c.h.b16 %v5128
    %v5218 = vunpack.c.l.b16 %v5129
    %v5219 = vunpack.c.h.b16 %v5129
    %v5220 = vunpack.c.l.b16 %v5130
    %v5221 = vunpack.c.h.b16 %v5130
    %v5222 = vunpack.c.l.b16 %v5131
    %v5223 = vunpack.c.h.b16 %v5131
    %v5224 = vunpack.c.l.b16 %v5132
    %v5225 = vunpack.c.h.b16 %v5132
    %v5226 = vunpack.c.l.b16 %v5133
    %v5227 = vunpack.c.h.b16 %v5133
    %v5228 = vunpack.c.l.b16 %v5134
    %v5229 = vunpack.c.h.b16 %v5134
    %v5230 = vunpack.c.l.b16 %v5135
    %v5231 = vunpack.c.h.b16 %v5135
    %v5232 = vpack.c.b16 %v5172, %v5168
    %v5233 = vpack.c.b16 %v5173, %v5169
    %v5234 = vpack.c.b16 %v5174, %v5170
    %v5235 = vpack.c.b16 %v5175, %v5171
    %v5236 = vpack.c.b16 %v5180, %v5176
    %v5237 = vpack.c.b16 %v5181, %v5177
    %v5238 = vpack.c.b16 %v5182, %v5178
    %v5239 = vpack.c.b16 %v5183, %v5179
    %v5240 = vpack.c.b16 %v5188, %v5184
    %v5241 = vpack.c.b16 %v5189, %v5185
    %v5242 = vpack.c.b16 %v5190, %v5186
    %v5243 = vpack.c.b16 %v5191, %v5187
    %v5244 = vpack.c.b16 %v5196, %v5192
    %v5245 = vpack.c.b16 %v5197, %v5193
    %v5246 = vpack.c.b16 %v5198, %v5194
    %v5247 = vpack.c.b16 %v5199, %v5195
    %v5248 = vpack.c.b16 %v5204, %v5200
    %v5249 = vpack.c.b16 %v5205, %v5201
    %v5250 = vpack.c.b16 %v5206, %v5202
    %v5251 = vpack.c.b16 %v5207, %v5203
    %v5252 = vpack.c.b16 %v5212, %v5208
    %v5253 = vpack.c.b16 %v5213, %v5209
    %v5254 = vpack.c.b16 %v5214, %v5210
    %v5255 = vpack.c.b16 %v5215, %v5211
    %v5256 = vpack.c.b16 %v5220, %v5216
    %v5257 = vpack.c.b16 %v5221, %v5217
    %v5258 = vpack.c.b16 %v5222, %v5218
    %v5259 = vpack.c.b16 %v5223, %v5219
    %v5260 = vpack.c.b16 %v5228, %v5224
    %v5261 = vpack.c.b16 %v5229, %v5225
    %v5262 = vpack.c.b16 %v5230, %v5226
    %v5263 = vpack.c.b16 %v5231, %v5227
    %5296 = vmatprep.subr.bf16.mxu0 %v5233
    %5297 = vmatpush1.bf16.msra.mxu0 %v5232
    %5298 = vmatprep.subr.bf16.mxu0 %v5237
    %5299 = vmatpush1.bf16.msra.mxu0 %v5236
    %5300 = vmatprep.subr.bf16.mxu0 %v5241
    %5301 = vmatpush1.bf16.msra.mxu0 %v5240
    %5302 = vmatprep.subr.bf16.mxu0 %v5245
    %5303 = vmatpush1.bf16.msra.mxu0 %v5244
    %5304 = vmatprep.subr.bf16.mxu0 %v5249
    %5305 = vmatpush1.bf16.msra.mxu0 %v5248
    %5306 = vmatprep.subr.bf16.mxu0 %v5253
    %5307 = vmatpush1.bf16.msra.mxu0 %v5252
    %5308 = vmatprep.subr.bf16.mxu0 %v5257
    %5309 = vmatpush1.bf16.msra.mxu0 %v5256
    %5310 = vmatprep.subr.bf16.mxu0 %v5261
    %5311 = vmatpush1.bf16.msra.mxu0 %v5260
    %5312 = vmatprep.subr.bf16.mxu0 0
    %5313 = vmatpush1.bf16.msra.mxu0 0
    %5314 = vmatprep.subr.bf16.mxu0 0
    %5315 = vmatpush1.bf16.msra.mxu0 0
    %5316 = vmatprep.subr.bf16.mxu0 0
    %5317 = vmatpush1.bf16.msra.mxu0 0
    %5318 = vmatprep.subr.bf16.mxu0 0
    %5319 = vmatpush1.bf16.msra.mxu0 0
    %5320 = vmatprep.subr.bf16.mxu0 0
    %5321 = vmatpush1.bf16.msra.mxu0 0
    %5322 = vmatprep.subr.bf16.mxu0 0
    %5323 = vmatpush1.bf16.msra.mxu0 0
    %5324 = vmatprep.subr.bf16.mxu0 0
    %5325 = vmatpush1.bf16.msra.mxu0 0
    %5326 = vmatprep.subr.bf16.mxu0 0
    %5327 = vmatpush1.bf16.msra.mxu0 0
    %5328 = vmatprep.mubr.bf16.mxu0 0
    %5329 = vmatmul.mubr.bf16.gmra.mrb[0].mxu0 %v5103
    %v5330 = vpop.f32.mrb[0].mxu0
    %v5331 = vadd.f32 0.0, %v5330
    %v5332 = vpop.f32.mrb[0].mxu0
    %v5333 = vadd.f32 0.0, %v5332
    %v5334 = vpop.f32.mrb[0].mxu0
    %v5335 = vpop.f32.mrb[0].mxu0
    %5336 = vdwg.mxu0
    %5337 = vmatprep.subr.bf16.mxu0 %v5235
    %5338 = vmatpush1.bf16.msra.mxu0 %v5234
    %5339 = vmatprep.subr.bf16.mxu0 %v5239
    %5340 = vmatpush1.bf16.msra.mxu0 %v5238
    %5341 = vmatprep.subr.bf16.mxu0 %v5243
    %5342 = vmatpush1.bf16.msra.mxu0 %v5242
    %5343 = vmatprep.subr.bf16.mxu0 %v5247
    %5344 = vmatpush1.bf16.msra.mxu0 %v5246
    %5345 = vmatprep.subr.bf16.mxu0 %v5251
    %5346 = vmatpush1.bf16.msra.mxu0 %v5250
    %5347 = vmatprep.subr.bf16.mxu0 %v5255
    %5348 = vmatpush1.bf16.msra.mxu0 %v5254
    %5349 = vmatprep.subr.bf16.mxu0 %v5259
    %5350 = vmatpush1.bf16.msra.mxu0 %v5258
    %5351 = vmatprep.subr.bf16.mxu0 %v5263
    %5352 = vmatpush1.bf16.msra.mxu0 %v5262
    %5353 = vmatprep.subr.bf16.mxu0 0
    %5354 = vmatpush1.bf16.msra.mxu0 0
    %5355 = vmatprep.subr.bf16.mxu0 0
    %5356 = vmatpush1.bf16.msra.mxu0 0
    %5357 = vmatprep.subr.bf16.mxu0 0
    %5358 = vmatpush1.bf16.msra.mxu0 0
    %5359 = vmatprep.subr.bf16.mxu0 0
    %5360 = vmatpush1.bf16.msra.mxu0 0
    %5361 = vmatprep.subr.bf16.mxu0 0
    %5362 = vmatpush1.bf16.msra.mxu0 0
    %5363 = vmatprep.subr.bf16.mxu0 0
    %5364 = vmatpush1.bf16.msra.mxu0 0
    %5365 = vmatprep.subr.bf16.mxu0 0
    %5366 = vmatpush1.bf16.msra.mxu0 0
    %5367 = vmatprep.subr.bf16.mxu0 0
    %5368 = vmatpush1.bf16.msra.mxu0 0
    %5369 = vmatprep.mubr.bf16.mxu0 0
    %5370 = vmatmul.mubr.bf16.gmra.mrb[0].mxu0 %v5103
    %v5371 = vpop.f32.mrb[0].mxu0
    %v5372 = vadd.f32 0.0, %v5371
    %v5373 = vpop.f32.mrb[0].mxu0
    %v5374 = vadd.f32 0.0, %v5373
    %v5375 = vpop.f32.mrb[0].mxu0
    %v5376 = vpop.f32.mrb[0].mxu0
    %5377 = vdwg.mxu0
    %v5378 = vadd.f32 %v5099, %v5331
    %v5379 = vadd.f32 %v5100, %v5333
    %v5380 = vadd.f32 %v5101, %v5372
    %v5381 = vadd.f32 %v5102, %v5374
    %v5382 = vxor.u32 %v5378, 2147483648
    %v5383 = vxor.u32 %v5379, 2147483648
    %v5384 = vxor.u32 %v5380, 2147483648
    %v5385 = vmul.f32 %v5382, 1.442695
    %v5386 = vpow.pop %v5385
    %v5387 = vmul.f32 %v5383, 1.442695
    %v5388 = vpow.pop %v5387
    %v5389 = vmul.f32 %v5384, 1.442695
    %v5390 = vpow.pop %v5389
    %v5391 = vadd.f32 %v5386, 1.0
    %v5392 = vadd.f32 %v5388, 1.0
    %v5393 = vadd.f32 %v5390, 1.0
    %v5394 = vrcp.pop %v5391
    %v5395 = vmul.f32 1.0, %v5394
    %v5396 = vrcp.pop %v5392
    %v5397 = vmul.f32 1.0, %v5396
    %v5398 = vrcp.pop %v5393
    %v5399 = vmul.f32 1.0, %v5398
    %v5400 = vtanh.pop %v5381
    %v5401 = vmul.f32 %v5397, %v5095
    %v5402 = vmul.f32 %v5395, %v5400
    %v5403 = vadd.f32 %v5401, %v5402
    %v5404 = vtanh.pop %v5403
    %v5405 = vmul.f32 %v5399, %v5404
    %5406 = vst [vmem:[%s2534] sm:$0xff] %v5405
    %v5407 = vld [vmem:[%s2538] sm:$0xff]
    %v5408 = vld [vmem:[%s2538 + $0x8] sm:$0xff]
    %v5409 = vld [vmem:[%s2538 + $0x10] sm:$0xff]
    %v5410 = vld [vmem:[%s2538 + $0x18] sm:$0xff]
    %v5411 = vpack.c.bf16 %v5405, %v5405
    %v5412 = vld [vmem:[#allocation6] sm:$0xff]
    %v5413 = vld [vmem:[#allocation6 + $0x8] sm:$0xff]
    %v5414 = vld [vmem:[#allocation6 + $0x10] sm:$0xff]
    %v5415 = vld [vmem:[#allocation6 + $0x18] sm:$0xff]
    %v5416 = vld [vmem:[#allocation6 + $0x20] sm:$0xff]
    %v5417 = vld [vmem:[#allocation6 + $0x28] sm:$0xff]
    %v5418 = vld [vmem:[#allocation6 + $0x30] sm:$0xff]
    %v5419 = vld [vmem:[#allocation6 + $0x38] sm:$0xff]
    %v5420 = vld [vmem:[#allocation6 + $0x40] sm:$0xff]
    %v5421 = vld [vmem:[#allocation6 + $0x48] sm:$0xff]
    %v5422 = vld [vmem:[#allocation6 + $0x50] sm:$0xff]
    %v5423 = vld [vmem:[#allocation6 + $0x58] sm:$0xff]
    %v5424 = vld [vmem:[#allocation6 + $0x60] sm:$0xff]
    %v5425 = vld [vmem:[#allocation6 + $0x68] sm:$0xff]
    %v5426 = vld [vmem:[#allocation6 + $0x70] sm:$0xff]
    %v5427 = vld [vmem:[#allocation6 + $0x78] sm:$0xff]
    %v5428 = vld [vmem:[#allocation6 + $0x80] sm:$0xff]
    %v5429 = vld [vmem:[#allocation6 + $0x88] sm:$0xff]
    %v5430 = vld [vmem:[#allocation6 + $0x90] sm:$0xff]
    %v5431 = vld [vmem:[#allocation6 + $0x98] sm:$0xff]
    %v5432 = vld [vmem:[#allocation6 + $0xa0] sm:$0xff]
    %v5433 = vld [vmem:[#allocation6 + $0xa8] sm:$0xff]
    %v5434 = vld [vmem:[#allocation6 + $0xb0] sm:$0xff]
    %v5435 = vld [vmem:[#allocation6 + $0xb8] sm:$0xff]
    %v5436 = vld [vmem:[#allocation6 + $0xc0] sm:$0xff]
    %v5437 = vld [vmem:[#allocation6 + $0xc8] sm:$0xff]
    %v5438 = vld [vmem:[#allocation6 + $0xd0] sm:$0xff]
    %v5439 = vld [vmem:[#allocation6 + $0xd8] sm:$0xff]
    %v5440 = vld [vmem:[#allocation6 + $0xe0] sm:$0xff]
    %v5441 = vld [vmem:[#allocation6 + $0xe8] sm:$0xff]
    %v5442 = vld [vmem:[#allocation6 + $0xf0] sm:$0xff]
    %v5443 = vld [vmem:[#allocation6 + $0xf8] sm:$0xff]
    %v5476 = vunpack.c.l.b16 %v5412
    %v5477 = vunpack.c.h.b16 %v5412
    %v5478 = vunpack.c.l.b16 %v5413
    %v5479 = vunpack.c.h.b16 %v5413
    %v5480 = vunpack.c.l.b16 %v5414
    %v5481 = vunpack.c.h.b16 %v5414
    %v5482 = vunpack.c.l.b16 %v5415
    %v5483 = vunpack.c.h.b16 %v5415
    %v5484 = vunpack.c.l.b16 %v5416
    %v5485 = vunpack.c.h.b16 %v5416
    %v5486 = vunpack.c.l.b16 %v5417
    %v5487 = vunpack.c.h.b16 %v5417
    %v5488 = vunpack.c.l.b16 %v5418
    %v5489 = vunpack.c.h.b16 %v5418
    %v5490 = vunpack.c.l.b16 %v5419
    %v5491 = vunpack.c.h.b16 %v5419
    %v5492 = vunpack.c.l.b16 %v5420
    %v5493 = vunpack.c.h.b16 %v5420
    %v5494 = vunpack.c.l.b16 %v5421
    %v5495 = vunpack.c.h.b16 %v5421
    %v5496 = vunpack.c.l.b16 %v5422
    %v5497 = vunpack.c.h.b16 %v5422
    %v5498 = vunpack.c.l.b16 %v5423
    %v5499 = vunpack.c.h.b16 %v5423
    %v5500 = vunpack.c.l.b16 %v5424
    %v5501 = vunpack.c.h.b16 %v5424
    %v5502 = vunpack.c.l.b16 %v5425
    %v5503 = vunpack.c.h.b16 %v5425
    %v5504 = vunpack.c.l.b16 %v5426
    %v5505 = vunpack.c.h.b16 %v5426
    %v5506 = vunpack.c.l.b16 %v5427
    %v5507 = vunpack.c.h.b16 %v5427
    %v5508 = vunpack.c.l.b16 %v5428
    %v5509 = vunpack.c.h.b16 %v5428
    %v5510 = vunpack.c.l.b16 %v5429
    %v5511 = vunpack.c.h.b16 %v5429
    %v5512 = vunpack.c.l.b16 %v5430
    %v5513 = vunpack.c.h.b16 %v5430
    %v5514 = vunpack.c.l.b16 %v5431
    %v5515 = vunpack.c.h.b16 %v5431
    %v5516 = vunpack.c.l.b16 %v5432
    %v5517 = vunpack.c.h.b16 %v5432
    %v5518 = vunpack.c.l.b16 %v5433
    %v5519 = vunpack.c.h.b16 %v5433
    %v5520 = vunpack.c.l.b16 %v5434
    %v5521 = vunpack.c.h.b16 %v5434
    %v5522 = vunpack.c.l.b16 %v5435
    %v5523 = vunpack.c.h.b16 %v5435
    %v5524 = vunpack.c.l.b16 %v5436
    %v5525 = vunpack.c.h.b16 %v5436
    %v5526 = vunpack.c.l.b16 %v5437
    %v5527 = vunpack.c.h.b16 %v5437
    %v5528 = vunpack.c.l.b16 %v5438
    %v5529 = vunpack.c.h.b16 %v5438
    %v5530 = vunpack.c.l.b16 %v5439
    %v5531 = vunpack.c.h.b16 %v5439
    %v5532 = vunpack.c.l.b16 %v5440
    %v5533 = vunpack.c.h.b16 %v5440
    %v5534 = vunpack.c.l.b16 %v5441
    %v5535 = vunpack.c.h.b16 %v5441
    %v5536 = vunpack.c.l.b16 %v5442
    %v5537 = vunpack.c.h.b16 %v5442
    %v5538 = vunpack.c.l.b16 %v5443
    %v5539 = vunpack.c.h.b16 %v5443
    %v5540 = vpack.c.b16 %v5480, %v5476
    %v5541 = vpack.c.b16 %v5481, %v5477
    %v5542 = vpack.c.b16 %v5482, %v5478
    %v5543 = vpack.c.b16 %v5483, %v5479
    %v5544 = vpack.c.b16 %v5488, %v5484
    %v5545 = vpack.c.b16 %v5489, %v5485
    %v5546 = vpack.c.b16 %v5490, %v5486
    %v5547 = vpack.c.b16 %v5491, %v5487
    %v5548 = vpack.c.b16 %v5496, %v5492
    %v5549 = vpack.c.b16 %v5497, %v5493
    %v5550 = vpack.c.b16 %v5498, %v5494
    %v5551 = vpack.c.b16 %v5499, %v5495
    %v5552 = vpack.c.b16 %v5504, %v5500
    %v5553 = vpack.c.b16 %v5505, %v5501
    %v5554 = vpack.c.b16 %v5506, %v5502
    %v5555 = vpack.c.b16 %v5507, %v5503
    %v5556 = vpack.c.b16 %v5512, %v5508
    %v5557 = vpack.c.b16 %v5513, %v5509
    %v5558 = vpack.c.b16 %v5514, %v5510
    %v5559 = vpack.c.b16 %v5515, %v5511
    %v5560 = vpack.c.b16 %v5520, %v5516
    %v5561 = vpack.c.b16 %v5521, %v5517
    %v5562 = vpack.c.b16 %v5522, %v5518
    %v5563 = vpack.c.b16 %v5523, %v5519
    %v5564 = vpack.c.b16 %v5528, %v5524
    %v5565 = vpack.c.b16 %v5529, %v5525
    %v5566 = vpack.c.b16 %v5530, %v5526
    %v5567 = vpack.c.b16 %v5531, %v5527
    %v5568 = vpack.c.b16 %v5536, %v5532
    %v5569 = vpack.c.b16 %v5537, %v5533
    %v5570 = vpack.c.b16 %v5538, %v5534
    %v5571 = vpack.c.b16 %v5539, %v5535
    %5604 = vmatprep.subr.bf16.mxu0 %v5541
    %5605 = vmatpush1.bf16.msra.mxu0 %v5540
    %5606 = vmatprep.subr.bf16.mxu0 %v5545
    %5607 = vmatpush1.bf16.msra.mxu0 %v5544
    %5608 = vmatprep.subr.bf16.mxu0 %v5549
    %5609 = vmatpush1.bf16.msra.mxu0 %v5548
    %5610 = vmatprep.subr.bf16.mxu0 %v5553
    %5611 = vmatpush1.bf16.msra.mxu0 %v5552
    %5612 = vmatprep.subr.bf16.mxu0 %v5557
    %5613 = vmatpush1.bf16.msra.mxu0 %v5556
    %5614 = vmatprep.subr.bf16.mxu0 %v5561
    %5615 = vmatpush1.bf16.msra.mxu0 %v5560
    %5616 = vmatprep.subr.bf16.mxu0 %v5565
    %5617 = vmatpush1.bf16.msra.mxu0 %v5564
    %5618 = vmatprep.subr.bf16.mxu0 %v5569
    %5619 = vmatpush1.bf16.msra.mxu0 %v5568
    %5620 = vmatprep.subr.bf16.mxu0 0
    %5621 = vmatpush1.bf16.msra.mxu0 0
    %5622 = vmatprep.subr.bf16.mxu0 0
    %5623 = vmatpush1.bf16.msra.mxu0 0
    %5624 = vmatprep.subr.bf16.mxu0 0
    %5625 = vmatpush1.bf16.msra.mxu0 0
    %5626 = vmatprep.subr.bf16.mxu0 0
    %5627 = vmatpush1.bf16.msra.mxu0 0
    %5628 = vmatprep.subr.bf16.mxu0 0
    %5629 = vmatpush1.bf16.msra.mxu0 0
    %5630 = vmatprep.subr.bf16.mxu0 0
    %5631 = vmatpush1.bf16.msra.mxu0 0
    %5632 = vmatprep.subr.bf16.mxu0 0
    %5633 = vmatpush1.bf16.msra.mxu0 0
    %5634 = vmatprep.subr.bf16.mxu0 0
    %5635 = vmatpush1.bf16.msra.mxu0 0
    %5636 = vmatprep.mubr.bf16.mxu0 0
    %5637 = vmatmul.mubr.bf16.gmra.mrb[0].mxu0 %v5411
    %v5638 = vpop.f32.mrb[0].mxu0
    %v5639 = vadd.f32 0.0, %v5638
    %v5640 = vpop.f32.mrb[0].mxu0
    %v5641 = vadd.f32 0.0, %v5640
    %v5642 = vpop.f32.mrb[0].mxu0
    %v5643 = vpop.f32.mrb[0].mxu0
    %5644 = vdwg.mxu0
    %5645 = vmatprep.subr.bf16.mxu0 %v5543
    %5646 = vmatpush1.bf16.msra.mxu0 %v5542
    %5647 = vmatprep.subr.bf16.mxu0 %v5547
    %5648 = vmatpush1.bf16.msra.mxu0 %v5546
    %5649 = vmatprep.subr.bf16.mxu0 %v5551
    %5650 = vmatpush1.bf16.msra.mxu0 %v5550
    %5651 = vmatprep.subr.bf16.mxu0 %v5555
    %5652 = vmatpush1.bf16.msra.mxu0 %v5554
    %5653 = vmatprep.subr.bf16.mxu0 %v5559
    %5654 = vmatpush1.bf16.msra.mxu0 %v5558
    %5655 = vmatprep.subr.bf16.mxu0 %v5563
    %5656 = vmatpush1.bf16.msra.mxu0 %v5562
    %5657 = vmatprep.subr.bf16.mxu0 %v5567
    %5658 = vmatpush1.bf16.msra.mxu0 %v5566
    %5659 = vmatprep.subr.bf16.mxu0 %v5571
    %5660 = vmatpush1.bf16.msra.mxu0 %v5570
    %5661 = vmatprep.subr.bf16.mxu0 0
    %5662 = vmatpush1.bf16.msra.mxu0 0
    %5663 = vmatprep.subr.bf16.mxu0 0
    %5664 = vmatpush1.bf16.msra.mxu0 0
    %5665 = vmatprep.subr.bf16.mxu0 0
    %5666 = vmatpush1.bf16.msra.mxu0 0
    %5667 = vmatprep.subr.bf16.mxu0 0
    %5668 = vmatpush1.bf16.msra.mxu0 0
    %5669 = vmatprep.subr.bf16.mxu0 0
    %5670 = vmatpush1.bf16.msra.mxu0 0
    %5671 = vmatprep.subr.bf16.mxu0 0
    %5672 = vmatpush1.bf16.msra.mxu0 0
    %5673 = vmatprep.subr.bf16.mxu0 0
    %5674 = vmatpush1.bf16.msra.mxu0 0
    %5675 = vmatprep.subr.bf16.mxu0 0
    %5676 = vmatpush1.bf16.msra.mxu0 0
    %5677 = vmatprep.mubr.bf16.mxu0 0
    %5678 = vmatmul.mubr.bf16.gmra.mrb[0].mxu0 %v5411
    %v5679 = vpop.f32.mrb[0].mxu0
    %v5680 = vadd.f32 0.0, %v5679
    %v5681 = vpop.f32.mrb[0].mxu0
    %v5682 = vadd.f32 0.0, %v5681
    %v5683 = vpop.f32.mrb[0].mxu0
    %v5684 = vpop.f32.mrb[0].mxu0
    %5685 = vdwg.mxu0
    %v5686 = vadd.f32 %v5407, %v5639
    %v5687 = vadd.f32 %v5408, %v5641
    %v5688 = vadd.f32 %v5409, %v5680
    %v5689 = vadd.f32 %v5410, %v5682
    %v5690 = vxor.u32 %v5686, 2147483648
    %v5691 = vxor.u32 %v5687, 2147483648
    %v5692 = vxor.u32 %v5688, 2147483648
    %v5693 = vmul.f32 %v5690, 1.442695
    %v5694 = vpow.pop %v5693
    %v5695 = vmul.f32 %v5691, 1.442695
    %v5696 = vpow.pop %v5695
    %v5697 = vmul.f32 %v5692, 1.442695
    %v5698 = vpow.pop %v5697
    %v5699 = vadd.f32 %v5694, 1.0
    %v5700 = vadd.f32 %v5696, 1.0
    %v5701 = vadd.f32 %v5698, 1.0
    %v5702 = vrcp.pop %v5699
    %v5703 = vmul.f32 1.0, %v5702
    %v5704 = vrcp.pop %v5700
    %v5705 = vmul.f32 1.0, %v5704
    %v5706 = vrcp.pop %v5701
    %v5707 = vmul.f32 1.0, %v5706
    %v5708 = vtanh.pop %v5689
    %v5709 = vmul.f32 %v5705, %v5403
    %v5710 = vmul.f32 %v5703, %v5708
    %v5711 = vadd.f32 %v5709, %v5710
    %v5712 = vtanh.pop %v5711
    %v5713 = vmul.f32 %v5707, %v5712
    %5714 = vst [vmem:[%s2846] sm:$0xff] %v5713
    %v5715 = vld [vmem:[#allocation3] sm:$0xff]
    %v5716 = vld [vmem:[#allocation3 + $0x8] sm:$0xff]
    %v5717 = vld [vmem:[#allocation3 + $0x10] sm:$0xff]
    %v5718 = vld [vmem:[#allocation3 + $0x18] sm:$0xff]
    %v5719 = vld [vmem:[#allocation3 + $0x20] sm:$0xff]
    %v5720 = vld [vmem:[#allocation3 + $0x28] sm:$0xff]
    %v5721 = vld [vmem:[#allocation3 + $0x30] sm:$0xff]
    %v5722 = vld [vmem:[#allocation3 + $0x38] sm:$0xff]
    %v5723 = vpack.c.bf16 %v5716, %v5715
    %v5724 = vpack.c.bf16 %v5718, %v5717
    %v5725 = vpack.c.bf16 %v5720, %v5719
    %v5726 = vpack.c.bf16 %v5722, %v5721
    %v5727 = vld [vmem:[#allocation8] sm:$0xff]
    %v5728 = vld [vmem:[#allocation8 + $0x8] sm:$0xff]
    %v5729 = vld [vmem:[#allocation8 + $0x10] sm:$0xff]
    %v5730 = vld [vmem:[#allocation8 + $0x18] sm:$0xff]
    %v5731 = vld [vmem:[#allocation8 + $0x20] sm:$0xff]
    %v5732 = vld [vmem:[#allocation8 + $0x28] sm:$0xff]
    %v5733 = vld [vmem:[#allocation8 + $0x30] sm:$0xff]
    %v5734 = vld [vmem:[#allocation8 + $0x38] sm:$0xff]
    %v5735 = vld [vmem:[#allocation8 + $0x40] sm:$0xff]
    %v5736 = vld [vmem:[#allocation8 + $0x48] sm:$0xff]
    %v5737 = vld [vmem:[#allocation8 + $0x50] sm:$0xff]
    %v5738 = vld [vmem:[#allocation8 + $0x58] sm:$0xff]
    %v5739 = vld [vmem:[#allocation8 + $0x60] sm:$0xff]
    %v5740 = vld [vmem:[#allocation8 + $0x68] sm:$0xff]
    %v5741 = vld [vmem:[#allocation8 + $0x70] sm:$0xff]
    %v5742 = vld [vmem:[#allocation8 + $0x78] sm:$0xff]
    %v5743 = vld [vmem:[#allocation8 + $0x80] sm:$0xff]
    %v5744 = vld [vmem:[#allocation8 + $0x88] sm:$0xff]
    %v5745 = vld [vmem:[#allocation8 + $0x90] sm:$0xff]
    %v5746 = vld [vmem:[#allocation8 + $0x98] sm:$0xff]
    %v5747 = vld [vmem:[#allocation8 + $0xa0] sm:$0xff]
    %v5748 = vld [vmem:[#allocation8 + $0xa8] sm:$0xff]
    %v5749 = vld [vmem:[#allocation8 + $0xb0] sm:$0xff]
    %v5750 = vld [vmem:[#allocation8 + $0xb8] sm:$0xff]
    %v5751 = vld [vmem:[#allocation8 + $0xc0] sm:$0xff]
    %v5752 = vld [vmem:[#allocation8 + $0xc8] sm:$0xff]
    %v5753 = vld [vmem:[#allocation8 + $0xd0] sm:$0xff]
    %v5754 = vld [vmem:[#allocation8 + $0xd8] sm:$0xff]
    %v5755 = vld [vmem:[#allocation8 + $0xe0] sm:$0xff]
    %v5756 = vld [vmem:[#allocation8 + $0xe8] sm:$0xff]
    %v5757 = vld [vmem:[#allocation8 + $0xf0] sm:$0xff]
    %v5758 = vld [vmem:[#allocation8 + $0xf8] sm:$0xff]
    %v5759 = vld [vmem:[%s9] sm:$0xf]
    %v5761 = vlaneseq
    %v5762 = vshrl.u32 %v5761, 7
    %v5763 = vsub.s32 0, %v5762
    %v5764 = vrot.slane %v5759, %v5763
    %v5765 = vlaneseq
    %v5766 = vshrl.u32 %v5765, 7
    %v5767 = vsub.s32 1, %v5766
    %v5768 = vrot.slane %v5759, %v5767
    %v5769 = vlaneseq
    %v5770 = vshrl.u32 %v5769, 7
    %v5771 = vsub.s32 2, %v5770
    %v5772 = vrot.slane %v5759, %v5771
    %v5773 = vlaneseq
    %v5774 = vshrl.u32 %v5773, 7
    %v5775 = vsub.s32 3, %v5774
    %v5776 = vrot.slane %v5759, %v5775
    %v5813 = vunpack.c.l.b16 %v5727
    %v5814 = vunpack.c.h.b16 %v5727
    %v5815 = vunpack.c.l.b16 %v5728
    %v5816 = vunpack.c.h.b16 %v5728
    %v5817 = vunpack.c.l.b16 %v5729
    %v5818 = vunpack.c.h.b16 %v5729
    %v5819 = vunpack.c.l.b16 %v5730
    %v5820 = vunpack.c.h.b16 %v5730
    %v5821 = vunpack.c.l.b16 %v5731
    %v5822 = vunpack.c.h.b16 %v5731
    %v5823 = vunpack.c.l.b16 %v5732
    %v5824 = vunpack.c.h.b16 %v5732
    %v5825 = vunpack.c.l.b16 %v5733
    %v5826 = vunpack.c.h.b16 %v5733
    %v5827 = vunpack.c.l.b16 %v5734
    %v5828 = vunpack.c.h.b16 %v5734
    %v5829 = vunpack.c.l.b16 %v5735
    %v5830 = vunpack.c.h.b16 %v5735
    %v5831 = vunpack.c.l.b16 %v5736
    %v5832 = vunpack.c.h.b16 %v5736
    %v5833 = vunpack.c.l.b16 %v5737
    %v5834 = vunpack.c.h.b16 %v5737
    %v5835 = vunpack.c.l.b16 %v5738
    %v5836 = vunpack.c.h.b16 %v5738
    %v5837 = vunpack.c.l.b16 %v5739
    %v5838 = vunpack.c.h.b16 %v5739
    %v5839 = vunpack.c.l.b16 %v5740
    %v5840 = vunpack.c.h.b16 %v5740
    %v5841 = vunpack.c.l.b16 %v5741
    %v5842 = vunpack.c.h.b16 %v5741
    %v5843 = vunpack.c.l.b16 %v5742
    %v5844 = vunpack.c.h.b16 %v5742
    %v5845 = vunpack.c.l.b16 %v5743
    %v5846 = vunpack.c.h.b16 %v5743
    %v5847 = vunpack.c.l.b16 %v5744
    %v5848 = vunpack.c.h.b16 %v5744
    %v5849 = vunpack.c.l.b16 %v5745
    %v5850 = vunpack.c.h.b16 %v5745
    %v5851 = vunpack.c.l.b16 %v5746
    %v5852 = vunpack.c.h.b16 %v5746
    %v5853 = vunpack.c.l.b16 %v5747
    %v5854 = vunpack.c.h.b16 %v5747
    %v5855 = vunpack.c.l.b16 %v5748
    %v5856 = vunpack.c.h.b16 %v5748
    %v5857 = vunpack.c.l.b16 %v5749
    %v5858 = vunpack.c.h.b16 %v5749
    %v5859 = vunpack.c.l.b16 %v5750
    %v5860 = vunpack.c.h.b16 %v5750
    %v5861 = vunpack.c.l.b16 %v5751
    %v5862 = vunpack.c.h.b16 %v5751
    %v5863 = vunpack.c.l.b16 %v5752
    %v5864 = vunpack.c.h.b16 %v5752
    %v5865 = vunpack.c.l.b16 %v5753
    %v5866 = vunpack.c.h.b16 %v5753
    %v5867 = vunpack.c.l.b16 %v5754
    %v5868 = vunpack.c.h.b16 %v5754
    %v5869 = vunpack.c.l.b16 %v5755
    %v5870 = vunpack.c.h.b16 %v5755
    %v5871 = vunpack.c.l.b16 %v5756
    %v5872 = vunpack.c.h.b16 %v5756
    %v5873 = vunpack.c.l.b16 %v5757
    %v5874 = vunpack.c.h.b16 %v5757
    %v5875 = vunpack.c.l.b16 %v5758
    %v5876 = vunpack.c.h.b16 %v5758
    %v5877 = vpack.c.b16 %v5817, %v5813
    %v5878 = vpack.c.b16 %v5818, %v5814
    %v5879 = vpack.c.b16 %v5819, %v5815
    %v5880 = vpack.c.b16 %v5820, %v5816
    %v5881 = vpack.c.b16 %v5825, %v5821
    %v5882 = vpack.c.b16 %v5826, %v5822
    %v5883 = vpack.c.b16 %v5827, %v5823
    %v5884 = vpack.c.b16 %v5828, %v5824
    %v5885 = vpack.c.b16 %v5833, %v5829
    %v5886 = vpack.c.b16 %v5834, %v5830
    %v5887 = vpack.c.b16 %v5835, %v5831
    %v5888 = vpack.c.b16 %v5836, %v5832
    %v5889 = vpack.c.b16 %v5841, %v5837
    %v5890 = vpack.c.b16 %v5842, %v5838
    %v5891 = vpack.c.b16 %v5843, %v5839
    %v5892 = vpack.c.b16 %v5844, %v5840
    %v5893 = vpack.c.b16 %v5849, %v5845
    %v5894 = vpack.c.b16 %v5850, %v5846
    %v5895 = vpack.c.b16 %v5851, %v5847
    %v5896 = vpack.c.b16 %v5852, %v5848
    %v5897 = vpack.c.b16 %v5857, %v5853
    %v5898 = vpack.c.b16 %v5858, %v5854
    %v5899 = vpack.c.b16 %v5859, %v5855
    %v5900 = vpack.c.b16 %v5860, %v5856
    %v5901 = vpack.c.b16 %v5865, %v5861
    %v5902 = vpack.c.b16 %v5866, %v5862
    %v5903 = vpack.c.b16 %v5867, %v5863
    %v5904 = vpack.c.b16 %v5868, %v5864
    %v5905 = vpack.c.b16 %v5873, %v5869
    %v5906 = vpack.c.b16 %v5874, %v5870
    %v5907 = vpack.c.b16 %v5875, %v5871
    %v5908 = vpack.c.b16 %v5876, %v5872
    %5941 = vmatprep.subr.bf16.mxu0 %v5878
    %5942 = vmatpush1.bf16.msra.mxu0 %v5877
    %5943 = vmatprep.subr.bf16.mxu0 %v5882
    %5944 = vmatpush1.bf16.msra.mxu0 %v5881
    %5945 = vmatprep.subr.bf16.mxu0 %v5886
    %5946 = vmatpush1.bf16.msra.mxu0 %v5885
    %5947 = vmatprep.subr.bf16.mxu0 %v5890
    %5948 = vmatpush1.bf16.msra.mxu0 %v5889
    %5949 = vmatprep.subr.bf16.mxu0 %v5894
    %5950 = vmatpush1.bf16.msra.mxu0 %v5893
    %5951 = vmatprep.subr.bf16.mxu0 %v5898
    %5952 = vmatpush1.bf16.msra.mxu0 %v5897
    %5953 = vmatprep.subr.bf16.mxu0 %v5902
    %5954 = vmatpush1.bf16.msra.mxu0 %v5901
    %5955 = vmatprep.subr.bf16.mxu0 %v5906
    %5956 = vmatpush1.bf16.msra.mxu0 %v5905
    %5957 = vmatprep.subr.bf16.mxu0 0
    %5958 = vmatpush1.bf16.msra.mxu0 0
    %5959 = vmatprep.subr.bf16.mxu0 0
    %5960 = vmatpush1.bf16.msra.mxu0 0
    %5961 = vmatprep.subr.bf16.mxu0 0
    %5962 = vmatpush1.bf16.msra.mxu0 0
    %5963 = vmatprep.subr.bf16.mxu0 0
    %5964 = vmatpush1.bf16.msra.mxu0 0
    %5965 = vmatprep.subr.bf16.mxu0 0
    %5966 = vmatpush1.bf16.msra.mxu0 0
    %5967 = vmatprep.subr.bf16.mxu0 0
    %5968 = vmatpush1.bf16.msra.mxu0 0
    %5969 = vmatprep.subr.bf16.mxu0 0
    %5970 = vmatpush1.bf16.msra.mxu0 0
    %5971 = vmatprep.subr.bf16.mxu0 0
    %5972 = vmatpush1.bf16.msra.mxu0 0
    %5973 = vmatprep.mubr.bf16.mxu0 0
    %5974 = vmatmul.mubr.bf16.gmra.mrb[0].mxu0 %v5723
    %v5975 = vpop.f32.mrb[0].mxu0
    %v5976 = vadd.f32 %v5764, %v5975
    %v5977 = vpop.f32.mrb[0].mxu0
    %v5978 = vadd.f32 %v5768, %v5977
    %v5979 = vpop.f32.mrb[0].mxu0
    %v5980 = vadd.f32 %v5764, %v5979
    %v5981 = vpop.f32.mrb[0].mxu0
    %v5982 = vadd.f32 %v5768, %v5981
    %5983 = vmatprep.mubr.bf16.mxu0 0
    %5984 = vmatmul.mubr.bf16.gmra.mrb[0].mxu0 %v5724
    %v5985 = vpop.f32.mrb[0].mxu0
    %v5986 = vadd.f32 %v5764, %v5985
    %v5987 = vpop.f32.mrb[0].mxu0
    %v5988 = vadd.f32 %v5768, %v5987
    %v5989 = vpop.f32.mrb[0].mxu0
    %v5990 = vadd.f32 %v5764, %v5989
    %v5991 = vpop.f32.mrb[0].mxu0
    %v5992 = vadd.f32 %v5768, %v5991
    %5993 = vmatprep.mubr.bf16.mxu0 0
    %5994 = vmatmul.mubr.bf16.gmra.mrb[0].mxu0 %v5725
    %v5995 = vpop.f32.mrb[0].mxu0
    %v5996 = vadd.f32 %v5764, %v5995
    %v5997 = vpop.f32.mrb[0].mxu0
    %v5998 = vadd.f32 %v5768, %v5997
    %v5999 = vpop.f32.mrb[0].mxu0
    %v6000 = vadd.f32 %v5764, %v5999
    %v6001 = vpop.f32.mrb[0].mxu0
    %v6002 = vadd.f32 %v5768, %v6001
    %6003 = vmatprep.mubr.bf16.mxu0 0
    %6004 = vmatmul.mubr.bf16.gmra.mrb[0].mxu0 %v5726
    %v6005 = vpop.f32.mrb[0].mxu0
    %v6006 = vadd.f32 %v5764, %v6005
    %v6007 = vpop.f32.mrb[0].mxu0
    %v6008 = vadd.f32 %v5768, %v6007
    %v6009 = vpop.f32.mrb[0].mxu0
    %v6010 = vadd.f32 %v5764, %v6009
    %v6011 = vpop.f32.mrb[0].mxu0
    %v6012 = vadd.f32 %v5768, %v6011
    %6013 = vdwg.mxu0
    %6014 = vmatprep.subr.bf16.mxu0 %v5880
    %6015 = vmatpush1.bf16.msra.mxu0 %v5879
    %6016 = vmatprep.subr.bf16.mxu0 %v5884
    %6017 = vmatpush1.bf16.msra.mxu0 %v5883
    %6018 = vmatprep.subr.bf16.mxu0 %v5888
    %6019 = vmatpush1.bf16.msra.mxu0 %v5887
    %6020 = vmatprep.subr.bf16.mxu0 %v5892
    %6021 = vmatpush1.bf16.msra.mxu0 %v5891
    %6022 = vmatprep.subr.bf16.mxu0 %v5896
    %6023 = vmatpush1.bf16.msra.mxu0 %v5895
    %6024 = vmatprep.subr.bf16.mxu0 %v5900
    %6025 = vmatpush1.bf16.msra.mxu0 %v5899
    %6026 = vmatprep.subr.bf16.mxu0 %v5904
    %6027 = vmatpush1.bf16.msra.mxu0 %v5903
    %6028 = vmatprep.subr.bf16.mxu0 %v5908
    %6029 = vmatpush1.bf16.msra.mxu0 %v5907
    %6030 = vmatprep.subr.bf16.mxu0 0
    %6031 = vmatpush1.bf16.msra.mxu0 0
    %6032 = vmatprep.subr.bf16.mxu0 0
    %6033 = vmatpush1.bf16.msra.mxu0 0
    %6034 = vmatprep.subr.bf16.mxu0 0
    %6035 = vmatpush1.bf16.msra.mxu0 0
    %6036 = vmatprep.subr.bf16.mxu0 0
    %6037 = vmatpush1.bf16.msra.mxu0 0
    %6038 = vmatprep.subr.bf16.mxu0 0
    %6039 = vmatpush1.bf16.msra.mxu0 0
    %6040 = vmatprep.subr.bf16.mxu0 0
    %6041 = vmatpush1.bf16.msra.mxu0 0
    %6042 = vmatprep.subr.bf16.mxu0 0
    %6043 = vmatpush1.bf16.msra.mxu0 0
    %6044 = vmatprep.subr.bf16.mxu0 0
    %6045 = vmatpush1.bf16.msra.mxu0 0
    %6046 = vmatprep.mubr.bf16.mxu0 0
    %6047 = vmatmul.mubr.bf16.gmra.mrb[0].mxu0 %v5723
    %v6048 = vpop.f32.mrb[0].mxu0
    %v6049 = vadd.f32 %v5772, %v6048
    %v6050 = vpop.f32.mrb[0].mxu0
    %v6051 = vadd.f32 %v5776, %v6050
    %v6052 = vpop.f32.mrb[0].mxu0
    %v6053 = vadd.f32 %v5772, %v6052
    %v6054 = vpop.f32.mrb[0].mxu0
    %v6055 = vadd.f32 %v5776, %v6054
    %6056 = vmatprep.mubr.bf16.mxu0 0
    %6057 = vmatmul.mubr.bf16.gmra.mrb[0].mxu0 %v5724
    %v6058 = vpop.f32.mrb[0].mxu0
    %v6059 = vadd.f32 %v5772, %v6058
    %v6060 = vpop.f32.mrb[0].mxu0
    %v6061 = vadd.f32 %v5776, %v6060
    %v6062 = vpop.f32.mrb[0].mxu0
    %v6063 = vadd.f32 %v5772, %v6062
    %v6064 = vpop.f32.mrb[0].mxu0
    %v6065 = vadd.f32 %v5776, %v6064
    %6066 = vmatprep.mubr.bf16.mxu0 0
    %6067 = vmatmul.mubr.bf16.gmra.mrb[0].mxu0 %v5725
    %v6068 = vpop.f32.mrb[0].mxu0
    %v6069 = vadd.f32 %v5772, %v6068
    %v6070 = vpop.f32.mrb[0].mxu0
    %v6071 = vadd.f32 %v5776, %v6070
    %v6072 = vpop.f32.mrb[0].mxu0
    %v6073 = vadd.f32 %v5772, %v6072
    %v6074 = vpop.f32.mrb[0].mxu0
    %v6075 = vadd.f32 %v5776, %v6074
    %6076 = vmatprep.mubr.bf16.mxu0 0
    %6077 = vmatmul.mubr.bf16.gmra.mrb[0].mxu0 %v5726
    %v6078 = vpop.f32.mrb[0].mxu0
    %v6079 = vadd.f32 %v5772, %v6078
    %v6080 = vpop.f32.mrb[0].mxu0
    %v6081 = vadd.f32 %v5776, %v6080
    %v6082 = vpop.f32.mrb[0].mxu0
    %v6083 = vadd.f32 %v5772, %v6082
    %v6084 = vpop.f32.mrb[0].mxu0
    %v6085 = vadd.f32 %v5776, %v6084
    %6086 = vdwg.mxu0
    %6087 = vst [vmem:[#allocation2] sm:$0xff] %v5976
    %6088 = vst [vmem:[#allocation2 + $0x8] sm:$0xff] %v5978
    %6089 = vst [vmem:[#allocation2 + $0x10] sm:$0xff] %v6049
    %6090 = vst [vmem:[#allocation2 + $0x18] sm:$0xff] %v6051
    %6091 = vst [vmem:[#allocation2 + $0x20] sm:$0xff] %v5980
    %6092 = vst [vmem:[#allocation2 + $0x28] sm:$0xff] %v5982
    %6093 = vst [vmem:[#allocation2 + $0x30] sm:$0xff] %v6053
    %6094 = vst [vmem:[#allocation2 + $0x38] sm:$0xff] %v6055
    %6095 = vst [vmem:[#allocation2 + $0x40] sm:$0xff] %v5986
    %6096 = vst [vmem:[#allocation2 + $0x48] sm:$0xff] %v5988
    %6097 = vst [vmem:[#allocation2 + $0x50] sm:$0xff] %v6059
    %6098 = vst [vmem:[#allocation2 + $0x58] sm:$0xff] %v6061
    %6099 = vst [vmem:[#allocation2 + $0x60] sm:$0xff] %v5990
    %6100 = vst [vmem:[#allocation2 + $0x68] sm:$0xff] %v5992
    %6101 = vst [vmem:[#allocation2 + $0x70] sm:$0xff] %v6063
    %6102 = vst [vmem:[#allocation2 + $0x78] sm:$0xff] %v6065
    %6103 = vst [vmem:[#allocation2 + $0x80] sm:$0xff] %v5996
    %6104 = vst [vmem:[#allocation2 + $0x88] sm:$0xff] %v5998
    %6105 = vst [vmem:[#allocation2 + $0x90] sm:$0xff] %v6069
    %6106 = vst [vmem:[#allocation2 + $0x98] sm:$0xff] %v6071
    %6107 = vst [vmem:[#allocation2 + $0xa0] sm:$0xff] %v6000
    %6108 = vst [vmem:[#allocation2 + $0xa8] sm:$0xff] %v6002
    %6109 = vst [vmem:[#allocation2 + $0xb0] sm:$0xff] %v6073
    %6110 = vst [vmem:[#allocation2 + $0xb8] sm:$0xff] %v6075
    %6111 = vst [vmem:[#allocation2 + $0xc0] sm:$0xff] %v6006
    %6112 = vst [vmem:[#allocation2 + $0xc8] sm:$0xff] %v6008
    %6113 = vst [vmem:[#allocation2 + $0xd0] sm:$0xff] %v6079
    %6114 = vst [vmem:[#allocation2 + $0xd8] sm:$0xff] %v6081
    %6115 = vst [vmem:[#allocation2 + $0xe0] sm:$0xff] %v6010
    %6116 = vst [vmem:[#allocation2 + $0xe8] sm:$0xff] %v6012
    %6117 = vst [vmem:[#allocation2 + $0xf0] sm:$0xff] %v6083
    %6118 = vst [vmem:[#allocation2 + $0xf8] sm:$0xff] %v6085
    %v6119 = vld [vmem:[%s356] sm:$0xff]
    %v6120 = vld [vmem:[%s356 + $0x8] sm:$0xff]
    %v6121 = vld [vmem:[%s356 + $0x10] sm:$0xff]
    %v6122 = vld [vmem:[%s356 + $0x18] sm:$0xff]
    %v6123 = vld [vmem:[#allocation9] sm:$0xff]
    %v6124 = vld [vmem:[#allocation9 + $0x8] sm:$0xff]
    %v6125 = vld [vmem:[#allocation9 + $0x10] sm:$0xff]
    %v6126 = vld [vmem:[#allocation9 + $0x18] sm:$0xff]
    %v6127 = vld [vmem:[#allocation9 + $0x20] sm:$0xff]
    %v6128 = vld [vmem:[#allocation9 + $0x28] sm:$0xff]
    %v6129 = vld [vmem:[#allocation9 + $0x30] sm:$0xff]
    %v6130 = vld [vmem:[#allocation9 + $0x38] sm:$0xff]
    %v6131 = vld [vmem:[#allocation9 + $0x40] sm:$0xff]
    %v6132 = vld [vmem:[#allocation9 + $0x48] sm:$0xff]
    %v6133 = vld [vmem:[#allocation9 + $0x50] sm:$0xff]
    %v6134 = vld [vmem:[#allocation9 + $0x58] sm:$0xff]
    %v6135 = vld [vmem:[#allocation9 + $0x60] sm:$0xff]
    %v6136 = vld [vmem:[#allocation9 + $0x68] sm:$0xff]
    %v6137 = vld [vmem:[#allocation9 + $0x70] sm:$0xff]
    %v6138 = vld [vmem:[#allocation9 + $0x78] sm:$0xff]
    %v6139 = vld [vmem:[#allocation9 + $0x80] sm:$0xff]
    %v6140 = vld [vmem:[#allocation9 + $0x88] sm:$0xff]
    %v6141 = vld [vmem:[#allocation9 + $0x90] sm:$0xff]
    %v6142 = vld [vmem:[#allocation9 + $0x98] sm:$0xff]
    %v6143 = vld [vmem:[#allocation9 + $0xa0] sm:$0xff]
    %v6144 = vld [vmem:[#allocation9 + $0xa8] sm:$0xff]
    %v6145 = vld [vmem:[#allocation9 + $0xb0] sm:$0xff]
    %v6146 = vld [vmem:[#allocation9 + $0xb8] sm:$0xff]
    %v6147 = vld [vmem:[#allocation9 + $0xc0] sm:$0xff]
    %v6148 = vld [vmem:[#allocation9 + $0xc8] sm:$0xff]
    %v6149 = vld [vmem:[#allocation9 + $0xd0] sm:$0xff]
    %v6150 = vld [vmem:[#allocation9 + $0xd8] sm:$0xff]
    %v6151 = vld [vmem:[#allocation9 + $0xe0] sm:$0xff]
    %v6152 = vld [vmem:[#allocation9 + $0xe8] sm:$0xff]
    %v6153 = vld [vmem:[#allocation9 + $0xf0] sm:$0xff]
    %v6154 = vld [vmem:[#allocation9 + $0xf8] sm:$0xff]
    %v6187 = vunpack.c.l.b16 %v6123
    %v6188 = vunpack.c.h.b16 %v6123
    %v6189 = vunpack.c.l.b16 %v6124
    %v6190 = vunpack.c.h.b16 %v6124
    %v6191 = vunpack.c.l.b16 %v6125
    %v6192 = vunpack.c.h.b16 %v6125
    %v6193 = vunpack.c.l.b16 %v6126
    %v6194 = vunpack.c.h.b16 %v6126
    %v6195 = vunpack.c.l.b16 %v6127
    %v6196 = vunpack.c.h.b16 %v6127
    %v6197 = vunpack.c.l.b16 %v6128
    %v6198 = vunpack.c.h.b16 %v6128
    %v6199 = vunpack.c.l.b16 %v6129
    %v6200 = vunpack.c.h.b16 %v6129
    %v6201 = vunpack.c.l.b16 %v6130
    %v6202 = vunpack.c.h.b16 %v6130
    %v6203 = vunpack.c.l.b16 %v6131
    %v6204 = vunpack.c.h.b16 %v6131
    %v6205 = vunpack.c.l.b16 %v6132
    %v6206 = vunpack.c.h.b16 %v6132
    %v6207 = vunpack.c.l.b16 %v6133
    %v6208 = vunpack.c.h.b16 %v6133
    %v6209 = vunpack.c.l.b16 %v6134
    %v6210 = vunpack.c.h.b16 %v6134
    %v6211 = vunpack.c.l.b16 %v6135
    %v6212 = vunpack.c.h.b16 %v6135
    %v6213 = vunpack.c.l.b16 %v6136
    %v6214 = vunpack.c.h.b16 %v6136
    %v6215 = vunpack.c.l.b16 %v6137
    %v6216 = vunpack.c.h.b16 %v6137
    %v6217 = vunpack.c.l.b16 %v6138
    %v6218 = vunpack.c.h.b16 %v6138
    %v6219 = vunpack.c.l.b16 %v6139
    %v6220 = vunpack.c.h.b16 %v6139
    %v6221 = vunpack.c.l.b16 %v6140
    %v6222 = vunpack.c.h.b16 %v6140
    %v6223 = vunpack.c.l.b16 %v6141
    %v6224 = vunpack.c.h.b16 %v6141
    %v6225 = vunpack.c.l.b16 %v6142
    %v6226 = vunpack.c.h.b16 %v6142
    %v6227 = vunpack.c.l.b16 %v6143
    %v6228 = vunpack.c.h.b16 %v6143
    %v6229 = vunpack.c.l.b16 %v6144
    %v6230 = vunpack.c.h.b16 %v6144
    %v6231 = vunpack.c.l.b16 %v6145
    %v6232 = vunpack.c.h.b16 %v6145
    %v6233 = vunpack.c.l.b16 %v6146
    %v6234 = vunpack.c.h.b16 %v6146
    %v6235 = vunpack.c.l.b16 %v6147
    %v6236 = vunpack.c.h.b16 %v6147
    %v6237 = vunpack.c.l.b16 %v6148
    %v6238 = vunpack.c.h.b16 %v6148
    %v6239 = vunpack.c.l.b16 %v6149
    %v6240 = vunpack.c.h.b16 %v6149
    %v6241 = vunpack.c.l.b16 %v6150
    %v6242 = vunpack.c.h.b16 %v6150
    %v6243 = vunpack.c.l.b16 %v6151
    %v6244 = vunpack.c.h.b16 %v6151
    %v6245 = vunpack.c.l.b16 %v6152
    %v6246 = vunpack.c.h.b16 %v6152
    %v6247 = vunpack.c.l.b16 %v6153
    %v6248 = vunpack.c.h.b16 %v6153
    %v6249 = vunpack.c.l.b16 %v6154
    %v6250 = vunpack.c.h.b16 %v6154
    %v6251 = vpack.c.b16 %v6191, %v6187
    %v6252 = vpack.c.b16 %v6192, %v6188
    %v6253 = vpack.c.b16 %v6193, %v6189
    %v6254 = vpack.c.b16 %v6194, %v6190
    %v6255 = vpack.c.b16 %v6199, %v6195
    %v6256 = vpack.c.b16 %v6200, %v6196
    %v6257 = vpack.c.b16 %v6201, %v6197
    %v6258 = vpack.c.b16 %v6202, %v6198
    %v6259 = vpack.c.b16 %v6207, %v6203
    %v6260 = vpack.c.b16 %v6208, %v6204
    %v6261 = vpack.c.b16 %v6209, %v6205
    %v6262 = vpack.c.b16 %v6210, %v6206
    %v6263 = vpack.c.b16 %v6215, %v6211
    %v6264 = vpack.c.b16 %v6216, %v6212
    %v6265 = vpack.c.b16 %v6217, %v6213
    %v6266 = vpack.c.b16 %v6218, %v6214
    %v6267 = vpack.c.b16 %v6223, %v6219
    %v6268 = vpack.c.b16 %v6224, %v6220
    %v6269 = vpack.c.b16 %v6225, %v6221
    %v6270 = vpack.c.b16 %v6226, %v6222
    %v6271 = vpack.c.b16 %v6231, %v6227
    %v6272 = vpack.c.b16 %v6232, %v6228
    %v6273 = vpack.c.b16 %v6233, %v6229
    %v6274 = vpack.c.b16 %v6234, %v6230
    %v6275 = vpack.c.b16 %v6239, %v6235
    %v6276 = vpack.c.b16 %v6240, %v6236
    %v6277 = vpack.c.b16 %v6241, %v6237
    %v6278 = vpack.c.b16 %v6242, %v6238
    %v6279 = vpack.c.b16 %v6247, %v6243
    %v6280 = vpack.c.b16 %v6248, %v6244
    %v6281 = vpack.c.b16 %v6249, %v6245
    %v6282 = vpack.c.b16 %v6250, %v6246
    %6315 = vmatprep.subr.bf16.mxu0 %v6252
    %6316 = vmatpush1.bf16.msra.mxu0 %v6251
    %6317 = vmatprep.subr.bf16.mxu0 %v6256
    %6318 = vmatpush1.bf16.msra.mxu0 %v6255
    %6319 = vmatprep.subr.bf16.mxu0 %v6260
    %6320 = vmatpush1.bf16.msra.mxu0 %v6259
    %6321 = vmatprep.subr.bf16.mxu0 %v6264
    %6322 = vmatpush1.bf16.msra.mxu0 %v6263
    %6323 = vmatprep.subr.bf16.mxu0 %v6268
    %6324 = vmatpush1.bf16.msra.mxu0 %v6267
    %6325 = vmatprep.subr.bf16.mxu0 %v6272
    %6326 = vmatpush1.bf16.msra.mxu0 %v6271
    %6327 = vmatprep.subr.bf16.mxu0 %v6276
    %6328 = vmatpush1.bf16.msra.mxu0 %v6275
    %6329 = vmatprep.subr.bf16.mxu0 %v6280
    %6330 = vmatpush1.bf16.msra.mxu0 %v6279
    %6331 = vmatprep.subr.bf16.mxu0 0
    %6332 = vmatpush1.bf16.msra.mxu0 0
    %6333 = vmatprep.subr.bf16.mxu0 0
    %6334 = vmatpush1.bf16.msra.mxu0 0
    %6335 = vmatprep.subr.bf16.mxu0 0
    %6336 = vmatpush1.bf16.msra.mxu0 0
    %6337 = vmatprep.subr.bf16.mxu0 0
    %6338 = vmatpush1.bf16.msra.mxu0 0
    %6339 = vmatprep.subr.bf16.mxu0 0
    %6340 = vmatpush1.bf16.msra.mxu0 0
    %6341 = vmatprep.subr.bf16.mxu0 0
    %6342 = vmatpush1.bf16.msra.mxu0 0
    %6343 = vmatprep.subr.bf16.mxu0 0
    %6344 = vmatpush1.bf16.msra.mxu0 0
    %6345 = vmatprep.subr.bf16.mxu0 0
    %6346 = vmatpush1.bf16.msra.mxu0 0
    %6347 = vmatprep.mubr.bf16.mxu0 0
    %6348 = vmatmul.mubr.bf16.gmra.mrb[0].mxu0 0
    %v6349 = vpop.f32.mrb[0].mxu0
    %v6350 = vadd.f32 0.0, %v6349
    %v6351 = vpop.f32.mrb[0].mxu0
    %v6352 = vadd.f32 0.0, %v6351
    %v6353 = vpop.f32.mrb[0].mxu0
    %v6354 = vpop.f32.mrb[0].mxu0
    %6355 = vdwg.mxu0
    %6356 = vmatprep.subr.bf16.mxu0 %v6254
    %6357 = vmatpush1.bf16.msra.mxu0 %v6253
    %6358 = vmatprep.subr.bf16.mxu0 %v6258
    %6359 = vmatpush1.bf16.msra.mxu0 %v6257
    %6360 = vmatprep.subr.bf16.mxu0 %v6262
    %6361 = vmatpush1.bf16.msra.mxu0 %v6261
    %6362 = vmatprep.subr.bf16.mxu0 %v6266
    %6363 = vmatpush1.bf16.msra.mxu0 %v6265
    %6364 = vmatprep.subr.bf16.mxu0 %v6270
    %6365 = vmatpush1.bf16.msra.mxu0 %v6269
    %6366 = vmatprep.subr.bf16.mxu0 %v6274
    %6367 = vmatpush1.bf16.msra.mxu0 %v6273
    %6368 = vmatprep.subr.bf16.mxu0 %v6278
    %6369 = vmatpush1.bf16.msra.mxu0 %v6277
    %6370 = vmatprep.subr.bf16.mxu0 %v6282
    %6371 = vmatpush1.bf16.msra.mxu0 %v6281
    %6372 = vmatprep.subr.bf16.mxu0 0
    %6373 = vmatpush1.bf16.msra.mxu0 0
    %6374 = vmatprep.subr.bf16.mxu0 0
    %6375 = vmatpush1.bf16.msra.mxu0 0
    %6376 = vmatprep.subr.bf16.mxu0 0
    %6377 = vmatpush1.bf16.msra.mxu0 0
    %6378 = vmatprep.subr.bf16.mxu0 0
    %6379 = vmatpush1.bf16.msra.mxu0 0
    %6380 = vmatprep.subr.bf16.mxu0 0
    %6381 = vmatpush1.bf16.msra.mxu0 0
    %6382 = vmatprep.subr.bf16.mxu0 0
    %6383 = vmatpush1.bf16.msra.mxu0 0
    %6384 = vmatprep.subr.bf16.mxu0 0
    %6385 = vmatpush1.bf16.msra.mxu0 0
    %6386 = vmatprep.subr.bf16.mxu0 0
    %6387 = vmatpush1.bf16.msra.mxu0 0
    %6388 = vmatprep.mubr.bf16.mxu0 0
    %6389 = vmatmul.mubr.bf16.gmra.mrb[0].mxu0 0
    %v6390 = vpop.f32.mrb[0].mxu0
    %v6391 = vadd.f32 0.0, %v6390
    %v6392 = vpop.f32.mrb[0].mxu0
    %v6393 = vadd.f32 0.0, %v6392
    %v6394 = vpop.f32.mrb[0].mxu0
    %v6395 = vpop.f32.mrb[0].mxu0
    %6396 = vdwg.mxu0
    %v6397 = vadd.f32 %v6119, %v6350
    %v6398 = vadd.f32 %v6120, %v6352
    %v6399 = vadd.f32 %v6121, %v6391
    %v6400 = vadd.f32 %v6122, %v6393
    %v6401 = vxor.u32 %v6397, 2147483648
    %v6402 = vxor.u32 %v6398, 2147483648
    %v6403 = vxor.u32 %v6399, 2147483648
    %v6404 = vmul.f32 %v6401, 1.442695
    %v6405 = vpow.pop %v6404
    %v6406 = vmul.f32 %v6402, 1.442695
    %v6407 = vpow.pop %v6406
    %v6408 = vmul.f32 %v6403, 1.442695
    %v6409 = vpow.pop %v6408
    %v6410 = vadd.f32 %v6405, 1.0
    %v6411 = vadd.f32 %v6407, 1.0
    %v6412 = vadd.f32 %v6409, 1.0
    %v6413 = vrcp.pop %v6410
    %v6414 = vmul.f32 1.0, %v6413
    %v6415 = vrcp.pop %v6411
    %v6416 = vmul.f32 1.0, %v6415
    %v6417 = vrcp.pop %v6412
    %v6418 = vmul.f32 1.0, %v6417
    %v6419 = vtanh.pop %v6400
    %v6420 = vmul.f32 %v6416, 0.0
    %v6421 = vmul.f32 %v6414, %v6419
    %v6422 = vadd.f32 %v6420, %v6421
    %v6423 = vtanh.pop %v6422
    %v6424 = vmul.f32 %v6418, %v6423
    %6425 = vst [vmem:[#allocation3] sm:$0xff] %v6424
    %v6426 = vld [vmem:[%s666] sm:$0xff]
    %v6427 = vld [vmem:[%s666 + $0x8] sm:$0xff]
    %v6428 = vld [vmem:[%s666 + $0x10] sm:$0xff]
    %v6429 = vld [vmem:[%s666 + $0x18] sm:$0xff]
    %v6430 = vpack.c.bf16 %v6424, %v6424
    %v6431 = vld [vmem:[#allocation9] sm:$0xff]
    %v6432 = vld [vmem:[#allocation9 + $0x8] sm:$0xff]
    %v6433 = vld [vmem:[#allocation9 + $0x10] sm:$0xff]
    %v6434 = vld [vmem:[#allocation9 + $0x18] sm:$0xff]
    %v6435 = vld [vmem:[#allocation9 + $0x20] sm:$0xff]
    %v6436 = vld [vmem:[#allocation9 + $0x28] sm:$0xff]
    %v6437 = vld [vmem:[#allocation9 + $0x30] sm:$0xff]
    %v6438 = vld [vmem:[#allocation9 + $0x38] sm:$0xff]
    %v6439 = vld [vmem:[#allocation9 + $0x40] sm:$0xff]
    %v6440 = vld [vmem:[#allocation9 + $0x48] sm:$0xff]
    %v6441 = vld [vmem:[#allocation9 + $0x50] sm:$0xff]
    %v6442 = vld [vmem:[#allocation9 + $0x58] sm:$0xff]
    %v6443 = vld [vmem:[#allocation9 + $0x60] sm:$0xff]
    %v6444 = vld [vmem:[#allocation9 + $0x68] sm:$0xff]
    %v6445 = vld [vmem:[#allocation9 + $0x70] sm:$0xff]
    %v6446 = vld [vmem:[#allocation9 + $0x78] sm:$0xff]
    %v6447 = vld [vmem:[#allocation9 + $0x80] sm:$0xff]
    %v6448 = vld [vmem:[#allocation9 + $0x88] sm:$0xff]
    %v6449 = vld [vmem:[#allocation9 + $0x90] sm:$0xff]
    %v6450 = vld [vmem:[#allocation9 + $0x98] sm:$0xff]
    %v6451 = vld [vmem:[#allocation9 + $0xa0] sm:$0xff]
    %v6452 = vld [vmem:[#allocation9 + $0xa8] sm:$0xff]
    %v6453 = vld [vmem:[#allocation9 + $0xb0] sm:$0xff]
    %v6454 = vld [vmem:[#allocation9 + $0xb8] sm:$0xff]
    %v6455 = vld [vmem:[#allocation9 + $0xc0] sm:$0xff]
    %v6456 = vld [vmem:[#allocation9 + $0xc8] sm:$0xff]
    %v6457 = vld [vmem:[#allocation9 + $0xd0] sm:$0xff]
    %v6458 = vld [vmem:[#allocation9 + $0xd8] sm:$0xff]
    %v6459 = vld [vmem:[#allocation9 + $0xe0] sm:$0xff]
    %v6460 = vld [vmem:[#allocation9 + $0xe8] sm:$0xff]
    %v6461 = vld [vmem:[#allocation9 + $0xf0] sm:$0xff]
    %v6462 = vld [vmem:[#allocation9 + $0xf8] sm:$0xff]
    %v6495 = vunpack.c.l.b16 %v6431
    %v6496 = vunpack.c.h.b16 %v6431
    %v6497 = vunpack.c.l.b16 %v6432
    %v6498 = vunpack.c.h.b16 %v6432
    %v6499 = vunpack.c.l.b16 %v6433
    %v6500 = vunpack.c.h.b16 %v6433
    %v6501 = vunpack.c.l.b16 %v6434
    %v6502 = vunpack.c.h.b16 %v6434
    %v6503 = vunpack.c.l.b16 %v6435
    %v6504 = vunpack.c.h.b16 %v6435
    %v6505 = vunpack.c.l.b16 %v6436
    %v6506 = vunpack.c.h.b16 %v6436
    %v6507 = vunpack.c.l.b16 %v6437
    %v6508 = vunpack.c.h.b16 %v6437
    %v6509 = vunpack.c.l.b16 %v6438
    %v6510 = vunpack.c.h.b16 %v6438
    %v6511 = vunpack.c.l.b16 %v6439
    %v6512 = vunpack.c.h.b16 %v6439
    %v6513 = vunpack.c.l.b16 %v6440
    %v6514 = vunpack.c.h.b16 %v6440
    %v6515 = vunpack.c.l.b16 %v6441
    %v6516 = vunpack.c.h.b16 %v6441
    %v6517 = vunpack.c.l.b16 %v6442
    %v6518 = vunpack.c.h.b16 %v6442
    %v6519 = vunpack.c.l.b16 %v6443
    %v6520 = vunpack.c.h.b16 %v6443
    %v6521 = vunpack.c.l.b16 %v6444
    %v6522 = vunpack.c.h.b16 %v6444
    %v6523 = vunpack.c.l.b16 %v6445
    %v6524 = vunpack.c.h.b16 %v6445
    %v6525 = vunpack.c.l.b16 %v6446
    %v6526 = vunpack.c.h.b16 %v6446
    %v6527 = vunpack.c.l.b16 %v6447
    %v6528 = vunpack.c.h.b16 %v6447
    %v6529 = vunpack.c.l.b16 %v6448
    %v6530 = vunpack.c.h.b16 %v6448
    %v6531 = vunpack.c.l.b16 %v6449
    %v6532 = vunpack.c.h.b16 %v6449
    %v6533 = vunpack.c.l.b16 %v6450
    %v6534 = vunpack.c.h.b16 %v6450
    %v6535 = vunpack.c.l.b16 %v6451
    %v6536 = vunpack.c.h.b16 %v6451
    %v6537 = vunpack.c.l.b16 %v6452
    %v6538 = vunpack.c.h.b16 %v6452
    %v6539 = vunpack.c.l.b16 %v6453
    %v6540 = vunpack.c.h.b16 %v6453
    %v6541 = vunpack.c.l.b16 %v6454
    %v6542 = vunpack.c.h.b16 %v6454
    %v6543 = vunpack.c.l.b16 %v6455
    %v6544 = vunpack.c.h.b16 %v6455
    %v6545 = vunpack.c.l.b16 %v6456
    %v6546 = vunpack.c.h.b16 %v6456
    %v6547 = vunpack.c.l.b16 %v6457
    %v6548 = vunpack.c.h.b16 %v6457
    %v6549 = vunpack.c.l.b16 %v6458
    %v6550 = vunpack.c.h.b16 %v6458
    %v6551 = vunpack.c.l.b16 %v6459
    %v6552 = vunpack.c.h.b16 %v6459
    %v6553 = vunpack.c.l.b16 %v6460
    %v6554 = vunpack.c.h.b16 %v6460
    %v6555 = vunpack.c.l.b16 %v6461
    %v6556 = vunpack.c.h.b16 %v6461
    %v6557 = vunpack.c.l.b16 %v6462
    %v6558 = vunpack.c.h.b16 %v6462
    %v6559 = vpack.c.b16 %v6499, %v6495
    %v6560 = vpack.c.b16 %v6500, %v6496
    %v6561 = vpack.c.b16 %v6501, %v6497
    %v6562 = vpack.c.b16 %v6502, %v6498
    %v6563 = vpack.c.b16 %v6507, %v6503
    %v6564 = vpack.c.b16 %v6508, %v6504
    %v6565 = vpack.c.b16 %v6509, %v6505
    %v6566 = vpack.c.b16 %v6510, %v6506
    %v6567 = vpack.c.b16 %v6515, %v6511
    %v6568 = vpack.c.b16 %v6516, %v6512
    %v6569 = vpack.c.b16 %v6517, %v6513
    %v6570 = vpack.c.b16 %v6518, %v6514
    %v6571 = vpack.c.b16 %v6523, %v6519
    %v6572 = vpack.c.b16 %v6524, %v6520
    %v6573 = vpack.c.b16 %v6525, %v6521
    %v6574 = vpack.c.b16 %v6526, %v6522
    %v6575 = vpack.c.b16 %v6531, %v6527
    %v6576 = vpack.c.b16 %v6532, %v6528
    %v6577 = vpack.c.b16 %v6533, %v6529
    %v6578 = vpack.c.b16 %v6534, %v6530
    %v6579 = vpack.c.b16 %v6539, %v6535
    %v6580 = vpack.c.b16 %v6540, %v6536
    %v6581 = vpack.c.b16 %v6541, %v6537
    %v6582 = vpack.c.b16 %v6542, %v6538
    %v6583 = vpack.c.b16 %v6547, %v6543
    %v6584 = vpack.c.b16 %v6548, %v6544
    %v6585 = vpack.c.b16 %v6549, %v6545
    %v6586 = vpack.c.b16 %v6550, %v6546
    %v6587 = vpack.c.b16 %v6555, %v6551
    %v6588 = vpack.c.b16 %v6556, %v6552
    %v6589 = vpack.c.b16 %v6557, %v6553
    %v6590 = vpack.c.b16 %v6558, %v6554
    %6623 = vmatprep.subr.bf16.mxu0 %v6560
    %6624 = vmatpush1.bf16.msra.mxu0 %v6559
    %6625 = vmatprep.subr.bf16.mxu0 %v6564
    %6626 = vmatpush1.bf16.msra.mxu0 %v6563
    %6627 = vmatprep.subr.bf16.mxu0 %v6568
    %6628 = vmatpush1.bf16.msra.mxu0 %v6567
    %6629 = vmatprep.subr.bf16.mxu0 %v6572
    %6630 = vmatpush1.bf16.msra.mxu0 %v6571
    %6631 = vmatprep.subr.bf16.mxu0 %v6576
    %6632 = vmatpush1.bf16.msra.mxu0 %v6575
    %6633 = vmatprep.subr.bf16.mxu0 %v6580
    %6634 = vmatpush1.bf16.msra.mxu0 %v6579
    %6635 = vmatprep.subr.bf16.mxu0 %v6584
    %6636 = vmatpush1.bf16.msra.mxu0 %v6583
    %6637 = vmatprep.subr.bf16.mxu0 %v6588
    %6638 = vmatpush1.bf16.msra.mxu0 %v6587
    %6639 = vmatprep.subr.bf16.mxu0 0
    %6640 = vmatpush1.bf16.msra.mxu0 0
    %6641 = vmatprep.subr.bf16.mxu0 0
    %6642 = vmatpush1.bf16.msra.mxu0 0
    %6643 = vmatprep.subr.bf16.mxu0 0
    %6644 = vmatpush1.bf16.msra.mxu0 0
    %6645 = vmatprep.subr.bf16.mxu0 0
    %6646 = vmatpush1.bf16.msra.mxu0 0
    %6647 = vmatprep.subr.bf16.mxu0 0
    %6648 = vmatpush1.bf16.msra.mxu0 0
    %6649 = vmatprep.subr.bf16.mxu0 0
    %6650 = vmatpush1.bf16.msra.mxu0 0
    %6651 = vmatprep.subr.bf16.mxu0 0
    %6652 = vmatpush1.bf16.msra.mxu0 0
    %6653 = vmatprep.subr.bf16.mxu0 0
    %6654 = vmatpush1.bf16.msra.mxu0 0
    %6655 = vmatprep.mubr.bf16.mxu0 0
    %6656 = vmatmul.mubr.bf16.gmra.mrb[0].mxu0 %v6430
    %v6657 = vpop.f32.mrb[0].mxu0
    %v6658 = vadd.f32 0.0, %v6657
    %v6659 = vpop.f32.mrb[0].mxu0
    %v6660 = vadd.f32 0.0, %v6659
    %v6661 = vpop.f32.mrb[0].mxu0
    %v6662 = vpop.f32.mrb[0].mxu0
    %6663 = vdwg.mxu0
    %6664 = vmatprep.subr.bf16.mxu0 %v6562
    %6665 = vmatpush1.bf16.msra.mxu0 %v6561
    %6666 = vmatprep.subr.bf16.mxu0 %v6566
    %6667 = vmatpush1.bf16.msra.mxu0 %v6565
    %6668 = vmatprep.subr.bf16.mxu0 %v6570
    %6669 = vmatpush1.bf16.msra.mxu0 %v6569
    %6670 = vmatprep.subr.bf16.mxu0 %v6574
    %6671 = vmatpush1.bf16.msra.mxu0 %v6573
    %6672 = vmatprep.subr.bf16.mxu0 %v6578
    %6673 = vmatpush1.bf16.msra.mxu0 %v6577
    %6674 = vmatprep.subr.bf16.mxu0 %v6582
    %6675 = vmatpush1.bf16.msra.mxu0 %v6581
    %6676 = vmatprep.subr.bf16.mxu0 %v6586
    %6677 = vmatpush1.bf16.msra.mxu0 %v6585
    %6678 = vmatprep.subr.bf16.mxu0 %v6590
    %6679 = vmatpush1.bf16.msra.mxu0 %v6589
    %6680 = vmatprep.subr.bf16.mxu0 0
    %6681 = vmatpush1.bf16.msra.mxu0 0
    %6682 = vmatprep.subr.bf16.mxu0 0
    %6683 = vmatpush1.bf16.msra.mxu0 0
    %6684 = vmatprep.subr.bf16.mxu0 0
    %6685 = vmatpush1.bf16.msra.mxu0 0
    %6686 = vmatprep.subr.bf16.mxu0 0
    %6687 = vmatpush1.bf16.msra.mxu0 0
    %6688 = vmatprep.subr.bf16.mxu0 0
    %6689 = vmatpush1.bf16.msra.mxu0 0
    %6690 = vmatprep.subr.bf16.mxu0 0
    %6691 = vmatpush1.bf16.msra.mxu0 0
    %6692 = vmatprep.subr.bf16.mxu0 0
    %6693 = vmatpush1.bf16.msra.mxu0 0
    %6694 = vmatprep.subr.bf16.mxu0 0
    %6695 = vmatpush1.bf16.msra.mxu0 0
    %6696 = vmatprep.mubr.bf16.mxu0 0
    %6697 = vmatmul.mubr.bf16.gmra.mrb[0].mxu0 %v6430
    %v6698 = vpop.f32.mrb[0].mxu0
    %v6699 = vadd.f32 0.0, %v6698
    %v6700 = vpop.f32.mrb[0].mxu0
    %v6701 = vadd.f32 0.0, %v6700
    %v6702 = vpop.f32.mrb[0].mxu0
    %v6703 = vpop.f32.mrb[0].mxu0
    %6704 = vdwg.mxu0
    %v6705 = vadd.f32 %v6426, %v6658
    %v6706 = vadd.f32 %v6427, %v6660
    %v6707 = vadd.f32 %v6428, %v6699
    %v6708 = vadd.f32 %v6429, %v6701
    %v6709 = vxor.u32 %v6705, 2147483648
    %v6710 = vxor.u32 %v6706, 2147483648
    %v6711 = vxor.u32 %v6707, 2147483648
    %v6712 = vmul.f32 %v6709, 1.442695
    %v6713 = vpow.pop %v6712
    %v6714 = vmul.f32 %v6710, 1.442695
    %v6715 = vpow.pop %v6714
    %v6716 = vmul.f32 %v6711, 1.442695
    %v6717 = vpow.pop %v6716
    %v6718 = vadd.f32 %v6713, 1.0
    %v6719 = vadd.f32 %v6715, 1.0
    %v6720 = vadd.f32 %v6717, 1.0
    %v6721 = vrcp.pop %v6718
    %v6722 = vmul.f32 1.0, %v6721
    %v6723 = vrcp.pop %v6719
    %v6724 = vmul.f32 1.0, %v6723
    %v6725 = vrcp.pop %v6720
    %v6726 = vmul.f32 1.0, %v6725
    %v6727 = vtanh.pop %v6708
    %v6728 = vmul.f32 %v6724, %v6422
    %v6729 = vmul.f32 %v6722, %v6727
    %v6730 = vadd.f32 %v6728, %v6729
    %v6731 = vtanh.pop %v6730
    %v6732 = vmul.f32 %v6726, %v6731
    %6733 = vst [vmem:[%s974] sm:$0xff] %v6732
    %v6734 = vld [vmem:[%s978] sm:$0xff]
    %v6735 = vld [vmem:[%s978 + $0x8] sm:$0xff]
    %v6736 = vld [vmem:[%s978 + $0x10] sm:$0xff]
    %v6737 = vld [vmem:[%s978 + $0x18] sm:$0xff]
    %v6738 = vpack.c.bf16 %v6732, %v6732
    %v6739 = vld [vmem:[#allocation9] sm:$0xff]
    %v6740 = vld [vmem:[#allocation9 + $0x8] sm:$0xff]
    %v6741 = vld [vmem:[#allocation9 + $0x10] sm:$0xff]
    %v6742 = vld [vmem:[#allocation9 + $0x18] sm:$0xff]
    %v6743 = vld [vmem:[#allocation9 + $0x20] sm:$0xff]
    %v6744 = vld [vmem:[#allocation9 + $0x28] sm:$0xff]
    %v6745 = vld [vmem:[#allocation9 + $0x30] sm:$0xff]
    %v6746 = vld [vmem:[#allocation9 + $0x38] sm:$0xff]
    %v6747 = vld [vmem:[#allocation9 + $0x40] sm:$0xff]
    %v6748 = vld [vmem:[#allocation9 + $0x48] sm:$0xff]
    %v6749 = vld [vmem:[#allocation9 + $0x50] sm:$0xff]
    %v6750 = vld [vmem:[#allocation9 + $0x58] sm:$0xff]
    %v6751 = vld [vmem:[#allocation9 + $0x60] sm:$0xff]
    %v6752 = vld [vmem:[#allocation9 + $0x68] sm:$0xff]
    %v6753 = vld [vmem:[#allocation9 + $0x70] sm:$0xff]
    %v6754 = vld [vmem:[#allocation9 + $0x78] sm:$0xff]
    %v6755 = vld [vmem:[#allocation9 + $0x80] sm:$0xff]
    %v6756 = vld [vmem:[#allocation9 + $0x88] sm:$0xff]
    %v6757 = vld [vmem:[#allocation9 + $0x90] sm:$0xff]
    %v6758 = vld [vmem:[#allocation9 + $0x98] sm:$0xff]
    %v6759 = vld [vmem:[#allocation9 + $0xa0] sm:$0xff]
    %v6760 = vld [vmem:[#allocation9 + $0xa8] sm:$0xff]
    %v6761 = vld [vmem:[#allocation9 + $0xb0] sm:$0xff]
    %v6762 = vld [vmem:[#allocation9 + $0xb8] sm:$0xff]
    %v6763 = vld [vmem:[#allocation9 + $0xc0] sm:$0xff]
    %v6764 = vld [vmem:[#allocation9 + $0xc8] sm:$0xff]
    %v6765 = vld [vmem:[#allocation9 + $0xd0] sm:$0xff]
    %v6766 = vld [vmem:[#allocation9 + $0xd8] sm:$0xff]
    %v6767 = vld [vmem:[#allocation9 + $0xe0] sm:$0xff]
    %v6768 = vld [vmem:[#allocation9 + $0xe8] sm:$0xff]
    %v6769 = vld [vmem:[#allocation9 + $0xf0] sm:$0xff]
    %v6770 = vld [vmem:[#allocation9 + $0xf8] sm:$0xff]
    %v6803 = vunpack.c.l.b16 %v6739
    %v6804 = vunpack.c.h.b16 %v6739
    %v6805 = vunpack.c.l.b16 %v6740
    %v6806 = vunpack.c.h.b16 %v6740
    %v6807 = vunpack.c.l.b16 %v6741
    %v6808 = vunpack.c.h.b16 %v6741
    %v6809 = vunpack.c.l.b16 %v6742
    %v6810 = vunpack.c.h.b16 %v6742
    %v6811 = vunpack.c.l.b16 %v6743
    %v6812 = vunpack.c.h.b16 %v6743
    %v6813 = vunpack.c.l.b16 %v6744
    %v6814 = vunpack.c.h.b16 %v6744
    %v6815 = vunpack.c.l.b16 %v6745
    %v6816 = vunpack.c.h.b16 %v6745
    %v6817 = vunpack.c.l.b16 %v6746
    %v6818 = vunpack.c.h.b16 %v6746
    %v6819 = vunpack.c.l.b16 %v6747
    %v6820 = vunpack.c.h.b16 %v6747
    %v6821 = vunpack.c.l.b16 %v6748
    %v6822 = vunpack.c.h.b16 %v6748
    %v6823 = vunpack.c.l.b16 %v6749
    %v6824 = vunpack.c.h.b16 %v6749
    %v6825 = vunpack.c.l.b16 %v6750
    %v6826 = vunpack.c.h.b16 %v6750
    %v6827 = vunpack.c.l.b16 %v6751
    %v6828 = vunpack.c.h.b16 %v6751
    %v6829 = vunpack.c.l.b16 %v6752
    %v6830 = vunpack.c.h.b16 %v6752
    %v6831 = vunpack.c.l.b16 %v6753
    %v6832 = vunpack.c.h.b16 %v6753
    %v6833 = vunpack.c.l.b16 %v6754
    %v6834 = vunpack.c.h.b16 %v6754
    %v6835 = vunpack.c.l.b16 %v6755
    %v6836 = vunpack.c.h.b16 %v6755
    %v6837 = vunpack.c.l.b16 %v6756
    %v6838 = vunpack.c.h.b16 %v6756
    %v6839 = vunpack.c.l.b16 %v6757
    %v6840 = vunpack.c.h.b16 %v6757
    %v6841 = vunpack.c.l.b16 %v6758
    %v6842 = vunpack.c.h.b16 %v6758
    %v6843 = vunpack.c.l.b16 %v6759
    %v6844 = vunpack.c.h.b16 %v6759
    %v6845 = vunpack.c.l.b16 %v6760
    %v6846 = vunpack.c.h.b16 %v6760
    %v6847 = vunpack.c.l.b16 %v6761
    %v6848 = vunpack.c.h.b16 %v6761
    %v6849 = vunpack.c.l.b16 %v6762
    %v6850 = vunpack.c.h.b16 %v6762
    %v6851 = vunpack.c.l.b16 %v6763
    %v6852 = vunpack.c.h.b16 %v6763
    %v6853 = vunpack.c.l.b16 %v6764
    %v6854 = vunpack.c.h.b16 %v6764
    %v6855 = vunpack.c.l.b16 %v6765
    %v6856 = vunpack.c.h.b16 %v6765
    %v6857 = vunpack.c.l.b16 %v6766
    %v6858 = vunpack.c.h.b16 %v6766
    %v6859 = vunpack.c.l.b16 %v6767
    %v6860 = vunpack.c.h.b16 %v6767
    %v6861 = vunpack.c.l.b16 %v6768
    %v6862 = vunpack.c.h.b16 %v6768
    %v6863 = vunpack.c.l.b16 %v6769
    %v6864 = vunpack.c.h.b16 %v6769
    %v6865 = vunpack.c.l.b16 %v6770
    %v6866 = vunpack.c.h.b16 %v6770
    %v6867 = vpack.c.b16 %v6807, %v6803
    %v6868 = vpack.c.b16 %v6808, %v6804
    %v6869 = vpack.c.b16 %v6809, %v6805
    %v6870 = vpack.c.b16 %v6810, %v6806
    %v6871 = vpack.c.b16 %v6815, %v6811
    %v6872 = vpack.c.b16 %v6816, %v6812
    %v6873 = vpack.c.b16 %v6817, %v6813
    %v6874 = vpack.c.b16 %v6818, %v6814
    %v6875 = vpack.c.b16 %v6823, %v6819
    %v6876 = vpack.c.b16 %v6824, %v6820
    %v6877 = vpack.c.b16 %v6825, %v6821
    %v6878 = vpack.c.b16 %v6826, %v6822
    %v6879 = vpack.c.b16 %v6831, %v6827
    %v6880 = vpack.c.b16 %v6832, %v6828
    %v6881 = vpack.c.b16 %v6833, %v6829
    %v6882 = vpack.c.b16 %v6834, %v6830
    %v6883 = vpack.c.b16 %v6839, %v6835
    %v6884 = vpack.c.b16 %v6840, %v6836
    %v6885 = vpack.c.b16 %v6841, %v6837
    %v6886 = vpack.c.b16 %v6842, %v6838
    %v6887 = vpack.c.b16 %v6847, %v6843
    %v6888 = vpack.c.b16 %v6848, %v6844
    %v6889 = vpack.c.b16 %v6849, %v6845
    %v6890 = vpack.c.b16 %v6850, %v6846
    %v6891 = vpack.c.b16 %v6855, %v6851
    %v6892 = vpack.c.b16 %v6856, %v6852
    %v6893 = vpack.c.b16 %v6857, %v6853
    %v6894 = vpack.c.b16 %v6858, %v6854
    %v6895 = vpack.c.b16 %v6863, %v6859
    %v6896 = vpack.c.b16 %v6864, %v6860
    %v6897 = vpack.c.b16 %v6865, %v6861
    %v6898 = vpack.c.b16 %v6866, %v6862
    %6931 = vmatprep.subr.bf16.mxu0 %v6868
    %6932 = vmatpush1.bf16.msra.mxu0 %v6867
    %6933 = vmatprep.subr.bf16.mxu0 %v6872
    %6934 = vmatpush1.bf16.msra.mxu0 %v6871
    %6935 = vmatprep.subr.bf16.mxu0 %v6876
    %6936 = vmatpush1.bf16.msra.mxu0 %v6875
    %6937 = vmatprep.subr.bf16.mxu0 %v6880
    %6938 = vmatpush1.bf16.msra.mxu0 %v6879
    %6939 = vmatprep.subr.bf16.mxu0 %v6884
    %6940 = vmatpush1.bf16.msra.mxu0 %v6883
    %6941 = vmatprep.subr.bf16.mxu0 %v6888
    %6942 = vmatpush1.bf16.msra.mxu0 %v6887
    %6943 = vmatprep.subr.bf16.mxu0 %v6892
    %6944 = vmatpush1.bf16.msra.mxu0 %v6891
    %6945 = vmatprep.subr.bf16.mxu0 %v6896
    %6946 = vmatpush1.bf16.msra.mxu0 %v6895
    %6947 = vmatprep.subr.bf16.mxu0 0
    %6948 = vmatpush1.bf16.msra.mxu0 0
    %6949 = vmatprep.subr.bf16.mxu0 0
    %6950 = vmatpush1.bf16.msra.mxu0 0
    %6951 = vmatprep.subr.bf16.mxu0 0
    %6952 = vmatpush1.bf16.msra.mxu0 0
    %6953 = vmatprep.subr.bf16.mxu0 0
    %6954 = vmatpush1.bf16.msra.mxu0 0
    %6955 = vmatprep.subr.bf16.mxu0 0
    %6956 = vmatpush1.bf16.msra.mxu0 0
    %6957 = vmatprep.subr.bf16.mxu0 0
    %6958 = vmatpush1.bf16.msra.mxu0 0
    %6959 = vmatprep.subr.bf16.mxu0 0
    %6960 = vmatpush1.bf16.msra.mxu0 0
    %6961 = vmatprep.subr.bf16.mxu0 0
    %6962 = vmatpush1.bf16.msra.mxu0 0
    %6963 = vmatprep.mubr.bf16.mxu0 0
    %6964 = vmatmul.mubr.bf16.gmra.mrb[0].mxu0 %v6738
    %v6965 = vpop.f32.mrb[0].mxu0
    %v6966 = vadd.f32 0.0, %v6965
    %v6967 = vpop.f32.mrb[0].mxu0
    %v6968 = vadd.f32 0.0, %v6967
    %v6969 = vpop.f32.mrb[0].mxu0
    %v6970 = vpop.f32.mrb[0].mxu0
    %6971 = vdwg.mxu0
    %6972 = vmatprep.subr.bf16.mxu0 %v6870
    %6973 = vmatpush1.bf16.msra.mxu0 %v6869
    %6974 = vmatprep.subr.bf16.mxu0 %v6874
    %6975 = vmatpush1.bf16.msra.mxu0 %v6873
    %6976 = vmatprep.subr.bf16.mxu0 %v6878
    %6977 = vmatpush1.bf16.msra.mxu0 %v6877
    %6978 = vmatprep.subr.bf16.mxu0 %v6882
    %6979 = vmatpush1.bf16.msra.mxu0 %v6881
    %6980 = vmatprep.subr.bf16.mxu0 %v6886
    %6981 = vmatpush1.bf16.msra.mxu0 %v6885
    %6982 = vmatprep.subr.bf16.mxu0 %v6890
    %6983 = vmatpush1.bf16.msra.mxu0 %v6889
    %6984 = vmatprep.subr.bf16.mxu0 %v6894
    %6985 = vmatpush1.bf16.msra.mxu0 %v6893
    %6986 = vmatprep.subr.bf16.mxu0 %v6898
    %6987 = vmatpush1.bf16.msra.mxu0 %v6897
    %6988 = vmatprep.subr.bf16.mxu0 0
    %6989 = vmatpush1.bf16.msra.mxu0 0
    %6990 = vmatprep.subr.bf16.mxu0 0
    %6991 = vmatpush1.bf16.msra.mxu0 0
    %6992 = vmatprep.subr.bf16.mxu0 0
    %6993 = vmatpush1.bf16.msra.mxu0 0
    %6994 = vmatprep.subr.bf16.mxu0 0
    %6995 = vmatpush1.bf16.msra.mxu0 0
    %6996 = vmatprep.subr.bf16.mxu0 0
    %6997 = vmatpush1.bf16.msra.mxu0 0
    %6998 = vmatprep.subr.bf16.mxu0 0
    %6999 = vmatpush1.bf16.msra.mxu0 0
    %7000 = vmatprep.subr.bf16.mxu0 0
    %7001 = vmatpush1.bf16.msra.mxu0 0
    %7002 = vmatprep.subr.bf16.mxu0 0
    %7003 = vmatpush1.bf16.msra.mxu0 0
    %7004 = vmatprep.mubr.bf16.mxu0 0
    %7005 = vmatmul.mubr.bf16.gmra.mrb[0].mxu0 %v6738
    %v7006 = vpop.f32.mrb[0].mxu0
    %v7007 = vadd.f32 0.0, %v7006
    %v7008 = vpop.f32.mrb[0].mxu0
    %v7009 = vadd.f32 0.0, %v7008
    %v7010 = vpop.f32.mrb[0].mxu0
    %v7011 = vpop.f32.mrb[0].mxu0
    %7012 = vdwg.mxu0
    %v7013 = vadd.f32 %v6734, %v6966
    %v7014 = vadd.f32 %v6735, %v6968
    %v7015 = vadd.f32 %v6736, %v7007
    %v7016 = vadd.f32 %v6737, %v7009
    %v7017 = vxor.u32 %v7013, 2147483648
    %v7018 = vxor.u32 %v7014, 2147483648
    %v7019 = vxor.u32 %v7015, 2147483648
    %v7020 = vmul.f32 %v7017, 1.442695
    %v7021 = vpow.pop %v7020
    %v7022 = vmul.f32 %v7018, 1.442695
    %v7023 = vpow.pop %v7022
    %v7024 = vmul.f32 %v7019, 1.442695
    %v7025 = vpow.pop %v7024
    %v7026 = vadd.f32 %v7021, 1.0
    %v7027 = vadd.f32 %v7023, 1.0
    %v7028 = vadd.f32 %v7025, 1.0
    %v7029 = vrcp.pop %v7026
    %v7030 = vmul.f32 1.0, %v7029
    %v7031 = vrcp.pop %v7027
    %v7032 = vmul.f32 1.0, %v7031
    %v7033 = vrcp.pop %v7028
    %v7034 = vmul.f32 1.0, %v7033
    %v7035 = vtanh.pop %v7016
    %v7036 = vmul.f32 %v7032, %v6730
    %v7037 = vmul.f32 %v7030, %v7035
    %v7038 = vadd.f32 %v7036, %v7037
    %v7039 = vtanh.pop %v7038
    %v7040 = vmul.f32 %v7034, %v7039
    %7041 = vst [vmem:[%s1286] sm:$0xff] %v7040
    %v7042 = vld [vmem:[%s1290] sm:$0xff]
    %v7043 = vld [vmem:[%s1290 + $0x8] sm:$0xff]
    %v7044 = vld [vmem:[%s1290 + $0x10] sm:$0xff]
    %v7045 = vld [vmem:[%s1290 + $0x18] sm:$0xff]
    %v7046 = vpack.c.bf16 %v7040, %v7040
    %v7047 = vld [vmem:[#allocation9] sm:$0xff]
    %v7048 = vld [vmem:[#allocation9 + $0x8] sm:$0xff]
    %v7049 = vld [vmem:[#allocation9 + $0x10] sm:$0xff]
    %v7050 = vld [vmem:[#allocation9 + $0x18] sm:$0xff]
    %v7051 = vld [vmem:[#allocation9 + $0x20] sm:$0xff]
    %v7052 = vld [vmem:[#allocation9 + $0x28] sm:$0xff]
    %v7053 = vld [vmem:[#allocation9 + $0x30] sm:$0xff]
    %v7054 = vld [vmem:[#allocation9 + $0x38] sm:$0xff]
    %v7055 = vld [vmem:[#allocation9 + $0x40] sm:$0xff]
    %v7056 = vld [vmem:[#allocation9 + $0x48] sm:$0xff]
    %v7057 = vld [vmem:[#allocation9 + $0x50] sm:$0xff]
    %v7058 = vld [vmem:[#allocation9 + $0x58] sm:$0xff]
    %v7059 = vld [vmem:[#allocation9 + $0x60] sm:$0xff]
    %v7060 = vld [vmem:[#allocation9 + $0x68] sm:$0xff]
    %v7061 = vld [vmem:[#allocation9 + $0x70] sm:$0xff]
    %v7062 = vld [vmem:[#allocation9 + $0x78] sm:$0xff]
    %v7063 = vld [vmem:[#allocation9 + $0x80] sm:$0xff]
    %v7064 = vld [vmem:[#allocation9 + $0x88] sm:$0xff]
    %v7065 = vld [vmem:[#allocation9 + $0x90] sm:$0xff]
    %v7066 = vld [vmem:[#allocation9 + $0x98] sm:$0xff]
    %v7067 = vld [vmem:[#allocation9 + $0xa0] sm:$0xff]
    %v7068 = vld [vmem:[#allocation9 + $0xa8] sm:$0xff]
    %v7069 = vld [vmem:[#allocation9 + $0xb0] sm:$0xff]
    %v7070 = vld [vmem:[#allocation9 + $0xb8] sm:$0xff]
    %v7071 = vld [vmem:[#allocation9 + $0xc0] sm:$0xff]
    %v7072 = vld [vmem:[#allocation9 + $0xc8] sm:$0xff]
    %v7073 = vld [vmem:[#allocation9 + $0xd0] sm:$0xff]
    %v7074 = vld [vmem:[#allocation9 + $0xd8] sm:$0xff]
    %v7075 = vld [vmem:[#allocation9 + $0xe0] sm:$0xff]
    %v7076 = vld [vmem:[#allocation9 + $0xe8] sm:$0xff]
    %v7077 = vld [vmem:[#allocation9 + $0xf0] sm:$0xff]
    %v7078 = vld [vmem:[#allocation9 + $0xf8] sm:$0xff]
    %v7111 = vunpack.c.l.b16 %v7047
    %v7112 = vunpack.c.h.b16 %v7047
    %v7113 = vunpack.c.l.b16 %v7048
    %v7114 = vunpack.c.h.b16 %v7048
    %v7115 = vunpack.c.l.b16 %v7049
    %v7116 = vunpack.c.h.b16 %v7049
    %v7117 = vunpack.c.l.b16 %v7050
    %v7118 = vunpack.c.h.b16 %v7050
    %v7119 = vunpack.c.l.b16 %v7051
    %v7120 = vunpack.c.h.b16 %v7051
    %v7121 = vunpack.c.l.b16 %v7052
    %v7122 = vunpack.c.h.b16 %v7052
    %v7123 = vunpack.c.l.b16 %v7053
    %v7124 = vunpack.c.h.b16 %v7053
    %v7125 = vunpack.c.l.b16 %v7054
    %v7126 = vunpack.c.h.b16 %v7054
    %v7127 = vunpack.c.l.b16 %v7055
    %v7128 = vunpack.c.h.b16 %v7055
    %v7129 = vunpack.c.l.b16 %v7056
    %v7130 = vunpack.c.h.b16 %v7056
    %v7131 = vunpack.c.l.b16 %v7057
    %v7132 = vunpack.c.h.b16 %v7057
    %v7133 = vunpack.c.l.b16 %v7058
    %v7134 = vunpack.c.h.b16 %v7058
    %v7135 = vunpack.c.l.b16 %v7059
    %v7136 = vunpack.c.h.b16 %v7059
    %v7137 = vunpack.c.l.b16 %v7060
    %v7138 = vunpack.c.h.b16 %v7060
    %v7139 = vunpack.c.l.b16 %v7061
    %v7140 = vunpack.c.h.b16 %v7061
    %v7141 = vunpack.c.l.b16 %v7062
    %v7142 = vunpack.c.h.b16 %v7062
    %v7143 = vunpack.c.l.b16 %v7063
    %v7144 = vunpack.c.h.b16 %v7063
    %v7145 = vunpack.c.l.b16 %v7064
    %v7146 = vunpack.c.h.b16 %v7064
    %v7147 = vunpack.c.l.b16 %v7065
    %v7148 = vunpack.c.h.b16 %v7065
    %v7149 = vunpack.c.l.b16 %v7066
    %v7150 = vunpack.c.h.b16 %v7066
    %v7151 = vunpack.c.l.b16 %v7067
    %v7152 = vunpack.c.h.b16 %v7067
    %v7153 = vunpack.c.l.b16 %v7068
    %v7154 = vunpack.c.h.b16 %v7068
    %v7155 = vunpack.c.l.b16 %v7069
    %v7156 = vunpack.c.h.b16 %v7069
    %v7157 = vunpack.c.l.b16 %v7070
    %v7158 = vunpack.c.h.b16 %v7070
    %v7159 = vunpack.c.l.b16 %v7071
    %v7160 = vunpack.c.h.b16 %v7071
    %v7161 = vunpack.c.l.b16 %v7072
    %v7162 = vunpack.c.h.b16 %v7072
    %v7163 = vunpack.c.l.b16 %v7073
    %v7164 = vunpack.c.h.b16 %v7073
    %v7165 = vunpack.c.l.b16 %v7074
    %v7166 = vunpack.c.h.b16 %v7074
    %v7167 = vunpack.c.l.b16 %v7075
    %v7168 = vunpack.c.h.b16 %v7075
    %v7169 = vunpack.c.l.b16 %v7076
    %v7170 = vunpack.c.h.b16 %v7076
    %v7171 = vunpack.c.l.b16 %v7077
    %v7172 = vunpack.c.h.b16 %v7077
    %v7173 = vunpack.c.l.b16 %v7078
    %v7174 = vunpack.c.h.b16 %v7078
    %v7175 = vpack.c.b16 %v7115, %v7111
    %v7176 = vpack.c.b16 %v7116, %v7112
    %v7177 = vpack.c.b16 %v7117, %v7113
    %v7178 = vpack.c.b16 %v7118, %v7114
    %v7179 = vpack.c.b16 %v7123, %v7119
    %v7180 = vpack.c.b16 %v7124, %v7120
    %v7181 = vpack.c.b16 %v7125, %v7121
    %v7182 = vpack.c.b16 %v7126, %v7122
    %v7183 = vpack.c.b16 %v7131, %v7127
    %v7184 = vpack.c.b16 %v7132, %v7128
    %v7185 = vpack.c.b16 %v7133, %v7129
    %v7186 = vpack.c.b16 %v7134, %v7130
    %v7187 = vpack.c.b16 %v7139, %v7135
    %v7188 = vpack.c.b16 %v7140, %v7136
    %v7189 = vpack.c.b16 %v7141, %v7137
    %v7190 = vpack.c.b16 %v7142, %v7138
    %v7191 = vpack.c.b16 %v7147, %v7143
    %v7192 = vpack.c.b16 %v7148, %v7144
    %v7193 = vpack.c.b16 %v7149, %v7145
    %v7194 = vpack.c.b16 %v7150, %v7146
    %v7195 = vpack.c.b16 %v7155, %v7151
    %v7196 = vpack.c.b16 %v7156, %v7152
    %v7197 = vpack.c.b16 %v7157, %v7153
    %v7198 = vpack.c.b16 %v7158, %v7154
    %v7199 = vpack.c.b16 %v7163, %v7159
    %v7200 = vpack.c.b16 %v7164, %v7160
    %v7201 = vpack.c.b16 %v7165, %v7161
    %v7202 = vpack.c.b16 %v7166, %v7162
    %v7203 = vpack.c.b16 %v7171, %v7167
    %v7204 = vpack.c.b16 %v7172, %v7168
    %v7205 = vpack.c.b16 %v7173, %v7169
    %v7206 = vpack.c.b16 %v7174, %v7170
    %7239 = vmatprep.subr.bf16.mxu0 %v7176
    %7240 = vmatpush1.bf16.msra.mxu0 %v7175
    %7241 = vmatprep.subr.bf16.mxu0 %v7180
    %7242 = vmatpush1.bf16.msra.mxu0 %v7179
    %7243 = vmatprep.subr.bf16.mxu0 %v7184
    %7244 = vmatpush1.bf16.msra.mxu0 %v7183
    %7245 = vmatprep.subr.bf16.mxu0 %v7188
    %7246 = vmatpush1.bf16.msra.mxu0 %v7187
    %7247 = vmatprep.subr.bf16.mxu0 %v7192
    %7248 = vmatpush1.bf16.msra.mxu0 %v7191
    %7249 = vmatprep.subr.bf16.mxu0 %v7196
    %7250 = vmatpush1.bf16.msra.mxu0 %v7195
    %7251 = vmatprep.subr.bf16.mxu0 %v7200
    %7252 = vmatpush1.bf16.msra.mxu0 %v7199
    %7253 = vmatprep.subr.bf16.mxu0 %v7204
    %7254 = vmatpush1.bf16.msra.mxu0 %v7203
    %7255 = vmatprep.subr.bf16.mxu0 0
    %7256 = vmatpush1.bf16.msra.mxu0 0
    %7257 = vmatprep.subr.bf16.mxu0 0
    %7258 = vmatpush1.bf16.msra.mxu0 0
    %7259 = vmatprep.subr.bf16.mxu0 0
    %7260 = vmatpush1.bf16.msra.mxu0 0
    %7261 = vmatprep.subr.bf16.mxu0 0
    %7262 = vmatpush1.bf16.msra.mxu0 0
    %7263 = vmatprep.subr.bf16.mxu0 0
    %7264 = vmatpush1.bf16.msra.mxu0 0
    %7265 = vmatprep.subr.bf16.mxu0 0
    %7266 = vmatpush1.bf16.msra.mxu0 0
    %7267 = vmatprep.subr.bf16.mxu0 0
    %7268 = vmatpush1.bf16.msra.mxu0 0
    %7269 = vmatprep.subr.bf16.mxu0 0
    %7270 = vmatpush1.bf16.msra.mxu0 0
    %7271 = vmatprep.mubr.bf16.mxu0 0
    %7272 = vmatmul.mubr.bf16.gmra.mrb[0].mxu0 %v7046
    %v7273 = vpop.f32.mrb[0].mxu0
    %v7274 = vadd.f32 0.0, %v7273
    %v7275 = vpop.f32.mrb[0].mxu0
    %v7276 = vadd.f32 0.0, %v7275
    %v7277 = vpop.f32.mrb[0].mxu0
    %v7278 = vpop.f32.mrb[0].mxu0
    %7279 = vdwg.mxu0
    %7280 = vmatprep.subr.bf16.mxu0 %v7178
    %7281 = vmatpush1.bf16.msra.mxu0 %v7177
    %7282 = vmatprep.subr.bf16.mxu0 %v7182
    %7283 = vmatpush1.bf16.msra.mxu0 %v7181
    %7284 = vmatprep.subr.bf16.mxu0 %v7186
    %7285 = vmatpush1.bf16.msra.mxu0 %v7185
    %7286 = vmatprep.subr.bf16.mxu0 %v7190
    %7287 = vmatpush1.bf16.msra.mxu0 %v7189
    %7288 = vmatprep.subr.bf16.mxu0 %v7194
    %7289 = vmatpush1.bf16.msra.mxu0 %v7193
    %7290 = vmatprep.subr.bf16.mxu0 %v7198
    %7291 = vmatpush1.bf16.msra.mxu0 %v7197
    %7292 = vmatprep.subr.bf16.mxu0 %v7202
    %7293 = vmatpush1.bf16.msra.mxu0 %v7201
    %7294 = vmatprep.subr.bf16.mxu0 %v7206
    %7295 = vmatpush1.bf16.msra.mxu0 %v7205
    %7296 = vmatprep.subr.bf16.mxu0 0
    %7297 = vmatpush1.bf16.msra.mxu0 0
    %7298 = vmatprep.subr.bf16.mxu0 0
    %7299 = vmatpush1.bf16.msra.mxu0 0
    %7300 = vmatprep.subr.bf16.mxu0 0
    %7301 = vmatpush1.bf16.msra.mxu0 0
    %7302 = vmatprep.subr.bf16.mxu0 0
    %7303 = vmatpush1.bf16.msra.mxu0 0
    %7304 = vmatprep.subr.bf16.mxu0 0
    %7305 = vmatpush1.bf16.msra.mxu0 0
    %7306 = vmatprep.subr.bf16.mxu0 0
    %7307 = vmatpush1.bf16.msra.mxu0 0
    %7308 = vmatprep.subr.bf16.mxu0 0
    %7309 = vmatpush1.bf16.msra.mxu0 0
    %7310 = vmatprep.subr.bf16.mxu0 0
    %7311 = vmatpush1.bf16.msra.mxu0 0
    %7312 = vmatprep.mubr.bf16.mxu0 0
    %7313 = vmatmul.mubr.bf16.gmra.mrb[0].mxu0 %v7046
    %v7314 = vpop.f32.mrb[0].mxu0
    %v7315 = vadd.f32 0.0, %v7314
    %v7316 = vpop.f32.mrb[0].mxu0
    %v7317 = vadd.f32 0.0, %v7316
    %v7318 = vpop.f32.mrb[0].mxu0
    %v7319 = vpop.f32.mrb[0].mxu0
    %7320 = vdwg.mxu0
    %v7321 = vadd.f32 %v7042, %v7274
    %v7322 = vadd.f32 %v7043, %v7276
    %v7323 = vadd.f32 %v7044, %v7315
    %v7324 = vadd.f32 %v7045, %v7317
    %v7325 = vxor.u32 %v7321, 2147483648
    %v7326 = vxor.u32 %v7322, 2147483648
    %v7327 = vxor.u32 %v7323, 2147483648
    %v7328 = vmul.f32 %v7325, 1.442695
    %v7329 = vpow.pop %v7328
    %v7330 = vmul.f32 %v7326, 1.442695
    %v7331 = vpow.pop %v7330
    %v7332 = vmul.f32 %v7327, 1.442695
    %v7333 = vpow.pop %v7332
    %v7334 = vadd.f32 %v7329, 1.0
    %v7335 = vadd.f32 %v7331, 1.0
    %v7336 = vadd.f32 %v7333, 1.0
    %v7337 = vrcp.pop %v7334
    %v7338 = vmul.f32 1.0, %v7337
    %v7339 = vrcp.pop %v7335
    %v7340 = vmul.f32 1.0, %v7339
    %v7341 = vrcp.pop %v7336
    %v7342 = vmul.f32 1.0, %v7341
    %v7343 = vtanh.pop %v7324
    %v7344 = vmul.f32 %v7340, %v7038
    %v7345 = vmul.f32 %v7338, %v7343
    %v7346 = vadd.f32 %v7344, %v7345
    %v7347 = vtanh.pop %v7346
    %v7348 = vmul.f32 %v7342, %v7347
    %7349 = vst [vmem:[%s1598] sm:$0xff] %v7348
    %v7350 = vld [vmem:[%s1602] sm:$0xff]
    %v7351 = vld [vmem:[%s1602 + $0x8] sm:$0xff]
    %v7352 = vld [vmem:[%s1602 + $0x10] sm:$0xff]
    %v7353 = vld [vmem:[%s1602 + $0x18] sm:$0xff]
    %v7354 = vpack.c.bf16 %v7348, %v7348
    %v7355 = vld [vmem:[#allocation9] sm:$0xff]
    %v7356 = vld [vmem:[#allocation9 + $0x8] sm:$0xff]
    %v7357 = vld [vmem:[#allocation9 + $0x10] sm:$0xff]
    %v7358 = vld [vmem:[#allocation9 + $0x18] sm:$0xff]
    %v7359 = vld [vmem:[#allocation9 + $0x20] sm:$0xff]
    %v7360 = vld [vmem:[#allocation9 + $0x28] sm:$0xff]
    %v7361 = vld [vmem:[#allocation9 + $0x30] sm:$0xff]
    %v7362 = vld [vmem:[#allocation9 + $0x38] sm:$0xff]
    %v7363 = vld [vmem:[#allocation9 + $0x40] sm:$0xff]
    %v7364 = vld [vmem:[#allocation9 + $0x48] sm:$0xff]
    %v7365 = vld [vmem:[#allocation9 + $0x50] sm:$0xff]
    %v7366 = vld [vmem:[#allocation9 + $0x58] sm:$0xff]
    %v7367 = vld [vmem:[#allocation9 + $0x60] sm:$0xff]
    %v7368 = vld [vmem:[#allocation9 + $0x68] sm:$0xff]
    %v7369 = vld [vmem:[#allocation9 + $0x70] sm:$0xff]
    %v7370 = vld [vmem:[#allocation9 + $0x78] sm:$0xff]
    %v7371 = vld [vmem:[#allocation9 + $0x80] sm:$0xff]
    %v7372 = vld [vmem:[#allocation9 + $0x88] sm:$0xff]
    %v7373 = vld [vmem:[#allocation9 + $0x90] sm:$0xff]
    %v7374 = vld [vmem:[#allocation9 + $0x98] sm:$0xff]
    %v7375 = vld [vmem:[#allocation9 + $0xa0] sm:$0xff]
    %v7376 = vld [vmem:[#allocation9 + $0xa8] sm:$0xff]
    %v7377 = vld [vmem:[#allocation9 + $0xb0] sm:$0xff]
    %v7378 = vld [vmem:[#allocation9 + $0xb8] sm:$0xff]
    %v7379 = vld [vmem:[#allocation9 + $0xc0] sm:$0xff]
    %v7380 = vld [vmem:[#allocation9 + $0xc8] sm:$0xff]
    %v7381 = vld [vmem:[#allocation9 + $0xd0] sm:$0xff]
    %v7382 = vld [vmem:[#allocation9 + $0xd8] sm:$0xff]
    %v7383 = vld [vmem:[#allocation9 + $0xe0] sm:$0xff]
    %v7384 = vld [vmem:[#allocation9 + $0xe8] sm:$0xff]
    %v7385 = vld [vmem:[#allocation9 + $0xf0] sm:$0xff]
    %v7386 = vld [vmem:[#allocation9 + $0xf8] sm:$0xff]
    %v7419 = vunpack.c.l.b16 %v7355
    %v7420 = vunpack.c.h.b16 %v7355
    %v7421 = vunpack.c.l.b16 %v7356
    %v7422 = vunpack.c.h.b16 %v7356
    %v7423 = vunpack.c.l.b16 %v7357
    %v7424 = vunpack.c.h.b16 %v7357
    %v7425 = vunpack.c.l.b16 %v7358
    %v7426 = vunpack.c.h.b16 %v7358
    %v7427 = vunpack.c.l.b16 %v7359
    %v7428 = vunpack.c.h.b16 %v7359
    %v7429 = vunpack.c.l.b16 %v7360
    %v7430 = vunpack.c.h.b16 %v7360
    %v7431 = vunpack.c.l.b16 %v7361
    %v7432 = vunpack.c.h.b16 %v7361
    %v7433 = vunpack.c.l.b16 %v7362
    %v7434 = vunpack.c.h.b16 %v7362
    %v7435 = vunpack.c.l.b16 %v7363
    %v7436 = vunpack.c.h.b16 %v7363
    %v7437 = vunpack.c.l.b16 %v7364
    %v7438 = vunpack.c.h.b16 %v7364
    %v7439 = vunpack.c.l.b16 %v7365
    %v7440 = vunpack.c.h.b16 %v7365
    %v7441 = vunpack.c.l.b16 %v7366
    %v7442 = vunpack.c.h.b16 %v7366
    %v7443 = vunpack.c.l.b16 %v7367
    %v7444 = vunpack.c.h.b16 %v7367
    %v7445 = vunpack.c.l.b16 %v7368
    %v7446 = vunpack.c.h.b16 %v7368
    %v7447 = vunpack.c.l.b16 %v7369
    %v7448 = vunpack.c.h.b16 %v7369
    %v7449 = vunpack.c.l.b16 %v7370
    %v7450 = vunpack.c.h.b16 %v7370
    %v7451 = vunpack.c.l.b16 %v7371
    %v7452 = vunpack.c.h.b16 %v7371
    %v7453 = vunpack.c.l.b16 %v7372
    %v7454 = vunpack.c.h.b16 %v7372
    %v7455 = vunpack.c.l.b16 %v7373
    %v7456 = vunpack.c.h.b16 %v7373
    %v7457 = vunpack.c.l.b16 %v7374
    %v7458 = vunpack.c.h.b16 %v7374
    %v7459 = vunpack.c.l.b16 %v7375
    %v7460 = vunpack.c.h.b16 %v7375
    %v7461 = vunpack.c.l.b16 %v7376
    %v7462 = vunpack.c.h.b16 %v7376
    %v7463 = vunpack.c.l.b16 %v7377
    %v7464 = vunpack.c.h.b16 %v7377
    %v7465 = vunpack.c.l.b16 %v7378
    %v7466 = vunpack.c.h.b16 %v7378
    %v7467 = vunpack.c.l.b16 %v7379
    %v7468 = vunpack.c.h.b16 %v7379
    %v7469 = vunpack.c.l.b16 %v7380
    %v7470 = vunpack.c.h.b16 %v7380
    %v7471 = vunpack.c.l.b16 %v7381
    %v7472 = vunpack.c.h.b16 %v7381
    %v7473 = vunpack.c.l.b16 %v7382
    %v7474 = vunpack.c.h.b16 %v7382
    %v7475 = vunpack.c.l.b16 %v7383
    %v7476 = vunpack.c.h.b16 %v7383
    %v7477 = vunpack.c.l.b16 %v7384
    %v7478 = vunpack.c.h.b16 %v7384
    %v7479 = vunpack.c.l.b16 %v7385
    %v7480 = vunpack.c.h.b16 %v7385
    %v7481 = vunpack.c.l.b16 %v7386
    %v7482 = vunpack.c.h.b16 %v7386
    %v7483 = vpack.c.b16 %v7423, %v7419
    %v7484 = vpack.c.b16 %v7424, %v7420
    %v7485 = vpack.c.b16 %v7425, %v7421
    %v7486 = vpack.c.b16 %v7426, %v7422
    %v7487 = vpack.c.b16 %v7431, %v7427
    %v7488 = vpack.c.b16 %v7432, %v7428
    %v7489 = vpack.c.b16 %v7433, %v7429
    %v7490 = vpack.c.b16 %v7434, %v7430
    %v7491 = vpack.c.b16 %v7439, %v7435
    %v7492 = vpack.c.b16 %v7440, %v7436
    %v7493 = vpack.c.b16 %v7441, %v7437
    %v7494 = vpack.c.b16 %v7442, %v7438
    %v7495 = vpack.c.b16 %v7447, %v7443
    %v7496 = vpack.c.b16 %v7448, %v7444
    %v7497 = vpack.c.b16 %v7449, %v7445
    %v7498 = vpack.c.b16 %v7450, %v7446
    %v7499 = vpack.c.b16 %v7455, %v7451
    %v7500 = vpack.c.b16 %v7456, %v7452
    %v7501 = vpack.c.b16 %v7457, %v7453
    %v7502 = vpack.c.b16 %v7458, %v7454
    %v7503 = vpack.c.b16 %v7463, %v7459
    %v7504 = vpack.c.b16 %v7464, %v7460
    %v7505 = vpack.c.b16 %v7465, %v7461
    %v7506 = vpack.c.b16 %v7466, %v7462
    %v7507 = vpack.c.b16 %v7471, %v7467
    %v7508 = vpack.c.b16 %v7472, %v7468
    %v7509 = vpack.c.b16 %v7473, %v7469
    %v7510 = vpack.c.b16 %v7474, %v7470
    %v7511 = vpack.c.b16 %v7479, %v7475
    %v7512 = vpack.c.b16 %v7480, %v7476
    %v7513 = vpack.c.b16 %v7481, %v7477
    %v7514 = vpack.c.b16 %v7482, %v7478
    %7547 = vmatprep.subr.bf16.mxu0 %v7484
    %7548 = vmatpush1.bf16.msra.mxu0 %v7483
    %7549 = vmatprep.subr.bf16.mxu0 %v7488
    %7550 = vmatpush1.bf16.msra.mxu0 %v7487
    %7551 = vmatprep.subr.bf16.mxu0 %v7492
    %7552 = vmatpush1.bf16.msra.mxu0 %v7491
    %7553 = vmatprep.subr.bf16.mxu0 %v7496
    %7554 = vmatpush1.bf16.msra.mxu0 %v7495
    %7555 = vmatprep.subr.bf16.mxu0 %v7500
    %7556 = vmatpush1.bf16.msra.mxu0 %v7499
    %7557 = vmatprep.subr.bf16.mxu0 %v7504
    %7558 = vmatpush1.bf16.msra.mxu0 %v7503
    %7559 = vmatprep.subr.bf16.mxu0 %v7508
    %7560 = vmatpush1.bf16.msra.mxu0 %v7507
    %7561 = vmatprep.subr.bf16.mxu0 %v7512
    %7562 = vmatpush1.bf16.msra.mxu0 %v7511
    %7563 = vmatprep.subr.bf16.mxu0 0
    %7564 = vmatpush1.bf16.msra.mxu0 0
    %7565 = vmatprep.subr.bf16.mxu0 0
    %7566 = vmatpush1.bf16.msra.mxu0 0
    %7567 = vmatprep.subr.bf16.mxu0 0
    %7568 = vmatpush1.bf16.msra.mxu0 0
    %7569 = vmatprep.subr.bf16.mxu0 0
    %7570 = vmatpush1.bf16.msra.mxu0 0
    %7571 = vmatprep.subr.bf16.mxu0 0
    %7572 = vmatpush1.bf16.msra.mxu0 0
    %7573 = vmatprep.subr.bf16.mxu0 0
    %7574 = vmatpush1.bf16.msra.mxu0 0
    %7575 = vmatprep.subr.bf16.mxu0 0
    %7576 = vmatpush1.bf16.msra.mxu0 0
    %7577 = vmatprep.subr.bf16.mxu0 0
    %7578 = vmatpush1.bf16.msra.mxu0 0
    %7579 = vmatprep.mubr.bf16.mxu0 0
    %7580 = vmatmul.mubr.bf16.gmra.mrb[0].mxu0 %v7354
    %v7581 = vpop.f32.mrb[0].mxu0
    %v7582 = vadd.f32 0.0, %v7581
    %v7583 = vpop.f32.mrb[0].mxu0
    %v7584 = vadd.f32 0.0, %v7583
    %v7585 = vpop.f32.mrb[0].mxu0
    %v7586 = vpop.f32.mrb[0].mxu0
    %7587 = vdwg.mxu0
    %7588 = vmatprep.subr.bf16.mxu0 %v7486
    %7589 = vmatpush1.bf16.msra.mxu0 %v7485
    %7590 = vmatprep.subr.bf16.mxu0 %v7490
    %7591 = vmatpush1.bf16.msra.mxu0 %v7489
    %7592 = vmatprep.subr.bf16.mxu0 %v7494
    %7593 = vmatpush1.bf16.msra.mxu0 %v7493
    %7594 = vmatprep.subr.bf16.mxu0 %v7498
    %7595 = vmatpush1.bf16.msra.mxu0 %v7497
    %7596 = vmatprep.subr.bf16.mxu0 %v7502
    %7597 = vmatpush1.bf16.msra.mxu0 %v7501
    %7598 = vmatprep.subr.bf16.mxu0 %v7506
    %7599 = vmatpush1.bf16.msra.mxu0 %v7505
    %7600 = vmatprep.subr.bf16.mxu0 %v7510
    %7601 = vmatpush1.bf16.msra.mxu0 %v7509
    %7602 = vmatprep.subr.bf16.mxu0 %v7514
    %7603 = vmatpush1.bf16.msra.mxu0 %v7513
    %7604 = vmatprep.subr.bf16.mxu0 0
    %7605 = vmatpush1.bf16.msra.mxu0 0
    %7606 = vmatprep.subr.bf16.mxu0 0
    %7607 = vmatpush1.bf16.msra.mxu0 0
    %7608 = vmatprep.subr.bf16.mxu0 0
    %7609 = vmatpush1.bf16.msra.mxu0 0
    %7610 = vmatprep.subr.bf16.mxu0 0
    %7611 = vmatpush1.bf16.msra.mxu0 0
    %7612 = vmatprep.subr.bf16.mxu0 0
    %7613 = vmatpush1.bf16.msra.mxu0 0
    %7614 = vmatprep.subr.bf16.mxu0 0
    %7615 = vmatpush1.bf16.msra.mxu0 0
    %7616 = vmatprep.subr.bf16.mxu0 0
    %7617 = vmatpush1.bf16.msra.mxu0 0
    %7618 = vmatprep.subr.bf16.mxu0 0
    %7619 = vmatpush1.bf16.msra.mxu0 0
    %7620 = vmatprep.mubr.bf16.mxu0 0
    %7621 = vmatmul.mubr.bf16.gmra.mrb[0].mxu0 %v7354
    %v7622 = vpop.f32.mrb[0].mxu0
    %v7623 = vadd.f32 0.0, %v7622
    %v7624 = vpop.f32.mrb[0].mxu0
    %v7625 = vadd.f32 0.0, %v7624
    %v7626 = vpop.f32.mrb[0].mxu0
    %v7627 = vpop.f32.mrb[0].mxu0
    %7628 = vdwg.mxu0
    %v7629 = vadd.f32 %v7350, %v7582
    %v7630 = vadd.f32 %v7351, %v7584
    %v7631 = vadd.f32 %v7352, %v7623
    %v7632 = vadd.f32 %v7353, %v7625
    %v7633 = vxor.u32 %v7629, 2147483648
    %v7634 = vxor.u32 %v7630, 2147483648
    %v7635 = vxor.u32 %v7631, 2147483648
    %v7636 = vmul.f32 %v7633, 1.442695
    %v7637 = vpow.pop %v7636
    %v7638 = vmul.f32 %v7634, 1.442695
    %v7639 = vpow.pop %v7638
    %v7640 = vmul.f32 %v7635, 1.442695
    %v7641 = vpow.pop %v7640
    %v7642 = vadd.f32 %v7637, 1.0
    %v7643 = vadd.f32 %v7639, 1.0
    %v7644 = vadd.f32 %v7641, 1.0
    %v7645 = vrcp.pop %v7642
    %v7646 = vmul.f32 1.0, %v7645
    %v7647 = vrcp.pop %v7643
    %v7648 = vmul.f32 1.0, %v7647
    %v7649 = vrcp.pop %v7644
    %v7650 = vmul.f32 1.0, %v7649
    %v7651 = vtanh.pop %v7632
    %v7652 = vmul.f32 %v7648, %v7346
    %v7653 = vmul.f32 %v7646, %v7651
    %v7654 = vadd.f32 %v7652, %v7653
    %v7655 = vtanh.pop %v7654
    %v7656 = vmul.f32 %v7650, %v7655
    %7657 = vst [vmem:[%s1910] sm:$0xff] %v7656
    %v7658 = vld [vmem:[%s1914] sm:$0xff]
    %v7659 = vld [vmem:[%s1914 + $0x8] sm:$0xff]
    %v7660 = vld [vmem:[%s1914 + $0x10] sm:$0xff]
    %v7661 = vld [vmem:[%s1914 + $0x18] sm:$0xff]
    %v7662 = vpack.c.bf16 %v7656, %v7656
    %v7663 = vld [vmem:[#allocation9] sm:$0xff]
    %v7664 = vld [vmem:[#allocation9 + $0x8] sm:$0xff]
    %v7665 = vld [vmem:[#allocation9 + $0x10] sm:$0xff]
    %v7666 = vld [vmem:[#allocation9 + $0x18] sm:$0xff]
    %v7667 = vld [vmem:[#allocation9 + $0x20] sm:$0xff]
    %v7668 = vld [vmem:[#allocation9 + $0x28] sm:$0xff]
    %v7669 = vld [vmem:[#allocation9 + $0x30] sm:$0xff]
    %v7670 = vld [vmem:[#allocation9 + $0x38] sm:$0xff]
    %v7671 = vld [vmem:[#allocation9 + $0x40] sm:$0xff]
    %v7672 = vld [vmem:[#allocation9 + $0x48] sm:$0xff]
    %v7673 = vld [vmem:[#allocation9 + $0x50] sm:$0xff]
    %v7674 = vld [vmem:[#allocation9 + $0x58] sm:$0xff]
    %v7675 = vld [vmem:[#allocation9 + $0x60] sm:$0xff]
    %v7676 = vld [vmem:[#allocation9 + $0x68] sm:$0xff]
    %v7677 = vld [vmem:[#allocation9 + $0x70] sm:$0xff]
    %v7678 = vld [vmem:[#allocation9 + $0x78] sm:$0xff]
    %v7679 = vld [vmem:[#allocation9 + $0x80] sm:$0xff]
    %v7680 = vld [vmem:[#allocation9 + $0x88] sm:$0xff]
    %v7681 = vld [vmem:[#allocation9 + $0x90] sm:$0xff]
    %v7682 = vld [vmem:[#allocation9 + $0x98] sm:$0xff]
    %v7683 = vld [vmem:[#allocation9 + $0xa0] sm:$0xff]
    %v7684 = vld [vmem:[#allocation9 + $0xa8] sm:$0xff]
    %v7685 = vld [vmem:[#allocation9 + $0xb0] sm:$0xff]
    %v7686 = vld [vmem:[#allocation9 + $0xb8] sm:$0xff]
    %v7687 = vld [vmem:[#allocation9 + $0xc0] sm:$0xff]
    %v7688 = vld [vmem:[#allocation9 + $0xc8] sm:$0xff]
    %v7689 = vld [vmem:[#allocation9 + $0xd0] sm:$0xff]
    %v7690 = vld [vmem:[#allocation9 + $0xd8] sm:$0xff]
    %v7691 = vld [vmem:[#allocation9 + $0xe0] sm:$0xff]
    %v7692 = vld [vmem:[#allocation9 + $0xe8] sm:$0xff]
    %v7693 = vld [vmem:[#allocation9 + $0xf0] sm:$0xff]
    %v7694 = vld [vmem:[#allocation9 + $0xf8] sm:$0xff]
    %v7727 = vunpack.c.l.b16 %v7663
    %v7728 = vunpack.c.h.b16 %v7663
    %v7729 = vunpack.c.l.b16 %v7664
    %v7730 = vunpack.c.h.b16 %v7664
    %v7731 = vunpack.c.l.b16 %v7665
    %v7732 = vunpack.c.h.b16 %v7665
    %v7733 = vunpack.c.l.b16 %v7666
    %v7734 = vunpack.c.h.b16 %v7666
    %v7735 = vunpack.c.l.b16 %v7667
    %v7736 = vunpack.c.h.b16 %v7667
    %v7737 = vunpack.c.l.b16 %v7668
    %v7738 = vunpack.c.h.b16 %v7668
    %v7739 = vunpack.c.l.b16 %v7669
    %v7740 = vunpack.c.h.b16 %v7669
    %v7741 = vunpack.c.l.b16 %v7670
    %v7742 = vunpack.c.h.b16 %v7670
    %v7743 = vunpack.c.l.b16 %v7671
    %v7744 = vunpack.c.h.b16 %v7671
    %v7745 = vunpack.c.l.b16 %v7672
    %v7746 = vunpack.c.h.b16 %v7672
    %v7747 = vunpack.c.l.b16 %v7673
    %v7748 = vunpack.c.h.b16 %v7673
    %v7749 = vunpack.c.l.b16 %v7674
    %v7750 = vunpack.c.h.b16 %v7674
    %v7751 = vunpack.c.l.b16 %v7675
    %v7752 = vunpack.c.h.b16 %v7675
    %v7753 = vunpack.c.l.b16 %v7676
    %v7754 = vunpack.c.h.b16 %v7676
    %v7755 = vunpack.c.l.b16 %v7677
    %v7756 = vunpack.c.h.b16 %v7677
    %v7757 = vunpack.c.l.b16 %v7678
    %v7758 = vunpack.c.h.b16 %v7678
    %v7759 = vunpack.c.l.b16 %v7679
    %v7760 = vunpack.c.h.b16 %v7679
    %v7761 = vunpack.c.l.b16 %v7680
    %v7762 = vunpack.c.h.b16 %v7680
    %v7763 = vunpack.c.l.b16 %v7681
    %v7764 = vunpack.c.h.b16 %v7681
    %v7765 = vunpack.c.l.b16 %v7682
    %v7766 = vunpack.c.h.b16 %v7682
    %v7767 = vunpack.c.l.b16 %v7683
    %v7768 = vunpack.c.h.b16 %v7683
    %v7769 = vunpack.c.l.b16 %v7684
    %v7770 = vunpack.c.h.b16 %v7684
    %v7771 = vunpack.c.l.b16 %v7685
    %v7772 = vunpack.c.h.b16 %v7685
    %v7773 = vunpack.c.l.b16 %v7686
    %v7774 = vunpack.c.h.b16 %v7686
    %v7775 = vunpack.c.l.b16 %v7687
    %v7776 = vunpack.c.h.b16 %v7687
    %v7777 = vunpack.c.l.b16 %v7688
    %v7778 = vunpack.c.h.b16 %v7688
    %v7779 = vunpack.c.l.b16 %v7689
    %v7780 = vunpack.c.h.b16 %v7689
    %v7781 = vunpack.c.l.b16 %v7690
    %v7782 = vunpack.c.h.b16 %v7690
    %v7783 = vunpack.c.l.b16 %v7691
    %v7784 = vunpack.c.h.b16 %v7691
    %v7785 = vunpack.c.l.b16 %v7692
    %v7786 = vunpack.c.h.b16 %v7692
    %v7787 = vunpack.c.l.b16 %v7693
    %v7788 = vunpack.c.h.b16 %v7693
    %v7789 = vunpack.c.l.b16 %v7694
    %v7790 = vunpack.c.h.b16 %v7694
    %v7791 = vpack.c.b16 %v7731, %v7727
    %v7792 = vpack.c.b16 %v7732, %v7728
    %v7793 = vpack.c.b16 %v7733, %v7729
    %v7794 = vpack.c.b16 %v7734, %v7730
    %v7795 = vpack.c.b16 %v7739, %v7735
    %v7796 = vpack.c.b16 %v7740, %v7736
    %v7797 = vpack.c.b16 %v7741, %v7737
    %v7798 = vpack.c.b16 %v7742, %v7738
    %v7799 = vpack.c.b16 %v7747, %v7743
    %v7800 = vpack.c.b16 %v7748, %v7744
    %v7801 = vpack.c.b16 %v7749, %v7745
    %v7802 = vpack.c.b16 %v7750, %v7746
    %v7803 = vpack.c.b16 %v7755, %v7751
    %v7804 = vpack.c.b16 %v7756, %v7752
    %v7805 = vpack.c.b16 %v7757, %v7753
    %v7806 = vpack.c.b16 %v7758, %v7754
    %v7807 = vpack.c.b16 %v7763, %v7759
    %v7808 = vpack.c.b16 %v7764, %v7760
    %v7809 = vpack.c.b16 %v7765, %v7761
    %v7810 = vpack.c.b16 %v7766, %v7762
    %v7811 = vpack.c.b16 %v7771, %v7767
    %v7812 = vpack.c.b16 %v7772, %v7768
    %v7813 = vpack.c.b16 %v7773, %v7769
    %v7814 = vpack.c.b16 %v7774, %v7770
    %v7815 = vpack.c.b16 %v7779, %v7775
    %v7816 = vpack.c.b16 %v7780, %v7776
    %v7817 = vpack.c.b16 %v7781, %v7777
    %v7818 = vpack.c.b16 %v7782, %v7778
    %v7819 = vpack.c.b16 %v7787, %v7783
    %v7820 = vpack.c.b16 %v7788, %v7784
    %v7821 = vpack.c.b16 %v7789, %v7785
    %v7822 = vpack.c.b16 %v7790, %v7786
    %7855 = vmatprep.subr.bf16.mxu0 %v7792
    %7856 = vmatpush1.bf16.msra.mxu0 %v7791
    %7857 = vmatprep.subr.bf16.mxu0 %v7796
    %7858 = vmatpush1.bf16.msra.mxu0 %v7795
    %7859 = vmatprep.subr.bf16.mxu0 %v7800
    %7860 = vmatpush1.bf16.msra.mxu0 %v7799
    %7861 = vmatprep.subr.bf16.mxu0 %v7804
    %7862 = vmatpush1.bf16.msra.mxu0 %v7803
    %7863 = vmatprep.subr.bf16.mxu0 %v7808
    %7864 = vmatpush1.bf16.msra.mxu0 %v7807
    %7865 = vmatprep.subr.bf16.mxu0 %v7812
    %7866 = vmatpush1.bf16.msra.mxu0 %v7811
    %7867 = vmatprep.subr.bf16.mxu0 %v7816
    %7868 = vmatpush1.bf16.msra.mxu0 %v7815
    %7869 = vmatprep.subr.bf16.mxu0 %v7820
    %7870 = vmatpush1.bf16.msra.mxu0 %v7819
    %7871 = vmatprep.subr.bf16.mxu0 0
    %7872 = vmatpush1.bf16.msra.mxu0 0
    %7873 = vmatprep.subr.bf16.mxu0 0
    %7874 = vmatpush1.bf16.msra.mxu0 0
    %7875 = vmatprep.subr.bf16.mxu0 0
    %7876 = vmatpush1.bf16.msra.mxu0 0
    %7877 = vmatprep.subr.bf16.mxu0 0
    %7878 = vmatpush1.bf16.msra.mxu0 0
    %7879 = vmatprep.subr.bf16.mxu0 0
    %7880 = vmatpush1.bf16.msra.mxu0 0
    %7881 = vmatprep.subr.bf16.mxu0 0
    %7882 = vmatpush1.bf16.msra.mxu0 0
    %7883 = vmatprep.subr.bf16.mxu0 0
    %7884 = vmatpush1.bf16.msra.mxu0 0
    %7885 = vmatprep.subr.bf16.mxu0 0
    %7886 = vmatpush1.bf16.msra.mxu0 0
    %7887 = vmatprep.mubr.bf16.mxu0 0
    %7888 = vmatmul.mubr.bf16.gmra.mrb[0].mxu0 %v7662
    %v7889 = vpop.f32.mrb[0].mxu0
    %v7890 = vadd.f32 0.0, %v7889
    %v7891 = vpop.f32.mrb[0].mxu0
    %v7892 = vadd.f32 0.0, %v7891
    %v7893 = vpop.f32.mrb[0].mxu0
    %v7894 = vpop.f32.mrb[0].mxu0
    %7895 = vdwg.mxu0
    %7896 = vmatprep.subr.bf16.mxu0 %v7794
    %7897 = vmatpush1.bf16.msra.mxu0 %v7793
    %7898 = vmatprep.subr.bf16.mxu0 %v7798
    %7899 = vmatpush1.bf16.msra.mxu0 %v7797
    %7900 = vmatprep.subr.bf16.mxu0 %v7802
    %7901 = vmatpush1.bf16.msra.mxu0 %v7801
    %7902 = vmatprep.subr.bf16.mxu0 %v7806
    %7903 = vmatpush1.bf16.msra.mxu0 %v7805
    %7904 = vmatprep.subr.bf16.mxu0 %v7810
    %7905 = vmatpush1.bf16.msra.mxu0 %v7809
    %7906 = vmatprep.subr.bf16.mxu0 %v7814
    %7907 = vmatpush1.bf16.msra.mxu0 %v7813
    %7908 = vmatprep.subr.bf16.mxu0 %v7818
    %7909 = vmatpush1.bf16.msra.mxu0 %v7817
    %7910 = vmatprep.subr.bf16.mxu0 %v7822
    %7911 = vmatpush1.bf16.msra.mxu0 %v7821
    %7912 = vmatprep.subr.bf16.mxu0 0
    %7913 = vmatpush1.bf16.msra.mxu0 0
    %7914 = vmatprep.subr.bf16.mxu0 0
    %7915 = vmatpush1.bf16.msra.mxu0 0
    %7916 = vmatprep.subr.bf16.mxu0 0
    %7917 = vmatpush1.bf16.msra.mxu0 0
    %7918 = vmatprep.subr.bf16.mxu0 0
    %7919 = vmatpush1.bf16.msra.mxu0 0
    %7920 = vmatprep.subr.bf16.mxu0 0
    %7921 = vmatpush1.bf16.msra.mxu0 0
    %7922 = vmatprep.subr.bf16.mxu0 0
    %7923 = vmatpush1.bf16.msra.mxu0 0
    %7924 = vmatprep.subr.bf16.mxu0 0
    %7925 = vmatpush1.bf16.msra.mxu0 0
    %7926 = vmatprep.subr.bf16.mxu0 0
    %7927 = vmatpush1.bf16.msra.mxu0 0
    %7928 = vmatprep.mubr.bf16.mxu0 0
    %7929 = vmatmul.mubr.bf16.gmra.mrb[0].mxu0 %v7662
    %v7930 = vpop.f32.mrb[0].mxu0
    %v7931 = vadd.f32 0.0, %v7930
    %v7932 = vpop.f32.mrb[0].mxu0
    %v7933 = vadd.f32 0.0, %v7932
    %v7934 = vpop.f32.mrb[0].mxu0
    %v7935 = vpop.f32.mrb[0].mxu0
    %7936 = vdwg.mxu0
    %v7937 = vadd.f32 %v7658, %v7890
    %v7938 = vadd.f32 %v7659, %v7892
    %v7939 = vadd.f32 %v7660, %v7931
    %v7940 = vadd.f32 %v7661, %v7933
    %v7941 = vxor.u32 %v7937, 2147483648
    %v7942 = vxor.u32 %v7938, 2147483648
    %v7943 = vxor.u32 %v7939, 2147483648
    %v7944 = vmul.f32 %v7941, 1.442695
    %v7945 = vpow.pop %v7944
    %v7946 = vmul.f32 %v7942, 1.442695
    %v7947 = vpow.pop %v7946
    %v7948 = vmul.f32 %v7943, 1.442695
    %v7949 = vpow.pop %v7948
    %v7950 = vadd.f32 %v7945, 1.0
    %v7951 = vadd.f32 %v7947, 1.0
    %v7952 = vadd.f32 %v7949, 1.0
    %v7953 = vrcp.pop %v7950
    %v7954 = vmul.f32 1.0, %v7953
    %v7955 = vrcp.pop %v7951
    %v7956 = vmul.f32 1.0, %v7955
    %v7957 = vrcp.pop %v7952
    %v7958 = vmul.f32 1.0, %v7957
    %v7959 = vtanh.pop %v7940
    %v7960 = vmul.f32 %v7956, %v7654
    %v7961 = vmul.f32 %v7954, %v7959
    %v7962 = vadd.f32 %v7960, %v7961
    %v7963 = vtanh.pop %v7962
    %v7964 = vmul.f32 %v7958, %v7963
    %7965 = vst [vmem:[%s2222] sm:$0xff] %v7964
    %v7966 = vld [vmem:[%s2226] sm:$0xff]
    %v7967 = vld [vmem:[%s2226 + $0x8] sm:$0xff]
    %v7968 = vld [vmem:[%s2226 + $0x10] sm:$0xff]
    %v7969 = vld [vmem:[%s2226 + $0x18] sm:$0xff]
    %v7970 = vpack.c.bf16 %v7964, %v7964
    %v7971 = vld [vmem:[#allocation9] sm:$0xff]
    %v7972 = vld [vmem:[#allocation9 + $0x8] sm:$0xff]
    %v7973 = vld [vmem:[#allocation9 + $0x10] sm:$0xff]
    %v7974 = vld [vmem:[#allocation9 + $0x18] sm:$0xff]
    %v7975 = vld [vmem:[#allocation9 + $0x20] sm:$0xff]
    %v7976 = vld [vmem:[#allocation9 + $0x28] sm:$0xff]
    %v7977 = vld [vmem:[#allocation9 + $0x30] sm:$0xff]
    %v7978 = vld [vmem:[#allocation9 + $0x38] sm:$0xff]
    %v7979 = vld [vmem:[#allocation9 + $0x40] sm:$0xff]
    %v7980 = vld [vmem:[#allocation9 + $0x48] sm:$0xff]
    %v7981 = vld [vmem:[#allocation9 + $0x50] sm:$0xff]
    %v7982 = vld [vmem:[#allocation9 + $0x58] sm:$0xff]
    %v7983 = vld [vmem:[#allocation9 + $0x60] sm:$0xff]
    %v7984 = vld [vmem:[#allocation9 + $0x68] sm:$0xff]
    %v7985 = vld [vmem:[#allocation9 + $0x70] sm:$0xff]
    %v7986 = vld [vmem:[#allocation9 + $0x78] sm:$0xff]
    %v7987 = vld [vmem:[#allocation9 + $0x80] sm:$0xff]
    %v7988 = vld [vmem:[#allocation9 + $0x88] sm:$0xff]
    %v7989 = vld [vmem:[#allocation9 + $0x90] sm:$0xff]
    %v7990 = vld [vmem:[#allocation9 + $0x98] sm:$0xff]
    %v7991 = vld [vmem:[#allocation9 + $0xa0] sm:$0xff]
    %v7992 = vld [vmem:[#allocation9 + $0xa8] sm:$0xff]
    %v7993 = vld [vmem:[#allocation9 + $0xb0] sm:$0xff]
    %v7994 = vld [vmem:[#allocation9 + $0xb8] sm:$0xff]
    %v7995 = vld [vmem:[#allocation9 + $0xc0] sm:$0xff]
    %v7996 = vld [vmem:[#allocation9 + $0xc8] sm:$0xff]
    %v7997 = vld [vmem:[#allocation9 + $0xd0] sm:$0xff]
    %v7998 = vld [vmem:[#allocation9 + $0xd8] sm:$0xff]
    %v7999 = vld [vmem:[#allocation9 + $0xe0] sm:$0xff]
    %v8000 = vld [vmem:[#allocation9 + $0xe8] sm:$0xff]
    %v8001 = vld [vmem:[#allocation9 + $0xf0] sm:$0xff]
    %v8002 = vld [vmem:[#allocation9 + $0xf8] sm:$0xff]
    %v8035 = vunpack.c.l.b16 %v7971
    %v8036 = vunpack.c.h.b16 %v7971
    %v8037 = vunpack.c.l.b16 %v7972
    %v8038 = vunpack.c.h.b16 %v7972
    %v8039 = vunpack.c.l.b16 %v7973
    %v8040 = vunpack.c.h.b16 %v7973
    %v8041 = vunpack.c.l.b16 %v7974
    %v8042 = vunpack.c.h.b16 %v7974
    %v8043 = vunpack.c.l.b16 %v7975
    %v8044 = vunpack.c.h.b16 %v7975
    %v8045 = vunpack.c.l.b16 %v7976
    %v8046 = vunpack.c.h.b16 %v7976
    %v8047 = vunpack.c.l.b16 %v7977
    %v8048 = vunpack.c.h.b16 %v7977
    %v8049 = vunpack.c.l.b16 %v7978
    %v8050 = vunpack.c.h.b16 %v7978
    %v8051 = vunpack.c.l.b16 %v7979
    %v8052 = vunpack.c.h.b16 %v7979
    %v8053 = vunpack.c.l.b16 %v7980
    %v8054 = vunpack.c.h.b16 %v7980
    %v8055 = vunpack.c.l.b16 %v7981
    %v8056 = vunpack.c.h.b16 %v7981
    %v8057 = vunpack.c.l.b16 %v7982
    %v8058 = vunpack.c.h.b16 %v7982
    %v8059 = vunpack.c.l.b16 %v7983
    %v8060 = vunpack.c.h.b16 %v7983
    %v8061 = vunpack.c.l.b16 %v7984
    %v8062 = vunpack.c.h.b16 %v7984
    %v8063 = vunpack.c.l.b16 %v7985
    %v8064 = vunpack.c.h.b16 %v7985
    %v8065 = vunpack.c.l.b16 %v7986
    %v8066 = vunpack.c.h.b16 %v7986
    %v8067 = vunpack.c.l.b16 %v7987
    %v8068 = vunpack.c.h.b16 %v7987
    %v8069 = vunpack.c.l.b16 %v7988
    %v8070 = vunpack.c.h.b16 %v7988
    %v8071 = vunpack.c.l.b16 %v7989
    %v8072 = vunpack.c.h.b16 %v7989
    %v8073 = vunpack.c.l.b16 %v7990
    %v8074 = vunpack.c.h.b16 %v7990
    %v8075 = vunpack.c.l.b16 %v7991
    %v8076 = vunpack.c.h.b16 %v7991
    %v8077 = vunpack.c.l.b16 %v7992
    %v8078 = vunpack.c.h.b16 %v7992
    %v8079 = vunpack.c.l.b16 %v7993
    %v8080 = vunpack.c.h.b16 %v7993
    %v8081 = vunpack.c.l.b16 %v7994
    %v8082 = vunpack.c.h.b16 %v7994
    %v8083 = vunpack.c.l.b16 %v7995
    %v8084 = vunpack.c.h.b16 %v7995
    %v8085 = vunpack.c.l.b16 %v7996
    %v8086 = vunpack.c.h.b16 %v7996
    %v8087 = vunpack.c.l.b16 %v7997
    %v8088 = vunpack.c.h.b16 %v7997
    %v8089 = vunpack.c.l.b16 %v7998
    %v8090 = vunpack.c.h.b16 %v7998
    %v8091 = vunpack.c.l.b16 %v7999
    %v8092 = vunpack.c.h.b16 %v7999
    %v8093 = vunpack.c.l.b16 %v8000
    %v8094 = vunpack.c.h.b16 %v8000
    %v8095 = vunpack.c.l.b16 %v8001
    %v8096 = vunpack.c.h.b16 %v8001
    %v8097 = vunpack.c.l.b16 %v8002
    %v8098 = vunpack.c.h.b16 %v8002
    %v8099 = vpack.c.b16 %v8039, %v8035
    %v8100 = vpack.c.b16 %v8040, %v8036
    %v8101 = vpack.c.b16 %v8041, %v8037
    %v8102 = vpack.c.b16 %v8042, %v8038
    %v8103 = vpack.c.b16 %v8047, %v8043
    %v8104 = vpack.c.b16 %v8048, %v8044
    %v8105 = vpack.c.b16 %v8049, %v8045
    %v8106 = vpack.c.b16 %v8050, %v8046
    %v8107 = vpack.c.b16 %v8055, %v8051
    %v8108 = vpack.c.b16 %v8056, %v8052
    %v8109 = vpack.c.b16 %v8057, %v8053
    %v8110 = vpack.c.b16 %v8058, %v8054
    %v8111 = vpack.c.b16 %v8063, %v8059
    %v8112 = vpack.c.b16 %v8064, %v8060
    %v8113 = vpack.c.b16 %v8065, %v8061
    %v8114 = vpack.c.b16 %v8066, %v8062
    %v8115 = vpack.c.b16 %v8071, %v8067
    %v8116 = vpack.c.b16 %v8072, %v8068
    %v8117 = vpack.c.b16 %v8073, %v8069
    %v8118 = vpack.c.b16 %v8074, %v8070
    %v8119 = vpack.c.b16 %v8079, %v8075
    %v8120 = vpack.c.b16 %v8080, %v8076
    %v8121 = vpack.c.b16 %v8081, %v8077
    %v8122 = vpack.c.b16 %v8082, %v8078
    %v8123 = vpack.c.b16 %v8087, %v8083
    %v8124 = vpack.c.b16 %v8088, %v8084
    %v8125 = vpack.c.b16 %v8089, %v8085
    %v8126 = vpack.c.b16 %v8090, %v8086
    %v8127 = vpack.c.b16 %v8095, %v8091
    %v8128 = vpack.c.b16 %v8096, %v8092
    %v8129 = vpack.c.b16 %v8097, %v8093
    %v8130 = vpack.c.b16 %v8098, %v8094
    %8163 = vmatprep.subr.bf16.mxu0 %v8100
    %8164 = vmatpush1.bf16.msra.mxu0 %v8099
    %8165 = vmatprep.subr.bf16.mxu0 %v8104
    %8166 = vmatpush1.bf16.msra.mxu0 %v8103
    %8167 = vmatprep.subr.bf16.mxu0 %v8108
    %8168 = vmatpush1.bf16.msra.mxu0 %v8107
    %8169 = vmatprep.subr.bf16.mxu0 %v8112
    %8170 = vmatpush1.bf16.msra.mxu0 %v8111
    %8171 = vmatprep.subr.bf16.mxu0 %v8116
    %8172 = vmatpush1.bf16.msra.mxu0 %v8115
    %8173 = vmatprep.subr.bf16.mxu0 %v8120
    %8174 = vmatpush1.bf16.msra.mxu0 %v8119
    %8175 = vmatprep.subr.bf16.mxu0 %v8124
    %8176 = vmatpush1.bf16.msra.mxu0 %v8123
    %8177 = vmatprep.subr.bf16.mxu0 %v8128
    %8178 = vmatpush1.bf16.msra.mxu0 %v8127
    %8179 = vmatprep.subr.bf16.mxu0 0
    %8180 = vmatpush1.bf16.msra.mxu0 0
    %8181 = vmatprep.subr.bf16.mxu0 0
    %8182 = vmatpush1.bf16.msra.mxu0 0
    %8183 = vmatprep.subr.bf16.mxu0 0
    %8184 = vmatpush1.bf16.msra.mxu0 0
    %8185 = vmatprep.subr.bf16.mxu0 0
    %8186 = vmatpush1.bf16.msra.mxu0 0
    %8187 = vmatprep.subr.bf16.mxu0 0
    %8188 = vmatpush1.bf16.msra.mxu0 0
    %8189 = vmatprep.subr.bf16.mxu0 0
    %8190 = vmatpush1.bf16.msra.mxu0 0
    %8191 = vmatprep.subr.bf16.mxu0 0
    %8192 = vmatpush1.bf16.msra.mxu0 0
    %8193 = vmatprep.subr.bf16.mxu0 0
    %8194 = vmatpush1.bf16.msra.mxu0 0
    %8195 = vmatprep.mubr.bf16.mxu0 0
    %8196 = vmatmul.mubr.bf16.gmra.mrb[0].mxu0 %v7970
    %v8197 = vpop.f32.mrb[0].mxu0
    %v8198 = vadd.f32 0.0, %v8197
    %v8199 = vpop.f32.mrb[0].mxu0
    %v8200 = vadd.f32 0.0, %v8199
    %v8201 = vpop.f32.mrb[0].mxu0
    %v8202 = vpop.f32.mrb[0].mxu0
    %8203 = vdwg.mxu0
    %8204 = vmatprep.subr.bf16.mxu0 %v8102
    %8205 = vmatpush1.bf16.msra.mxu0 %v8101
    %8206 = vmatprep.subr.bf16.mxu0 %v8106
    %8207 = vmatpush1.bf16.msra.mxu0 %v8105
    %8208 = vmatprep.subr.bf16.mxu0 %v8110
    %8209 = vmatpush1.bf16.msra.mxu0 %v8109
    %8210 = vmatprep.subr.bf16.mxu0 %v8114
    %8211 = vmatpush1.bf16.msra.mxu0 %v8113
    %8212 = vmatprep.subr.bf16.mxu0 %v8118
    %8213 = vmatpush1.bf16.msra.mxu0 %v8117
    %8214 = vmatprep.subr.bf16.mxu0 %v8122
    %8215 = vmatpush1.bf16.msra.mxu0 %v8121
    %8216 = vmatprep.subr.bf16.mxu0 %v8126
    %8217 = vmatpush1.bf16.msra.mxu0 %v8125
    %8218 = vmatprep.subr.bf16.mxu0 %v8130
    %8219 = vmatpush1.bf16.msra.mxu0 %v8129
    %8220 = vmatprep.subr.bf16.mxu0 0
    %8221 = vmatpush1.bf16.msra.mxu0 0
    %8222 = vmatprep.subr.bf16.mxu0 0
    %8223 = vmatpush1.bf16.msra.mxu0 0
    %8224 = vmatprep.subr.bf16.mxu0 0
    %8225 = vmatpush1.bf16.msra.mxu0 0
    %8226 = vmatprep.subr.bf16.mxu0 0
    %8227 = vmatpush1.bf16.msra.mxu0 0
    %8228 = vmatprep.subr.bf16.mxu0 0
    %8229 = vmatpush1.bf16.msra.mxu0 0
    %8230 = vmatprep.subr.bf16.mxu0 0
    %8231 = vmatpush1.bf16.msra.mxu0 0
    %8232 = vmatprep.subr.bf16.mxu0 0
    %8233 = vmatpush1.bf16.msra.mxu0 0
    %8234 = vmatprep.subr.bf16.mxu0 0
    %8235 = vmatpush1.bf16.msra.mxu0 0
    %8236 = vmatprep.mubr.bf16.mxu0 0
    %8237 = vmatmul.mubr.bf16.gmra.mrb[0].mxu0 %v7970
    %v8238 = vpop.f32.mrb[0].mxu0
    %v8239 = vadd.f32 0.0, %v8238
    %v8240 = vpop.f32.mrb[0].mxu0
    %v8241 = vadd.f32 0.0, %v8240
    %v8242 = vpop.f32.mrb[0].mxu0
    %v8243 = vpop.f32.mrb[0].mxu0
    %8244 = vdwg.mxu0
    %v8245 = vadd.f32 %v7966, %v8198
    %v8246 = vadd.f32 %v7967, %v8200
    %v8247 = vadd.f32 %v7968, %v8239
    %v8248 = vadd.f32 %v7969, %v8241
    %v8249 = vxor.u32 %v8245, 2147483648
    %v8250 = vxor.u32 %v8246, 2147483648
    %v8251 = vxor.u32 %v8247, 2147483648
    %v8252 = vmul.f32 %v8249, 1.442695
    %v8253 = vpow.pop %v8252
    %v8254 = vmul.f32 %v8250, 1.442695
    %v8255 = vpow.pop %v8254
    %v8256 = vmul.f32 %v8251, 1.442695
    %v8257 = vpow.pop %v8256
    %v8258 = vadd.f32 %v8253, 1.0
    %v8259 = vadd.f32 %v8255, 1.0
    %v8260 = vadd.f32 %v8257, 1.0
    %v8261 = vrcp.pop %v8258
    %v8262 = vmul.f32 1.0, %v8261
    %v8263 = vrcp.pop %v8259
    %v8264 = vmul.f32 1.0, %v8263
    %v8265 = vrcp.pop %v8260
    %v8266 = vmul.f32 1.0, %v8265
    %v8267 = vtanh.pop %v8248
    %v8268 = vmul.f32 %v8264, %v7962
    %v8269 = vmul.f32 %v8262, %v8267
    %v8270 = vadd.f32 %v8268, %v8269
    %v8271 = vtanh.pop %v8270
    %v8272 = vmul.f32 %v8266, %v8271
    %8273 = vst [vmem:[%s2534] sm:$0xff] %v8272
    %v8274 = vld [vmem:[%s2538] sm:$0xff]
    %v8275 = vld [vmem:[%s2538 + $0x8] sm:$0xff]
    %v8276 = vld [vmem:[%s2538 + $0x10] sm:$0xff]
    %v8277 = vld [vmem:[%s2538 + $0x18] sm:$0xff]
    %v8278 = vpack.c.bf16 %v8272, %v8272
    %v8279 = vld [vmem:[#allocation9] sm:$0xff]
    %v8280 = vld [vmem:[#allocation9 + $0x8] sm:$0xff]
    %v8281 = vld [vmem:[#allocation9 + $0x10] sm:$0xff]
    %v8282 = vld [vmem:[#allocation9 + $0x18] sm:$0xff]
    %v8283 = vld [vmem:[#allocation9 + $0x20] sm:$0xff]
    %v8284 = vld [vmem:[#allocation9 + $0x28] sm:$0xff]
    %v8285 = vld [vmem:[#allocation9 + $0x30] sm:$0xff]
    %v8286 = vld [vmem:[#allocation9 + $0x38] sm:$0xff]
    %v8287 = vld [vmem:[#allocation9 + $0x40] sm:$0xff]
    %v8288 = vld [vmem:[#allocation9 + $0x48] sm:$0xff]
    %v8289 = vld [vmem:[#allocation9 + $0x50] sm:$0xff]
    %v8290 = vld [vmem:[#allocation9 + $0x58] sm:$0xff]
    %v8291 = vld [vmem:[#allocation9 + $0x60] sm:$0xff]
    %v8292 = vld [vmem:[#allocation9 + $0x68] sm:$0xff]
    %v8293 = vld [vmem:[#allocation9 + $0x70] sm:$0xff]
    %v8294 = vld [vmem:[#allocation9 + $0x78] sm:$0xff]
    %v8295 = vld [vmem:[#allocation9 + $0x80] sm:$0xff]
    %v8296 = vld [vmem:[#allocation9 + $0x88] sm:$0xff]
    %v8297 = vld [vmem:[#allocation9 + $0x90] sm:$0xff]
    %v8298 = vld [vmem:[#allocation9 + $0x98] sm:$0xff]
    %v8299 = vld [vmem:[#allocation9 + $0xa0] sm:$0xff]
    %v8300 = vld [vmem:[#allocation9 + $0xa8] sm:$0xff]
    %v8301 = vld [vmem:[#allocation9 + $0xb0] sm:$0xff]
    %v8302 = vld [vmem:[#allocation9 + $0xb8] sm:$0xff]
    %v8303 = vld [vmem:[#allocation9 + $0xc0] sm:$0xff]
    %v8304 = vld [vmem:[#allocation9 + $0xc8] sm:$0xff]
    %v8305 = vld [vmem:[#allocation9 + $0xd0] sm:$0xff]
    %v8306 = vld [vmem:[#allocation9 + $0xd8] sm:$0xff]
    %v8307 = vld [vmem:[#allocation9 + $0xe0] sm:$0xff]
    %v8308 = vld [vmem:[#allocation9 + $0xe8] sm:$0xff]
    %v8309 = vld [vmem:[#allocation9 + $0xf0] sm:$0xff]
    %v8310 = vld [vmem:[#allocation9 + $0xf8] sm:$0xff]
    %v8343 = vunpack.c.l.b16 %v8279
    %v8344 = vunpack.c.h.b16 %v8279
    %v8345 = vunpack.c.l.b16 %v8280
    %v8346 = vunpack.c.h.b16 %v8280
    %v8347 = vunpack.c.l.b16 %v8281
    %v8348 = vunpack.c.h.b16 %v8281
    %v8349 = vunpack.c.l.b16 %v8282
    %v8350 = vunpack.c.h.b16 %v8282
    %v8351 = vunpack.c.l.b16 %v8283
    %v8352 = vunpack.c.h.b16 %v8283
    %v8353 = vunpack.c.l.b16 %v8284
    %v8354 = vunpack.c.h.b16 %v8284
    %v8355 = vunpack.c.l.b16 %v8285
    %v8356 = vunpack.c.h.b16 %v8285
    %v8357 = vunpack.c.l.b16 %v8286
    %v8358 = vunpack.c.h.b16 %v8286
    %v8359 = vunpack.c.l.b16 %v8287
    %v8360 = vunpack.c.h.b16 %v8287
    %v8361 = vunpack.c.l.b16 %v8288
    %v8362 = vunpack.c.h.b16 %v8288
    %v8363 = vunpack.c.l.b16 %v8289
    %v8364 = vunpack.c.h.b16 %v8289
    %v8365 = vunpack.c.l.b16 %v8290
    %v8366 = vunpack.c.h.b16 %v8290
    %v8367 = vunpack.c.l.b16 %v8291
    %v8368 = vunpack.c.h.b16 %v8291
    %v8369 = vunpack.c.l.b16 %v8292
    %v8370 = vunpack.c.h.b16 %v8292
    %v8371 = vunpack.c.l.b16 %v8293
    %v8372 = vunpack.c.h.b16 %v8293
    %v8373 = vunpack.c.l.b16 %v8294
    %v8374 = vunpack.c.h.b16 %v8294
    %v8375 = vunpack.c.l.b16 %v8295
    %v8376 = vunpack.c.h.b16 %v8295
    %v8377 = vunpack.c.l.b16 %v8296
    %v8378 = vunpack.c.h.b16 %v8296
    %v8379 = vunpack.c.l.b16 %v8297
    %v8380 = vunpack.c.h.b16 %v8297
    %v8381 = vunpack.c.l.b16 %v8298
    %v8382 = vunpack.c.h.b16 %v8298
    %v8383 = vunpack.c.l.b16 %v8299
    %v8384 = vunpack.c.h.b16 %v8299
    %v8385 = vunpack.c.l.b16 %v8300
    %v8386 = vunpack.c.h.b16 %v8300
    %v8387 = vunpack.c.l.b16 %v8301
    %v8388 = vunpack.c.h.b16 %v8301
    %v8389 = vunpack.c.l.b16 %v8302
    %v8390 = vunpack.c.h.b16 %v8302
    %v8391 = vunpack.c.l.b16 %v8303
    %v8392 = vunpack.c.h.b16 %v8303
    %v8393 = vunpack.c.l.b16 %v8304
    %v8394 = vunpack.c.h.b16 %v8304
    %v8395 = vunpack.c.l.b16 %v8305
    %v8396 = vunpack.c.h.b16 %v8305
    %v8397 = vunpack.c.l.b16 %v8306
    %v8398 = vunpack.c.h.b16 %v8306
    %v8399 = vunpack.c.l.b16 %v8307
    %v8400 = vunpack.c.h.b16 %v8307
    %v8401 = vunpack.c.l.b16 %v8308
    %v8402 = vunpack.c.h.b16 %v8308
    %v8403 = vunpack.c.l.b16 %v8309
    %v8404 = vunpack.c.h.b16 %v8309
    %v8405 = vunpack.c.l.b16 %v8310
    %v8406 = vunpack.c.h.b16 %v8310
    %v8407 = vpack.c.b16 %v8347, %v8343
    %v8408 = vpack.c.b16 %v8348, %v8344
    %v8409 = vpack.c.b16 %v8349, %v8345
    %v8410 = vpack.c.b16 %v8350, %v8346
    %v8411 = vpack.c.b16 %v8355, %v8351
    %v8412 = vpack.c.b16 %v8356, %v8352
    %v8413 = vpack.c.b16 %v8357, %v8353
    %v8414 = vpack.c.b16 %v8358, %v8354
    %v8415 = vpack.c.b16 %v8363, %v8359
    %v8416 = vpack.c.b16 %v8364, %v8360
    %v8417 = vpack.c.b16 %v8365, %v8361
    %v8418 = vpack.c.b16 %v8366, %v8362
    %v8419 = vpack.c.b16 %v8371, %v8367
    %v8420 = vpack.c.b16 %v8372, %v8368
    %v8421 = vpack.c.b16 %v8373, %v8369
    %v8422 = vpack.c.b16 %v8374, %v8370
    %v8423 = vpack.c.b16 %v8379, %v8375
    %v8424 = vpack.c.b16 %v8380, %v8376
    %v8425 = vpack.c.b16 %v8381, %v8377
    %v8426 = vpack.c.b16 %v8382, %v8378
    %v8427 = vpack.c.b16 %v8387, %v8383
    %v8428 = vpack.c.b16 %v8388, %v8384
    %v8429 = vpack.c.b16 %v8389, %v8385
    %v8430 = vpack.c.b16 %v8390, %v8386
    %v8431 = vpack.c.b16 %v8395, %v8391
    %v8432 = vpack.c.b16 %v8396, %v8392
    %v8433 = vpack.c.b16 %v8397, %v8393
    %v8434 = vpack.c.b16 %v8398, %v8394
    %v8435 = vpack.c.b16 %v8403, %v8399
    %v8436 = vpack.c.b16 %v8404, %v8400
    %v8437 = vpack.c.b16 %v8405, %v8401
    %v8438 = vpack.c.b16 %v8406, %v8402
    %8471 = vmatprep.subr.bf16.mxu0 %v8408
    %8472 = vmatpush1.bf16.msra.mxu0 %v8407
    %8473 = vmatprep.subr.bf16.mxu0 %v8412
    %8474 = vmatpush1.bf16.msra.mxu0 %v8411
    %8475 = vmatprep.subr.bf16.mxu0 %v8416
    %8476 = vmatpush1.bf16.msra.mxu0 %v8415
    %8477 = vmatprep.subr.bf16.mxu0 %v8420
    %8478 = vmatpush1.bf16.msra.mxu0 %v8419
    %8479 = vmatprep.subr.bf16.mxu0 %v8424
    %8480 = vmatpush1.bf16.msra.mxu0 %v8423
    %8481 = vmatprep.subr.bf16.mxu0 %v8428
    %8482 = vmatpush1.bf16.msra.mxu0 %v8427
    %8483 = vmatprep.subr.bf16.mxu0 %v8432
    %8484 = vmatpush1.bf16.msra.mxu0 %v8431
    %8485 = vmatprep.subr.bf16.mxu0 %v8436
    %8486 = vmatpush1.bf16.msra.mxu0 %v8435
    %8487 = vmatprep.subr.bf16.mxu0 0
    %8488 = vmatpush1.bf16.msra.mxu0 0
    %8489 = vmatprep.subr.bf16.mxu0 0
    %8490 = vmatpush1.bf16.msra.mxu0 0
    %8491 = vmatprep.subr.bf16.mxu0 0
    %8492 = vmatpush1.bf16.msra.mxu0 0
    %8493 = vmatprep.subr.bf16.mxu0 0
    %8494 = vmatpush1.bf16.msra.mxu0 0
    %8495 = vmatprep.subr.bf16.mxu0 0
    %8496 = vmatpush1.bf16.msra.mxu0 0
    %8497 = vmatprep.subr.bf16.mxu0 0
    %8498 = vmatpush1.bf16.msra.mxu0 0
    %8499 = vmatprep.subr.bf16.mxu0 0
    %8500 = vmatpush1.bf16.msra.mxu0 0
    %8501 = vmatprep.subr.bf16.mxu0 0
    %8502 = vmatpush1.bf16.msra.mxu0 0
    %8503 = vmatprep.mubr.bf16.mxu0 0
    %8504 = vmatmul.mubr.bf16.gmra.mrb[0].mxu0 %v8278
    %v8505 = vpop.f32.mrb[0].mxu0
    %v8506 = vadd.f32 0.0, %v8505
    %v8507 = vpop.f32.mrb[0].mxu0
    %v8508 = vadd.f32 0.0, %v8507
    %v8509 = vpop.f32.mrb[0].mxu0
    %v8510 = vpop.f32.mrb[0].mxu0
    %8511 = vdwg.mxu0
    %8512 = vmatprep.subr.bf16.mxu0 %v8410
    %8513 = vmatpush1.bf16.msra.mxu0 %v8409
    %8514 = vmatprep.subr.bf16.mxu0 %v8414
    %8515 = vmatpush1.bf16.msra.mxu0 %v8413
    %8516 = vmatprep.subr.bf16.mxu0 %v8418
    %8517 = vmatpush1.bf16.msra.mxu0 %v8417
    %8518 = vmatprep.subr.bf16.mxu0 %v8422
    %8519 = vmatpush1.bf16.msra.mxu0 %v8421
    %8520 = vmatprep.subr.bf16.mxu0 %v8426
    %8521 = vmatpush1.bf16.msra.mxu0 %v8425
    %8522 = vmatprep.subr.bf16.mxu0 %v8430
    %8523 = vmatpush1.bf16.msra.mxu0 %v8429
    %8524 = vmatprep.subr.bf16.mxu0 %v8434
    %8525 = vmatpush1.bf16.msra.mxu0 %v8433
    %8526 = vmatprep.subr.bf16.mxu0 %v8438
    %8527 = vmatpush1.bf16.msra.mxu0 %v8437
    %8528 = vmatprep.subr.bf16.mxu0 0
    %8529 = vmatpush1.bf16.msra.mxu0 0
    %8530 = vmatprep.subr.bf16.mxu0 0
    %8531 = vmatpush1.bf16.msra.mxu0 0
    %8532 = vmatprep.subr.bf16.mxu0 0
    %8533 = vmatpush1.bf16.msra.mxu0 0
    %8534 = vmatprep.subr.bf16.mxu0 0
    %8535 = vmatpush1.bf16.msra.mxu0 0
    %8536 = vmatprep.subr.bf16.mxu0 0
    %8537 = vmatpush1.bf16.msra.mxu0 0
    %8538 = vmatprep.subr.bf16.mxu0 0
    %8539 = vmatpush1.bf16.msra.mxu0 0
    %8540 = vmatprep.subr.bf16.mxu0 0
    %8541 = vmatpush1.bf16.msra.mxu0 0
    %8542 = vmatprep.subr.bf16.mxu0 0
    %8543 = vmatpush1.bf16.msra.mxu0 0
    %8544 = vmatprep.mubr.bf16.mxu0 0
    %8545 = vmatmul.mubr.bf16.gmra.mrb[0].mxu0 %v8278
    %v8546 = vpop.f32.mrb[0].mxu0
    %v8547 = vadd.f32 0.0, %v8546
    %v8548 = vpop.f32.mrb[0].mxu0
    %v8549 = vadd.f32 0.0, %v8548
    %v8550 = vpop.f32.mrb[0].mxu0
    %v8551 = vpop.f32.mrb[0].mxu0
    %8552 = vdwg.mxu0
    %v8553 = vadd.f32 %v8274, %v8506
    %v8554 = vadd.f32 %v8275, %v8508
    %v8555 = vadd.f32 %v8276, %v8547
    %v8556 = vadd.f32 %v8277, %v8549
    %v8557 = vxor.u32 %v8553, 2147483648
    %v8558 = vxor.u32 %v8554, 2147483648
    %v8559 = vxor.u32 %v8555, 2147483648
    %v8560 = vmul.f32 %v8557, 1.442695
    %v8561 = vpow.pop %v8560
    %v8562 = vmul.f32 %v8558, 1.442695
    %v8563 = vpow.pop %v8562
    %v8564 = vmul.f32 %v8559, 1.442695
    %v8565 = vpow.pop %v8564
    %v8566 = vadd.f32 %v8561, 1.0
    %v8567 = vadd.f32 %v8563, 1.0
    %v8568 = vadd.f32 %v8565, 1.0
    %v8569 = vrcp.pop %v8566
    %v8570 = vmul.f32 1.0, %v8569
    %v8571 = vrcp.pop %v8567
    %v8572 = vmul.f32 1.0, %v8571
    %v8573 = vrcp.pop %v8568
    %v8574 = vmul.f32 1.0, %v8573
    %v8575 = vtanh.pop %v8556
    %v8576 = vmul.f32 %v8572, %v8270
    %v8577 = vmul.f32 %v8570, %v8575
    %v8578 = vadd.f32 %v8576, %v8577
    %v8579 = vtanh.pop %v8578
    %v8580 = vmul.f32 %v8574, %v8579
    %8581 = vst [vmem:[%s2846] sm:$0xff] %v8580
    %v8582 = vld [vmem:[#allocation3] sm:$0xff]
    %v8583 = vld [vmem:[#allocation3 + $0x8] sm:$0xff]
    %v8584 = vld [vmem:[#allocation3 + $0x10] sm:$0xff]
    %v8585 = vld [vmem:[#allocation3 + $0x18] sm:$0xff]
    %v8586 = vld [vmem:[#allocation3 + $0x20] sm:$0xff]
    %v8587 = vld [vmem:[#allocation3 + $0x28] sm:$0xff]
    %v8588 = vld [vmem:[#allocation3 + $0x30] sm:$0xff]
    %v8589 = vld [vmem:[#allocation3 + $0x38] sm:$0xff]
    %v8590 = vpack.c.bf16 %v8583, %v8582
    %v8591 = vpack.c.bf16 %v8585, %v8584
    %v8592 = vpack.c.bf16 %v8587, %v8586
    %v8593 = vpack.c.bf16 %v8589, %v8588
    %v8594 = vld [vmem:[%s10] sm:$0xf]
    %v8595 = vld [vmem:[%s10 + $0x4] sm:$0xf]
    %v8596 = vld [vmem:[%s10 + $0x8] sm:$0xf]
    %v8597 = vld [vmem:[%s10 + $0xc] sm:$0xf]
    %v8598 = vld [vmem:[%s10 + $0x10] sm:$0xf]
    %v8599 = vld [vmem:[%s10 + $0x14] sm:$0xf]
    %v8600 = vld [vmem:[%s10 + $0x18] sm:$0xf]
    %v8601 = vld [vmem:[%s10 + $0x1c] sm:$0xf]
    %v8602 = vld [vmem:[%s10 + $0x20] sm:$0xf]
    %v8603 = vld [vmem:[%s10 + $0x24] sm:$0xf]
    %v8604 = vld [vmem:[%s10 + $0x28] sm:$0xf]
    %v8605 = vld [vmem:[%s10 + $0x2c] sm:$0xf]
    %v8606 = vld [vmem:[%s10 + $0x30] sm:$0xf]
    %v8607 = vld [vmem:[%s10 + $0x34] sm:$0xf]
    %v8608 = vld [vmem:[%s10 + $0x38] sm:$0xf]
    %v8609 = vld [vmem:[%s10 + $0x3c] sm:$0xf]
    %v8610 = vld [vmem:[%s11] sm:$0x1]
    %v8612 = vlaneseq
    %v8613 = vshrl.u32 %v8612, 7
    %v8614 = vsub.s32 0, %v8613
    %v8615 = vrot.slane %v8610, %v8614
    %v8633 = vunpack.c.l.b16 %v8594
    %v8634 = vunpack.c.l.b16 %v8595
    %v8635 = vunpack.c.l.b16 %v8596
    %v8636 = vunpack.c.l.b16 %v8597
    %v8637 = vunpack.c.l.b16 %v8598
    %v8638 = vunpack.c.l.b16 %v8599
    %v8639 = vunpack.c.l.b16 %v8600
    %v8640 = vunpack.c.l.b16 %v8601
    %v8641 = vunpack.c.l.b16 %v8602
    %v8642 = vunpack.c.l.b16 %v8603
    %v8643 = vunpack.c.l.b16 %v8604
    %v8644 = vunpack.c.l.b16 %v8605
    %v8645 = vunpack.c.l.b16 %v8606
    %v8646 = vunpack.c.l.b16 %v8607
    %v8647 = vunpack.c.l.b16 %v8608
    %v8648 = vunpack.c.l.b16 %v8609
    %v8649 = vpack.c.b16 %v8634, %v8633
    %v8650 = vpack.c.b16 %v8636, %v8635
    %v8651 = vpack.c.b16 %v8638, %v8637
    %v8652 = vpack.c.b16 %v8640, %v8639
    %v8653 = vpack.c.b16 %v8642, %v8641
    %v8654 = vpack.c.b16 %v8644, %v8643
    %v8655 = vpack.c.b16 %v8646, %v8645
    %v8656 = vpack.c.b16 %v8648, %v8647
    %8665 = vmatprep.subr.bf16.mxu0 0
    %8666 = vmatpush1.bf16.msra.mxu0 %v8649
    %8667 = vmatprep.subr.bf16.mxu0 0
    %8668 = vmatpush1.bf16.msra.mxu0 %v8650
    %8669 = vmatprep.subr.bf16.mxu0 0
    %8670 = vmatpush1.bf16.msra.mxu0 %v8651
    %8671 = vmatprep.subr.bf16.mxu0 0
    %8672 = vmatpush1.bf16.msra.mxu0 %v8652
    %8673 = vmatprep.subr.bf16.mxu0 0
    %8674 = vmatpush1.bf16.msra.mxu0 %v8653
    %8675 = vmatprep.subr.bf16.mxu0 0
    %8676 = vmatpush1.bf16.msra.mxu0 %v8654
    %8677 = vmatprep.subr.bf16.mxu0 0
    %8678 = vmatpush1.bf16.msra.mxu0 %v8655
    %8679 = vmatprep.subr.bf16.mxu0 0
    %8680 = vmatpush1.bf16.msra.mxu0 %v8656
    %8681 = vmatprep.subr.bf16.mxu0 0
    %8682 = vmatpush1.bf16.msra.mxu0 0
    %8683 = vmatprep.subr.bf16.mxu0 0
    %8684 = vmatpush1.bf16.msra.mxu0 0
    %8685 = vmatprep.subr.bf16.mxu0 0
    %8686 = vmatpush1.bf16.msra.mxu0 0
    %8687 = vmatprep.subr.bf16.mxu0 0
    %8688 = vmatpush1.bf16.msra.mxu0 0
    %8689 = vmatprep.subr.bf16.mxu0 0
    %8690 = vmatpush1.bf16.msra.mxu0 0
    %8691 = vmatprep.subr.bf16.mxu0 0
    %8692 = vmatpush1.bf16.msra.mxu0 0
    %8693 = vmatprep.subr.bf16.mxu0 0
    %8694 = vmatpush1.bf16.msra.mxu0 0
    %8695 = vmatprep.subr.bf16.mxu0 0
    %8696 = vmatpush1.bf16.msra.mxu0 0
    %8697 = vmatprep.mubr.bf16.mxu0 0
    %8698 = vmatmul.mubr.bf16.gmra.mrb[0].mxu0 %v8590
    %v8699 = vpop.f32.mrb[0].mxu0
    %v8700 = vadd.f32 %v8615, %v8699
    %v8701 = vpop.f32.mrb[0].mxu0
    %v8702 = vpop.f32.mrb[0].mxu0
    %v8703 = vadd.f32 %v8615, %v8702
    %v8704 = vpop.f32.mrb[0].mxu0
    %8705 = vmatprep.mubr.bf16.mxu0 0
    %8706 = vmatmul.mubr.bf16.gmra.mrb[0].mxu0 %v8591
    %v8707 = vpop.f32.mrb[0].mxu0
    %v8708 = vadd.f32 %v8615, %v8707
    %v8709 = vpop.f32.mrb[0].mxu0
    %v8710 = vpop.f32.mrb[0].mxu0
    %v8711 = vadd.f32 %v8615, %v8710
    %v8712 = vpop.f32.mrb[0].mxu0
    %8713 = vmatprep.mubr.bf16.mxu0 0
    %8714 = vmatmul.mubr.bf16.gmra.mrb[0].mxu0 %v8592
    %v8715 = vpop.f32.mrb[0].mxu0
    %v8716 = vadd.f32 %v8615, %v8715
    %v8717 = vpop.f32.mrb[0].mxu0
    %v8718 = vpop.f32.mrb[0].mxu0
    %v8719 = vadd.f32 %v8615, %v8718
    %v8720 = vpop.f32.mrb[0].mxu0
    %8721 = vmatprep.mubr.bf16.mxu0 0
    %8722 = vmatmul.mubr.bf16.gmra.mrb[0].mxu0 %v8593
    %v8723 = vpop.f32.mrb[0].mxu0
    %v8724 = vadd.f32 %v8615, %v8723
    %v8725 = vpop.f32.mrb[0].mxu0
    %v8726 = vpop.f32.mrb[0].mxu0
    %v8727 = vadd.f32 %v8615, %v8726
    %v8728 = vpop.f32.mrb[0].mxu0
    %8729 = vdwg.mxu0
    %8730 = vst [vmem:[%s12] sm:$0xff] %v8700
    %8731 = vst [vmem:[%s12 + $0x8] sm:$0xff] %v8703
    %8732 = vst [vmem:[%s12 + $0x10] sm:$0xff] %v8708
    %8733 = vst [vmem:[%s12 + $0x18] sm:$0xff] %v8711
    %8734 = vst [vmem:[%s12 + $0x20] sm:$0xff] %v8716
    %8735 = vst [vmem:[%s12 + $0x28] sm:$0xff] %v8719
    %8736 = vst [vmem:[%s12 + $0x30] sm:$0xff] %v8724
    %8737 = vst [vmem:[%s12 + $0x38] sm:$0xff] %v8727
    // Predicated region
    $region66: #{lstm_reg_forward.1} parent=1 // pred_check
      _
    $region67: #{lstm_reg_forward.1} parent=1 // pred_check_branch
      %8739 = sbr.rel (0) target = $region69
    $region68: #{lstm_reg_forward.1} parent=1 // pred_region
      _
    $region69: #{lstm_reg_forward.1} parent=1 // pred_fallthru
      _
    // Predicated region
    $region70: #{lstm_reg_forward.1} parent=1 // pred_check
      _
    $region71: #{lstm_reg_forward.1} parent=1 // pred_check_branch
      %8741 = sbr.rel (0) target = $region73
    $region72: #{lstm_reg_forward.1} parent=1 // pred_region
      _
    $region73: #{lstm_reg_forward.1} parent=1 // pred_fallthru
      _
    %8742 = vsyncpa [#allocation5], 1
    %8743 = vsyncpa [#allocation7], 1
    %8744 = vsyncpa [#allocation10], 1

</llo_original>
